<compile_context>
chip_gen: v7x
topology: tpu7x:2x2x1
jax: 0.10.0
libtpu: 0.0.40
codegen_flags: <defaults>
</compile_context>

<pallas_src>
import jax
import jax.numpy as jnp
from jax import lax
from jax.experimental import pallas as pl
from jax.experimental.pallas import tpu as pltpu


def _round_up(x, m):
    return (x + m - 1) // m * m


def _sigmoid(x):
    # sigmoid(x) = 0.5 * (tanh(x/2) + 1): single EUP op.
    return 0.5 * jnp.tanh(0.5 * x) + 0.5


# --------------------------------------------------------------------------
# Fused multi-layer LSTM + fc + sigmoid kernel (everything in VMEM).
# PyTorch gate ordering [i, f, g, o]; c' = f*c + i*g ; h' = o*tanh(c').
# --------------------------------------------------------------------------
def _make_fused_lstm_kernel(num_layers, seq_len, hp):
    def kernel(*args):
        # args: x_ref, (w_ref, b_ref) * L, fc_w_ref, fc_b_ref,
        #       out_ref, seq_scr, h_scr, c_scr
        x_ref = args[0]
        layer_refs = args[1:1 + 2 * num_layers]
        fc_w_ref = args[1 + 2 * num_layers]
        fc_b_ref = args[2 + 2 * num_layers]
        out_ref = args[3 + 2 * num_layers]
        seq_scr = args[4 + 2 * num_layers]   # (T, Bp, Hp) inter-layer sequence
        h_scr = args[5 + 2 * num_layers]     # (Bp, Hp)
        c_scr = args[6 + 2 * num_layers]     # (Bp, Hp)

        for l in range(num_layers):
            w_ref = layer_refs[2 * l]        # (Din_p + Hp, 4*Hp) stacked
            b_ref = layer_refs[2 * l + 1]    # (1, 4*Hp)
            is_first = (l == 0)
            is_last = (l == num_layers - 1)

            h_scr[...] = jnp.zeros_like(h_scr)
            c_scr[...] = jnp.zeros_like(c_scr)

            bias = b_ref[...]                # hoisted out of the time loop

            def step(t, carry, *, w_ref=w_ref, bias=bias,
                     is_first=is_first, is_last=is_last):
                x_t = x_ref[t] if is_first else seq_scr[t]   # (Bp, Din_p)
                h = h_scr[...]
                c = c_scr[...]
                xh = jnp.concatenate([x_t, h], axis=-1)      # lane-aligned
                gates = jnp.dot(xh, w_ref[...],
                                preferred_element_type=jnp.float32) + bias
                # 128-aligned gate slices (Hp is a multiple of 128).
                i_g = _sigmoid(gates[:, 0 * hp:1 * hp])
                f_g = _sigmoid(gates[:, 1 * hp:2 * hp])
                g_g = jnp.tanh(gates[:, 2 * hp:3 * hp])
                o_g = _sigmoid(gates[:, 3 * hp:4 * hp])
                c_new = f_g * c + i_g * g_g
                h_new = o_g * jnp.tanh(c_new)
                h_scr[...] = h_new
                c_scr[...] = c_new
                if not is_last:
                    # Only non-final layers need the full sequence (in VMEM).
                    seq_scr[t] = h_new
                return carry

            lax.fori_loop(0, seq_len, step, 0, unroll=True)

        # fc + sigmoid on the final hidden state: VPU multiply + lane reduce.
        h_last = h_scr[...]                                   # (Bp, Hp)
        logits = jnp.sum(h_last * fc_w_ref[...], axis=-1, keepdims=True)
        logits = logits + fc_b_ref[...]
        out_ref[...] = _sigmoid(logits)

    return kernel


# --------------------------------------------------------------------------
# Parameter init (PyTorch-style layout) and one-time packing (transpose,
# stack, pad) so the per-call forward does no weight reshaping.
# --------------------------------------------------------------------------
def init_params(key, input_size, hidden_size, num_layers):
    params = {"layers": []}
    bound = 1.0 / jnp.sqrt(hidden_size)
    for l in range(num_layers):
        d_in = input_size if l == 0 else hidden_size
        key, k1, k2, k3, k4 = jax.random.split(key, 5)
        params["layers"].append(dict(
            w_ih=jax.random.uniform(k1, (4 * hidden_size, d_in),
                                    jnp.float32, -bound, bound),
            w_hh=jax.random.uniform(k2, (4 * hidden_size, hidden_size),
                                    jnp.float32, -bound, bound),
            b_ih=jax.random.uniform(k3, (4 * hidden_size,),
                                    jnp.float32, -bound, bound),
            b_hh=jax.random.uniform(k4, (4 * hidden_size,),
                                    jnp.float32, -bound, bound),
        ))
    key, k5, k6 = jax.random.split(key, 3)
    params["fc_w"] = jax.random.uniform(k5, (1, hidden_size),
                                        jnp.float32, -bound, bound)
    params["fc_b"] = jax.random.uniform(k6, (1,), jnp.float32, -bound, bound)
    return params


def pack_params(params, input_size, hidden_size):
    """Build stacked [W_ih^T; W_hh^T] weights, padded to lane-aligned shapes.
    Gate k occupies lanes [k*Hp, k*Hp+H); padded lanes/rows are zero (exact)."""
    H = hidden_size
    Hp = _round_up(H, 128)
    packed = {"w": [], "b": []}
    for l, layer in enumerate(params["layers"]):
        d_in = input_size if l == 0 else hidden_size
        Dp = _round_up(d_in, 128)
        wih_t = jnp.transpose(layer["w_ih"]).reshape(d_in, 4, H)
        whh_t = jnp.transpose(layer["w_hh"]).reshape(H, 4, H)
        w = jnp.zeros((Dp + Hp, 4, Hp), jnp.float32)
        w = w.at[:d_in, :, :H].set(wih_t)
        w = w.at[Dp:Dp + H, :, :H].set(whh_t)
        packed["w"].append(w.reshape(Dp + Hp, 4 * Hp))
        b = (layer["b_ih"] + layer["b_hh"]).reshape(4, H)
        b_pad = jnp.zeros((4, Hp), jnp.float32).at[:, :H].set(b)
        packed["b"].append(b_pad.reshape(1, 4 * Hp))
    packed["fc_w"] = jnp.zeros((1, Hp), jnp.float32).at[:, :H].set(
        params["fc_w"].astype(jnp.float32))
    packed["fc_b"] = params["fc_b"].reshape(1, 1).astype(jnp.float32)
    return packed


# --------------------------------------------------------------------------
# Forward
# --------------------------------------------------------------------------
@jax.jit
def lstm_model_forward(packed, x):
    """x: (B, T, input_size), batch_first like the PyTorch module."""
    layer_ws, layer_bs = packed["w"], packed["b"]
    fc_w, fc_b = packed["fc_w"], packed["fc_b"]
    num_layers = len(layer_ws)
    hp = fc_w.shape[1]
    dp = layer_ws[0].shape[0] - hp

    B, T, D = x.shape
    bp = _round_up(max(B, 8), 8)

    # time-major, zero-padded to (T, Bp, Dp)
    x_tm = jnp.transpose(x, (1, 0, 2)).astype(jnp.float32)
    x_pad = jnp.zeros((T, bp, dp), jnp.float32).at[:, :B, :D].set(x_tm)

    kernel = _make_fused_lstm_kernel(num_layers, T, hp)

    in_specs = [pl.BlockSpec((T, bp, dp), lambda: (0, 0, 0))]
    operands = [x_pad]
    for w, b in zip(layer_ws, layer_bs):
        in_specs.append(pl.BlockSpec(w.shape, lambda: (0, 0)))
        in_specs.append(pl.BlockSpec(b.shape, lambda: (0, 0)))
        operands.append(w)
        operands.append(b)
    in_specs.append(pl.BlockSpec(fc_w.shape, lambda: (0, 0)))
    in_specs.append(pl.BlockSpec(fc_b.shape, lambda: (0, 0)))
    operands.append(fc_w)
    operands.append(fc_b)

    out_pad = pl.pallas_call(
        kernel,
        out_shape=jax.ShapeDtypeStruct((bp, 1), jnp.float32),
        grid=(),
        in_specs=in_specs,
        out_specs=pl.BlockSpec((bp, 1), lambda: (0, 0)),
        scratch_shapes=[
            pltpu.VMEM((T, bp, hp), jnp.float32),   # inter-layer sequence
            pltpu.VMEM((bp, hp), jnp.float32),      # h
            pltpu.VMEM((bp, hp), jnp.float32),      # c
        ],
    )(*operands)
    return out_pad[:B]


# --------------------------------------------------------------------------
# Pure-JAX reference (PyTorch semantics) for a correctness check.
# --------------------------------------------------------------------------
def reference_forward(params, x):
    B, T, _ = x.shape
    H = params["layers"][0]["w_hh"].shape[1]
    seq = x.astype(jnp.float32)
    h = jnp.zeros((B, H), jnp.float32)
    for layer in params["layers"]:
        w_ih, w_hh = layer["w_ih"], layer["w_hh"]
        b = layer["b_ih"] + layer["b_hh"]
        h = jnp.zeros((B, H), jnp.float32)
        c = jnp.zeros((B, H), jnp.float32)
        outs = []
        for t in range(T):
            gates = seq[:, t] @ w_ih.T + h @ w_hh.T + b
            i = jax.nn.sigmoid(gates[:, 0 * H:1 * H])
            f = jax.nn.sigmoid(gates[:, 1 * H:2 * H])
            g = jnp.tanh(gates[:, 2 * H:3 * H])
            o = jax.nn.sigmoid(gates[:, 3 * H:4 * H])
            c = f * c + i * g
            h = o * jnp.tanh(c)
            outs.append(h)
        seq = jnp.stack(outs, axis=1)
    return jax.nn.sigmoid(h @ params["fc_w"].T + params["fc_b"])


if __name__ == "__main__":
    batch, seq_len, input_size, hidden_size, num_layers = 2, 8, 4, 32, 2

    key = jax.random.PRNGKey(0)
    key, kx = jax.random.split(key)
    x = jax.random.normal(kx, (batch, seq_len, input_size), jnp.float32)

    params = init_params(key, input_size, hidden_size, num_layers)
    packed = pack_params(params, input_size, hidden_size)   # one-time prep

    out = lstm_model_forward(packed, x)
    jax.block_until_ready(out)
    assert out.shape == (batch, 1)

    ref = reference_forward(params, x)
    max_err = float(jnp.max(jnp.abs(out - ref)))
    assert max_err < 5e-2, f"mismatch vs reference: {max_err}"
    print("KERNEL_OK")
</pallas_src>

<mosaic_0001>
module attributes {stable_mosaic.version = 11 : i64} {
  func.func @kernel(%arg0: memref<8x8x128xf32, #tpu.memory_space<vmem>>, %arg1: memref<256x512xf32, #tpu.memory_space<vmem>>, %arg2: memref<1x512xf32, #tpu.memory_space<vmem>>, %arg3: memref<256x512xf32, #tpu.memory_space<vmem>>, %arg4: memref<1x512xf32, #tpu.memory_space<vmem>>, %arg5: memref<1x128xf32, #tpu.memory_space<vmem>>, %arg6: memref<1x1xf32, #tpu.memory_space<vmem>>, %arg7: memref<8x1xf32, #tpu.memory_space<vmem>>, %arg8: memref<8x8x128xf32, #tpu.memory_space<vmem>>, %arg9: memref<8x128xf32, #tpu.memory_space<vmem>>, %arg10: memref<8x128xf32, #tpu.memory_space<vmem>>) attributes {dimension_semantics = [], scalar_prefetch = 0 : i64, scratch_operands = 3 : i64, tpu.core_type = #tpu.core_type<tc>} {
    %cst = arith.constant 0.000000e+00 : f32
    %0 = vector.broadcast %cst : f32 to vector<8x128xf32>
    %c0 = arith.constant 0 : index
    %c0_0 = arith.constant 0 : index
    %1 = vector.load %arg9[%c0, %c0_0] : memref<8x128xf32, #tpu.memory_space<vmem>>, vector<8x128xf32>
    tpu.vector_store %arg9[%c0, %c0_0], %0 {strides = array<i32>} : memref<8x128xf32, #tpu.memory_space<vmem>>, vector<8x128xf32>,
    %cst_1 = arith.constant 0.000000e+00 : f32
    %2 = vector.broadcast %cst_1 : f32 to vector<8x128xf32>
    %c0_2 = arith.constant 0 : index
    %c0_3 = arith.constant 0 : index
    %3 = vector.load %arg10[%c0_2, %c0_3] : memref<8x128xf32, #tpu.memory_space<vmem>>, vector<8x128xf32>
    tpu.vector_store %arg10[%c0_2, %c0_3], %2 {strides = array<i32>} : memref<8x128xf32, #tpu.memory_space<vmem>>, vector<8x128xf32>,
    %c0_4 = arith.constant 0 : index
    %c0_5 = arith.constant 0 : index
    %4 = vector.load %arg2[%c0_4, %c0_5] : memref<1x512xf32, #tpu.memory_space<vmem>>, vector<1x512xf32>
    %c0_i32 = arith.constant 0 : i32
    %5 = arith.index_cast %c0_i32 : i32 to index
    %c0_6 = arith.constant 0 : index
    %c0_7 = arith.constant 0 : index
    %6 = vector.load %arg0[%5, %c0_6, %c0_7] : memref<8x8x128xf32, #tpu.memory_space<vmem>>, vector<1x8x128xf32>
    %7 = vector.shape_cast %6 : vector<1x8x128xf32> to vector<8x128xf32>
    %c0_8 = arith.constant 0 : index
    %c0_9 = arith.constant 0 : index
    %8 = vector.load %arg9[%c0_8, %c0_9] : memref<8x128xf32, #tpu.memory_space<vmem>>, vector<8x128xf32>
    %c0_10 = arith.constant 0 : index
    %c0_11 = arith.constant 0 : index
    %9 = vector.load %arg10[%c0_10, %c0_11] : memref<8x128xf32, #tpu.memory_space<vmem>>, vector<8x128xf32>
    %10 = tpu.concatenate %7, %8 in 1 : vector<8x128xf32>, vector<8x128xf32> -> vector<8x256xf32>
    %c0_12 = arith.constant 0 : index
    %c0_13 = arith.constant 0 : index
    %11 = vector.load %arg1[%c0_12, %c0_13] : memref<256x512xf32, #tpu.memory_space<vmem>>, vector<256x512xf32>
    %cst_14 = arith.constant dense<0.000000e+00> : vector<8x512xf32>
    %12 = tpu.matmul %10, %11, %cst_14 {dimension_numbers = #tpu.dot_dimension_numbers<[1], [0], [0], [1], [0, 0, 1, 1], [], []>} : vector<8x256xf32>, vector<256x512xf32>, vector<8x512xf32> -> vector<8x512xf32>
    %13 = vector.broadcast %4 : vector<1x512xf32> to vector<8x512xf32>
    %14 = arith.addf %12, %13 : vector<8x512xf32>
    %15 = vector.extract_strided_slice %14 {offsets = [0, 0], sizes = [8, 128], strides = [1, 1]} : vector<8x512xf32> to vector<8x128xf32>
    %cst_15 = arith.constant 5.000000e-01 : f32
    %16 = vector.broadcast %cst_15 : f32 to vector<8x128xf32>
    %17 = arith.mulf %16, %15 : vector<8x128xf32>
    %18 = math.tanh %17 : vector<8x128xf32>
    %cst_16 = arith.constant 5.000000e-01 : f32
    %19 = vector.broadcast %cst_16 : f32 to vector<8x128xf32>
    %20 = arith.mulf %19, %18 : vector<8x128xf32>
    %cst_17 = arith.constant 5.000000e-01 : f32
    %21 = vector.broadcast %cst_17 : f32 to vector<8x128xf32>
    %22 = arith.addf %20, %21 : vector<8x128xf32>
    %23 = vector.extract_strided_slice %14 {offsets = [0, 128], sizes = [8, 128], strides = [1, 1]} : vector<8x512xf32> to vector<8x128xf32>
    %cst_18 = arith.constant 5.000000e-01 : f32
    %24 = vector.broadcast %cst_18 : f32 to vector<8x128xf32>
    %25 = arith.mulf %24, %23 : vector<8x128xf32>
    %26 = math.tanh %25 : vector<8x128xf32>
    %cst_19 = arith.constant 5.000000e-01 : f32
    %27 = vector.broadcast %cst_19 : f32 to vector<8x128xf32>
    %28 = arith.mulf %27, %26 : vector<8x128xf32>
    %cst_20 = arith.constant 5.000000e-01 : f32
    %29 = vector.broadcast %cst_20 : f32 to vector<8x128xf32>
    %30 = arith.addf %28, %29 : vector<8x128xf32>
    %31 = vector.extract_strided_slice %14 {offsets = [0, 256], sizes = [8, 128], strides = [1, 1]} : vector<8x512xf32> to vector<8x128xf32>
    %32 = math.tanh %31 : vector<8x128xf32>
    %33 = vector.extract_strided_slice %14 {offsets = [0, 384], sizes = [8, 128], strides = [1, 1]} : vector<8x512xf32> to vector<8x128xf32>
    %cst_21 = arith.constant 5.000000e-01 : f32
    %34 = vector.broadcast %cst_21 : f32 to vector<8x128xf32>
    %35 = arith.mulf %34, %33 : vector<8x128xf32>
    %36 = math.tanh %35 : vector<8x128xf32>
    %cst_22 = arith.constant 5.000000e-01 : f32
    %37 = vector.broadcast %cst_22 : f32 to vector<8x128xf32>
    %38 = arith.mulf %37, %36 : vector<8x128xf32>
    %cst_23 = arith.constant 5.000000e-01 : f32
    %39 = vector.broadcast %cst_23 : f32 to vector<8x128xf32>
    %40 = arith.addf %38, %39 : vector<8x128xf32>
    %41 = arith.mulf %30, %9 : vector<8x128xf32>
    %42 = arith.mulf %22, %32 : vector<8x128xf32>
    %43 = arith.addf %41, %42 : vector<8x128xf32>
    %44 = math.tanh %43 : vector<8x128xf32>
    %45 = arith.mulf %40, %44 : vector<8x128xf32>
    %c0_24 = arith.constant 0 : index
    %c0_25 = arith.constant 0 : index
    %46 = vector.load %arg9[%c0_24, %c0_25] : memref<8x128xf32, #tpu.memory_space<vmem>>, vector<8x128xf32>
    tpu.vector_store %arg9[%c0_24, %c0_25], %45 {strides = array<i32>} : memref<8x128xf32, #tpu.memory_space<vmem>>, vector<8x128xf32>,
    %c0_26 = arith.constant 0 : index
    %c0_27 = arith.constant 0 : index
    %47 = vector.load %arg10[%c0_26, %c0_27] : memref<8x128xf32, #tpu.memory_space<vmem>>, vector<8x128xf32>
    tpu.vector_store %arg10[%c0_26, %c0_27], %43 {strides = array<i32>} : memref<8x128xf32, #tpu.memory_space<vmem>>, vector<8x128xf32>,
    %48 = arith.index_cast %c0_i32 : i32 to index
    %c0_28 = arith.constant 0 : index
    %c0_29 = arith.constant 0 : index
    %49 = vector.load %arg8[%48, %c0_28, %c0_29] : memref<8x8x128xf32, #tpu.memory_space<vmem>>, vector<1x8x128xf32>
    %50 = vector.shape_cast %49 : vector<1x8x128xf32> to vector<8x128xf32>
    %51 = vector.shape_cast %45 : vector<8x128xf32> to vector<1x8x128xf32>
    tpu.vector_store %arg8[%48, %c0_28, %c0_29], %51 {strides = array<i32>} : memref<8x8x128xf32, #tpu.memory_space<vmem>>, vector<1x8x128xf32>,
    %c1_i32 = arith.constant 1 : i32
    %52 = arith.index_cast %c1_i32 : i32 to index
    %c0_30 = arith.constant 0 : index
    %c0_31 = arith.constant 0 : index
    %53 = vector.load %arg0[%52, %c0_30, %c0_31] : memref<8x8x128xf32, #tpu.memory_space<vmem>>, vector<1x8x128xf32>
    %54 = vector.shape_cast %53 : vector<1x8x128xf32> to vector<8x128xf32>
    %c0_32 = arith.constant 0 : index
    %c0_33 = arith.constant 0 : index
    %55 = vector.load %arg9[%c0_32, %c0_33] : memref<8x128xf32, #tpu.memory_space<vmem>>, vector<8x128xf32>
    %c0_34 = arith.constant 0 : index
    %c0_35 = arith.constant 0 : index
    %56 = vector.load %arg10[%c0_34, %c0_35] : memref<8x128xf32, #tpu.memory_space<vmem>>, vector<8x128xf32>
    %57 = tpu.concatenate %54, %55 in 1 : vector<8x128xf32>, vector<8x128xf32> -> vector<8x256xf32>
    %c0_36 = arith.constant 0 : index
    %c0_37 = arith.constant 0 : index
    %58 = vector.load %arg1[%c0_36, %c0_37] : memref<256x512xf32, #tpu.memory_space<vmem>>, vector<256x512xf32>
    %cst_38 = arith.constant dense<0.000000e+00> : vector<8x512xf32>
    %59 = tpu.matmul %57, %58, %cst_38 {dimension_numbers = #tpu.dot_dimension_numbers<[1], [0], [0], [1], [0, 0, 1, 1], [], []>} : vector<8x256xf32>, vector<256x512xf32>, vector<8x512xf32> -> vector<8x512xf32>
    %60 = vector.broadcast %4 : vector<1x512xf32> to vector<8x512xf32>
    %61 = arith.addf %59, %60 : vector<8x512xf32>
    %62 = vector.extract_strided_slice %61 {offsets = [0, 0], sizes = [8, 128], strides = [1, 1]} : vector<8x512xf32> to vector<8x128xf32>
    %cst_39 = arith.constant 5.000000e-01 : f32
    %63 = vector.broadcast %cst_39 : f32 to vector<8x128xf32>
    %64 = arith.mulf %63, %62 : vector<8x128xf32>
    %65 = math.tanh %64 : vector<8x128xf32>
    %cst_40 = arith.constant 5.000000e-01 : f32
    %66 = vector.broadcast %cst_40 : f32 to vector<8x128xf32>
    %67 = arith.mulf %66, %65 : vector<8x128xf32>
    %cst_41 = arith.constant 5.000000e-01 : f32
    %68 = vector.broadcast %cst_41 : f32 to vector<8x128xf32>
    %69 = arith.addf %67, %68 : vector<8x128xf32>
    %70 = vector.extract_strided_slice %61 {offsets = [0, 128], sizes = [8, 128], strides = [1, 1]} : vector<8x512xf32> to vector<8x128xf32>
    %cst_42 = arith.constant 5.000000e-01 : f32
    %71 = vector.broadcast %cst_42 : f32 to vector<8x128xf32>
    %72 = arith.mulf %71, %70 : vector<8x128xf32>
    %73 = math.tanh %72 : vector<8x128xf32>
    %cst_43 = arith.constant 5.000000e-01 : f32
    %74 = vector.broadcast %cst_43 : f32 to vector<8x128xf32>
    %75 = arith.mulf %74, %73 : vector<8x128xf32>
    %cst_44 = arith.constant 5.000000e-01 : f32
    %76 = vector.broadcast %cst_44 : f32 to vector<8x128xf32>
    %77 = arith.addf %75, %76 : vector<8x128xf32>
    %78 = vector.extract_strided_slice %61 {offsets = [0, 256], sizes = [8, 128], strides = [1, 1]} : vector<8x512xf32> to vector<8x128xf32>
    %79 = math.tanh %78 : vector<8x128xf32>
    %80 = vector.extract_strided_slice %61 {offsets = [0, 384], sizes = [8, 128], strides = [1, 1]} : vector<8x512xf32> to vector<8x128xf32>
    %cst_45 = arith.constant 5.000000e-01 : f32
    %81 = vector.broadcast %cst_45 : f32 to vector<8x128xf32>
    %82 = arith.mulf %81, %80 : vector<8x128xf32>
    %83 = math.tanh %82 : vector<8x128xf32>
    %cst_46 = arith.constant 5.000000e-01 : f32
    %84 = vector.broadcast %cst_46 : f32 to vector<8x128xf32>
    %85 = arith.mulf %84, %83 : vector<8x128xf32>
    %cst_47 = arith.constant 5.000000e-01 : f32
    %86 = vector.broadcast %cst_47 : f32 to vector<8x128xf32>
    %87 = arith.addf %85, %86 : vector<8x128xf32>
    %88 = arith.mulf %77, %56 : vector<8x128xf32>
    %89 = arith.mulf %69, %79 : vector<8x128xf32>
    %90 = arith.addf %88, %89 : vector<8x128xf32>
    %91 = math.tanh %90 : vector<8x128xf32>
    %92 = arith.mulf %87, %91 : vector<8x128xf32>
    %c0_48 = arith.constant 0 : index
    %c0_49 = arith.constant 0 : index
    %93 = vector.load %arg9[%c0_48, %c0_49] : memref<8x128xf32, #tpu.memory_space<vmem>>, vector<8x128xf32>
    tpu.vector_store %arg9[%c0_48, %c0_49], %92 {strides = array<i32>} : memref<8x128xf32, #tpu.memory_space<vmem>>, vector<8x128xf32>,
    %c0_50 = arith.constant 0 : index
    %c0_51 = arith.constant 0 : index
    %94 = vector.load %arg10[%c0_50, %c0_51] : memref<8x128xf32, #tpu.memory_space<vmem>>, vector<8x128xf32>
    tpu.vector_store %arg10[%c0_50, %c0_51], %90 {strides = array<i32>} : memref<8x128xf32, #tpu.memory_space<vmem>>, vector<8x128xf32>,
    %95 = arith.index_cast %c1_i32 : i32 to index
    %c0_52 = arith.constant 0 : index
    %c0_53 = arith.constant 0 : index
    %96 = vector.load %arg8[%95, %c0_52, %c0_53] : memref<8x8x128xf32, #tpu.memory_space<vmem>>, vector<1x8x128xf32>
    %97 = vector.shape_cast %96 : vector<1x8x128xf32> to vector<8x128xf32>
    %98 = vector.shape_cast %92 : vector<8x128xf32> to vector<1x8x128xf32>
    tpu.vector_store %arg8[%95, %c0_52, %c0_53], %98 {strides = array<i32>} : memref<8x8x128xf32, #tpu.memory_space<vmem>>, vector<1x8x128xf32>,
    %c2_i32 = arith.constant 2 : i32
    %99 = arith.index_cast %c2_i32 : i32 to index
    %c0_54 = arith.constant 0 : index
    %c0_55 = arith.constant 0 : index
    %100 = vector.load %arg0[%99, %c0_54, %c0_55] : memref<8x8x128xf32, #tpu.memory_space<vmem>>, vector<1x8x128xf32>
    %101 = vector.shape_cast %100 : vector<1x8x128xf32> to vector<8x128xf32>
    %c0_56 = arith.constant 0 : index
    %c0_57 = arith.constant 0 : index
    %102 = vector.load %arg9[%c0_56, %c0_57] : memref<8x128xf32, #tpu.memory_space<vmem>>, vector<8x128xf32>
    %c0_58 = arith.constant 0 : index
    %c0_59 = arith.constant 0 : index
    %103 = vector.load %arg10[%c0_58, %c0_59] : memref<8x128xf32, #tpu.memory_space<vmem>>, vector<8x128xf32>
    %104 = tpu.concatenate %101, %102 in 1 : vector<8x128xf32>, vector<8x128xf32> -> vector<8x256xf32>
    %c0_60 = arith.constant 0 : index
    %c0_61 = arith.constant 0 : index
    %105 = vector.load %arg1[%c0_60, %c0_61] : memref<256x512xf32, #tpu.memory_space<vmem>>, vector<256x512xf32>
    %cst_62 = arith.constant dense<0.000000e+00> : vector<8x512xf32>
    %106 = tpu.matmul %104, %105, %cst_62 {dimension_numbers = #tpu.dot_dimension_numbers<[1], [0], [0], [1], [0, 0, 1, 1], [], []>} : vector<8x256xf32>, vector<256x512xf32>, vector<8x512xf32> -> vector<8x512xf32>
    %107 = vector.broadcast %4 : vector<1x512xf32> to vector<8x512xf32>
    %108 = arith.addf %106, %107 : vector<8x512xf32>
    %109 = vector.extract_strided_slice %108 {offsets = [0, 0], sizes = [8, 128], strides = [1, 1]} : vector<8x512xf32> to vector<8x128xf32>
    %cst_63 = arith.constant 5.000000e-01 : f32
    %110 = vector.broadcast %cst_63 : f32 to vector<8x128xf32>
    %111 = arith.mulf %110, %109 : vector<8x128xf32>
    %112 = math.tanh %111 : vector<8x128xf32>
    %cst_64 = arith.constant 5.000000e-01 : f32
    %113 = vector.broadcast %cst_64 : f32 to vector<8x128xf32>
    %114 = arith.mulf %113, %112 : vector<8x128xf32>
    %cst_65 = arith.constant 5.000000e-01 : f32
    %115 = vector.broadcast %cst_65 : f32 to vector<8x128xf32>
    %116 = arith.addf %114, %115 : vector<8x128xf32>
    %117 = vector.extract_strided_slice %108 {offsets = [0, 128], sizes = [8, 128], strides = [1, 1]} : vector<8x512xf32> to vector<8x128xf32>
    %cst_66 = arith.constant 5.000000e-01 : f32
    %118 = vector.broadcast %cst_66 : f32 to vector<8x128xf32>
    %119 = arith.mulf %118, %117 : vector<8x128xf32>
    %120 = math.tanh %119 : vector<8x128xf32>
    %cst_67 = arith.constant 5.000000e-01 : f32
    %121 = vector.broadcast %cst_67 : f32 to vector<8x128xf32>
    %122 = arith.mulf %121, %120 : vector<8x128xf32>
    %cst_68 = arith.constant 5.000000e-01 : f32
    %123 = vector.broadcast %cst_68 : f32 to vector<8x128xf32>
    %124 = arith.addf %122, %123 : vector<8x128xf32>
    %125 = vector.extract_strided_slice %108 {offsets = [0, 256], sizes = [8, 128], strides = [1, 1]} : vector<8x512xf32> to vector<8x128xf32>
    %126 = math.tanh %125 : vector<8x128xf32>
    %127 = vector.extract_strided_slice %108 {offsets = [0, 384], sizes = [8, 128], strides = [1, 1]} : vector<8x512xf32> to vector<8x128xf32>
    %cst_69 = arith.constant 5.000000e-01 : f32
    %128 = vector.broadcast %cst_69 : f32 to vector<8x128xf32>
    %129 = arith.mulf %128, %127 : vector<8x128xf32>
    %130 = math.tanh %129 : vector<8x128xf32>
    %cst_70 = arith.constant 5.000000e-01 : f32
    %131 = vector.broadcast %cst_70 : f32 to vector<8x128xf32>
    %132 = arith.mulf %131, %130 : vector<8x128xf32>
    %cst_71 = arith.constant 5.000000e-01 : f32
    %133 = vector.broadcast %cst_71 : f32 to vector<8x128xf32>
    %134 = arith.addf %132, %133 : vector<8x128xf32>
    %135 = arith.mulf %124, %103 : vector<8x128xf32>
    %136 = arith.mulf %116, %126 : vector<8x128xf32>
    %137 = arith.addf %135, %136 : vector<8x128xf32>
    %138 = math.tanh %137 : vector<8x128xf32>
    %139 = arith.mulf %134, %138 : vector<8x128xf32>
    %c0_72 = arith.constant 0 : index
    %c0_73 = arith.constant 0 : index
    %140 = vector.load %arg9[%c0_72, %c0_73] : memref<8x128xf32, #tpu.memory_space<vmem>>, vector<8x128xf32>
    tpu.vector_store %arg9[%c0_72, %c0_73], %139 {strides = array<i32>} : memref<8x128xf32, #tpu.memory_space<vmem>>, vector<8x128xf32>,
    %c0_74 = arith.constant 0 : index
    %c0_75 = arith.constant 0 : index
    %141 = vector.load %arg10[%c0_74, %c0_75] : memref<8x128xf32, #tpu.memory_space<vmem>>, vector<8x128xf32>
    tpu.vector_store %arg10[%c0_74, %c0_75], %137 {strides = array<i32>} : memref<8x128xf32, #tpu.memory_space<vmem>>, vector<8x128xf32>,
    %142 = arith.index_cast %c2_i32 : i32 to index
    %c0_76 = arith.constant 0 : index
    %c0_77 = arith.constant 0 : index
    %143 = vector.load %arg8[%142, %c0_76, %c0_77] : memref<8x8x128xf32, #tpu.memory_space<vmem>>, vector<1x8x128xf32>
    %144 = vector.shape_cast %143 : vector<1x8x128xf32> to vector<8x128xf32>
    %145 = vector.shape_cast %139 : vector<8x128xf32> to vector<1x8x128xf32>
    tpu.vector_store %arg8[%142, %c0_76, %c0_77], %145 {strides = array<i32>} : memref<8x8x128xf32, #tpu.memory_space<vmem>>, vector<1x8x128xf32>,
    %c3_i32 = arith.constant 3 : i32
    %146 = arith.index_cast %c3_i32 : i32 to index
    %c0_78 = arith.constant 0 : index
    %c0_79 = arith.constant 0 : index
    %147 = vector.load %arg0[%146, %c0_78, %c0_79] : memref<8x8x128xf32, #tpu.memory_space<vmem>>, vector<1x8x128xf32>
    %148 = vector.shape_cast %147 : vector<1x8x128xf32> to vector<8x128xf32>
    %c0_80 = arith.constant 0 : index
    %c0_81 = arith.constant 0 : index
    %149 = vector.load %arg9[%c0_80, %c0_81] : memref<8x128xf32, #tpu.memory_space<vmem>>, vector<8x128xf32>
    %c0_82 = arith.constant 0 : index
    %c0_83 = arith.constant 0 : index
    %150 = vector.load %arg10[%c0_82, %c0_83] : memref<8x128xf32, #tpu.memory_space<vmem>>, vector<8x128xf32>
    %151 = tpu.concatenate %148, %149 in 1 : vector<8x128xf32>, vector<8x128xf32> -> vector<8x256xf32>
    %c0_84 = arith.constant 0 : index
    %c0_85 = arith.constant 0 : index
    %152 = vector.load %arg1[%c0_84, %c0_85] : memref<256x512xf32, #tpu.memory_space<vmem>>, vector<256x512xf32>
    %cst_86 = arith.constant dense<0.000000e+00> : vector<8x512xf32>
    %153 = tpu.matmul %151, %152, %cst_86 {dimension_numbers = #tpu.dot_dimension_numbers<[1], [0], [0], [1], [0, 0, 1, 1], [], []>} : vector<8x256xf32>, vector<256x512xf32>, vector<8x512xf32> -> vector<8x512xf32>
    %154 = vector.broadcast %4 : vector<1x512xf32> to vector<8x512xf32>
    %155 = arith.addf %153, %154 : vector<8x512xf32>
    %156 = vector.extract_strided_slice %155 {offsets = [0, 0], sizes = [8, 128], strides = [1, 1]} : vector<8x512xf32> to vector<8x128xf32>
    %cst_87 = arith.constant 5.000000e-01 : f32
    %157 = vector.broadcast %cst_87 : f32 to vector<8x128xf32>
    %158 = arith.mulf %157, %156 : vector<8x128xf32>
    %159 = math.tanh %158 : vector<8x128xf32>
    %cst_88 = arith.constant 5.000000e-01 : f32
    %160 = vector.broadcast %cst_88 : f32 to vector<8x128xf32>
    %161 = arith.mulf %160, %159 : vector<8x128xf32>
    %cst_89 = arith.constant 5.000000e-01 : f32
    %162 = vector.broadcast %cst_89 : f32 to vector<8x128xf32>
    %163 = arith.addf %161, %162 : vector<8x128xf32>
    %164 = vector.extract_strided_slice %155 {offsets = [0, 128], sizes = [8, 128], strides = [1, 1]} : vector<8x512xf32> to vector<8x128xf32>
    %cst_90 = arith.constant 5.000000e-01 : f32
    %165 = vector.broadcast %cst_90 : f32 to vector<8x128xf32>
    %166 = arith.mulf %165, %164 : vector<8x128xf32>
    %167 = math.tanh %166 : vector<8x128xf32>
    %cst_91 = arith.constant 5.000000e-01 : f32
    %168 = vector.broadcast %cst_91 : f32 to vector<8x128xf32>
    %169 = arith.mulf %168, %167 : vector<8x128xf32>
    %cst_92 = arith.constant 5.000000e-01 : f32
    %170 = vector.broadcast %cst_92 : f32 to vector<8x128xf32>
    %171 = arith.addf %169, %170 : vector<8x128xf32>
    %172 = vector.extract_strided_slice %155 {offsets = [0, 256], sizes = [8, 128], strides = [1, 1]} : vector<8x512xf32> to vector<8x128xf32>
    %173 = math.tanh %172 : vector<8x128xf32>
    %174 = vector.extract_strided_slice %155 {offsets = [0, 384], sizes = [8, 128], strides = [1, 1]} : vector<8x512xf32> to vector<8x128xf32>
    %cst_93 = arith.constant 5.000000e-01 : f32
    %175 = vector.broadcast %cst_93 : f32 to vector<8x128xf32>
    %176 = arith.mulf %175, %174 : vector<8x128xf32>
    %177 = math.tanh %176 : vector<8x128xf32>
    %cst_94 = arith.constant 5.000000e-01 : f32
    %178 = vector.broadcast %cst_94 : f32 to vector<8x128xf32>
    %179 = arith.mulf %178, %177 : vector<8x128xf32>
    %cst_95 = arith.constant 5.000000e-01 : f32
    %180 = vector.broadcast %cst_95 : f32 to vector<8x128xf32>
    %181 = arith.addf %179, %180 : vector<8x128xf32>
    %182 = arith.mulf %171, %150 : vector<8x128xf32>
    %183 = arith.mulf %163, %173 : vector<8x128xf32>
    %184 = arith.addf %182, %183 : vector<8x128xf32>
    %185 = math.tanh %184 : vector<8x128xf32>
    %186 = arith.mulf %181, %185 : vector<8x128xf32>
    %c0_96 = arith.constant 0 : index
    %c0_97 = arith.constant 0 : index
    %187 = vector.load %arg9[%c0_96, %c0_97] : memref<8x128xf32, #tpu.memory_space<vmem>>, vector<8x128xf32>
    tpu.vector_store %arg9[%c0_96, %c0_97], %186 {strides = array<i32>} : memref<8x128xf32, #tpu.memory_space<vmem>>, vector<8x128xf32>,
    %c0_98 = arith.constant 0 : index
    %c0_99 = arith.constant 0 : index
    %188 = vector.load %arg10[%c0_98, %c0_99] : memref<8x128xf32, #tpu.memory_space<vmem>>, vector<8x128xf32>
    tpu.vector_store %arg10[%c0_98, %c0_99], %184 {strides = array<i32>} : memref<8x128xf32, #tpu.memory_space<vmem>>, vector<8x128xf32>,
    %189 = arith.index_cast %c3_i32 : i32 to index
    %c0_100 = arith.constant 0 : index
    %c0_101 = arith.constant 0 : index
    %190 = vector.load %arg8[%189, %c0_100, %c0_101] : memref<8x8x128xf32, #tpu.memory_space<vmem>>, vector<1x8x128xf32>
    %191 = vector.shape_cast %190 : vector<1x8x128xf32> to vector<8x128xf32>
    %192 = vector.shape_cast %186 : vector<8x128xf32> to vector<1x8x128xf32>
    tpu.vector_store %arg8[%189, %c0_100, %c0_101], %192 {strides = array<i32>} : memref<8x8x128xf32, #tpu.memory_space<vmem>>, vector<1x8x128xf32>,
    %c4_i32 = arith.constant 4 : i32
    %193 = arith.index_cast %c4_i32 : i32 to index
    %c0_102 = arith.constant 0 : index
    %c0_103 = arith.constant 0 : index
    %194 = vector.load %arg0[%193, %c0_102, %c0_103] : memref<8x8x128xf32, #tpu.memory_space<vmem>>, vector<1x8x128xf32>
    %195 = vector.shape_cast %194 : vector<1x8x128xf32> to vector<8x128xf32>
    %c0_104 = arith.constant 0 : index
    %c0_105 = arith.constant 0 : index
    %196 = vector.load %arg9[%c0_104, %c0_105] : memref<8x128xf32, #tpu.memory_space<vmem>>, vector<8x128xf32>
    %c0_106 = arith.constant 0 : index
    %c0_107 = arith.constant 0 : index
    %197 = vector.load %arg10[%c0_106, %c0_107] : memref<8x128xf32, #tpu.memory_space<vmem>>, vector<8x128xf32>
    %198 = tpu.concatenate %195, %196 in 1 : vector<8x128xf32>, vector<8x128xf32> -> vector<8x256xf32>
    %c0_108 = arith.constant 0 : index
    %c0_109 = arith.constant 0 : index
    %199 = vector.load %arg1[%c0_108, %c0_109] : memref<256x512xf32, #tpu.memory_space<vmem>>, vector<256x512xf32>
    %cst_110 = arith.constant dense<0.000000e+00> : vector<8x512xf32>
    %200 = tpu.matmul %198, %199, %cst_110 {dimension_numbers = #tpu.dot_dimension_numbers<[1], [0], [0], [1], [0, 0, 1, 1], [], []>} : vector<8x256xf32>, vector<256x512xf32>, vector<8x512xf32> -> vector<8x512xf32>
    %201 = vector.broadcast %4 : vector<1x512xf32> to vector<8x512xf32>
    %202 = arith.addf %200, %201 : vector<8x512xf32>
    %203 = vector.extract_strided_slice %202 {offsets = [0, 0], sizes = [8, 128], strides = [1, 1]} : vector<8x512xf32> to vector<8x128xf32>
    %cst_111 = arith.constant 5.000000e-01 : f32
    %204 = vector.broadcast %cst_111 : f32 to vector<8x128xf32>
    %205 = arith.mulf %204, %203 : vector<8x128xf32>
    %206 = math.tanh %205 : vector<8x128xf32>
    %cst_112 = arith.constant 5.000000e-01 : f32
    %207 = vector.broadcast %cst_112 : f32 to vector<8x128xf32>
    %208 = arith.mulf %207, %206 : vector<8x128xf32>
    %cst_113 = arith.constant 5.000000e-01 : f32
    %209 = vector.broadcast %cst_113 : f32 to vector<8x128xf32>
    %210 = arith.addf %208, %209 : vector<8x128xf32>
    %211 = vector.extract_strided_slice %202 {offsets = [0, 128], sizes = [8, 128], strides = [1, 1]} : vector<8x512xf32> to vector<8x128xf32>
    %cst_114 = arith.constant 5.000000e-01 : f32
    %212 = vector.broadcast %cst_114 : f32 to vector<8x128xf32>
    %213 = arith.mulf %212, %211 : vector<8x128xf32>
    %214 = math.tanh %213 : vector<8x128xf32>
    %cst_115 = arith.constant 5.000000e-01 : f32
    %215 = vector.broadcast %cst_115 : f32 to vector<8x128xf32>
    %216 = arith.mulf %215, %214 : vector<8x128xf32>
    %cst_116 = arith.constant 5.000000e-01 : f32
    %217 = vector.broadcast %cst_116 : f32 to vector<8x128xf32>
    %218 = arith.addf %216, %217 : vector<8x128xf32>
    %219 = vector.extract_strided_slice %202 {offsets = [0, 256], sizes = [8, 128], strides = [1, 1]} : vector<8x512xf32> to vector<8x128xf32>
    %220 = math.tanh %219 : vector<8x128xf32>
    %221 = vector.extract_strided_slice %202 {offsets = [0, 384], sizes = [8, 128], strides = [1, 1]} : vector<8x512xf32> to vector<8x128xf32>
    %cst_117 = arith.constant 5.000000e-01 : f32
    %222 = vector.broadcast %cst_117 : f32 to vector<8x128xf32>
    %223 = arith.mulf %222, %221 : vector<8x128xf32>
    %224 = math.tanh %223 : vector<8x128xf32>
    %cst_118 = arith.constant 5.000000e-01 : f32
    %225 = vector.broadcast %cst_118 : f32 to vector<8x128xf32>
    %226 = arith.mulf %225, %224 : vector<8x128xf32>
    %cst_119 = arith.constant 5.000000e-01 : f32
    %227 = vector.broadcast %cst_119 : f32 to vector<8x128xf32>
    %228 = arith.addf %226, %227 : vector<8x128xf32>
    %229 = arith.mulf %218, %197 : vector<8x128xf32>
    %230 = arith.mulf %210, %220 : vector<8x128xf32>
    %231 = arith.addf %229, %230 : vector<8x128xf32>
    %232 = math.tanh %231 : vector<8x128xf32>
    %233 = arith.mulf %228, %232 : vector<8x128xf32>
    %c0_120 = arith.constant 0 : index
    %c0_121 = arith.constant 0 : index
    %234 = vector.load %arg9[%c0_120, %c0_121] : memref<8x128xf32, #tpu.memory_space<vmem>>, vector<8x128xf32>
    tpu.vector_store %arg9[%c0_120, %c0_121], %233 {strides = array<i32>} : memref<8x128xf32, #tpu.memory_space<vmem>>, vector<8x128xf32>,
    %c0_122 = arith.constant 0 : index
    %c0_123 = arith.constant 0 : index
    %235 = vector.load %arg10[%c0_122, %c0_123] : memref<8x128xf32, #tpu.memory_space<vmem>>, vector<8x128xf32>
    tpu.vector_store %arg10[%c0_122, %c0_123], %231 {strides = array<i32>} : memref<8x128xf32, #tpu.memory_space<vmem>>, vector<8x128xf32>,
    %236 = arith.index_cast %c4_i32 : i32 to index
    %c0_124 = arith.constant 0 : index
    %c0_125 = arith.constant 0 : index
    %237 = vector.load %arg8[%236, %c0_124, %c0_125] : memref<8x8x128xf32, #tpu.memory_space<vmem>>, vector<1x8x128xf32>
    %238 = vector.shape_cast %237 : vector<1x8x128xf32> to vector<8x128xf32>
    %239 = vector.shape_cast %233 : vector<8x128xf32> to vector<1x8x128xf32>
    tpu.vector_store %arg8[%236, %c0_124, %c0_125], %239 {strides = array<i32>} : memref<8x8x128xf32, #tpu.memory_space<vmem>>, vector<1x8x128xf32>,
    %c5_i32 = arith.constant 5 : i32
    %240 = arith.index_cast %c5_i32 : i32 to index
    %c0_126 = arith.constant 0 : index
    %c0_127 = arith.constant 0 : index
    %241 = vector.load %arg0[%240, %c0_126, %c0_127] : memref<8x8x128xf32, #tpu.memory_space<vmem>>, vector<1x8x128xf32>
    %242 = vector.shape_cast %241 : vector<1x8x128xf32> to vector<8x128xf32>
    %c0_128 = arith.constant 0 : index
    %c0_129 = arith.constant 0 : index
    %243 = vector.load %arg9[%c0_128, %c0_129] : memref<8x128xf32, #tpu.memory_space<vmem>>, vector<8x128xf32>
    %c0_130 = arith.constant 0 : index
    %c0_131 = arith.constant 0 : index
    %244 = vector.load %arg10[%c0_130, %c0_131] : memref<8x128xf32, #tpu.memory_space<vmem>>, vector<8x128xf32>
    %245 = tpu.concatenate %242, %243 in 1 : vector<8x128xf32>, vector<8x128xf32> -> vector<8x256xf32>
    %c0_132 = arith.constant 0 : index
    %c0_133 = arith.constant 0 : index
    %246 = vector.load %arg1[%c0_132, %c0_133] : memref<256x512xf32, #tpu.memory_space<vmem>>, vector<256x512xf32>
    %cst_134 = arith.constant dense<0.000000e+00> : vector<8x512xf32>
    %247 = tpu.matmul %245, %246, %cst_134 {dimension_numbers = #tpu.dot_dimension_numbers<[1], [0], [0], [1], [0, 0, 1, 1], [], []>} : vector<8x256xf32>, vector<256x512xf32>, vector<8x512xf32> -> vector<8x512xf32>
    %248 = vector.broadcast %4 : vector<1x512xf32> to vector<8x512xf32>
    %249 = arith.addf %247, %248 : vector<8x512xf32>
    %250 = vector.extract_strided_slice %249 {offsets = [0, 0], sizes = [8, 128], strides = [1, 1]} : vector<8x512xf32> to vector<8x128xf32>
    %cst_135 = arith.constant 5.000000e-01 : f32
    %251 = vector.broadcast %cst_135 : f32 to vector<8x128xf32>
    %252 = arith.mulf %251, %250 : vector<8x128xf32>
    %253 = math.tanh %252 : vector<8x128xf32>
    %cst_136 = arith.constant 5.000000e-01 : f32
    %254 = vector.broadcast %cst_136 : f32 to vector<8x128xf32>
    %255 = arith.mulf %254, %253 : vector<8x128xf32>
    %cst_137 = arith.constant 5.000000e-01 : f32
    %256 = vector.broadcast %cst_137 : f32 to vector<8x128xf32>
    %257 = arith.addf %255, %256 : vector<8x128xf32>
    %258 = vector.extract_strided_slice %249 {offsets = [0, 128], sizes = [8, 128], strides = [1, 1]} : vector<8x512xf32> to vector<8x128xf32>
    %cst_138 = arith.constant 5.000000e-01 : f32
    %259 = vector.broadcast %cst_138 : f32 to vector<8x128xf32>
    %260 = arith.mulf %259, %258 : vector<8x128xf32>
    %261 = math.tanh %260 : vector<8x128xf32>
    %cst_139 = arith.constant 5.000000e-01 : f32
    %262 = vector.broadcast %cst_139 : f32 to vector<8x128xf32>
    %263 = arith.mulf %262, %261 : vector<8x128xf32>
    %cst_140 = arith.constant 5.000000e-01 : f32
    %264 = vector.broadcast %cst_140 : f32 to vector<8x128xf32>
    %265 = arith.addf %263, %264 : vector<8x128xf32>
    %266 = vector.extract_strided_slice %249 {offsets = [0, 256], sizes = [8, 128], strides = [1, 1]} : vector<8x512xf32> to vector<8x128xf32>
    %267 = math.tanh %266 : vector<8x128xf32>
    %268 = vector.extract_strided_slice %249 {offsets = [0, 384], sizes = [8, 128], strides = [1, 1]} : vector<8x512xf32> to vector<8x128xf32>
    %cst_141 = arith.constant 5.000000e-01 : f32
    %269 = vector.broadcast %cst_141 : f32 to vector<8x128xf32>
    %270 = arith.mulf %269, %268 : vector<8x128xf32>
    %271 = math.tanh %270 : vector<8x128xf32>
    %cst_142 = arith.constant 5.000000e-01 : f32
    %272 = vector.broadcast %cst_142 : f32 to vector<8x128xf32>
    %273 = arith.mulf %272, %271 : vector<8x128xf32>
    %cst_143 = arith.constant 5.000000e-01 : f32
    %274 = vector.broadcast %cst_143 : f32 to vector<8x128xf32>
    %275 = arith.addf %273, %274 : vector<8x128xf32>
    %276 = arith.mulf %265, %244 : vector<8x128xf32>
    %277 = arith.mulf %257, %267 : vector<8x128xf32>
    %278 = arith.addf %276, %277 : vector<8x128xf32>
    %279 = math.tanh %278 : vector<8x128xf32>
    %280 = arith.mulf %275, %279 : vector<8x128xf32>
    %c0_144 = arith.constant 0 : index
    %c0_145 = arith.constant 0 : index
    %281 = vector.load %arg9[%c0_144, %c0_145] : memref<8x128xf32, #tpu.memory_space<vmem>>, vector<8x128xf32>
    tpu.vector_store %arg9[%c0_144, %c0_145], %280 {strides = array<i32>} : memref<8x128xf32, #tpu.memory_space<vmem>>, vector<8x128xf32>,
    %c0_146 = arith.constant 0 : index
    %c0_147 = arith.constant 0 : index
    %282 = vector.load %arg10[%c0_146, %c0_147] : memref<8x128xf32, #tpu.memory_space<vmem>>, vector<8x128xf32>
    tpu.vector_store %arg10[%c0_146, %c0_147], %278 {strides = array<i32>} : memref<8x128xf32, #tpu.memory_space<vmem>>, vector<8x128xf32>,
    %283 = arith.index_cast %c5_i32 : i32 to index
    %c0_148 = arith.constant 0 : index
    %c0_149 = arith.constant 0 : index
    %284 = vector.load %arg8[%283, %c0_148, %c0_149] : memref<8x8x128xf32, #tpu.memory_space<vmem>>, vector<1x8x128xf32>
    %285 = vector.shape_cast %284 : vector<1x8x128xf32> to vector<8x128xf32>
    %286 = vector.shape_cast %280 : vector<8x128xf32> to vector<1x8x128xf32>
    tpu.vector_store %arg8[%283, %c0_148, %c0_149], %286 {strides = array<i32>} : memref<8x8x128xf32, #tpu.memory_space<vmem>>, vector<1x8x128xf32>,
    %c6_i32 = arith.constant 6 : i32
    %287 = arith.index_cast %c6_i32 : i32 to index
    %c0_150 = arith.constant 0 : index
    %c0_151 = arith.constant 0 : index
    %288 = vector.load %arg0[%287, %c0_150, %c0_151] : memref<8x8x128xf32, #tpu.memory_space<vmem>>, vector<1x8x128xf32>
    %289 = vector.shape_cast %288 : vector<1x8x128xf32> to vector<8x128xf32>
    %c0_152 = arith.constant 0 : index
    %c0_153 = arith.constant 0 : index
    %290 = vector.load %arg9[%c0_152, %c0_153] : memref<8x128xf32, #tpu.memory_space<vmem>>, vector<8x128xf32>
    %c0_154 = arith.constant 0 : index
    %c0_155 = arith.constant 0 : index
    %291 = vector.load %arg10[%c0_154, %c0_155] : memref<8x128xf32, #tpu.memory_space<vmem>>, vector<8x128xf32>
    %292 = tpu.concatenate %289, %290 in 1 : vector<8x128xf32>, vector<8x128xf32> -> vector<8x256xf32>
    %c0_156 = arith.constant 0 : index
    %c0_157 = arith.constant 0 : index
    %293 = vector.load %arg1[%c0_156, %c0_157] : memref<256x512xf32, #tpu.memory_space<vmem>>, vector<256x512xf32>
    %cst_158 = arith.constant dense<0.000000e+00> : vector<8x512xf32>
    %294 = tpu.matmul %292, %293, %cst_158 {dimension_numbers = #tpu.dot_dimension_numbers<[1], [0], [0], [1], [0, 0, 1, 1], [], []>} : vector<8x256xf32>, vector<256x512xf32>, vector<8x512xf32> -> vector<8x512xf32>
    %295 = vector.broadcast %4 : vector<1x512xf32> to vector<8x512xf32>
    %296 = arith.addf %294, %295 : vector<8x512xf32>
    %297 = vector.extract_strided_slice %296 {offsets = [0, 0], sizes = [8, 128], strides = [1, 1]} : vector<8x512xf32> to vector<8x128xf32>
    %cst_159 = arith.constant 5.000000e-01 : f32
    %298 = vector.broadcast %cst_159 : f32 to vector<8x128xf32>
    %299 = arith.mulf %298, %297 : vector<8x128xf32>
    %300 = math.tanh %299 : vector<8x128xf32>
    %cst_160 = arith.constant 5.000000e-01 : f32
    %301 = vector.broadcast %cst_160 : f32 to vector<8x128xf32>
    %302 = arith.mulf %301, %300 : vector<8x128xf32>
    %cst_161 = arith.constant 5.000000e-01 : f32
    %303 = vector.broadcast %cst_161 : f32 to vector<8x128xf32>
    %304 = arith.addf %302, %303 : vector<8x128xf32>
    %305 = vector.extract_strided_slice %296 {offsets = [0, 128], sizes = [8, 128], strides = [1, 1]} : vector<8x512xf32> to vector<8x128xf32>
    %cst_162 = arith.constant 5.000000e-01 : f32
    %306 = vector.broadcast %cst_162 : f32 to vector<8x128xf32>
    %307 = arith.mulf %306, %305 : vector<8x128xf32>
    %308 = math.tanh %307 : vector<8x128xf32>
    %cst_163 = arith.constant 5.000000e-01 : f32
    %309 = vector.broadcast %cst_163 : f32 to vector<8x128xf32>
    %310 = arith.mulf %309, %308 : vector<8x128xf32>
    %cst_164 = arith.constant 5.000000e-01 : f32
    %311 = vector.broadcast %cst_164 : f32 to vector<8x128xf32>
    %312 = arith.addf %310, %311 : vector<8x128xf32>
    %313 = vector.extract_strided_slice %296 {offsets = [0, 256], sizes = [8, 128], strides = [1, 1]} : vector<8x512xf32> to vector<8x128xf32>
    %314 = math.tanh %313 : vector<8x128xf32>
    %315 = vector.extract_strided_slice %296 {offsets = [0, 384], sizes = [8, 128], strides = [1, 1]} : vector<8x512xf32> to vector<8x128xf32>
    %cst_165 = arith.constant 5.000000e-01 : f32
    %316 = vector.broadcast %cst_165 : f32 to vector<8x128xf32>
    %317 = arith.mulf %316, %315 : vector<8x128xf32>
    %318 = math.tanh %317 : vector<8x128xf32>
    %cst_166 = arith.constant 5.000000e-01 : f32
    %319 = vector.broadcast %cst_166 : f32 to vector<8x128xf32>
    %320 = arith.mulf %319, %318 : vector<8x128xf32>
    %cst_167 = arith.constant 5.000000e-01 : f32
    %321 = vector.broadcast %cst_167 : f32 to vector<8x128xf32>
    %322 = arith.addf %320, %321 : vector<8x128xf32>
    %323 = arith.mulf %312, %291 : vector<8x128xf32>
    %324 = arith.mulf %304, %314 : vector<8x128xf32>
    %325 = arith.addf %323, %324 : vector<8x128xf32>
    %326 = math.tanh %325 : vector<8x128xf32>
    %327 = arith.mulf %322, %326 : vector<8x128xf32>
    %c0_168 = arith.constant 0 : index
    %c0_169 = arith.constant 0 : index
    %328 = vector.load %arg9[%c0_168, %c0_169] : memref<8x128xf32, #tpu.memory_space<vmem>>, vector<8x128xf32>
    tpu.vector_store %arg9[%c0_168, %c0_169], %327 {strides = array<i32>} : memref<8x128xf32, #tpu.memory_space<vmem>>, vector<8x128xf32>,
    %c0_170 = arith.constant 0 : index
    %c0_171 = arith.constant 0 : index
    %329 = vector.load %arg10[%c0_170, %c0_171] : memref<8x128xf32, #tpu.memory_space<vmem>>, vector<8x128xf32>
    tpu.vector_store %arg10[%c0_170, %c0_171], %325 {strides = array<i32>} : memref<8x128xf32, #tpu.memory_space<vmem>>, vector<8x128xf32>,
    %330 = arith.index_cast %c6_i32 : i32 to index
    %c0_172 = arith.constant 0 : index
    %c0_173 = arith.constant 0 : index
    %331 = vector.load %arg8[%330, %c0_172, %c0_173] : memref<8x8x128xf32, #tpu.memory_space<vmem>>, vector<1x8x128xf32>
    %332 = vector.shape_cast %331 : vector<1x8x128xf32> to vector<8x128xf32>
    %333 = vector.shape_cast %327 : vector<8x128xf32> to vector<1x8x128xf32>
    tpu.vector_store %arg8[%330, %c0_172, %c0_173], %333 {strides = array<i32>} : memref<8x8x128xf32, #tpu.memory_space<vmem>>, vector<1x8x128xf32>,
    %c7_i32 = arith.constant 7 : i32
    %334 = arith.index_cast %c7_i32 : i32 to index
    %c0_174 = arith.constant 0 : index
    %c0_175 = arith.constant 0 : index
    %335 = vector.load %arg0[%334, %c0_174, %c0_175] : memref<8x8x128xf32, #tpu.memory_space<vmem>>, vector<1x8x128xf32>
    %336 = vector.shape_cast %335 : vector<1x8x128xf32> to vector<8x128xf32>
    %c0_176 = arith.constant 0 : index
    %c0_177 = arith.constant 0 : index
    %337 = vector.load %arg9[%c0_176, %c0_177] : memref<8x128xf32, #tpu.memory_space<vmem>>, vector<8x128xf32>
    %c0_178 = arith.constant 0 : index
    %c0_179 = arith.constant 0 : index
    %338 = vector.load %arg10[%c0_178, %c0_179] : memref<8x128xf32, #tpu.memory_space<vmem>>, vector<8x128xf32>
    %339 = tpu.concatenate %336, %337 in 1 : vector<8x128xf32>, vector<8x128xf32> -> vector<8x256xf32>
    %c0_180 = arith.constant 0 : index
    %c0_181 = arith.constant 0 : index
    %340 = vector.load %arg1[%c0_180, %c0_181] : memref<256x512xf32, #tpu.memory_space<vmem>>, vector<256x512xf32>
    %cst_182 = arith.constant dense<0.000000e+00> : vector<8x512xf32>
    %341 = tpu.matmul %339, %340, %cst_182 {dimension_numbers = #tpu.dot_dimension_numbers<[1], [0], [0], [1], [0, 0, 1, 1], [], []>} : vector<8x256xf32>, vector<256x512xf32>, vector<8x512xf32> -> vector<8x512xf32>
    %342 = vector.broadcast %4 : vector<1x512xf32> to vector<8x512xf32>
    %343 = arith.addf %341, %342 : vector<8x512xf32>
    %344 = vector.extract_strided_slice %343 {offsets = [0, 0], sizes = [8, 128], strides = [1, 1]} : vector<8x512xf32> to vector<8x128xf32>
    %cst_183 = arith.constant 5.000000e-01 : f32
    %345 = vector.broadcast %cst_183 : f32 to vector<8x128xf32>
    %346 = arith.mulf %345, %344 : vector<8x128xf32>
    %347 = math.tanh %346 : vector<8x128xf32>
    %cst_184 = arith.constant 5.000000e-01 : f32
    %348 = vector.broadcast %cst_184 : f32 to vector<8x128xf32>
    %349 = arith.mulf %348, %347 : vector<8x128xf32>
    %cst_185 = arith.constant 5.000000e-01 : f32
    %350 = vector.broadcast %cst_185 : f32 to vector<8x128xf32>
    %351 = arith.addf %349, %350 : vector<8x128xf32>
    %352 = vector.extract_strided_slice %343 {offsets = [0, 128], sizes = [8, 128], strides = [1, 1]} : vector<8x512xf32> to vector<8x128xf32>
    %cst_186 = arith.constant 5.000000e-01 : f32
    %353 = vector.broadcast %cst_186 : f32 to vector<8x128xf32>
    %354 = arith.mulf %353, %352 : vector<8x128xf32>
    %355 = math.tanh %354 : vector<8x128xf32>
    %cst_187 = arith.constant 5.000000e-01 : f32
    %356 = vector.broadcast %cst_187 : f32 to vector<8x128xf32>
    %357 = arith.mulf %356, %355 : vector<8x128xf32>
    %cst_188 = arith.constant 5.000000e-01 : f32
    %358 = vector.broadcast %cst_188 : f32 to vector<8x128xf32>
    %359 = arith.addf %357, %358 : vector<8x128xf32>
    %360 = vector.extract_strided_slice %343 {offsets = [0, 256], sizes = [8, 128], strides = [1, 1]} : vector<8x512xf32> to vector<8x128xf32>
    %361 = math.tanh %360 : vector<8x128xf32>
    %362 = vector.extract_strided_slice %343 {offsets = [0, 384], sizes = [8, 128], strides = [1, 1]} : vector<8x512xf32> to vector<8x128xf32>
    %cst_189 = arith.constant 5.000000e-01 : f32
    %363 = vector.broadcast %cst_189 : f32 to vector<8x128xf32>
    %364 = arith.mulf %363, %362 : vector<8x128xf32>
    %365 = math.tanh %364 : vector<8x128xf32>
    %cst_190 = arith.constant 5.000000e-01 : f32
    %366 = vector.broadcast %cst_190 : f32 to vector<8x128xf32>
    %367 = arith.mulf %366, %365 : vector<8x128xf32>
    %cst_191 = arith.constant 5.000000e-01 : f32
    %368 = vector.broadcast %cst_191 : f32 to vector<8x128xf32>
    %369 = arith.addf %367, %368 : vector<8x128xf32>
    %370 = arith.mulf %359, %338 : vector<8x128xf32>
    %371 = arith.mulf %351, %361 : vector<8x128xf32>
    %372 = arith.addf %370, %371 : vector<8x128xf32>
    %373 = math.tanh %372 : vector<8x128xf32>
    %374 = arith.mulf %369, %373 : vector<8x128xf32>
    %c0_192 = arith.constant 0 : index
    %c0_193 = arith.constant 0 : index
    %375 = vector.load %arg9[%c0_192, %c0_193] : memref<8x128xf32, #tpu.memory_space<vmem>>, vector<8x128xf32>
    tpu.vector_store %arg9[%c0_192, %c0_193], %374 {strides = array<i32>} : memref<8x128xf32, #tpu.memory_space<vmem>>, vector<8x128xf32>,
    %c0_194 = arith.constant 0 : index
    %c0_195 = arith.constant 0 : index
    %376 = vector.load %arg10[%c0_194, %c0_195] : memref<8x128xf32, #tpu.memory_space<vmem>>, vector<8x128xf32>
    tpu.vector_store %arg10[%c0_194, %c0_195], %372 {strides = array<i32>} : memref<8x128xf32, #tpu.memory_space<vmem>>, vector<8x128xf32>,
    %377 = arith.index_cast %c7_i32 : i32 to index
    %c0_196 = arith.constant 0 : index
    %c0_197 = arith.constant 0 : index
    %378 = vector.load %arg8[%377, %c0_196, %c0_197] : memref<8x8x128xf32, #tpu.memory_space<vmem>>, vector<1x8x128xf32>
    %379 = vector.shape_cast %378 : vector<1x8x128xf32> to vector<8x128xf32>
    %380 = vector.shape_cast %374 : vector<8x128xf32> to vector<1x8x128xf32>
    tpu.vector_store %arg8[%377, %c0_196, %c0_197], %380 {strides = array<i32>} : memref<8x8x128xf32, #tpu.memory_space<vmem>>, vector<1x8x128xf32>,
    %c8_i32 = arith.constant 8 : i32
    %cst_198 = arith.constant 0.000000e+00 : f32
    %381 = vector.broadcast %cst_198 : f32 to vector<8x128xf32>
    %c0_199 = arith.constant 0 : index
    %c0_200 = arith.constant 0 : index
    %382 = vector.load %arg9[%c0_199, %c0_200] : memref<8x128xf32, #tpu.memory_space<vmem>>, vector<8x128xf32>
    tpu.vector_store %arg9[%c0_199, %c0_200], %381 {strides = array<i32>} : memref<8x128xf32, #tpu.memory_space<vmem>>, vector<8x128xf32>,
    %cst_201 = arith.constant 0.000000e+00 : f32
    %383 = vector.broadcast %cst_201 : f32 to vector<8x128xf32>
    %c0_202 = arith.constant 0 : index
    %c0_203 = arith.constant 0 : index
    %384 = vector.load %arg10[%c0_202, %c0_203] : memref<8x128xf32, #tpu.memory_space<vmem>>, vector<8x128xf32>
    tpu.vector_store %arg10[%c0_202, %c0_203], %383 {strides = array<i32>} : memref<8x128xf32, #tpu.memory_space<vmem>>, vector<8x128xf32>,
    %c0_204 = arith.constant 0 : index
    %c0_205 = arith.constant 0 : index
    %385 = vector.load %arg4[%c0_204, %c0_205] : memref<1x512xf32, #tpu.memory_space<vmem>>, vector<1x512xf32>
    %c0_i32_206 = arith.constant 0 : i32
    %386 = arith.index_cast %c0_i32_206 : i32 to index
    %c0_207 = arith.constant 0 : index
    %c0_208 = arith.constant 0 : index
    %387 = vector.load %arg8[%386, %c0_207, %c0_208] : memref<8x8x128xf32, #tpu.memory_space<vmem>>, vector<1x8x128xf32>
    %388 = vector.shape_cast %387 : vector<1x8x128xf32> to vector<8x128xf32>
    %c0_209 = arith.constant 0 : index
    %c0_210 = arith.constant 0 : index
    %389 = vector.load %arg9[%c0_209, %c0_210] : memref<8x128xf32, #tpu.memory_space<vmem>>, vector<8x128xf32>
    %c0_211 = arith.constant 0 : index
    %c0_212 = arith.constant 0 : index
    %390 = vector.load %arg10[%c0_211, %c0_212] : memref<8x128xf32, #tpu.memory_space<vmem>>, vector<8x128xf32>
    %391 = tpu.concatenate %388, %389 in 1 : vector<8x128xf32>, vector<8x128xf32> -> vector<8x256xf32>
    %c0_213 = arith.constant 0 : index
    %c0_214 = arith.constant 0 : index
    %392 = vector.load %arg3[%c0_213, %c0_214] : memref<256x512xf32, #tpu.memory_space<vmem>>, vector<256x512xf32>
    %cst_215 = arith.constant dense<0.000000e+00> : vector<8x512xf32>
    %393 = tpu.matmul %391, %392, %cst_215 {dimension_numbers = #tpu.dot_dimension_numbers<[1], [0], [0], [1], [0, 0, 1, 1], [], []>} : vector<8x256xf32>, vector<256x512xf32>, vector<8x512xf32> -> vector<8x512xf32>
    %394 = vector.broadcast %385 : vector<1x512xf32> to vector<8x512xf32>
    %395 = arith.addf %393, %394 : vector<8x512xf32>
    %396 = vector.extract_strided_slice %395 {offsets = [0, 0], sizes = [8, 128], strides = [1, 1]} : vector<8x512xf32> to vector<8x128xf32>
    %cst_216 = arith.constant 5.000000e-01 : f32
    %397 = vector.broadcast %cst_216 : f32 to vector<8x128xf32>
    %398 = arith.mulf %397, %396 : vector<8x128xf32>
    %399 = math.tanh %398 : vector<8x128xf32>
    %cst_217 = arith.constant 5.000000e-01 : f32
    %400 = vector.broadcast %cst_217 : f32 to vector<8x128xf32>
    %401 = arith.mulf %400, %399 : vector<8x128xf32>
    %cst_218 = arith.constant 5.000000e-01 : f32
    %402 = vector.broadcast %cst_218 : f32 to vector<8x128xf32>
    %403 = arith.addf %401, %402 : vector<8x128xf32>
    %404 = vector.extract_strided_slice %395 {offsets = [0, 128], sizes = [8, 128], strides = [1, 1]} : vector<8x512xf32> to vector<8x128xf32>
    %cst_219 = arith.constant 5.000000e-01 : f32
    %405 = vector.broadcast %cst_219 : f32 to vector<8x128xf32>
    %406 = arith.mulf %405, %404 : vector<8x128xf32>
    %407 = math.tanh %406 : vector<8x128xf32>
    %cst_220 = arith.constant 5.000000e-01 : f32
    %408 = vector.broadcast %cst_220 : f32 to vector<8x128xf32>
    %409 = arith.mulf %408, %407 : vector<8x128xf32>
    %cst_221 = arith.constant 5.000000e-01 : f32
    %410 = vector.broadcast %cst_221 : f32 to vector<8x128xf32>
    %411 = arith.addf %409, %410 : vector<8x128xf32>
    %412 = vector.extract_strided_slice %395 {offsets = [0, 256], sizes = [8, 128], strides = [1, 1]} : vector<8x512xf32> to vector<8x128xf32>
    %413 = math.tanh %412 : vector<8x128xf32>
    %414 = vector.extract_strided_slice %395 {offsets = [0, 384], sizes = [8, 128], strides = [1, 1]} : vector<8x512xf32> to vector<8x128xf32>
    %cst_222 = arith.constant 5.000000e-01 : f32
    %415 = vector.broadcast %cst_222 : f32 to vector<8x128xf32>
    %416 = arith.mulf %415, %414 : vector<8x128xf32>
    %417 = math.tanh %416 : vector<8x128xf32>
    %cst_223 = arith.constant 5.000000e-01 : f32
    %418 = vector.broadcast %cst_223 : f32 to vector<8x128xf32>
    %419 = arith.mulf %418, %417 : vector<8x128xf32>
    %cst_224 = arith.constant 5.000000e-01 : f32
    %420 = vector.broadcast %cst_224 : f32 to vector<8x128xf32>
    %421 = arith.addf %419, %420 : vector<8x128xf32>
    %422 = arith.mulf %411, %390 : vector<8x128xf32>
    %423 = arith.mulf %403, %413 : vector<8x128xf32>
    %424 = arith.addf %422, %423 : vector<8x128xf32>
    %425 = math.tanh %424 : vector<8x128xf32>
    %426 = arith.mulf %421, %425 : vector<8x128xf32>
    %c0_225 = arith.constant 0 : index
    %c0_226 = arith.constant 0 : index
    %427 = vector.load %arg9[%c0_225, %c0_226] : memref<8x128xf32, #tpu.memory_space<vmem>>, vector<8x128xf32>
    tpu.vector_store %arg9[%c0_225, %c0_226], %426 {strides = array<i32>} : memref<8x128xf32, #tpu.memory_space<vmem>>, vector<8x128xf32>,
    %c0_227 = arith.constant 0 : index
    %c0_228 = arith.constant 0 : index
    %428 = vector.load %arg10[%c0_227, %c0_228] : memref<8x128xf32, #tpu.memory_space<vmem>>, vector<8x128xf32>
    tpu.vector_store %arg10[%c0_227, %c0_228], %424 {strides = array<i32>} : memref<8x128xf32, #tpu.memory_space<vmem>>, vector<8x128xf32>,
    %c1_i32_229 = arith.constant 1 : i32
    %429 = arith.index_cast %c1_i32_229 : i32 to index
    %c0_230 = arith.constant 0 : index
    %c0_231 = arith.constant 0 : index
    %430 = vector.load %arg8[%429, %c0_230, %c0_231] : memref<8x8x128xf32, #tpu.memory_space<vmem>>, vector<1x8x128xf32>
    %431 = vector.shape_cast %430 : vector<1x8x128xf32> to vector<8x128xf32>
    %c0_232 = arith.constant 0 : index
    %c0_233 = arith.constant 0 : index
    %432 = vector.load %arg9[%c0_232, %c0_233] : memref<8x128xf32, #tpu.memory_space<vmem>>, vector<8x128xf32>
    %c0_234 = arith.constant 0 : index
    %c0_235 = arith.constant 0 : index
    %433 = vector.load %arg10[%c0_234, %c0_235] : memref<8x128xf32, #tpu.memory_space<vmem>>, vector<8x128xf32>
    %434 = tpu.concatenate %431, %432 in 1 : vector<8x128xf32>, vector<8x128xf32> -> vector<8x256xf32>
    %c0_236 = arith.constant 0 : index
    %c0_237 = arith.constant 0 : index
    %435 = vector.load %arg3[%c0_236, %c0_237] : memref<256x512xf32, #tpu.memory_space<vmem>>, vector<256x512xf32>
    %cst_238 = arith.constant dense<0.000000e+00> : vector<8x512xf32>
    %436 = tpu.matmul %434, %435, %cst_238 {dimension_numbers = #tpu.dot_dimension_numbers<[1], [0], [0], [1], [0, 0, 1, 1], [], []>} : vector<8x256xf32>, vector<256x512xf32>, vector<8x512xf32> -> vector<8x512xf32>
    %437 = vector.broadcast %385 : vector<1x512xf32> to vector<8x512xf32>
    %438 = arith.addf %436, %437 : vector<8x512xf32>
    %439 = vector.extract_strided_slice %438 {offsets = [0, 0], sizes = [8, 128], strides = [1, 1]} : vector<8x512xf32> to vector<8x128xf32>
    %cst_239 = arith.constant 5.000000e-01 : f32
    %440 = vector.broadcast %cst_239 : f32 to vector<8x128xf32>
    %441 = arith.mulf %440, %439 : vector<8x128xf32>
    %442 = math.tanh %441 : vector<8x128xf32>
    %cst_240 = arith.constant 5.000000e-01 : f32
    %443 = vector.broadcast %cst_240 : f32 to vector<8x128xf32>
    %444 = arith.mulf %443, %442 : vector<8x128xf32>
    %cst_241 = arith.constant 5.000000e-01 : f32
    %445 = vector.broadcast %cst_241 : f32 to vector<8x128xf32>
    %446 = arith.addf %444, %445 : vector<8x128xf32>
    %447 = vector.extract_strided_slice %438 {offsets = [0, 128], sizes = [8, 128], strides = [1, 1]} : vector<8x512xf32> to vector<8x128xf32>
    %cst_242 = arith.constant 5.000000e-01 : f32
    %448 = vector.broadcast %cst_242 : f32 to vector<8x128xf32>
    %449 = arith.mulf %448, %447 : vector<8x128xf32>
    %450 = math.tanh %449 : vector<8x128xf32>
    %cst_243 = arith.constant 5.000000e-01 : f32
    %451 = vector.broadcast %cst_243 : f32 to vector<8x128xf32>
    %452 = arith.mulf %451, %450 : vector<8x128xf32>
    %cst_244 = arith.constant 5.000000e-01 : f32
    %453 = vector.broadcast %cst_244 : f32 to vector<8x128xf32>
    %454 = arith.addf %452, %453 : vector<8x128xf32>
    %455 = vector.extract_strided_slice %438 {offsets = [0, 256], sizes = [8, 128], strides = [1, 1]} : vector<8x512xf32> to vector<8x128xf32>
    %456 = math.tanh %455 : vector<8x128xf32>
    %457 = vector.extract_strided_slice %438 {offsets = [0, 384], sizes = [8, 128], strides = [1, 1]} : vector<8x512xf32> to vector<8x128xf32>
    %cst_245 = arith.constant 5.000000e-01 : f32
    %458 = vector.broadcast %cst_245 : f32 to vector<8x128xf32>
    %459 = arith.mulf %458, %457 : vector<8x128xf32>
    %460 = math.tanh %459 : vector<8x128xf32>
    %cst_246 = arith.constant 5.000000e-01 : f32
    %461 = vector.broadcast %cst_246 : f32 to vector<8x128xf32>
    %462 = arith.mulf %461, %460 : vector<8x128xf32>
    %cst_247 = arith.constant 5.000000e-01 : f32
    %463 = vector.broadcast %cst_247 : f32 to vector<8x128xf32>
    %464 = arith.addf %462, %463 : vector<8x128xf32>
    %465 = arith.mulf %454, %433 : vector<8x128xf32>
    %466 = arith.mulf %446, %456 : vector<8x128xf32>
    %467 = arith.addf %465, %466 : vector<8x128xf32>
    %468 = math.tanh %467 : vector<8x128xf32>
    %469 = arith.mulf %464, %468 : vector<8x128xf32>
    %c0_248 = arith.constant 0 : index
    %c0_249 = arith.constant 0 : index
    %470 = vector.load %arg9[%c0_248, %c0_249] : memref<8x128xf32, #tpu.memory_space<vmem>>, vector<8x128xf32>
    tpu.vector_store %arg9[%c0_248, %c0_249], %469 {strides = array<i32>} : memref<8x128xf32, #tpu.memory_space<vmem>>, vector<8x128xf32>,
    %c0_250 = arith.constant 0 : index
    %c0_251 = arith.constant 0 : index
    %471 = vector.load %arg10[%c0_250, %c0_251] : memref<8x128xf32, #tpu.memory_space<vmem>>, vector<8x128xf32>
    tpu.vector_store %arg10[%c0_250, %c0_251], %467 {strides = array<i32>} : memref<8x128xf32, #tpu.memory_space<vmem>>, vector<8x128xf32>,
    %c2_i32_252 = arith.constant 2 : i32
    %472 = arith.index_cast %c2_i32_252 : i32 to index
    %c0_253 = arith.constant 0 : index
    %c0_254 = arith.constant 0 : index
    %473 = vector.load %arg8[%472, %c0_253, %c0_254] : memref<8x8x128xf32, #tpu.memory_space<vmem>>, vector<1x8x128xf32>
    %474 = vector.shape_cast %473 : vector<1x8x128xf32> to vector<8x128xf32>
    %c0_255 = arith.constant 0 : index
    %c0_256 = arith.constant 0 : index
    %475 = vector.load %arg9[%c0_255, %c0_256] : memref<8x128xf32, #tpu.memory_space<vmem>>, vector<8x128xf32>
    %c0_257 = arith.constant 0 : index
    %c0_258 = arith.constant 0 : index
    %476 = vector.load %arg10[%c0_257, %c0_258] : memref<8x128xf32, #tpu.memory_space<vmem>>, vector<8x128xf32>
    %477 = tpu.concatenate %474, %475 in 1 : vector<8x128xf32>, vector<8x128xf32> -> vector<8x256xf32>
    %c0_259 = arith.constant 0 : index
    %c0_260 = arith.constant 0 : index
    %478 = vector.load %arg3[%c0_259, %c0_260] : memref<256x512xf32, #tpu.memory_space<vmem>>, vector<256x512xf32>
    %cst_261 = arith.constant dense<0.000000e+00> : vector<8x512xf32>
    %479 = tpu.matmul %477, %478, %cst_261 {dimension_numbers = #tpu.dot_dimension_numbers<[1], [0], [0], [1], [0, 0, 1, 1], [], []>} : vector<8x256xf32>, vector<256x512xf32>, vector<8x512xf32> -> vector<8x512xf32>
    %480 = vector.broadcast %385 : vector<1x512xf32> to vector<8x512xf32>
    %481 = arith.addf %479, %480 : vector<8x512xf32>
    %482 = vector.extract_strided_slice %481 {offsets = [0, 0], sizes = [8, 128], strides = [1, 1]} : vector<8x512xf32> to vector<8x128xf32>
    %cst_262 = arith.constant 5.000000e-01 : f32
    %483 = vector.broadcast %cst_262 : f32 to vector<8x128xf32>
    %484 = arith.mulf %483, %482 : vector<8x128xf32>
    %485 = math.tanh %484 : vector<8x128xf32>
    %cst_263 = arith.constant 5.000000e-01 : f32
    %486 = vector.broadcast %cst_263 : f32 to vector<8x128xf32>
    %487 = arith.mulf %486, %485 : vector<8x128xf32>
    %cst_264 = arith.constant 5.000000e-01 : f32
    %488 = vector.broadcast %cst_264 : f32 to vector<8x128xf32>
    %489 = arith.addf %487, %488 : vector<8x128xf32>
    %490 = vector.extract_strided_slice %481 {offsets = [0, 128], sizes = [8, 128], strides = [1, 1]} : vector<8x512xf32> to vector<8x128xf32>
    %cst_265 = arith.constant 5.000000e-01 : f32
    %491 = vector.broadcast %cst_265 : f32 to vector<8x128xf32>
    %492 = arith.mulf %491, %490 : vector<8x128xf32>
    %493 = math.tanh %492 : vector<8x128xf32>
    %cst_266 = arith.constant 5.000000e-01 : f32
    %494 = vector.broadcast %cst_266 : f32 to vector<8x128xf32>
    %495 = arith.mulf %494, %493 : vector<8x128xf32>
    %cst_267 = arith.constant 5.000000e-01 : f32
    %496 = vector.broadcast %cst_267 : f32 to vector<8x128xf32>
    %497 = arith.addf %495, %496 : vector<8x128xf32>
    %498 = vector.extract_strided_slice %481 {offsets = [0, 256], sizes = [8, 128], strides = [1, 1]} : vector<8x512xf32> to vector<8x128xf32>
    %499 = math.tanh %498 : vector<8x128xf32>
    %500 = vector.extract_strided_slice %481 {offsets = [0, 384], sizes = [8, 128], strides = [1, 1]} : vector<8x512xf32> to vector<8x128xf32>
    %cst_268 = arith.constant 5.000000e-01 : f32
    %501 = vector.broadcast %cst_268 : f32 to vector<8x128xf32>
    %502 = arith.mulf %501, %500 : vector<8x128xf32>
    %503 = math.tanh %502 : vector<8x128xf32>
    %cst_269 = arith.constant 5.000000e-01 : f32
    %504 = vector.broadcast %cst_269 : f32 to vector<8x128xf32>
    %505 = arith.mulf %504, %503 : vector<8x128xf32>
    %cst_270 = arith.constant 5.000000e-01 : f32
    %506 = vector.broadcast %cst_270 : f32 to vector<8x128xf32>
    %507 = arith.addf %505, %506 : vector<8x128xf32>
    %508 = arith.mulf %497, %476 : vector<8x128xf32>
    %509 = arith.mulf %489, %499 : vector<8x128xf32>
    %510 = arith.addf %508, %509 : vector<8x128xf32>
    %511 = math.tanh %510 : vector<8x128xf32>
    %512 = arith.mulf %507, %511 : vector<8x128xf32>
    %c0_271 = arith.constant 0 : index
    %c0_272 = arith.constant 0 : index
    %513 = vector.load %arg9[%c0_271, %c0_272] : memref<8x128xf32, #tpu.memory_space<vmem>>, vector<8x128xf32>
    tpu.vector_store %arg9[%c0_271, %c0_272], %512 {strides = array<i32>} : memref<8x128xf32, #tpu.memory_space<vmem>>, vector<8x128xf32>,
    %c0_273 = arith.constant 0 : index
    %c0_274 = arith.constant 0 : index
    %514 = vector.load %arg10[%c0_273, %c0_274] : memref<8x128xf32, #tpu.memory_space<vmem>>, vector<8x128xf32>
    tpu.vector_store %arg10[%c0_273, %c0_274], %510 {strides = array<i32>} : memref<8x128xf32, #tpu.memory_space<vmem>>, vector<8x128xf32>,
    %c3_i32_275 = arith.constant 3 : i32
    %515 = arith.index_cast %c3_i32_275 : i32 to index
    %c0_276 = arith.constant 0 : index
    %c0_277 = arith.constant 0 : index
    %516 = vector.load %arg8[%515, %c0_276, %c0_277] : memref<8x8x128xf32, #tpu.memory_space<vmem>>, vector<1x8x128xf32>
    %517 = vector.shape_cast %516 : vector<1x8x128xf32> to vector<8x128xf32>
    %c0_278 = arith.constant 0 : index
    %c0_279 = arith.constant 0 : index
    %518 = vector.load %arg9[%c0_278, %c0_279] : memref<8x128xf32, #tpu.memory_space<vmem>>, vector<8x128xf32>
    %c0_280 = arith.constant 0 : index
    %c0_281 = arith.constant 0 : index
    %519 = vector.load %arg10[%c0_280, %c0_281] : memref<8x128xf32, #tpu.memory_space<vmem>>, vector<8x128xf32>
    %520 = tpu.concatenate %517, %518 in 1 : vector<8x128xf32>, vector<8x128xf32> -> vector<8x256xf32>
    %c0_282 = arith.constant 0 : index
    %c0_283 = arith.constant 0 : index
    %521 = vector.load %arg3[%c0_282, %c0_283] : memref<256x512xf32, #tpu.memory_space<vmem>>, vector<256x512xf32>
    %cst_284 = arith.constant dense<0.000000e+00> : vector<8x512xf32>
    %522 = tpu.matmul %520, %521, %cst_284 {dimension_numbers = #tpu.dot_dimension_numbers<[1], [0], [0], [1], [0, 0, 1, 1], [], []>} : vector<8x256xf32>, vector<256x512xf32>, vector<8x512xf32> -> vector<8x512xf32>
    %523 = vector.broadcast %385 : vector<1x512xf32> to vector<8x512xf32>
    %524 = arith.addf %522, %523 : vector<8x512xf32>
    %525 = vector.extract_strided_slice %524 {offsets = [0, 0], sizes = [8, 128], strides = [1, 1]} : vector<8x512xf32> to vector<8x128xf32>
    %cst_285 = arith.constant 5.000000e-01 : f32
    %526 = vector.broadcast %cst_285 : f32 to vector<8x128xf32>
    %527 = arith.mulf %526, %525 : vector<8x128xf32>
    %528 = math.tanh %527 : vector<8x128xf32>
    %cst_286 = arith.constant 5.000000e-01 : f32
    %529 = vector.broadcast %cst_286 : f32 to vector<8x128xf32>
    %530 = arith.mulf %529, %528 : vector<8x128xf32>
    %cst_287 = arith.constant 5.000000e-01 : f32
    %531 = vector.broadcast %cst_287 : f32 to vector<8x128xf32>
    %532 = arith.addf %530, %531 : vector<8x128xf32>
    %533 = vector.extract_strided_slice %524 {offsets = [0, 128], sizes = [8, 128], strides = [1, 1]} : vector<8x512xf32> to vector<8x128xf32>
    %cst_288 = arith.constant 5.000000e-01 : f32
    %534 = vector.broadcast %cst_288 : f32 to vector<8x128xf32>
    %535 = arith.mulf %534, %533 : vector<8x128xf32>
    %536 = math.tanh %535 : vector<8x128xf32>
    %cst_289 = arith.constant 5.000000e-01 : f32
    %537 = vector.broadcast %cst_289 : f32 to vector<8x128xf32>
    %538 = arith.mulf %537, %536 : vector<8x128xf32>
    %cst_290 = arith.constant 5.000000e-01 : f32
    %539 = vector.broadcast %cst_290 : f32 to vector<8x128xf32>
    %540 = arith.addf %538, %539 : vector<8x128xf32>
    %541 = vector.extract_strided_slice %524 {offsets = [0, 256], sizes = [8, 128], strides = [1, 1]} : vector<8x512xf32> to vector<8x128xf32>
    %542 = math.tanh %541 : vector<8x128xf32>
    %543 = vector.extract_strided_slice %524 {offsets = [0, 384], sizes = [8, 128], strides = [1, 1]} : vector<8x512xf32> to vector<8x128xf32>
    %cst_291 = arith.constant 5.000000e-01 : f32
    %544 = vector.broadcast %cst_291 : f32 to vector<8x128xf32>
    %545 = arith.mulf %544, %543 : vector<8x128xf32>
    %546 = math.tanh %545 : vector<8x128xf32>
    %cst_292 = arith.constant 5.000000e-01 : f32
    %547 = vector.broadcast %cst_292 : f32 to vector<8x128xf32>
    %548 = arith.mulf %547, %546 : vector<8x128xf32>
    %cst_293 = arith.constant 5.000000e-01 : f32
    %549 = vector.broadcast %cst_293 : f32 to vector<8x128xf32>
    %550 = arith.addf %548, %549 : vector<8x128xf32>
    %551 = arith.mulf %540, %519 : vector<8x128xf32>
    %552 = arith.mulf %532, %542 : vector<8x128xf32>
    %553 = arith.addf %551, %552 : vector<8x128xf32>
    %554 = math.tanh %553 : vector<8x128xf32>
    %555 = arith.mulf %550, %554 : vector<8x128xf32>
    %c0_294 = arith.constant 0 : index
    %c0_295 = arith.constant 0 : index
    %556 = vector.load %arg9[%c0_294, %c0_295] : memref<8x128xf32, #tpu.memory_space<vmem>>, vector<8x128xf32>
    tpu.vector_store %arg9[%c0_294, %c0_295], %555 {strides = array<i32>} : memref<8x128xf32, #tpu.memory_space<vmem>>, vector<8x128xf32>,
    %c0_296 = arith.constant 0 : index
    %c0_297 = arith.constant 0 : index
    %557 = vector.load %arg10[%c0_296, %c0_297] : memref<8x128xf32, #tpu.memory_space<vmem>>, vector<8x128xf32>
    tpu.vector_store %arg10[%c0_296, %c0_297], %553 {strides = array<i32>} : memref<8x128xf32, #tpu.memory_space<vmem>>, vector<8x128xf32>,
    %c4_i32_298 = arith.constant 4 : i32
    %558 = arith.index_cast %c4_i32_298 : i32 to index
    %c0_299 = arith.constant 0 : index
    %c0_300 = arith.constant 0 : index
    %559 = vector.load %arg8[%558, %c0_299, %c0_300] : memref<8x8x128xf32, #tpu.memory_space<vmem>>, vector<1x8x128xf32>
    %560 = vector.shape_cast %559 : vector<1x8x128xf32> to vector<8x128xf32>
    %c0_301 = arith.constant 0 : index
    %c0_302 = arith.constant 0 : index
    %561 = vector.load %arg9[%c0_301, %c0_302] : memref<8x128xf32, #tpu.memory_space<vmem>>, vector<8x128xf32>
    %c0_303 = arith.constant 0 : index
    %c0_304 = arith.constant 0 : index
    %562 = vector.load %arg10[%c0_303, %c0_304] : memref<8x128xf32, #tpu.memory_space<vmem>>, vector<8x128xf32>
    %563 = tpu.concatenate %560, %561 in 1 : vector<8x128xf32>, vector<8x128xf32> -> vector<8x256xf32>
    %c0_305 = arith.constant 0 : index
    %c0_306 = arith.constant 0 : index
    %564 = vector.load %arg3[%c0_305, %c0_306] : memref<256x512xf32, #tpu.memory_space<vmem>>, vector<256x512xf32>
    %cst_307 = arith.constant dense<0.000000e+00> : vector<8x512xf32>
    %565 = tpu.matmul %563, %564, %cst_307 {dimension_numbers = #tpu.dot_dimension_numbers<[1], [0], [0], [1], [0, 0, 1, 1], [], []>} : vector<8x256xf32>, vector<256x512xf32>, vector<8x512xf32> -> vector<8x512xf32>
    %566 = vector.broadcast %385 : vector<1x512xf32> to vector<8x512xf32>
    %567 = arith.addf %565, %566 : vector<8x512xf32>
    %568 = vector.extract_strided_slice %567 {offsets = [0, 0], sizes = [8, 128], strides = [1, 1]} : vector<8x512xf32> to vector<8x128xf32>
    %cst_308 = arith.constant 5.000000e-01 : f32
    %569 = vector.broadcast %cst_308 : f32 to vector<8x128xf32>
    %570 = arith.mulf %569, %568 : vector<8x128xf32>
    %571 = math.tanh %570 : vector<8x128xf32>
    %cst_309 = arith.constant 5.000000e-01 : f32
    %572 = vector.broadcast %cst_309 : f32 to vector<8x128xf32>
    %573 = arith.mulf %572, %571 : vector<8x128xf32>
    %cst_310 = arith.constant 5.000000e-01 : f32
    %574 = vector.broadcast %cst_310 : f32 to vector<8x128xf32>
    %575 = arith.addf %573, %574 : vector<8x128xf32>
    %576 = vector.extract_strided_slice %567 {offsets = [0, 128], sizes = [8, 128], strides = [1, 1]} : vector<8x512xf32> to vector<8x128xf32>
    %cst_311 = arith.constant 5.000000e-01 : f32
    %577 = vector.broadcast %cst_311 : f32 to vector<8x128xf32>
    %578 = arith.mulf %577, %576 : vector<8x128xf32>
    %579 = math.tanh %578 : vector<8x128xf32>
    %cst_312 = arith.constant 5.000000e-01 : f32
    %580 = vector.broadcast %cst_312 : f32 to vector<8x128xf32>
    %581 = arith.mulf %580, %579 : vector<8x128xf32>
    %cst_313 = arith.constant 5.000000e-01 : f32
    %582 = vector.broadcast %cst_313 : f32 to vector<8x128xf32>
    %583 = arith.addf %581, %582 : vector<8x128xf32>
    %584 = vector.extract_strided_slice %567 {offsets = [0, 256], sizes = [8, 128], strides = [1, 1]} : vector<8x512xf32> to vector<8x128xf32>
    %585 = math.tanh %584 : vector<8x128xf32>
    %586 = vector.extract_strided_slice %567 {offsets = [0, 384], sizes = [8, 128], strides = [1, 1]} : vector<8x512xf32> to vector<8x128xf32>
    %cst_314 = arith.constant 5.000000e-01 : f32
    %587 = vector.broadcast %cst_314 : f32 to vector<8x128xf32>
    %588 = arith.mulf %587, %586 : vector<8x128xf32>
    %589 = math.tanh %588 : vector<8x128xf32>
    %cst_315 = arith.constant 5.000000e-01 : f32
    %590 = vector.broadcast %cst_315 : f32 to vector<8x128xf32>
    %591 = arith.mulf %590, %589 : vector<8x128xf32>
    %cst_316 = arith.constant 5.000000e-01 : f32
    %592 = vector.broadcast %cst_316 : f32 to vector<8x128xf32>
    %593 = arith.addf %591, %592 : vector<8x128xf32>
    %594 = arith.mulf %583, %562 : vector<8x128xf32>
    %595 = arith.mulf %575, %585 : vector<8x128xf32>
    %596 = arith.addf %594, %595 : vector<8x128xf32>
    %597 = math.tanh %596 : vector<8x128xf32>
    %598 = arith.mulf %593, %597 : vector<8x128xf32>
    %c0_317 = arith.constant 0 : index
    %c0_318 = arith.constant 0 : index
    %599 = vector.load %arg9[%c0_317, %c0_318] : memref<8x128xf32, #tpu.memory_space<vmem>>, vector<8x128xf32>
    tpu.vector_store %arg9[%c0_317, %c0_318], %598 {strides = array<i32>} : memref<8x128xf32, #tpu.memory_space<vmem>>, vector<8x128xf32>,
    %c0_319 = arith.constant 0 : index
    %c0_320 = arith.constant 0 : index
    %600 = vector.load %arg10[%c0_319, %c0_320] : memref<8x128xf32, #tpu.memory_space<vmem>>, vector<8x128xf32>
    tpu.vector_store %arg10[%c0_319, %c0_320], %596 {strides = array<i32>} : memref<8x128xf32, #tpu.memory_space<vmem>>, vector<8x128xf32>,
    %c5_i32_321 = arith.constant 5 : i32
    %601 = arith.index_cast %c5_i32_321 : i32 to index
    %c0_322 = arith.constant 0 : index
    %c0_323 = arith.constant 0 : index
    %602 = vector.load %arg8[%601, %c0_322, %c0_323] : memref<8x8x128xf32, #tpu.memory_space<vmem>>, vector<1x8x128xf32>
    %603 = vector.shape_cast %602 : vector<1x8x128xf32> to vector<8x128xf32>
    %c0_324 = arith.constant 0 : index
    %c0_325 = arith.constant 0 : index
    %604 = vector.load %arg9[%c0_324, %c0_325] : memref<8x128xf32, #tpu.memory_space<vmem>>, vector<8x128xf32>
    %c0_326 = arith.constant 0 : index
    %c0_327 = arith.constant 0 : index
    %605 = vector.load %arg10[%c0_326, %c0_327] : memref<8x128xf32, #tpu.memory_space<vmem>>, vector<8x128xf32>
    %606 = tpu.concatenate %603, %604 in 1 : vector<8x128xf32>, vector<8x128xf32> -> vector<8x256xf32>
    %c0_328 = arith.constant 0 : index
    %c0_329 = arith.constant 0 : index
    %607 = vector.load %arg3[%c0_328, %c0_329] : memref<256x512xf32, #tpu.memory_space<vmem>>, vector<256x512xf32>
    %cst_330 = arith.constant dense<0.000000e+00> : vector<8x512xf32>
    %608 = tpu.matmul %606, %607, %cst_330 {dimension_numbers = #tpu.dot_dimension_numbers<[1], [0], [0], [1], [0, 0, 1, 1], [], []>} : vector<8x256xf32>, vector<256x512xf32>, vector<8x512xf32> -> vector<8x512xf32>
    %609 = vector.broadcast %385 : vector<1x512xf32> to vector<8x512xf32>
    %610 = arith.addf %608, %609 : vector<8x512xf32>
    %611 = vector.extract_strided_slice %610 {offsets = [0, 0], sizes = [8, 128], strides = [1, 1]} : vector<8x512xf32> to vector<8x128xf32>
    %cst_331 = arith.constant 5.000000e-01 : f32
    %612 = vector.broadcast %cst_331 : f32 to vector<8x128xf32>
    %613 = arith.mulf %612, %611 : vector<8x128xf32>
    %614 = math.tanh %613 : vector<8x128xf32>
    %cst_332 = arith.constant 5.000000e-01 : f32
    %615 = vector.broadcast %cst_332 : f32 to vector<8x128xf32>
    %616 = arith.mulf %615, %614 : vector<8x128xf32>
    %cst_333 = arith.constant 5.000000e-01 : f32
    %617 = vector.broadcast %cst_333 : f32 to vector<8x128xf32>
    %618 = arith.addf %616, %617 : vector<8x128xf32>
    %619 = vector.extract_strided_slice %610 {offsets = [0, 128], sizes = [8, 128], strides = [1, 1]} : vector<8x512xf32> to vector<8x128xf32>
    %cst_334 = arith.constant 5.000000e-01 : f32
    %620 = vector.broadcast %cst_334 : f32 to vector<8x128xf32>
    %621 = arith.mulf %620, %619 : vector<8x128xf32>
    %622 = math.tanh %621 : vector<8x128xf32>
    %cst_335 = arith.constant 5.000000e-01 : f32
    %623 = vector.broadcast %cst_335 : f32 to vector<8x128xf32>
    %624 = arith.mulf %623, %622 : vector<8x128xf32>
    %cst_336 = arith.constant 5.000000e-01 : f32
    %625 = vector.broadcast %cst_336 : f32 to vector<8x128xf32>
    %626 = arith.addf %624, %625 : vector<8x128xf32>
    %627 = vector.extract_strided_slice %610 {offsets = [0, 256], sizes = [8, 128], strides = [1, 1]} : vector<8x512xf32> to vector<8x128xf32>
    %628 = math.tanh %627 : vector<8x128xf32>
    %629 = vector.extract_strided_slice %610 {offsets = [0, 384], sizes = [8, 128], strides = [1, 1]} : vector<8x512xf32> to vector<8x128xf32>
    %cst_337 = arith.constant 5.000000e-01 : f32
    %630 = vector.broadcast %cst_337 : f32 to vector<8x128xf32>
    %631 = arith.mulf %630, %629 : vector<8x128xf32>
    %632 = math.tanh %631 : vector<8x128xf32>
    %cst_338 = arith.constant 5.000000e-01 : f32
    %633 = vector.broadcast %cst_338 : f32 to vector<8x128xf32>
    %634 = arith.mulf %633, %632 : vector<8x128xf32>
    %cst_339 = arith.constant 5.000000e-01 : f32
    %635 = vector.broadcast %cst_339 : f32 to vector<8x128xf32>
    %636 = arith.addf %634, %635 : vector<8x128xf32>
    %637 = arith.mulf %626, %605 : vector<8x128xf32>
    %638 = arith.mulf %618, %628 : vector<8x128xf32>
    %639 = arith.addf %637, %638 : vector<8x128xf32>
    %640 = math.tanh %639 : vector<8x128xf32>
    %641 = arith.mulf %636, %640 : vector<8x128xf32>
    %c0_340 = arith.constant 0 : index
    %c0_341 = arith.constant 0 : index
    %642 = vector.load %arg9[%c0_340, %c0_341] : memref<8x128xf32, #tpu.memory_space<vmem>>, vector<8x128xf32>
    tpu.vector_store %arg9[%c0_340, %c0_341], %641 {strides = array<i32>} : memref<8x128xf32, #tpu.memory_space<vmem>>, vector<8x128xf32>,
    %c0_342 = arith.constant 0 : index
    %c0_343 = arith.constant 0 : index
    %643 = vector.load %arg10[%c0_342, %c0_343] : memref<8x128xf32, #tpu.memory_space<vmem>>, vector<8x128xf32>
    tpu.vector_store %arg10[%c0_342, %c0_343], %639 {strides = array<i32>} : memref<8x128xf32, #tpu.memory_space<vmem>>, vector<8x128xf32>,
    %c6_i32_344 = arith.constant 6 : i32
    %644 = arith.index_cast %c6_i32_344 : i32 to index
    %c0_345 = arith.constant 0 : index
    %c0_346 = arith.constant 0 : index
    %645 = vector.load %arg8[%644, %c0_345, %c0_346] : memref<8x8x128xf32, #tpu.memory_space<vmem>>, vector<1x8x128xf32>
    %646 = vector.shape_cast %645 : vector<1x8x128xf32> to vector<8x128xf32>
    %c0_347 = arith.constant 0 : index
    %c0_348 = arith.constant 0 : index
    %647 = vector.load %arg9[%c0_347, %c0_348] : memref<8x128xf32, #tpu.memory_space<vmem>>, vector<8x128xf32>
    %c0_349 = arith.constant 0 : index
    %c0_350 = arith.constant 0 : index
    %648 = vector.load %arg10[%c0_349, %c0_350] : memref<8x128xf32, #tpu.memory_space<vmem>>, vector<8x128xf32>
    %649 = tpu.concatenate %646, %647 in 1 : vector<8x128xf32>, vector<8x128xf32> -> vector<8x256xf32>
    %c0_351 = arith.constant 0 : index
    %c0_352 = arith.constant 0 : index
    %650 = vector.load %arg3[%c0_351, %c0_352] : memref<256x512xf32, #tpu.memory_space<vmem>>, vector<256x512xf32>
    %cst_353 = arith.constant dense<0.000000e+00> : vector<8x512xf32>
    %651 = tpu.matmul %649, %650, %cst_353 {dimension_numbers = #tpu.dot_dimension_numbers<[1], [0], [0], [1], [0, 0, 1, 1], [], []>} : vector<8x256xf32>, vector<256x512xf32>, vector<8x512xf32> -> vector<8x512xf32>
    %652 = vector.broadcast %385 : vector<1x512xf32> to vector<8x512xf32>
    %653 = arith.addf %651, %652 : vector<8x512xf32>
    %654 = vector.extract_strided_slice %653 {offsets = [0, 0], sizes = [8, 128], strides = [1, 1]} : vector<8x512xf32> to vector<8x128xf32>
    %cst_354 = arith.constant 5.000000e-01 : f32
    %655 = vector.broadcast %cst_354 : f32 to vector<8x128xf32>
    %656 = arith.mulf %655, %654 : vector<8x128xf32>
    %657 = math.tanh %656 : vector<8x128xf32>
    %cst_355 = arith.constant 5.000000e-01 : f32
    %658 = vector.broadcast %cst_355 : f32 to vector<8x128xf32>
    %659 = arith.mulf %658, %657 : vector<8x128xf32>
    %cst_356 = arith.constant 5.000000e-01 : f32
    %660 = vector.broadcast %cst_356 : f32 to vector<8x128xf32>
    %661 = arith.addf %659, %660 : vector<8x128xf32>
    %662 = vector.extract_strided_slice %653 {offsets = [0, 128], sizes = [8, 128], strides = [1, 1]} : vector<8x512xf32> to vector<8x128xf32>
    %cst_357 = arith.constant 5.000000e-01 : f32
    %663 = vector.broadcast %cst_357 : f32 to vector<8x128xf32>
    %664 = arith.mulf %663, %662 : vector<8x128xf32>
    %665 = math.tanh %664 : vector<8x128xf32>
    %cst_358 = arith.constant 5.000000e-01 : f32
    %666 = vector.broadcast %cst_358 : f32 to vector<8x128xf32>
    %667 = arith.mulf %666, %665 : vector<8x128xf32>
    %cst_359 = arith.constant 5.000000e-01 : f32
    %668 = vector.broadcast %cst_359 : f32 to vector<8x128xf32>
    %669 = arith.addf %667, %668 : vector<8x128xf32>
    %670 = vector.extract_strided_slice %653 {offsets = [0, 256], sizes = [8, 128], strides = [1, 1]} : vector<8x512xf32> to vector<8x128xf32>
    %671 = math.tanh %670 : vector<8x128xf32>
    %672 = vector.extract_strided_slice %653 {offsets = [0, 384], sizes = [8, 128], strides = [1, 1]} : vector<8x512xf32> to vector<8x128xf32>
    %cst_360 = arith.constant 5.000000e-01 : f32
    %673 = vector.broadcast %cst_360 : f32 to vector<8x128xf32>
    %674 = arith.mulf %673, %672 : vector<8x128xf32>
    %675 = math.tanh %674 : vector<8x128xf32>
    %cst_361 = arith.constant 5.000000e-01 : f32
    %676 = vector.broadcast %cst_361 : f32 to vector<8x128xf32>
    %677 = arith.mulf %676, %675 : vector<8x128xf32>
    %cst_362 = arith.constant 5.000000e-01 : f32
    %678 = vector.broadcast %cst_362 : f32 to vector<8x128xf32>
    %679 = arith.addf %677, %678 : vector<8x128xf32>
    %680 = arith.mulf %669, %648 : vector<8x128xf32>
    %681 = arith.mulf %661, %671 : vector<8x128xf32>
    %682 = arith.addf %680, %681 : vector<8x128xf32>
    %683 = math.tanh %682 : vector<8x128xf32>
    %684 = arith.mulf %679, %683 : vector<8x128xf32>
    %c0_363 = arith.constant 0 : index
    %c0_364 = arith.constant 0 : index
    %685 = vector.load %arg9[%c0_363, %c0_364] : memref<8x128xf32, #tpu.memory_space<vmem>>, vector<8x128xf32>
    tpu.vector_store %arg9[%c0_363, %c0_364], %684 {strides = array<i32>} : memref<8x128xf32, #tpu.memory_space<vmem>>, vector<8x128xf32>,
    %c0_365 = arith.constant 0 : index
    %c0_366 = arith.constant 0 : index
    %686 = vector.load %arg10[%c0_365, %c0_366] : memref<8x128xf32, #tpu.memory_space<vmem>>, vector<8x128xf32>
    tpu.vector_store %arg10[%c0_365, %c0_366], %682 {strides = array<i32>} : memref<8x128xf32, #tpu.memory_space<vmem>>, vector<8x128xf32>,
    %c7_i32_367 = arith.constant 7 : i32
    %687 = arith.index_cast %c7_i32_367 : i32 to index
    %c0_368 = arith.constant 0 : index
    %c0_369 = arith.constant 0 : index
    %688 = vector.load %arg8[%687, %c0_368, %c0_369] : memref<8x8x128xf32, #tpu.memory_space<vmem>>, vector<1x8x128xf32>
    %689 = vector.shape_cast %688 : vector<1x8x128xf32> to vector<8x128xf32>
    %c0_370 = arith.constant 0 : index
    %c0_371 = arith.constant 0 : index
    %690 = vector.load %arg9[%c0_370, %c0_371] : memref<8x128xf32, #tpu.memory_space<vmem>>, vector<8x128xf32>
    %c0_372 = arith.constant 0 : index
    %c0_373 = arith.constant 0 : index
    %691 = vector.load %arg10[%c0_372, %c0_373] : memref<8x128xf32, #tpu.memory_space<vmem>>, vector<8x128xf32>
    %692 = tpu.concatenate %689, %690 in 1 : vector<8x128xf32>, vector<8x128xf32> -> vector<8x256xf32>
    %c0_374 = arith.constant 0 : index
    %c0_375 = arith.constant 0 : index
    %693 = vector.load %arg3[%c0_374, %c0_375] : memref<256x512xf32, #tpu.memory_space<vmem>>, vector<256x512xf32>
    %cst_376 = arith.constant dense<0.000000e+00> : vector<8x512xf32>
    %694 = tpu.matmul %692, %693, %cst_376 {dimension_numbers = #tpu.dot_dimension_numbers<[1], [0], [0], [1], [0, 0, 1, 1], [], []>} : vector<8x256xf32>, vector<256x512xf32>, vector<8x512xf32> -> vector<8x512xf32>
    %695 = vector.broadcast %385 : vector<1x512xf32> to vector<8x512xf32>
    %696 = arith.addf %694, %695 : vector<8x512xf32>
    %697 = vector.extract_strided_slice %696 {offsets = [0, 0], sizes = [8, 128], strides = [1, 1]} : vector<8x512xf32> to vector<8x128xf32>
    %cst_377 = arith.constant 5.000000e-01 : f32
    %698 = vector.broadcast %cst_377 : f32 to vector<8x128xf32>
    %699 = arith.mulf %698, %697 : vector<8x128xf32>
    %700 = math.tanh %699 : vector<8x128xf32>
    %cst_378 = arith.constant 5.000000e-01 : f32
    %701 = vector.broadcast %cst_378 : f32 to vector<8x128xf32>
    %702 = arith.mulf %701, %700 : vector<8x128xf32>
    %cst_379 = arith.constant 5.000000e-01 : f32
    %703 = vector.broadcast %cst_379 : f32 to vector<8x128xf32>
    %704 = arith.addf %702, %703 : vector<8x128xf32>
    %705 = vector.extract_strided_slice %696 {offsets = [0, 128], sizes = [8, 128], strides = [1, 1]} : vector<8x512xf32> to vector<8x128xf32>
    %cst_380 = arith.constant 5.000000e-01 : f32
    %706 = vector.broadcast %cst_380 : f32 to vector<8x128xf32>
    %707 = arith.mulf %706, %705 : vector<8x128xf32>
    %708 = math.tanh %707 : vector<8x128xf32>
    %cst_381 = arith.constant 5.000000e-01 : f32
    %709 = vector.broadcast %cst_381 : f32 to vector<8x128xf32>
    %710 = arith.mulf %709, %708 : vector<8x128xf32>
    %cst_382 = arith.constant 5.000000e-01 : f32
    %711 = vector.broadcast %cst_382 : f32 to vector<8x128xf32>
    %712 = arith.addf %710, %711 : vector<8x128xf32>
    %713 = vector.extract_strided_slice %696 {offsets = [0, 256], sizes = [8, 128], strides = [1, 1]} : vector<8x512xf32> to vector<8x128xf32>
    %714 = math.tanh %713 : vector<8x128xf32>
    %715 = vector.extract_strided_slice %696 {offsets = [0, 384], sizes = [8, 128], strides = [1, 1]} : vector<8x512xf32> to vector<8x128xf32>
    %cst_383 = arith.constant 5.000000e-01 : f32
    %716 = vector.broadcast %cst_383 : f32 to vector<8x128xf32>
    %717 = arith.mulf %716, %715 : vector<8x128xf32>
    %718 = math.tanh %717 : vector<8x128xf32>
    %cst_384 = arith.constant 5.000000e-01 : f32
    %719 = vector.broadcast %cst_384 : f32 to vector<8x128xf32>
    %720 = arith.mulf %719, %718 : vector<8x128xf32>
    %cst_385 = arith.constant 5.000000e-01 : f32
    %721 = vector.broadcast %cst_385 : f32 to vector<8x128xf32>
    %722 = arith.addf %720, %721 : vector<8x128xf32>
    %723 = arith.mulf %712, %691 : vector<8x128xf32>
    %724 = arith.mulf %704, %714 : vector<8x128xf32>
    %725 = arith.addf %723, %724 : vector<8x128xf32>
    %726 = math.tanh %725 : vector<8x128xf32>
    %727 = arith.mulf %722, %726 : vector<8x128xf32>
    %c0_386 = arith.constant 0 : index
    %c0_387 = arith.constant 0 : index
    %728 = vector.load %arg9[%c0_386, %c0_387] : memref<8x128xf32, #tpu.memory_space<vmem>>, vector<8x128xf32>
    tpu.vector_store %arg9[%c0_386, %c0_387], %727 {strides = array<i32>} : memref<8x128xf32, #tpu.memory_space<vmem>>, vector<8x128xf32>,
    %c0_388 = arith.constant 0 : index
    %c0_389 = arith.constant 0 : index
    %729 = vector.load %arg10[%c0_388, %c0_389] : memref<8x128xf32, #tpu.memory_space<vmem>>, vector<8x128xf32>
    tpu.vector_store %arg10[%c0_388, %c0_389], %725 {strides = array<i32>} : memref<8x128xf32, #tpu.memory_space<vmem>>, vector<8x128xf32>,
    %c8_i32_390 = arith.constant 8 : i32
    %c0_391 = arith.constant 0 : index
    %c0_392 = arith.constant 0 : index
    %730 = vector.load %arg9[%c0_391, %c0_392] : memref<8x128xf32, #tpu.memory_space<vmem>>, vector<8x128xf32>
    %c0_393 = arith.constant 0 : index
    %c0_394 = arith.constant 0 : index
    %731 = vector.load %arg5[%c0_393, %c0_394] : memref<1x128xf32, #tpu.memory_space<vmem>>, vector<1x128xf32>
    %732 = vector.broadcast %731 : vector<1x128xf32> to vector<8x128xf32>
    %733 = arith.mulf %730, %732 : vector<8x128xf32>
    %cst_395 = arith.constant dense<0.000000e+00> : vector<8xf32>
    %734 = vector.multi_reduction <add>, %733, %cst_395 [1] : vector<8x128xf32> to vector<8xf32>
    %735 = vector.shape_cast %734 : vector<8xf32> to vector<8x1xf32>
    %c0_396 = arith.constant 0 : index
    %c0_397 = arith.constant 0 : index
    %736 = vector.load %arg6[%c0_396, %c0_397] : memref<1x1xf32, #tpu.memory_space<vmem>>, vector<1x1xf32>
    %737 = vector.broadcast %736 : vector<1x1xf32> to vector<8x1xf32>
    %738 = arith.addf %735, %737 : vector<8x1xf32>
    %cst_398 = arith.constant 5.000000e-01 : f32
    %739 = vector.broadcast %cst_398 : f32 to vector<8x1xf32>
    %740 = arith.mulf %739, %738 : vector<8x1xf32>
    %741 = math.tanh %740 : vector<8x1xf32>
    %cst_399 = arith.constant 5.000000e-01 : f32
    %742 = vector.broadcast %cst_399 : f32 to vector<8x1xf32>
    %743 = arith.mulf %742, %741 : vector<8x1xf32>
    %cst_400 = arith.constant 5.000000e-01 : f32
    %744 = vector.broadcast %cst_400 : f32 to vector<8x1xf32>
    %745 = arith.addf %743, %744 : vector<8x1xf32>
    %c0_401 = arith.constant 0 : index
    %c0_402 = arith.constant 0 : index
    %746 = vector.load %arg7[%c0_401, %c0_402] : memref<8x1xf32, #tpu.memory_space<vmem>>, vector<8x1xf32>
    tpu.vector_store %arg7[%c0_401, %c0_402], %745 {strides = array<i32>} : memref<8x1xf32, #tpu.memory_space<vmem>>, vector<8x1xf32>,
    return
  }
}

</mosaic_0001>

<llo_original>
// kernel: lstm_model_forward.1
$region0: #{lstm_model_forward.1}
  #allocation0 [shape = 'u32[]', space=smem, size = 0x4, offset = 0x4, fixed_abs, tag = 'smem constant byte address 0x4 - core index']
  #allocation1 [shape = 'u32[144,128]{1,0:T(1,128)}', space=vmem, size = 0x12000, scoped, tag = 'internal scratch']
  #allocation2 [shape = 'f32[8,8,128]{2,1,0:T(8,128)}', space=vmem, size = 0x8000, scoped, tag = 'scratch operand']
  #allocation3 [shape = 'f32[8,128]{1,0:T(8,128)}', space=vmem, size = 0x1000, scoped, tag = 'scratch operand']
  #allocation4 [shape = 'f32[8,128]{1,0:T(8,128)}', space=vmem, size = 0x1000, scoped, tag = 'scratch operand']
  #allocation5 [shape = 'f32[1,1]{1,0:T(1,128)S(1)}', space=vmem, size = 0x200, scoped, tag = 'scoped memory for lstm_model_forward.1']
  %s0 = inlined_call_operand.vmem [shape: f32[8,8,128], index: 0, kind: input, shape index: {}]
  %s1 = inlined_call_operand.hbm [shape: f32[256,512], index: 1, kind: input, shape index: {}]
  %s2 = inlined_call_operand.vmem [shape: f32[1,512], index: 2, kind: input, shape index: {}]
  %s3 = inlined_call_operand.hbm [shape: f32[256,512], index: 3, kind: input, shape index: {}]
  %s4 = inlined_call_operand.vmem [shape: f32[1,512], index: 4, kind: input, shape index: {}]
  %s5 = inlined_call_operand.vmem [shape: f32[1,128], index: 5, kind: input, shape index: {}]
  %s6 = inlined_call_operand.<no memory space> [shape: f32[1,1], index: 6, kind: input, shape index: {}]
  %s7 = inlined_call_operand.vmem [shape: f32[8,1], index: 7, kind: output, shape index: {}]
  %s8 = sld [smem:[#allocation0]]
  $region46: #{lstm_model_forward.1} parent=0
    _
  %s10 = ssub.s32 1, %s8
  %s11 = scalar_select 0, %s10, %s8
  %v12 = vstv %s6
  %13 = vst [vmem:[#allocation5] sm:$0x1] %v12
  $region1: #{lstm_model_forward.1} parent=0
    #allocation6 [shape = 'u8[524288]{0}', space=vmem, size = 0x80000, scoped, tag = 'input window, operand 1, single buffered']
    #allocation7 [shape = 's32[1]{0}', space=sflag, size = 0x4, scoped, tag = 'scoped memory for lstm_model_forward.1']
    #allocation8 [shape = 'u8[524288]{0}', space=vmem, size = 0x80000, scoped, tag = 'input window, operand 3, single buffered']
    #allocation9 [shape = 's32[1]{0}', space=sflag, size = 0x4, scoped, tag = 'scoped memory for lstm_model_forward.1']
    %14 = vsyncpa [#allocation7], 0
    %15 = vsyncpa [#allocation9], 0
    // Predicated region
    $region2: #{lstm_model_forward.1} parent=1 // pred_check
      _
    $region3: #{lstm_model_forward.1} parent=1 // pred_check_branch
      %17 = sbr.rel (0) target = $region5
    $region4: #{lstm_model_forward.1} parent=1 // pred_region
      _
    $region5: #{lstm_model_forward.1} parent=1 // pred_fallthru
      _
    // Predicated region
    $region6: #{lstm_model_forward.1} parent=1 // pred_check
      _
    $region7: #{lstm_model_forward.1} parent=1 // pred_check_branch
      %19 = sbr.rel (0) target = $region9
    $region8: #{lstm_model_forward.1} parent=1 // pred_region
      %s21 = ssub.s32 16384, 16384
      %22 = vsyncadd [#allocation7], %s21
      %s23 = sshll.u32 [#allocation6], 4
      %s24 = int_to_ptr.vmem [resolvable:$true] %s23
      %29 = dma.hbm_to_vmem [thread:$0]  %s1, 16384, %s24, [#allocation7], 512, 512, 32
    $region9: #{lstm_model_forward.1} parent=1 // pred_fallthru
      _
    // Predicated region
    $region10: #{lstm_model_forward.1} parent=1 // pred_check
      _
    $region11: #{lstm_model_forward.1} parent=1 // pred_check_branch
      %31 = sbr.rel (0) target = $region13
    $region12: #{lstm_model_forward.1} parent=1 // pred_region
      _
    $region13: #{lstm_model_forward.1} parent=1 // pred_fallthru
      _
    // Predicated region
    $region14: #{lstm_model_forward.1} parent=1 // pred_check
      _
    $region15: #{lstm_model_forward.1} parent=1 // pred_check_branch
      %33 = sbr.rel (0) target = $region17
    $region16: #{lstm_model_forward.1} parent=1 // pred_region
      %s35 = ssub.s32 16384, 16384
      %36 = vsyncadd [#allocation9], %s35
      %s37 = sshll.u32 [#allocation8], 4
      %s38 = int_to_ptr.vmem [resolvable:$true] %s37
      %43 = dma.hbm_to_vmem [thread:$0]  %s3, 16384, %s38, [#allocation9], 512, 512, 32
    $region17: #{lstm_model_forward.1} parent=1 // pred_fallthru
      _
    // Predicated region
    $region18: #{lstm_model_forward.1} parent=1 // pred_check
      _
    $region19: #{lstm_model_forward.1} parent=1 // pred_check_branch
      %45 = sbr.rel (0) target = $region21
    $region20: #{lstm_model_forward.1} parent=1 // pred_region
      _
    $region21: #{lstm_model_forward.1} parent=1 // pred_fallthru
      _
    // Predicated region
    $region22: #{lstm_model_forward.1} parent=1 // pred_check
      _
    $region23: #{lstm_model_forward.1} parent=1 // pred_check_branch
      %47 = sbr.rel (0) target = $region25
    $region24: #{lstm_model_forward.1} parent=1 // pred_region
      _
    $region25: #{lstm_model_forward.1} parent=1 // pred_fallthru
      _
    // Predicated region
    $region26: #{lstm_model_forward.1} parent=1 // pred_check
      _
    $region27: #{lstm_model_forward.1} parent=1 // pred_check_branch
      %49 = sbr.rel (0) target = $region29
    $region28: #{lstm_model_forward.1} parent=1 // pred_region
      _
    $region29: #{lstm_model_forward.1} parent=1 // pred_fallthru
      _
    // Predicated region
    $region30: #{lstm_model_forward.1} parent=1 // pred_check
      _
    $region31: #{lstm_model_forward.1} parent=1 // pred_check_branch
      %51 = sbr.rel (0) target = $region33
    $region32: #{lstm_model_forward.1} parent=1 // pred_region
      %52 = dma.done [#allocation7], 16384
    $region33: #{lstm_model_forward.1} parent=1 // pred_fallthru
      _
    // Predicated region
    $region34: #{lstm_model_forward.1} parent=1 // pred_check
      _
    $region35: #{lstm_model_forward.1} parent=1 // pred_check_branch
      %54 = sbr.rel (0) target = $region37
    $region36: #{lstm_model_forward.1} parent=1 // pred_region
      %55 = dma.done [#allocation9], 16384
    $region37: #{lstm_model_forward.1} parent=1 // pred_fallthru
      _
    %56 = vst [vmem:[#allocation3] sm:$0xff] 0.0
    %57 = vst [vmem:[#allocation4] sm:$0xff] 0.0
    %v58 = vld [vmem:[%s2] sm:$0xf]
    %v59 = vld [vmem:[%s0] sm:$0xff]
    %v60 = vld [vmem:[#allocation3] sm:$0xff]
    %v61 = vld [vmem:[#allocation4] sm:$0xff]
    %v62 = vld [vmem:[#allocation6] sm:$0xff]
    %v63 = vld [vmem:[#allocation6 + $0x8] sm:$0xff]
    %v64 = vld [vmem:[#allocation6 + $0x10] sm:$0xff]
    %v65 = vld [vmem:[#allocation6 + $0x18] sm:$0xff]
    %v66 = vld [vmem:[#allocation6 + $0x20] sm:$0xff]
    %v67 = vld [vmem:[#allocation6 + $0x28] sm:$0xff]
    %v68 = vld [vmem:[#allocation6 + $0x30] sm:$0xff]
    %v69 = vld [vmem:[#allocation6 + $0x38] sm:$0xff]
    %v70 = vld [vmem:[#allocation6 + $0x40] sm:$0xff]
    %v71 = vld [vmem:[#allocation6 + $0x48] sm:$0xff]
    %v72 = vld [vmem:[#allocation6 + $0x50] sm:$0xff]
    %v73 = vld [vmem:[#allocation6 + $0x58] sm:$0xff]
    %v74 = vld [vmem:[#allocation6 + $0x60] sm:$0xff]
    %v75 = vld [vmem:[#allocation6 + $0x68] sm:$0xff]
    %v76 = vld [vmem:[#allocation6 + $0x70] sm:$0xff]
    %v77 = vld [vmem:[#allocation6 + $0x78] sm:$0xff]
    %v78 = vld [vmem:[#allocation6 + $0x80] sm:$0xff]
    %v79 = vld [vmem:[#allocation6 + $0x88] sm:$0xff]
    %v80 = vld [vmem:[#allocation6 + $0x90] sm:$0xff]
    %v81 = vld [vmem:[#allocation6 + $0x98] sm:$0xff]
    %v82 = vld [vmem:[#allocation6 + $0xa0] sm:$0xff]
    %v83 = vld [vmem:[#allocation6 + $0xa8] sm:$0xff]
    %v84 = vld [vmem:[#allocation6 + $0xb0] sm:$0xff]
    %v85 = vld [vmem:[#allocation6 + $0xb8] sm:$0xff]
    %v86 = vld [vmem:[#allocation6 + $0xc0] sm:$0xff]
    %v87 = vld [vmem:[#allocation6 + $0xc8] sm:$0xff]
    %v88 = vld [vmem:[#allocation6 + $0xd0] sm:$0xff]
    %v89 = vld [vmem:[#allocation6 + $0xd8] sm:$0xff]
    %v90 = vld [vmem:[#allocation6 + $0xe0] sm:$0xff]
    %v91 = vld [vmem:[#allocation6 + $0xe8] sm:$0xff]
    %v92 = vld [vmem:[#allocation6 + $0xf0] sm:$0xff]
    %v93 = vld [vmem:[#allocation6 + $0xf8] sm:$0xff]
    %v94 = vld [vmem:[#allocation6 + $0x100] sm:$0xff]
    %v95 = vld [vmem:[#allocation6 + $0x108] sm:$0xff]
    %v96 = vld [vmem:[#allocation6 + $0x110] sm:$0xff]
    %v97 = vld [vmem:[#allocation6 + $0x118] sm:$0xff]
    %v98 = vld [vmem:[#allocation6 + $0x120] sm:$0xff]
    %v99 = vld [vmem:[#allocation6 + $0x128] sm:$0xff]
    %v100 = vld [vmem:[#allocation6 + $0x130] sm:$0xff]
    %v101 = vld [vmem:[#allocation6 + $0x138] sm:$0xff]
    %v102 = vld [vmem:[#allocation6 + $0x140] sm:$0xff]
    %v103 = vld [vmem:[#allocation6 + $0x148] sm:$0xff]
    %v104 = vld [vmem:[#allocation6 + $0x150] sm:$0xff]
    %v105 = vld [vmem:[#allocation6 + $0x158] sm:$0xff]
    %v106 = vld [vmem:[#allocation6 + $0x160] sm:$0xff]
    %v107 = vld [vmem:[#allocation6 + $0x168] sm:$0xff]
    %v108 = vld [vmem:[#allocation6 + $0x170] sm:$0xff]
    %v109 = vld [vmem:[#allocation6 + $0x178] sm:$0xff]
    %v110 = vld [vmem:[#allocation6 + $0x180] sm:$0xff]
    %v111 = vld [vmem:[#allocation6 + $0x188] sm:$0xff]
    %v112 = vld [vmem:[#allocation6 + $0x190] sm:$0xff]
    %v113 = vld [vmem:[#allocation6 + $0x198] sm:$0xff]
    %v114 = vld [vmem:[#allocation6 + $0x1a0] sm:$0xff]
    %v115 = vld [vmem:[#allocation6 + $0x1a8] sm:$0xff]
    %v116 = vld [vmem:[#allocation6 + $0x1b0] sm:$0xff]
    %v117 = vld [vmem:[#allocation6 + $0x1b8] sm:$0xff]
    %v118 = vld [vmem:[#allocation6 + $0x1c0] sm:$0xff]
    %v119 = vld [vmem:[#allocation6 + $0x1c8] sm:$0xff]
    %v120 = vld [vmem:[#allocation6 + $0x1d0] sm:$0xff]
    %v121 = vld [vmem:[#allocation6 + $0x1d8] sm:$0xff]
    %v122 = vld [vmem:[#allocation6 + $0x1e0] sm:$0xff]
    %v123 = vld [vmem:[#allocation6 + $0x1e8] sm:$0xff]
    %v124 = vld [vmem:[#allocation6 + $0x1f0] sm:$0xff]
    %v125 = vld [vmem:[#allocation6 + $0x1f8] sm:$0xff]
    %v126 = vld [vmem:[#allocation6 + $0x200] sm:$0xff]
    %v127 = vld [vmem:[#allocation6 + $0x208] sm:$0xff]
    %v128 = vld [vmem:[#allocation6 + $0x210] sm:$0xff]
    %v129 = vld [vmem:[#allocation6 + $0x218] sm:$0xff]
    %v130 = vld [vmem:[#allocation6 + $0x220] sm:$0xff]
    %v131 = vld [vmem:[#allocation6 + $0x228] sm:$0xff]
    %v132 = vld [vmem:[#allocation6 + $0x230] sm:$0xff]
    %v133 = vld [vmem:[#allocation6 + $0x238] sm:$0xff]
    %v134 = vld [vmem:[#allocation6 + $0x240] sm:$0xff]
    %v135 = vld [vmem:[#allocation6 + $0x248] sm:$0xff]
    %v136 = vld [vmem:[#allocation6 + $0x250] sm:$0xff]
    %v137 = vld [vmem:[#allocation6 + $0x258] sm:$0xff]
    %v138 = vld [vmem:[#allocation6 + $0x260] sm:$0xff]
    %v139 = vld [vmem:[#allocation6 + $0x268] sm:$0xff]
    %v140 = vld [vmem:[#allocation6 + $0x270] sm:$0xff]
    %v141 = vld [vmem:[#allocation6 + $0x278] sm:$0xff]
    %v142 = vld [vmem:[#allocation6 + $0x280] sm:$0xff]
    %v143 = vld [vmem:[#allocation6 + $0x288] sm:$0xff]
    %v144 = vld [vmem:[#allocation6 + $0x290] sm:$0xff]
    %v145 = vld [vmem:[#allocation6 + $0x298] sm:$0xff]
    %v146 = vld [vmem:[#allocation6 + $0x2a0] sm:$0xff]
    %v147 = vld [vmem:[#allocation6 + $0x2a8] sm:$0xff]
    %v148 = vld [vmem:[#allocation6 + $0x2b0] sm:$0xff]
    %v149 = vld [vmem:[#allocation6 + $0x2b8] sm:$0xff]
    %v150 = vld [vmem:[#allocation6 + $0x2c0] sm:$0xff]
    %v151 = vld [vmem:[#allocation6 + $0x2c8] sm:$0xff]
    %v152 = vld [vmem:[#allocation6 + $0x2d0] sm:$0xff]
    %v153 = vld [vmem:[#allocation6 + $0x2d8] sm:$0xff]
    %v154 = vld [vmem:[#allocation6 + $0x2e0] sm:$0xff]
    %v155 = vld [vmem:[#allocation6 + $0x2e8] sm:$0xff]
    %v156 = vld [vmem:[#allocation6 + $0x2f0] sm:$0xff]
    %v157 = vld [vmem:[#allocation6 + $0x2f8] sm:$0xff]
    %v158 = vld [vmem:[#allocation6 + $0x300] sm:$0xff]
    %v159 = vld [vmem:[#allocation6 + $0x308] sm:$0xff]
    %v160 = vld [vmem:[#allocation6 + $0x310] sm:$0xff]
    %v161 = vld [vmem:[#allocation6 + $0x318] sm:$0xff]
    %v162 = vld [vmem:[#allocation6 + $0x320] sm:$0xff]
    %v163 = vld [vmem:[#allocation6 + $0x328] sm:$0xff]
    %v164 = vld [vmem:[#allocation6 + $0x330] sm:$0xff]
    %v165 = vld [vmem:[#allocation6 + $0x338] sm:$0xff]
    %v166 = vld [vmem:[#allocation6 + $0x340] sm:$0xff]
    %v167 = vld [vmem:[#allocation6 + $0x348] sm:$0xff]
    %v168 = vld [vmem:[#allocation6 + $0x350] sm:$0xff]
    %v169 = vld [vmem:[#allocation6 + $0x358] sm:$0xff]
    %v170 = vld [vmem:[#allocation6 + $0x360] sm:$0xff]
    %v171 = vld [vmem:[#allocation6 + $0x368] sm:$0xff]
    %v172 = vld [vmem:[#allocation6 + $0x370] sm:$0xff]
    %v173 = vld [vmem:[#allocation6 + $0x378] sm:$0xff]
    %v174 = vld [vmem:[#allocation6 + $0x380] sm:$0xff]
    %v175 = vld [vmem:[#allocation6 + $0x388] sm:$0xff]
    %v176 = vld [vmem:[#allocation6 + $0x390] sm:$0xff]
    %v177 = vld [vmem:[#allocation6 + $0x398] sm:$0xff]
    %v178 = vld [vmem:[#allocation6 + $0x3a0] sm:$0xff]
    %v179 = vld [vmem:[#allocation6 + $0x3a8] sm:$0xff]
    %v180 = vld [vmem:[#allocation6 + $0x3b0] sm:$0xff]
    %v181 = vld [vmem:[#allocation6 + $0x3b8] sm:$0xff]
    %v182 = vld [vmem:[#allocation6 + $0x3c0] sm:$0xff]
    %v183 = vld [vmem:[#allocation6 + $0x3c8] sm:$0xff]
    %v184 = vld [vmem:[#allocation6 + $0x3d0] sm:$0xff]
    %v185 = vld [vmem:[#allocation6 + $0x3d8] sm:$0xff]
    %v186 = vld [vmem:[#allocation6 + $0x3e0] sm:$0xff]
    %v187 = vld [vmem:[#allocation6 + $0x3e8] sm:$0xff]
    %v188 = vld [vmem:[#allocation6 + $0x3f0] sm:$0xff]
    %v189 = vld [vmem:[#allocation6 + $0x3f8] sm:$0xff]
    %v191 = vlaneseq
    %v192 = vshrl.u32 %v191, 7
    %v193 = vsub.s32 0, %v192
    %v194 = vrot.slane %v58, %v193
    %v195 = vlaneseq
    %v196 = vshrl.u32 %v195, 7
    %v197 = vsub.s32 1, %v196
    %v198 = vrot.slane %v58, %v197
    %v199 = vlaneseq
    %v200 = vshrl.u32 %v199, 7
    %v201 = vsub.s32 2, %v200
    %v202 = vrot.slane %v58, %v201
    %v203 = vlaneseq
    %v204 = vshrl.u32 %v203, 7
    %v205 = vsub.s32 3, %v204
    %v206 = vrot.slane %v58, %v205
    %211 = vmatprep.subr.mxu0 %v63
    %212 = vmatpush1.msra.mxu0 %v62
    %213 = vmatprep.subr.mxu0 %v67
    %214 = vmatpush1.msra.mxu0 %v66
    %215 = vmatprep.subr.mxu0 %v71
    %216 = vmatpush1.msra.mxu0 %v70
    %217 = vmatprep.subr.mxu0 %v75
    %218 = vmatpush1.msra.mxu0 %v74
    %219 = vmatprep.subr.mxu0 %v79
    %220 = vmatpush1.msra.mxu0 %v78
    %221 = vmatprep.subr.mxu0 %v83
    %222 = vmatpush1.msra.mxu0 %v82
    %223 = vmatprep.subr.mxu0 %v87
    %224 = vmatpush1.msra.mxu0 %v86
    %225 = vmatprep.subr.mxu0 %v91
    %226 = vmatpush1.msra.mxu0 %v90
    %227 = vmatprep.subr.mxu0 %v95
    %228 = vmatpush1.msra.mxu0 %v94
    %229 = vmatprep.subr.mxu0 %v99
    %230 = vmatpush1.msra.mxu0 %v98
    %231 = vmatprep.subr.mxu0 %v103
    %232 = vmatpush1.msra.mxu0 %v102
    %233 = vmatprep.subr.mxu0 %v107
    %234 = vmatpush1.msra.mxu0 %v106
    %235 = vmatprep.subr.mxu0 %v111
    %236 = vmatpush1.msra.mxu0 %v110
    %237 = vmatprep.subr.mxu0 %v115
    %238 = vmatpush1.msra.mxu0 %v114
    %239 = vmatprep.subr.mxu0 %v119
    %240 = vmatpush1.msra.mxu0 %v118
    %241 = vmatprep.subr.mxu0 %v123
    %242 = vmatpush1.msra.mxu0 %v122
    %243 = vmatprep.subr.mxu0 %v127
    %244 = vmatpush1.msra.mxu0 %v126
    %245 = vmatprep.subr.mxu0 %v131
    %246 = vmatpush1.msra.mxu0 %v130
    %247 = vmatprep.subr.mxu0 %v135
    %248 = vmatpush1.msra.mxu0 %v134
    %249 = vmatprep.subr.mxu0 %v139
    %250 = vmatpush1.msra.mxu0 %v138
    %251 = vmatprep.subr.mxu0 %v143
    %252 = vmatpush1.msra.mxu0 %v142
    %253 = vmatprep.subr.mxu0 %v147
    %254 = vmatpush1.msra.mxu0 %v146
    %255 = vmatprep.subr.mxu0 %v151
    %256 = vmatpush1.msra.mxu0 %v150
    %257 = vmatprep.subr.mxu0 %v155
    %258 = vmatpush1.msra.mxu0 %v154
    %259 = vmatprep.subr.mxu0 %v159
    %260 = vmatpush1.msra.mxu0 %v158
    %261 = vmatprep.subr.mxu0 %v163
    %262 = vmatpush1.msra.mxu0 %v162
    %263 = vmatprep.subr.mxu0 %v167
    %264 = vmatpush1.msra.mxu0 %v166
    %265 = vmatprep.subr.mxu0 %v171
    %266 = vmatpush1.msra.mxu0 %v170
    %267 = vmatprep.subr.mxu0 %v175
    %268 = vmatpush1.msra.mxu0 %v174
    %269 = vmatprep.subr.mxu0 %v179
    %270 = vmatpush1.msra.mxu0 %v178
    %271 = vmatprep.subr.mxu0 %v183
    %272 = vmatpush1.msra.mxu0 %v182
    %273 = vmatprep.subr.mxu0 %v187
    %274 = vmatpush1.msra.mxu0 %v186
    %275 = vmatprep.mubr.f32.mxu0 %v60
    %276 = vmatmul.mubr.f32.gmra.mrb[0].mxu0 %v59
    %v277 = vpop.f32.mrb[0].mxu0
    %v278 = vadd.f32 %v194, %v277
    %v279 = vpop.f32.mrb[0].mxu0
    %v280 = vadd.f32 %v198, %v279
    %281 = vdwg.mxu0
    %282 = vmatprep.subr.mxu0 %v65
    %283 = vmatpush1.msra.mxu0 %v64
    %284 = vmatprep.subr.mxu0 %v69
    %285 = vmatpush1.msra.mxu0 %v68
    %286 = vmatprep.subr.mxu0 %v73
    %287 = vmatpush1.msra.mxu0 %v72
    %288 = vmatprep.subr.mxu0 %v77
    %289 = vmatpush1.msra.mxu0 %v76
    %290 = vmatprep.subr.mxu0 %v81
    %291 = vmatpush1.msra.mxu0 %v80
    %292 = vmatprep.subr.mxu0 %v85
    %293 = vmatpush1.msra.mxu0 %v84
    %294 = vmatprep.subr.mxu0 %v89
    %295 = vmatpush1.msra.mxu0 %v88
    %296 = vmatprep.subr.mxu0 %v93
    %297 = vmatpush1.msra.mxu0 %v92
    %298 = vmatprep.subr.mxu0 %v97
    %299 = vmatpush1.msra.mxu0 %v96
    %300 = vmatprep.subr.mxu0 %v101
    %301 = vmatpush1.msra.mxu0 %v100
    %302 = vmatprep.subr.mxu0 %v105
    %303 = vmatpush1.msra.mxu0 %v104
    %304 = vmatprep.subr.mxu0 %v109
    %305 = vmatpush1.msra.mxu0 %v108
    %306 = vmatprep.subr.mxu0 %v113
    %307 = vmatpush1.msra.mxu0 %v112
    %308 = vmatprep.subr.mxu0 %v117
    %309 = vmatpush1.msra.mxu0 %v116
    %310 = vmatprep.subr.mxu0 %v121
    %311 = vmatpush1.msra.mxu0 %v120
    %312 = vmatprep.subr.mxu0 %v125
    %313 = vmatpush1.msra.mxu0 %v124
    %314 = vmatprep.subr.mxu0 %v129
    %315 = vmatpush1.msra.mxu0 %v128
    %316 = vmatprep.subr.mxu0 %v133
    %317 = vmatpush1.msra.mxu0 %v132
    %318 = vmatprep.subr.mxu0 %v137
    %319 = vmatpush1.msra.mxu0 %v136
    %320 = vmatprep.subr.mxu0 %v141
    %321 = vmatpush1.msra.mxu0 %v140
    %322 = vmatprep.subr.mxu0 %v145
    %323 = vmatpush1.msra.mxu0 %v144
    %324 = vmatprep.subr.mxu0 %v149
    %325 = vmatpush1.msra.mxu0 %v148
    %326 = vmatprep.subr.mxu0 %v153
    %327 = vmatpush1.msra.mxu0 %v152
    %328 = vmatprep.subr.mxu0 %v157
    %329 = vmatpush1.msra.mxu0 %v156
    %330 = vmatprep.subr.mxu0 %v161
    %331 = vmatpush1.msra.mxu0 %v160
    %332 = vmatprep.subr.mxu0 %v165
    %333 = vmatpush1.msra.mxu0 %v164
    %334 = vmatprep.subr.mxu0 %v169
    %335 = vmatpush1.msra.mxu0 %v168
    %336 = vmatprep.subr.mxu0 %v173
    %337 = vmatpush1.msra.mxu0 %v172
    %338 = vmatprep.subr.mxu0 %v177
    %339 = vmatpush1.msra.mxu0 %v176
    %340 = vmatprep.subr.mxu0 %v181
    %341 = vmatpush1.msra.mxu0 %v180
    %342 = vmatprep.subr.mxu0 %v185
    %343 = vmatpush1.msra.mxu0 %v184
    %344 = vmatprep.subr.mxu0 %v189
    %345 = vmatpush1.msra.mxu0 %v188
    %346 = vmatprep.mubr.f32.mxu0 %v60
    %347 = vmatmul.mubr.f32.gmra.mrb[0].mxu0 %v59
    %v348 = vpop.f32.mrb[0].mxu0
    %v349 = vadd.f32 %v202, %v348
    %v350 = vpop.f32.mrb[0].mxu0
    %v351 = vadd.f32 %v206, %v350
    %352 = vdwg.mxu0
    %v353 = vmul.f32 %v278, 0.5
    %v354 = vtanh.pop %v353
    %v355 = vmul.f32 %v354, 0.5
    %v356 = vadd.f32 %v355, 0.5
    %v357 = vmul.f32 %v280, 0.5
    %v358 = vtanh.pop %v357
    %v359 = vmul.f32 %v358, 0.5
    %v360 = vadd.f32 %v359, 0.5
    %v361 = vtanh.pop %v349
    %v362 = vmul.f32 %v351, 0.5
    %v363 = vtanh.pop %v362
    %v364 = vmul.f32 %v363, 0.5
    %v365 = vadd.f32 %v364, 0.5
    %v366 = vmul.f32 %v360, %v61
    %v367 = vmul.f32 %v356, %v361
    %v368 = vadd.f32 %v366, %v367
    %v369 = vtanh.pop %v368
    %v370 = vmul.f32 %v365, %v369
    %371 = vst [vmem:[#allocation3] sm:$0xff] %v370
    %372 = vst [vmem:[#allocation4] sm:$0xff] %v368
    %373 = vst [vmem:[#allocation2] sm:$0xff] %v370
    %s374 = scalar_lea.vmem %s0, 8
    %v375 = vld [vmem:[%s374] sm:$0xff]
    %v376 = vld [vmem:[#allocation3] sm:$0xff]
    %v377 = vld [vmem:[#allocation4] sm:$0xff]
    %v378 = vld [vmem:[#allocation6] sm:$0xff]
    %v379 = vld [vmem:[#allocation6 + $0x8] sm:$0xff]
    %v380 = vld [vmem:[#allocation6 + $0x10] sm:$0xff]
    %v381 = vld [vmem:[#allocation6 + $0x18] sm:$0xff]
    %v382 = vld [vmem:[#allocation6 + $0x20] sm:$0xff]
    %v383 = vld [vmem:[#allocation6 + $0x28] sm:$0xff]
    %v384 = vld [vmem:[#allocation6 + $0x30] sm:$0xff]
    %v385 = vld [vmem:[#allocation6 + $0x38] sm:$0xff]
    %v386 = vld [vmem:[#allocation6 + $0x40] sm:$0xff]
    %v387 = vld [vmem:[#allocation6 + $0x48] sm:$0xff]
    %v388 = vld [vmem:[#allocation6 + $0x50] sm:$0xff]
    %v389 = vld [vmem:[#allocation6 + $0x58] sm:$0xff]
    %v390 = vld [vmem:[#allocation6 + $0x60] sm:$0xff]
    %v391 = vld [vmem:[#allocation6 + $0x68] sm:$0xff]
    %v392 = vld [vmem:[#allocation6 + $0x70] sm:$0xff]
    %v393 = vld [vmem:[#allocation6 + $0x78] sm:$0xff]
    %v394 = vld [vmem:[#allocation6 + $0x80] sm:$0xff]
    %v395 = vld [vmem:[#allocation6 + $0x88] sm:$0xff]
    %v396 = vld [vmem:[#allocation6 + $0x90] sm:$0xff]
    %v397 = vld [vmem:[#allocation6 + $0x98] sm:$0xff]
    %v398 = vld [vmem:[#allocation6 + $0xa0] sm:$0xff]
    %v399 = vld [vmem:[#allocation6 + $0xa8] sm:$0xff]
    %v400 = vld [vmem:[#allocation6 + $0xb0] sm:$0xff]
    %v401 = vld [vmem:[#allocation6 + $0xb8] sm:$0xff]
    %v402 = vld [vmem:[#allocation6 + $0xc0] sm:$0xff]
    %v403 = vld [vmem:[#allocation6 + $0xc8] sm:$0xff]
    %v404 = vld [vmem:[#allocation6 + $0xd0] sm:$0xff]
    %v405 = vld [vmem:[#allocation6 + $0xd8] sm:$0xff]
    %v406 = vld [vmem:[#allocation6 + $0xe0] sm:$0xff]
    %v407 = vld [vmem:[#allocation6 + $0xe8] sm:$0xff]
    %v408 = vld [vmem:[#allocation6 + $0xf0] sm:$0xff]
    %v409 = vld [vmem:[#allocation6 + $0xf8] sm:$0xff]
    %v410 = vld [vmem:[#allocation6 + $0x100] sm:$0xff]
    %v411 = vld [vmem:[#allocation6 + $0x108] sm:$0xff]
    %v412 = vld [vmem:[#allocation6 + $0x110] sm:$0xff]
    %v413 = vld [vmem:[#allocation6 + $0x118] sm:$0xff]
    %v414 = vld [vmem:[#allocation6 + $0x120] sm:$0xff]
    %v415 = vld [vmem:[#allocation6 + $0x128] sm:$0xff]
    %v416 = vld [vmem:[#allocation6 + $0x130] sm:$0xff]
    %v417 = vld [vmem:[#allocation6 + $0x138] sm:$0xff]
    %v418 = vld [vmem:[#allocation6 + $0x140] sm:$0xff]
    %v419 = vld [vmem:[#allocation6 + $0x148] sm:$0xff]
    %v420 = vld [vmem:[#allocation6 + $0x150] sm:$0xff]
    %v421 = vld [vmem:[#allocation6 + $0x158] sm:$0xff]
    %v422 = vld [vmem:[#allocation6 + $0x160] sm:$0xff]
    %v423 = vld [vmem:[#allocation6 + $0x168] sm:$0xff]
    %v424 = vld [vmem:[#allocation6 + $0x170] sm:$0xff]
    %v425 = vld [vmem:[#allocation6 + $0x178] sm:$0xff]
    %v426 = vld [vmem:[#allocation6 + $0x180] sm:$0xff]
    %v427 = vld [vmem:[#allocation6 + $0x188] sm:$0xff]
    %v428 = vld [vmem:[#allocation6 + $0x190] sm:$0xff]
    %v429 = vld [vmem:[#allocation6 + $0x198] sm:$0xff]
    %v430 = vld [vmem:[#allocation6 + $0x1a0] sm:$0xff]
    %v431 = vld [vmem:[#allocation6 + $0x1a8] sm:$0xff]
    %v432 = vld [vmem:[#allocation6 + $0x1b0] sm:$0xff]
    %v433 = vld [vmem:[#allocation6 + $0x1b8] sm:$0xff]
    %v434 = vld [vmem:[#allocation6 + $0x1c0] sm:$0xff]
    %v435 = vld [vmem:[#allocation6 + $0x1c8] sm:$0xff]
    %v436 = vld [vmem:[#allocation6 + $0x1d0] sm:$0xff]
    %v437 = vld [vmem:[#allocation6 + $0x1d8] sm:$0xff]
    %v438 = vld [vmem:[#allocation6 + $0x1e0] sm:$0xff]
    %v439 = vld [vmem:[#allocation6 + $0x1e8] sm:$0xff]
    %v440 = vld [vmem:[#allocation6 + $0x1f0] sm:$0xff]
    %v441 = vld [vmem:[#allocation6 + $0x1f8] sm:$0xff]
    %v442 = vld [vmem:[#allocation6 + $0x200] sm:$0xff]
    %v443 = vld [vmem:[#allocation6 + $0x208] sm:$0xff]
    %v444 = vld [vmem:[#allocation6 + $0x210] sm:$0xff]
    %v445 = vld [vmem:[#allocation6 + $0x218] sm:$0xff]
    %v446 = vld [vmem:[#allocation6 + $0x220] sm:$0xff]
    %v447 = vld [vmem:[#allocation6 + $0x228] sm:$0xff]
    %v448 = vld [vmem:[#allocation6 + $0x230] sm:$0xff]
    %v449 = vld [vmem:[#allocation6 + $0x238] sm:$0xff]
    %v450 = vld [vmem:[#allocation6 + $0x240] sm:$0xff]
    %v451 = vld [vmem:[#allocation6 + $0x248] sm:$0xff]
    %v452 = vld [vmem:[#allocation6 + $0x250] sm:$0xff]
    %v453 = vld [vmem:[#allocation6 + $0x258] sm:$0xff]
    %v454 = vld [vmem:[#allocation6 + $0x260] sm:$0xff]
    %v455 = vld [vmem:[#allocation6 + $0x268] sm:$0xff]
    %v456 = vld [vmem:[#allocation6 + $0x270] sm:$0xff]
    %v457 = vld [vmem:[#allocation6 + $0x278] sm:$0xff]
    %v458 = vld [vmem:[#allocation6 + $0x280] sm:$0xff]
    %v459 = vld [vmem:[#allocation6 + $0x288] sm:$0xff]
    %v460 = vld [vmem:[#allocation6 + $0x290] sm:$0xff]
    %v461 = vld [vmem:[#allocation6 + $0x298] sm:$0xff]
    %v462 = vld [vmem:[#allocation6 + $0x2a0] sm:$0xff]
    %v463 = vld [vmem:[#allocation6 + $0x2a8] sm:$0xff]
    %v464 = vld [vmem:[#allocation6 + $0x2b0] sm:$0xff]
    %v465 = vld [vmem:[#allocation6 + $0x2b8] sm:$0xff]
    %v466 = vld [vmem:[#allocation6 + $0x2c0] sm:$0xff]
    %v467 = vld [vmem:[#allocation6 + $0x2c8] sm:$0xff]
    %v468 = vld [vmem:[#allocation6 + $0x2d0] sm:$0xff]
    %v469 = vld [vmem:[#allocation6 + $0x2d8] sm:$0xff]
    %v470 = vld [vmem:[#allocation6 + $0x2e0] sm:$0xff]
    %v471 = vld [vmem:[#allocation6 + $0x2e8] sm:$0xff]
    %v472 = vld [vmem:[#allocation6 + $0x2f0] sm:$0xff]
    %v473 = vld [vmem:[#allocation6 + $0x2f8] sm:$0xff]
    %v474 = vld [vmem:[#allocation6 + $0x300] sm:$0xff]
    %v475 = vld [vmem:[#allocation6 + $0x308] sm:$0xff]
    %v476 = vld [vmem:[#allocation6 + $0x310] sm:$0xff]
    %v477 = vld [vmem:[#allocation6 + $0x318] sm:$0xff]
    %v478 = vld [vmem:[#allocation6 + $0x320] sm:$0xff]
    %v479 = vld [vmem:[#allocation6 + $0x328] sm:$0xff]
    %v480 = vld [vmem:[#allocation6 + $0x330] sm:$0xff]
    %v481 = vld [vmem:[#allocation6 + $0x338] sm:$0xff]
    %v482 = vld [vmem:[#allocation6 + $0x340] sm:$0xff]
    %v483 = vld [vmem:[#allocation6 + $0x348] sm:$0xff]
    %v484 = vld [vmem:[#allocation6 + $0x350] sm:$0xff]
    %v485 = vld [vmem:[#allocation6 + $0x358] sm:$0xff]
    %v486 = vld [vmem:[#allocation6 + $0x360] sm:$0xff]
    %v487 = vld [vmem:[#allocation6 + $0x368] sm:$0xff]
    %v488 = vld [vmem:[#allocation6 + $0x370] sm:$0xff]
    %v489 = vld [vmem:[#allocation6 + $0x378] sm:$0xff]
    %v490 = vld [vmem:[#allocation6 + $0x380] sm:$0xff]
    %v491 = vld [vmem:[#allocation6 + $0x388] sm:$0xff]
    %v492 = vld [vmem:[#allocation6 + $0x390] sm:$0xff]
    %v493 = vld [vmem:[#allocation6 + $0x398] sm:$0xff]
    %v494 = vld [vmem:[#allocation6 + $0x3a0] sm:$0xff]
    %v495 = vld [vmem:[#allocation6 + $0x3a8] sm:$0xff]
    %v496 = vld [vmem:[#allocation6 + $0x3b0] sm:$0xff]
    %v497 = vld [vmem:[#allocation6 + $0x3b8] sm:$0xff]
    %v498 = vld [vmem:[#allocation6 + $0x3c0] sm:$0xff]
    %v499 = vld [vmem:[#allocation6 + $0x3c8] sm:$0xff]
    %v500 = vld [vmem:[#allocation6 + $0x3d0] sm:$0xff]
    %v501 = vld [vmem:[#allocation6 + $0x3d8] sm:$0xff]
    %v502 = vld [vmem:[#allocation6 + $0x3e0] sm:$0xff]
    %v503 = vld [vmem:[#allocation6 + $0x3e8] sm:$0xff]
    %v504 = vld [vmem:[#allocation6 + $0x3f0] sm:$0xff]
    %v505 = vld [vmem:[#allocation6 + $0x3f8] sm:$0xff]
    %506 = vmatprep.subr.mxu0 %v379
    %507 = vmatpush1.msra.mxu0 %v378
    %508 = vmatprep.subr.mxu0 %v383
    %509 = vmatpush1.msra.mxu0 %v382
    %510 = vmatprep.subr.mxu0 %v387
    %511 = vmatpush1.msra.mxu0 %v386
    %512 = vmatprep.subr.mxu0 %v391
    %513 = vmatpush1.msra.mxu0 %v390
    %514 = vmatprep.subr.mxu0 %v395
    %515 = vmatpush1.msra.mxu0 %v394
    %516 = vmatprep.subr.mxu0 %v399
    %517 = vmatpush1.msra.mxu0 %v398
    %518 = vmatprep.subr.mxu0 %v403
    %519 = vmatpush1.msra.mxu0 %v402
    %520 = vmatprep.subr.mxu0 %v407
    %521 = vmatpush1.msra.mxu0 %v406
    %522 = vmatprep.subr.mxu0 %v411
    %523 = vmatpush1.msra.mxu0 %v410
    %524 = vmatprep.subr.mxu0 %v415
    %525 = vmatpush1.msra.mxu0 %v414
    %526 = vmatprep.subr.mxu0 %v419
    %527 = vmatpush1.msra.mxu0 %v418
    %528 = vmatprep.subr.mxu0 %v423
    %529 = vmatpush1.msra.mxu0 %v422
    %530 = vmatprep.subr.mxu0 %v427
    %531 = vmatpush1.msra.mxu0 %v426
    %532 = vmatprep.subr.mxu0 %v431
    %533 = vmatpush1.msra.mxu0 %v430
    %534 = vmatprep.subr.mxu0 %v435
    %535 = vmatpush1.msra.mxu0 %v434
    %536 = vmatprep.subr.mxu0 %v439
    %537 = vmatpush1.msra.mxu0 %v438
    %538 = vmatprep.subr.mxu0 %v443
    %539 = vmatpush1.msra.mxu0 %v442
    %540 = vmatprep.subr.mxu0 %v447
    %541 = vmatpush1.msra.mxu0 %v446
    %542 = vmatprep.subr.mxu0 %v451
    %543 = vmatpush1.msra.mxu0 %v450
    %544 = vmatprep.subr.mxu0 %v455
    %545 = vmatpush1.msra.mxu0 %v454
    %546 = vmatprep.subr.mxu0 %v459
    %547 = vmatpush1.msra.mxu0 %v458
    %548 = vmatprep.subr.mxu0 %v463
    %549 = vmatpush1.msra.mxu0 %v462
    %550 = vmatprep.subr.mxu0 %v467
    %551 = vmatpush1.msra.mxu0 %v466
    %552 = vmatprep.subr.mxu0 %v471
    %553 = vmatpush1.msra.mxu0 %v470
    %554 = vmatprep.subr.mxu0 %v475
    %555 = vmatpush1.msra.mxu0 %v474
    %556 = vmatprep.subr.mxu0 %v479
    %557 = vmatpush1.msra.mxu0 %v478
    %558 = vmatprep.subr.mxu0 %v483
    %559 = vmatpush1.msra.mxu0 %v482
    %560 = vmatprep.subr.mxu0 %v487
    %561 = vmatpush1.msra.mxu0 %v486
    %562 = vmatprep.subr.mxu0 %v491
    %563 = vmatpush1.msra.mxu0 %v490
    %564 = vmatprep.subr.mxu0 %v495
    %565 = vmatpush1.msra.mxu0 %v494
    %566 = vmatprep.subr.mxu0 %v499
    %567 = vmatpush1.msra.mxu0 %v498
    %568 = vmatprep.subr.mxu0 %v503
    %569 = vmatpush1.msra.mxu0 %v502
    %570 = vmatprep.mubr.f32.mxu0 %v376
    %571 = vmatmul.mubr.f32.gmra.mrb[0].mxu0 %v375
    %v572 = vpop.f32.mrb[0].mxu0
    %v573 = vadd.f32 %v194, %v572
    %v574 = vpop.f32.mrb[0].mxu0
    %v575 = vadd.f32 %v198, %v574
    %576 = vdwg.mxu0
    %577 = vmatprep.subr.mxu0 %v381
    %578 = vmatpush1.msra.mxu0 %v380
    %579 = vmatprep.subr.mxu0 %v385
    %580 = vmatpush1.msra.mxu0 %v384
    %581 = vmatprep.subr.mxu0 %v389
    %582 = vmatpush1.msra.mxu0 %v388
    %583 = vmatprep.subr.mxu0 %v393
    %584 = vmatpush1.msra.mxu0 %v392
    %585 = vmatprep.subr.mxu0 %v397
    %586 = vmatpush1.msra.mxu0 %v396
    %587 = vmatprep.subr.mxu0 %v401
    %588 = vmatpush1.msra.mxu0 %v400
    %589 = vmatprep.subr.mxu0 %v405
    %590 = vmatpush1.msra.mxu0 %v404
    %591 = vmatprep.subr.mxu0 %v409
    %592 = vmatpush1.msra.mxu0 %v408
    %593 = vmatprep.subr.mxu0 %v413
    %594 = vmatpush1.msra.mxu0 %v412
    %595 = vmatprep.subr.mxu0 %v417
    %596 = vmatpush1.msra.mxu0 %v416
    %597 = vmatprep.subr.mxu0 %v421
    %598 = vmatpush1.msra.mxu0 %v420
    %599 = vmatprep.subr.mxu0 %v425
    %600 = vmatpush1.msra.mxu0 %v424
    %601 = vmatprep.subr.mxu0 %v429
    %602 = vmatpush1.msra.mxu0 %v428
    %603 = vmatprep.subr.mxu0 %v433
    %604 = vmatpush1.msra.mxu0 %v432
    %605 = vmatprep.subr.mxu0 %v437
    %606 = vmatpush1.msra.mxu0 %v436
    %607 = vmatprep.subr.mxu0 %v441
    %608 = vmatpush1.msra.mxu0 %v440
    %609 = vmatprep.subr.mxu0 %v445
    %610 = vmatpush1.msra.mxu0 %v444
    %611 = vmatprep.subr.mxu0 %v449
    %612 = vmatpush1.msra.mxu0 %v448
    %613 = vmatprep.subr.mxu0 %v453
    %614 = vmatpush1.msra.mxu0 %v452
    %615 = vmatprep.subr.mxu0 %v457
    %616 = vmatpush1.msra.mxu0 %v456
    %617 = vmatprep.subr.mxu0 %v461
    %618 = vmatpush1.msra.mxu0 %v460
    %619 = vmatprep.subr.mxu0 %v465
    %620 = vmatpush1.msra.mxu0 %v464
    %621 = vmatprep.subr.mxu0 %v469
    %622 = vmatpush1.msra.mxu0 %v468
    %623 = vmatprep.subr.mxu0 %v473
    %624 = vmatpush1.msra.mxu0 %v472
    %625 = vmatprep.subr.mxu0 %v477
    %626 = vmatpush1.msra.mxu0 %v476
    %627 = vmatprep.subr.mxu0 %v481
    %628 = vmatpush1.msra.mxu0 %v480
    %629 = vmatprep.subr.mxu0 %v485
    %630 = vmatpush1.msra.mxu0 %v484
    %631 = vmatprep.subr.mxu0 %v489
    %632 = vmatpush1.msra.mxu0 %v488
    %633 = vmatprep.subr.mxu0 %v493
    %634 = vmatpush1.msra.mxu0 %v492
    %635 = vmatprep.subr.mxu0 %v497
    %636 = vmatpush1.msra.mxu0 %v496
    %637 = vmatprep.subr.mxu0 %v501
    %638 = vmatpush1.msra.mxu0 %v500
    %639 = vmatprep.subr.mxu0 %v505
    %640 = vmatpush1.msra.mxu0 %v504
    %641 = vmatprep.mubr.f32.mxu0 %v376
    %642 = vmatmul.mubr.f32.gmra.mrb[0].mxu0 %v375
    %v643 = vpop.f32.mrb[0].mxu0
    %v644 = vadd.f32 %v202, %v643
    %v645 = vpop.f32.mrb[0].mxu0
    %v646 = vadd.f32 %v206, %v645
    %647 = vdwg.mxu0
    %v648 = vmul.f32 %v573, 0.5
    %v649 = vtanh.pop %v648
    %v650 = vmul.f32 %v649, 0.5
    %v651 = vadd.f32 %v650, 0.5
    %v652 = vmul.f32 %v575, 0.5
    %v653 = vtanh.pop %v652
    %v654 = vmul.f32 %v653, 0.5
    %v655 = vadd.f32 %v654, 0.5
    %v656 = vtanh.pop %v644
    %v657 = vmul.f32 %v646, 0.5
    %v658 = vtanh.pop %v657
    %v659 = vmul.f32 %v658, 0.5
    %v660 = vadd.f32 %v659, 0.5
    %v661 = vmul.f32 %v655, %v377
    %v662 = vmul.f32 %v651, %v656
    %v663 = vadd.f32 %v661, %v662
    %v664 = vtanh.pop %v663
    %v665 = vmul.f32 %v660, %v664
    %666 = vst [vmem:[#allocation3] sm:$0xff] %v665
    %667 = vst [vmem:[#allocation4] sm:$0xff] %v663
    %s668 = scalar_lea.vmem [#allocation2], 8
    %669 = vst [vmem:[%s668] sm:$0xff] %v665
    %s670 = scalar_lea.vmem %s0, 16
    %v671 = vld [vmem:[%s670] sm:$0xff]
    %v672 = vld [vmem:[#allocation3] sm:$0xff]
    %v673 = vld [vmem:[#allocation4] sm:$0xff]
    %v674 = vld [vmem:[#allocation6] sm:$0xff]
    %v675 = vld [vmem:[#allocation6 + $0x8] sm:$0xff]
    %v676 = vld [vmem:[#allocation6 + $0x10] sm:$0xff]
    %v677 = vld [vmem:[#allocation6 + $0x18] sm:$0xff]
    %v678 = vld [vmem:[#allocation6 + $0x20] sm:$0xff]
    %v679 = vld [vmem:[#allocation6 + $0x28] sm:$0xff]
    %v680 = vld [vmem:[#allocation6 + $0x30] sm:$0xff]
    %v681 = vld [vmem:[#allocation6 + $0x38] sm:$0xff]
    %v682 = vld [vmem:[#allocation6 + $0x40] sm:$0xff]
    %v683 = vld [vmem:[#allocation6 + $0x48] sm:$0xff]
    %v684 = vld [vmem:[#allocation6 + $0x50] sm:$0xff]
    %v685 = vld [vmem:[#allocation6 + $0x58] sm:$0xff]
    %v686 = vld [vmem:[#allocation6 + $0x60] sm:$0xff]
    %v687 = vld [vmem:[#allocation6 + $0x68] sm:$0xff]
    %v688 = vld [vmem:[#allocation6 + $0x70] sm:$0xff]
    %v689 = vld [vmem:[#allocation6 + $0x78] sm:$0xff]
    %v690 = vld [vmem:[#allocation6 + $0x80] sm:$0xff]
    %v691 = vld [vmem:[#allocation6 + $0x88] sm:$0xff]
    %v692 = vld [vmem:[#allocation6 + $0x90] sm:$0xff]
    %v693 = vld [vmem:[#allocation6 + $0x98] sm:$0xff]
    %v694 = vld [vmem:[#allocation6 + $0xa0] sm:$0xff]
    %v695 = vld [vmem:[#allocation6 + $0xa8] sm:$0xff]
    %v696 = vld [vmem:[#allocation6 + $0xb0] sm:$0xff]
    %v697 = vld [vmem:[#allocation6 + $0xb8] sm:$0xff]
    %v698 = vld [vmem:[#allocation6 + $0xc0] sm:$0xff]
    %v699 = vld [vmem:[#allocation6 + $0xc8] sm:$0xff]
    %v700 = vld [vmem:[#allocation6 + $0xd0] sm:$0xff]
    %v701 = vld [vmem:[#allocation6 + $0xd8] sm:$0xff]
    %v702 = vld [vmem:[#allocation6 + $0xe0] sm:$0xff]
    %v703 = vld [vmem:[#allocation6 + $0xe8] sm:$0xff]
    %v704 = vld [vmem:[#allocation6 + $0xf0] sm:$0xff]
    %v705 = vld [vmem:[#allocation6 + $0xf8] sm:$0xff]
    %v706 = vld [vmem:[#allocation6 + $0x100] sm:$0xff]
    %v707 = vld [vmem:[#allocation6 + $0x108] sm:$0xff]
    %v708 = vld [vmem:[#allocation6 + $0x110] sm:$0xff]
    %v709 = vld [vmem:[#allocation6 + $0x118] sm:$0xff]
    %v710 = vld [vmem:[#allocation6 + $0x120] sm:$0xff]
    %v711 = vld [vmem:[#allocation6 + $0x128] sm:$0xff]
    %v712 = vld [vmem:[#allocation6 + $0x130] sm:$0xff]
    %v713 = vld [vmem:[#allocation6 + $0x138] sm:$0xff]
    %v714 = vld [vmem:[#allocation6 + $0x140] sm:$0xff]
    %v715 = vld [vmem:[#allocation6 + $0x148] sm:$0xff]
    %v716 = vld [vmem:[#allocation6 + $0x150] sm:$0xff]
    %v717 = vld [vmem:[#allocation6 + $0x158] sm:$0xff]
    %v718 = vld [vmem:[#allocation6 + $0x160] sm:$0xff]
    %v719 = vld [vmem:[#allocation6 + $0x168] sm:$0xff]
    %v720 = vld [vmem:[#allocation6 + $0x170] sm:$0xff]
    %v721 = vld [vmem:[#allocation6 + $0x178] sm:$0xff]
    %v722 = vld [vmem:[#allocation6 + $0x180] sm:$0xff]
    %v723 = vld [vmem:[#allocation6 + $0x188] sm:$0xff]
    %v724 = vld [vmem:[#allocation6 + $0x190] sm:$0xff]
    %v725 = vld [vmem:[#allocation6 + $0x198] sm:$0xff]
    %v726 = vld [vmem:[#allocation6 + $0x1a0] sm:$0xff]
    %v727 = vld [vmem:[#allocation6 + $0x1a8] sm:$0xff]
    %v728 = vld [vmem:[#allocation6 + $0x1b0] sm:$0xff]
    %v729 = vld [vmem:[#allocation6 + $0x1b8] sm:$0xff]
    %v730 = vld [vmem:[#allocation6 + $0x1c0] sm:$0xff]
    %v731 = vld [vmem:[#allocation6 + $0x1c8] sm:$0xff]
    %v732 = vld [vmem:[#allocation6 + $0x1d0] sm:$0xff]
    %v733 = vld [vmem:[#allocation6 + $0x1d8] sm:$0xff]
    %v734 = vld [vmem:[#allocation6 + $0x1e0] sm:$0xff]
    %v735 = vld [vmem:[#allocation6 + $0x1e8] sm:$0xff]
    %v736 = vld [vmem:[#allocation6 + $0x1f0] sm:$0xff]
    %v737 = vld [vmem:[#allocation6 + $0x1f8] sm:$0xff]
    %v738 = vld [vmem:[#allocation6 + $0x200] sm:$0xff]
    %v739 = vld [vmem:[#allocation6 + $0x208] sm:$0xff]
    %v740 = vld [vmem:[#allocation6 + $0x210] sm:$0xff]
    %v741 = vld [vmem:[#allocation6 + $0x218] sm:$0xff]
    %v742 = vld [vmem:[#allocation6 + $0x220] sm:$0xff]
    %v743 = vld [vmem:[#allocation6 + $0x228] sm:$0xff]
    %v744 = vld [vmem:[#allocation6 + $0x230] sm:$0xff]
    %v745 = vld [vmem:[#allocation6 + $0x238] sm:$0xff]
    %v746 = vld [vmem:[#allocation6 + $0x240] sm:$0xff]
    %v747 = vld [vmem:[#allocation6 + $0x248] sm:$0xff]
    %v748 = vld [vmem:[#allocation6 + $0x250] sm:$0xff]
    %v749 = vld [vmem:[#allocation6 + $0x258] sm:$0xff]
    %v750 = vld [vmem:[#allocation6 + $0x260] sm:$0xff]
    %v751 = vld [vmem:[#allocation6 + $0x268] sm:$0xff]
    %v752 = vld [vmem:[#allocation6 + $0x270] sm:$0xff]
    %v753 = vld [vmem:[#allocation6 + $0x278] sm:$0xff]
    %v754 = vld [vmem:[#allocation6 + $0x280] sm:$0xff]
    %v755 = vld [vmem:[#allocation6 + $0x288] sm:$0xff]
    %v756 = vld [vmem:[#allocation6 + $0x290] sm:$0xff]
    %v757 = vld [vmem:[#allocation6 + $0x298] sm:$0xff]
    %v758 = vld [vmem:[#allocation6 + $0x2a0] sm:$0xff]
    %v759 = vld [vmem:[#allocation6 + $0x2a8] sm:$0xff]
    %v760 = vld [vmem:[#allocation6 + $0x2b0] sm:$0xff]
    %v761 = vld [vmem:[#allocation6 + $0x2b8] sm:$0xff]
    %v762 = vld [vmem:[#allocation6 + $0x2c0] sm:$0xff]
    %v763 = vld [vmem:[#allocation6 + $0x2c8] sm:$0xff]
    %v764 = vld [vmem:[#allocation6 + $0x2d0] sm:$0xff]
    %v765 = vld [vmem:[#allocation6 + $0x2d8] sm:$0xff]
    %v766 = vld [vmem:[#allocation6 + $0x2e0] sm:$0xff]
    %v767 = vld [vmem:[#allocation6 + $0x2e8] sm:$0xff]
    %v768 = vld [vmem:[#allocation6 + $0x2f0] sm:$0xff]
    %v769 = vld [vmem:[#allocation6 + $0x2f8] sm:$0xff]
    %v770 = vld [vmem:[#allocation6 + $0x300] sm:$0xff]
    %v771 = vld [vmem:[#allocation6 + $0x308] sm:$0xff]
    %v772 = vld [vmem:[#allocation6 + $0x310] sm:$0xff]
    %v773 = vld [vmem:[#allocation6 + $0x318] sm:$0xff]
    %v774 = vld [vmem:[#allocation6 + $0x320] sm:$0xff]
    %v775 = vld [vmem:[#allocation6 + $0x328] sm:$0xff]
    %v776 = vld [vmem:[#allocation6 + $0x330] sm:$0xff]
    %v777 = vld [vmem:[#allocation6 + $0x338] sm:$0xff]
    %v778 = vld [vmem:[#allocation6 + $0x340] sm:$0xff]
    %v779 = vld [vmem:[#allocation6 + $0x348] sm:$0xff]
    %v780 = vld [vmem:[#allocation6 + $0x350] sm:$0xff]
    %v781 = vld [vmem:[#allocation6 + $0x358] sm:$0xff]
    %v782 = vld [vmem:[#allocation6 + $0x360] sm:$0xff]
    %v783 = vld [vmem:[#allocation6 + $0x368] sm:$0xff]
    %v784 = vld [vmem:[#allocation6 + $0x370] sm:$0xff]
    %v785 = vld [vmem:[#allocation6 + $0x378] sm:$0xff]
    %v786 = vld [vmem:[#allocation6 + $0x380] sm:$0xff]
    %v787 = vld [vmem:[#allocation6 + $0x388] sm:$0xff]
    %v788 = vld [vmem:[#allocation6 + $0x390] sm:$0xff]
    %v789 = vld [vmem:[#allocation6 + $0x398] sm:$0xff]
    %v790 = vld [vmem:[#allocation6 + $0x3a0] sm:$0xff]
    %v791 = vld [vmem:[#allocation6 + $0x3a8] sm:$0xff]
    %v792 = vld [vmem:[#allocation6 + $0x3b0] sm:$0xff]
    %v793 = vld [vmem:[#allocation6 + $0x3b8] sm:$0xff]
    %v794 = vld [vmem:[#allocation6 + $0x3c0] sm:$0xff]
    %v795 = vld [vmem:[#allocation6 + $0x3c8] sm:$0xff]
    %v796 = vld [vmem:[#allocation6 + $0x3d0] sm:$0xff]
    %v797 = vld [vmem:[#allocation6 + $0x3d8] sm:$0xff]
    %v798 = vld [vmem:[#allocation6 + $0x3e0] sm:$0xff]
    %v799 = vld [vmem:[#allocation6 + $0x3e8] sm:$0xff]
    %v800 = vld [vmem:[#allocation6 + $0x3f0] sm:$0xff]
    %v801 = vld [vmem:[#allocation6 + $0x3f8] sm:$0xff]
    %802 = vmatprep.subr.mxu0 %v675
    %803 = vmatpush1.msra.mxu0 %v674
    %804 = vmatprep.subr.mxu0 %v679
    %805 = vmatpush1.msra.mxu0 %v678
    %806 = vmatprep.subr.mxu0 %v683
    %807 = vmatpush1.msra.mxu0 %v682
    %808 = vmatprep.subr.mxu0 %v687
    %809 = vmatpush1.msra.mxu0 %v686
    %810 = vmatprep.subr.mxu0 %v691
    %811 = vmatpush1.msra.mxu0 %v690
    %812 = vmatprep.subr.mxu0 %v695
    %813 = vmatpush1.msra.mxu0 %v694
    %814 = vmatprep.subr.mxu0 %v699
    %815 = vmatpush1.msra.mxu0 %v698
    %816 = vmatprep.subr.mxu0 %v703
    %817 = vmatpush1.msra.mxu0 %v702
    %818 = vmatprep.subr.mxu0 %v707
    %819 = vmatpush1.msra.mxu0 %v706
    %820 = vmatprep.subr.mxu0 %v711
    %821 = vmatpush1.msra.mxu0 %v710
    %822 = vmatprep.subr.mxu0 %v715
    %823 = vmatpush1.msra.mxu0 %v714
    %824 = vmatprep.subr.mxu0 %v719
    %825 = vmatpush1.msra.mxu0 %v718
    %826 = vmatprep.subr.mxu0 %v723
    %827 = vmatpush1.msra.mxu0 %v722
    %828 = vmatprep.subr.mxu0 %v727
    %829 = vmatpush1.msra.mxu0 %v726
    %830 = vmatprep.subr.mxu0 %v731
    %831 = vmatpush1.msra.mxu0 %v730
    %832 = vmatprep.subr.mxu0 %v735
    %833 = vmatpush1.msra.mxu0 %v734
    %834 = vmatprep.subr.mxu0 %v739
    %835 = vmatpush1.msra.mxu0 %v738
    %836 = vmatprep.subr.mxu0 %v743
    %837 = vmatpush1.msra.mxu0 %v742
    %838 = vmatprep.subr.mxu0 %v747
    %839 = vmatpush1.msra.mxu0 %v746
    %840 = vmatprep.subr.mxu0 %v751
    %841 = vmatpush1.msra.mxu0 %v750
    %842 = vmatprep.subr.mxu0 %v755
    %843 = vmatpush1.msra.mxu0 %v754
    %844 = vmatprep.subr.mxu0 %v759
    %845 = vmatpush1.msra.mxu0 %v758
    %846 = vmatprep.subr.mxu0 %v763
    %847 = vmatpush1.msra.mxu0 %v762
    %848 = vmatprep.subr.mxu0 %v767
    %849 = vmatpush1.msra.mxu0 %v766
    %850 = vmatprep.subr.mxu0 %v771
    %851 = vmatpush1.msra.mxu0 %v770
    %852 = vmatprep.subr.mxu0 %v775
    %853 = vmatpush1.msra.mxu0 %v774
    %854 = vmatprep.subr.mxu0 %v779
    %855 = vmatpush1.msra.mxu0 %v778
    %856 = vmatprep.subr.mxu0 %v783
    %857 = vmatpush1.msra.mxu0 %v782
    %858 = vmatprep.subr.mxu0 %v787
    %859 = vmatpush1.msra.mxu0 %v786
    %860 = vmatprep.subr.mxu0 %v791
    %861 = vmatpush1.msra.mxu0 %v790
    %862 = vmatprep.subr.mxu0 %v795
    %863 = vmatpush1.msra.mxu0 %v794
    %864 = vmatprep.subr.mxu0 %v799
    %865 = vmatpush1.msra.mxu0 %v798
    %866 = vmatprep.mubr.f32.mxu0 %v672
    %867 = vmatmul.mubr.f32.gmra.mrb[0].mxu0 %v671
    %v868 = vpop.f32.mrb[0].mxu0
    %v869 = vadd.f32 %v194, %v868
    %v870 = vpop.f32.mrb[0].mxu0
    %v871 = vadd.f32 %v198, %v870
    %872 = vdwg.mxu0
    %873 = vmatprep.subr.mxu0 %v677
    %874 = vmatpush1.msra.mxu0 %v676
    %875 = vmatprep.subr.mxu0 %v681
    %876 = vmatpush1.msra.mxu0 %v680
    %877 = vmatprep.subr.mxu0 %v685
    %878 = vmatpush1.msra.mxu0 %v684
    %879 = vmatprep.subr.mxu0 %v689
    %880 = vmatpush1.msra.mxu0 %v688
    %881 = vmatprep.subr.mxu0 %v693
    %882 = vmatpush1.msra.mxu0 %v692
    %883 = vmatprep.subr.mxu0 %v697
    %884 = vmatpush1.msra.mxu0 %v696
    %885 = vmatprep.subr.mxu0 %v701
    %886 = vmatpush1.msra.mxu0 %v700
    %887 = vmatprep.subr.mxu0 %v705
    %888 = vmatpush1.msra.mxu0 %v704
    %889 = vmatprep.subr.mxu0 %v709
    %890 = vmatpush1.msra.mxu0 %v708
    %891 = vmatprep.subr.mxu0 %v713
    %892 = vmatpush1.msra.mxu0 %v712
    %893 = vmatprep.subr.mxu0 %v717
    %894 = vmatpush1.msra.mxu0 %v716
    %895 = vmatprep.subr.mxu0 %v721
    %896 = vmatpush1.msra.mxu0 %v720
    %897 = vmatprep.subr.mxu0 %v725
    %898 = vmatpush1.msra.mxu0 %v724
    %899 = vmatprep.subr.mxu0 %v729
    %900 = vmatpush1.msra.mxu0 %v728
    %901 = vmatprep.subr.mxu0 %v733
    %902 = vmatpush1.msra.mxu0 %v732
    %903 = vmatprep.subr.mxu0 %v737
    %904 = vmatpush1.msra.mxu0 %v736
    %905 = vmatprep.subr.mxu0 %v741
    %906 = vmatpush1.msra.mxu0 %v740
    %907 = vmatprep.subr.mxu0 %v745
    %908 = vmatpush1.msra.mxu0 %v744
    %909 = vmatprep.subr.mxu0 %v749
    %910 = vmatpush1.msra.mxu0 %v748
    %911 = vmatprep.subr.mxu0 %v753
    %912 = vmatpush1.msra.mxu0 %v752
    %913 = vmatprep.subr.mxu0 %v757
    %914 = vmatpush1.msra.mxu0 %v756
    %915 = vmatprep.subr.mxu0 %v761
    %916 = vmatpush1.msra.mxu0 %v760
    %917 = vmatprep.subr.mxu0 %v765
    %918 = vmatpush1.msra.mxu0 %v764
    %919 = vmatprep.subr.mxu0 %v769
    %920 = vmatpush1.msra.mxu0 %v768
    %921 = vmatprep.subr.mxu0 %v773
    %922 = vmatpush1.msra.mxu0 %v772
    %923 = vmatprep.subr.mxu0 %v777
    %924 = vmatpush1.msra.mxu0 %v776
    %925 = vmatprep.subr.mxu0 %v781
    %926 = vmatpush1.msra.mxu0 %v780
    %927 = vmatprep.subr.mxu0 %v785
    %928 = vmatpush1.msra.mxu0 %v784
    %929 = vmatprep.subr.mxu0 %v789
    %930 = vmatpush1.msra.mxu0 %v788
    %931 = vmatprep.subr.mxu0 %v793
    %932 = vmatpush1.msra.mxu0 %v792
    %933 = vmatprep.subr.mxu0 %v797
    %934 = vmatpush1.msra.mxu0 %v796
    %935 = vmatprep.subr.mxu0 %v801
    %936 = vmatpush1.msra.mxu0 %v800
    %937 = vmatprep.mubr.f32.mxu0 %v672
    %938 = vmatmul.mubr.f32.gmra.mrb[0].mxu0 %v671
    %v939 = vpop.f32.mrb[0].mxu0
    %v940 = vadd.f32 %v202, %v939
    %v941 = vpop.f32.mrb[0].mxu0
    %v942 = vadd.f32 %v206, %v941
    %943 = vdwg.mxu0
    %v944 = vmul.f32 %v869, 0.5
    %v945 = vtanh.pop %v944
    %v946 = vmul.f32 %v945, 0.5
    %v947 = vadd.f32 %v946, 0.5
    %v948 = vmul.f32 %v871, 0.5
    %v949 = vtanh.pop %v948
    %v950 = vmul.f32 %v949, 0.5
    %v951 = vadd.f32 %v950, 0.5
    %v952 = vtanh.pop %v940
    %v953 = vmul.f32 %v942, 0.5
    %v954 = vtanh.pop %v953
    %v955 = vmul.f32 %v954, 0.5
    %v956 = vadd.f32 %v955, 0.5
    %v957 = vmul.f32 %v951, %v673
    %v958 = vmul.f32 %v947, %v952
    %v959 = vadd.f32 %v957, %v958
    %v960 = vtanh.pop %v959
    %v961 = vmul.f32 %v956, %v960
    %962 = vst [vmem:[#allocation3] sm:$0xff] %v961
    %963 = vst [vmem:[#allocation4] sm:$0xff] %v959
    %s964 = scalar_lea.vmem [#allocation2], 16
    %965 = vst [vmem:[%s964] sm:$0xff] %v961
    %s966 = scalar_lea.vmem %s0, 24
    %v967 = vld [vmem:[%s966] sm:$0xff]
    %v968 = vld [vmem:[#allocation3] sm:$0xff]
    %v969 = vld [vmem:[#allocation4] sm:$0xff]
    %v970 = vld [vmem:[#allocation6] sm:$0xff]
    %v971 = vld [vmem:[#allocation6 + $0x8] sm:$0xff]
    %v972 = vld [vmem:[#allocation6 + $0x10] sm:$0xff]
    %v973 = vld [vmem:[#allocation6 + $0x18] sm:$0xff]
    %v974 = vld [vmem:[#allocation6 + $0x20] sm:$0xff]
    %v975 = vld [vmem:[#allocation6 + $0x28] sm:$0xff]
    %v976 = vld [vmem:[#allocation6 + $0x30] sm:$0xff]
    %v977 = vld [vmem:[#allocation6 + $0x38] sm:$0xff]
    %v978 = vld [vmem:[#allocation6 + $0x40] sm:$0xff]
    %v979 = vld [vmem:[#allocation6 + $0x48] sm:$0xff]
    %v980 = vld [vmem:[#allocation6 + $0x50] sm:$0xff]
    %v981 = vld [vmem:[#allocation6 + $0x58] sm:$0xff]
    %v982 = vld [vmem:[#allocation6 + $0x60] sm:$0xff]
    %v983 = vld [vmem:[#allocation6 + $0x68] sm:$0xff]
    %v984 = vld [vmem:[#allocation6 + $0x70] sm:$0xff]
    %v985 = vld [vmem:[#allocation6 + $0x78] sm:$0xff]
    %v986 = vld [vmem:[#allocation6 + $0x80] sm:$0xff]
    %v987 = vld [vmem:[#allocation6 + $0x88] sm:$0xff]
    %v988 = vld [vmem:[#allocation6 + $0x90] sm:$0xff]
    %v989 = vld [vmem:[#allocation6 + $0x98] sm:$0xff]
    %v990 = vld [vmem:[#allocation6 + $0xa0] sm:$0xff]
    %v991 = vld [vmem:[#allocation6 + $0xa8] sm:$0xff]
    %v992 = vld [vmem:[#allocation6 + $0xb0] sm:$0xff]
    %v993 = vld [vmem:[#allocation6 + $0xb8] sm:$0xff]
    %v994 = vld [vmem:[#allocation6 + $0xc0] sm:$0xff]
    %v995 = vld [vmem:[#allocation6 + $0xc8] sm:$0xff]
    %v996 = vld [vmem:[#allocation6 + $0xd0] sm:$0xff]
    %v997 = vld [vmem:[#allocation6 + $0xd8] sm:$0xff]
    %v998 = vld [vmem:[#allocation6 + $0xe0] sm:$0xff]
    %v999 = vld [vmem:[#allocation6 + $0xe8] sm:$0xff]
    %v1000 = vld [vmem:[#allocation6 + $0xf0] sm:$0xff]
    %v1001 = vld [vmem:[#allocation6 + $0xf8] sm:$0xff]
    %v1002 = vld [vmem:[#allocation6 + $0x100] sm:$0xff]
    %v1003 = vld [vmem:[#allocation6 + $0x108] sm:$0xff]
    %v1004 = vld [vmem:[#allocation6 + $0x110] sm:$0xff]
    %v1005 = vld [vmem:[#allocation6 + $0x118] sm:$0xff]
    %v1006 = vld [vmem:[#allocation6 + $0x120] sm:$0xff]
    %v1007 = vld [vmem:[#allocation6 + $0x128] sm:$0xff]
    %v1008 = vld [vmem:[#allocation6 + $0x130] sm:$0xff]
    %v1009 = vld [vmem:[#allocation6 + $0x138] sm:$0xff]
    %v1010 = vld [vmem:[#allocation6 + $0x140] sm:$0xff]
    %v1011 = vld [vmem:[#allocation6 + $0x148] sm:$0xff]
    %v1012 = vld [vmem:[#allocation6 + $0x150] sm:$0xff]
    %v1013 = vld [vmem:[#allocation6 + $0x158] sm:$0xff]
    %v1014 = vld [vmem:[#allocation6 + $0x160] sm:$0xff]
    %v1015 = vld [vmem:[#allocation6 + $0x168] sm:$0xff]
    %v1016 = vld [vmem:[#allocation6 + $0x170] sm:$0xff]
    %v1017 = vld [vmem:[#allocation6 + $0x178] sm:$0xff]
    %v1018 = vld [vmem:[#allocation6 + $0x180] sm:$0xff]
    %v1019 = vld [vmem:[#allocation6 + $0x188] sm:$0xff]
    %v1020 = vld [vmem:[#allocation6 + $0x190] sm:$0xff]
    %v1021 = vld [vmem:[#allocation6 + $0x198] sm:$0xff]
    %v1022 = vld [vmem:[#allocation6 + $0x1a0] sm:$0xff]
    %v1023 = vld [vmem:[#allocation6 + $0x1a8] sm:$0xff]
    %v1024 = vld [vmem:[#allocation6 + $0x1b0] sm:$0xff]
    %v1025 = vld [vmem:[#allocation6 + $0x1b8] sm:$0xff]
    %v1026 = vld [vmem:[#allocation6 + $0x1c0] sm:$0xff]
    %v1027 = vld [vmem:[#allocation6 + $0x1c8] sm:$0xff]
    %v1028 = vld [vmem:[#allocation6 + $0x1d0] sm:$0xff]
    %v1029 = vld [vmem:[#allocation6 + $0x1d8] sm:$0xff]
    %v1030 = vld [vmem:[#allocation6 + $0x1e0] sm:$0xff]
    %v1031 = vld [vmem:[#allocation6 + $0x1e8] sm:$0xff]
    %v1032 = vld [vmem:[#allocation6 + $0x1f0] sm:$0xff]
    %v1033 = vld [vmem:[#allocation6 + $0x1f8] sm:$0xff]
    %v1034 = vld [vmem:[#allocation6 + $0x200] sm:$0xff]
    %v1035 = vld [vmem:[#allocation6 + $0x208] sm:$0xff]
    %v1036 = vld [vmem:[#allocation6 + $0x210] sm:$0xff]
    %v1037 = vld [vmem:[#allocation6 + $0x218] sm:$0xff]
    %v1038 = vld [vmem:[#allocation6 + $0x220] sm:$0xff]
    %v1039 = vld [vmem:[#allocation6 + $0x228] sm:$0xff]
    %v1040 = vld [vmem:[#allocation6 + $0x230] sm:$0xff]
    %v1041 = vld [vmem:[#allocation6 + $0x238] sm:$0xff]
    %v1042 = vld [vmem:[#allocation6 + $0x240] sm:$0xff]
    %v1043 = vld [vmem:[#allocation6 + $0x248] sm:$0xff]
    %v1044 = vld [vmem:[#allocation6 + $0x250] sm:$0xff]
    %v1045 = vld [vmem:[#allocation6 + $0x258] sm:$0xff]
    %v1046 = vld [vmem:[#allocation6 + $0x260] sm:$0xff]
    %v1047 = vld [vmem:[#allocation6 + $0x268] sm:$0xff]
    %v1048 = vld [vmem:[#allocation6 + $0x270] sm:$0xff]
    %v1049 = vld [vmem:[#allocation6 + $0x278] sm:$0xff]
    %v1050 = vld [vmem:[#allocation6 + $0x280] sm:$0xff]
    %v1051 = vld [vmem:[#allocation6 + $0x288] sm:$0xff]
    %v1052 = vld [vmem:[#allocation6 + $0x290] sm:$0xff]
    %v1053 = vld [vmem:[#allocation6 + $0x298] sm:$0xff]
    %v1054 = vld [vmem:[#allocation6 + $0x2a0] sm:$0xff]
    %v1055 = vld [vmem:[#allocation6 + $0x2a8] sm:$0xff]
    %v1056 = vld [vmem:[#allocation6 + $0x2b0] sm:$0xff]
    %v1057 = vld [vmem:[#allocation6 + $0x2b8] sm:$0xff]
    %v1058 = vld [vmem:[#allocation6 + $0x2c0] sm:$0xff]
    %v1059 = vld [vmem:[#allocation6 + $0x2c8] sm:$0xff]
    %v1060 = vld [vmem:[#allocation6 + $0x2d0] sm:$0xff]
    %v1061 = vld [vmem:[#allocation6 + $0x2d8] sm:$0xff]
    %v1062 = vld [vmem:[#allocation6 + $0x2e0] sm:$0xff]
    %v1063 = vld [vmem:[#allocation6 + $0x2e8] sm:$0xff]
    %v1064 = vld [vmem:[#allocation6 + $0x2f0] sm:$0xff]
    %v1065 = vld [vmem:[#allocation6 + $0x2f8] sm:$0xff]
    %v1066 = vld [vmem:[#allocation6 + $0x300] sm:$0xff]
    %v1067 = vld [vmem:[#allocation6 + $0x308] sm:$0xff]
    %v1068 = vld [vmem:[#allocation6 + $0x310] sm:$0xff]
    %v1069 = vld [vmem:[#allocation6 + $0x318] sm:$0xff]
    %v1070 = vld [vmem:[#allocation6 + $0x320] sm:$0xff]
    %v1071 = vld [vmem:[#allocation6 + $0x328] sm:$0xff]
    %v1072 = vld [vmem:[#allocation6 + $0x330] sm:$0xff]
    %v1073 = vld [vmem:[#allocation6 + $0x338] sm:$0xff]
    %v1074 = vld [vmem:[#allocation6 + $0x340] sm:$0xff]
    %v1075 = vld [vmem:[#allocation6 + $0x348] sm:$0xff]
    %v1076 = vld [vmem:[#allocation6 + $0x350] sm:$0xff]
    %v1077 = vld [vmem:[#allocation6 + $0x358] sm:$0xff]
    %v1078 = vld [vmem:[#allocation6 + $0x360] sm:$0xff]
    %v1079 = vld [vmem:[#allocation6 + $0x368] sm:$0xff]
    %v1080 = vld [vmem:[#allocation6 + $0x370] sm:$0xff]
    %v1081 = vld [vmem:[#allocation6 + $0x378] sm:$0xff]
    %v1082 = vld [vmem:[#allocation6 + $0x380] sm:$0xff]
    %v1083 = vld [vmem:[#allocation6 + $0x388] sm:$0xff]
    %v1084 = vld [vmem:[#allocation6 + $0x390] sm:$0xff]
    %v1085 = vld [vmem:[#allocation6 + $0x398] sm:$0xff]
    %v1086 = vld [vmem:[#allocation6 + $0x3a0] sm:$0xff]
    %v1087 = vld [vmem:[#allocation6 + $0x3a8] sm:$0xff]
    %v1088 = vld [vmem:[#allocation6 + $0x3b0] sm:$0xff]
    %v1089 = vld [vmem:[#allocation6 + $0x3b8] sm:$0xff]
    %v1090 = vld [vmem:[#allocation6 + $0x3c0] sm:$0xff]
    %v1091 = vld [vmem:[#allocation6 + $0x3c8] sm:$0xff]
    %v1092 = vld [vmem:[#allocation6 + $0x3d0] sm:$0xff]
    %v1093 = vld [vmem:[#allocation6 + $0x3d8] sm:$0xff]
    %v1094 = vld [vmem:[#allocation6 + $0x3e0] sm:$0xff]
    %v1095 = vld [vmem:[#allocation6 + $0x3e8] sm:$0xff]
    %v1096 = vld [vmem:[#allocation6 + $0x3f0] sm:$0xff]
    %v1097 = vld [vmem:[#allocation6 + $0x3f8] sm:$0xff]
    %1098 = vmatprep.subr.mxu0 %v971
    %1099 = vmatpush1.msra.mxu0 %v970
    %1100 = vmatprep.subr.mxu0 %v975
    %1101 = vmatpush1.msra.mxu0 %v974
    %1102 = vmatprep.subr.mxu0 %v979
    %1103 = vmatpush1.msra.mxu0 %v978
    %1104 = vmatprep.subr.mxu0 %v983
    %1105 = vmatpush1.msra.mxu0 %v982
    %1106 = vmatprep.subr.mxu0 %v987
    %1107 = vmatpush1.msra.mxu0 %v986
    %1108 = vmatprep.subr.mxu0 %v991
    %1109 = vmatpush1.msra.mxu0 %v990
    %1110 = vmatprep.subr.mxu0 %v995
    %1111 = vmatpush1.msra.mxu0 %v994
    %1112 = vmatprep.subr.mxu0 %v999
    %1113 = vmatpush1.msra.mxu0 %v998
    %1114 = vmatprep.subr.mxu0 %v1003
    %1115 = vmatpush1.msra.mxu0 %v1002
    %1116 = vmatprep.subr.mxu0 %v1007
    %1117 = vmatpush1.msra.mxu0 %v1006
    %1118 = vmatprep.subr.mxu0 %v1011
    %1119 = vmatpush1.msra.mxu0 %v1010
    %1120 = vmatprep.subr.mxu0 %v1015
    %1121 = vmatpush1.msra.mxu0 %v1014
    %1122 = vmatprep.subr.mxu0 %v1019
    %1123 = vmatpush1.msra.mxu0 %v1018
    %1124 = vmatprep.subr.mxu0 %v1023
    %1125 = vmatpush1.msra.mxu0 %v1022
    %1126 = vmatprep.subr.mxu0 %v1027
    %1127 = vmatpush1.msra.mxu0 %v1026
    %1128 = vmatprep.subr.mxu0 %v1031
    %1129 = vmatpush1.msra.mxu0 %v1030
    %1130 = vmatprep.subr.mxu0 %v1035
    %1131 = vmatpush1.msra.mxu0 %v1034
    %1132 = vmatprep.subr.mxu0 %v1039
    %1133 = vmatpush1.msra.mxu0 %v1038
    %1134 = vmatprep.subr.mxu0 %v1043
    %1135 = vmatpush1.msra.mxu0 %v1042
    %1136 = vmatprep.subr.mxu0 %v1047
    %1137 = vmatpush1.msra.mxu0 %v1046
    %1138 = vmatprep.subr.mxu0 %v1051
    %1139 = vmatpush1.msra.mxu0 %v1050
    %1140 = vmatprep.subr.mxu0 %v1055
    %1141 = vmatpush1.msra.mxu0 %v1054
    %1142 = vmatprep.subr.mxu0 %v1059
    %1143 = vmatpush1.msra.mxu0 %v1058
    %1144 = vmatprep.subr.mxu0 %v1063
    %1145 = vmatpush1.msra.mxu0 %v1062
    %1146 = vmatprep.subr.mxu0 %v1067
    %1147 = vmatpush1.msra.mxu0 %v1066
    %1148 = vmatprep.subr.mxu0 %v1071
    %1149 = vmatpush1.msra.mxu0 %v1070
    %1150 = vmatprep.subr.mxu0 %v1075
    %1151 = vmatpush1.msra.mxu0 %v1074
    %1152 = vmatprep.subr.mxu0 %v1079
    %1153 = vmatpush1.msra.mxu0 %v1078
    %1154 = vmatprep.subr.mxu0 %v1083
    %1155 = vmatpush1.msra.mxu0 %v1082
    %1156 = vmatprep.subr.mxu0 %v1087
    %1157 = vmatpush1.msra.mxu0 %v1086
    %1158 = vmatprep.subr.mxu0 %v1091
    %1159 = vmatpush1.msra.mxu0 %v1090
    %1160 = vmatprep.subr.mxu0 %v1095
    %1161 = vmatpush1.msra.mxu0 %v1094
    %1162 = vmatprep.mubr.f32.mxu0 %v968
    %1163 = vmatmul.mubr.f32.gmra.mrb[0].mxu0 %v967
    %v1164 = vpop.f32.mrb[0].mxu0
    %v1165 = vadd.f32 %v194, %v1164
    %v1166 = vpop.f32.mrb[0].mxu0
    %v1167 = vadd.f32 %v198, %v1166
    %1168 = vdwg.mxu0
    %1169 = vmatprep.subr.mxu0 %v973
    %1170 = vmatpush1.msra.mxu0 %v972
    %1171 = vmatprep.subr.mxu0 %v977
    %1172 = vmatpush1.msra.mxu0 %v976
    %1173 = vmatprep.subr.mxu0 %v981
    %1174 = vmatpush1.msra.mxu0 %v980
    %1175 = vmatprep.subr.mxu0 %v985
    %1176 = vmatpush1.msra.mxu0 %v984
    %1177 = vmatprep.subr.mxu0 %v989
    %1178 = vmatpush1.msra.mxu0 %v988
    %1179 = vmatprep.subr.mxu0 %v993
    %1180 = vmatpush1.msra.mxu0 %v992
    %1181 = vmatprep.subr.mxu0 %v997
    %1182 = vmatpush1.msra.mxu0 %v996
    %1183 = vmatprep.subr.mxu0 %v1001
    %1184 = vmatpush1.msra.mxu0 %v1000
    %1185 = vmatprep.subr.mxu0 %v1005
    %1186 = vmatpush1.msra.mxu0 %v1004
    %1187 = vmatprep.subr.mxu0 %v1009
    %1188 = vmatpush1.msra.mxu0 %v1008
    %1189 = vmatprep.subr.mxu0 %v1013
    %1190 = vmatpush1.msra.mxu0 %v1012
    %1191 = vmatprep.subr.mxu0 %v1017
    %1192 = vmatpush1.msra.mxu0 %v1016
    %1193 = vmatprep.subr.mxu0 %v1021
    %1194 = vmatpush1.msra.mxu0 %v1020
    %1195 = vmatprep.subr.mxu0 %v1025
    %1196 = vmatpush1.msra.mxu0 %v1024
    %1197 = vmatprep.subr.mxu0 %v1029
    %1198 = vmatpush1.msra.mxu0 %v1028
    %1199 = vmatprep.subr.mxu0 %v1033
    %1200 = vmatpush1.msra.mxu0 %v1032
    %1201 = vmatprep.subr.mxu0 %v1037
    %1202 = vmatpush1.msra.mxu0 %v1036
    %1203 = vmatprep.subr.mxu0 %v1041
    %1204 = vmatpush1.msra.mxu0 %v1040
    %1205 = vmatprep.subr.mxu0 %v1045
    %1206 = vmatpush1.msra.mxu0 %v1044
    %1207 = vmatprep.subr.mxu0 %v1049
    %1208 = vmatpush1.msra.mxu0 %v1048
    %1209 = vmatprep.subr.mxu0 %v1053
    %1210 = vmatpush1.msra.mxu0 %v1052
    %1211 = vmatprep.subr.mxu0 %v1057
    %1212 = vmatpush1.msra.mxu0 %v1056
    %1213 = vmatprep.subr.mxu0 %v1061
    %1214 = vmatpush1.msra.mxu0 %v1060
    %1215 = vmatprep.subr.mxu0 %v1065
    %1216 = vmatpush1.msra.mxu0 %v1064
    %1217 = vmatprep.subr.mxu0 %v1069
    %1218 = vmatpush1.msra.mxu0 %v1068
    %1219 = vmatprep.subr.mxu0 %v1073
    %1220 = vmatpush1.msra.mxu0 %v1072
    %1221 = vmatprep.subr.mxu0 %v1077
    %1222 = vmatpush1.msra.mxu0 %v1076
    %1223 = vmatprep.subr.mxu0 %v1081
    %1224 = vmatpush1.msra.mxu0 %v1080
    %1225 = vmatprep.subr.mxu0 %v1085
    %1226 = vmatpush1.msra.mxu0 %v1084
    %1227 = vmatprep.subr.mxu0 %v1089
    %1228 = vmatpush1.msra.mxu0 %v1088
    %1229 = vmatprep.subr.mxu0 %v1093
    %1230 = vmatpush1.msra.mxu0 %v1092
    %1231 = vmatprep.subr.mxu0 %v1097
    %1232 = vmatpush1.msra.mxu0 %v1096
    %1233 = vmatprep.mubr.f32.mxu0 %v968
    %1234 = vmatmul.mubr.f32.gmra.mrb[0].mxu0 %v967
    %v1235 = vpop.f32.mrb[0].mxu0
    %v1236 = vadd.f32 %v202, %v1235
    %v1237 = vpop.f32.mrb[0].mxu0
    %v1238 = vadd.f32 %v206, %v1237
    %1239 = vdwg.mxu0
    %v1240 = vmul.f32 %v1165, 0.5
    %v1241 = vtanh.pop %v1240
    %v1242 = vmul.f32 %v1241, 0.5
    %v1243 = vadd.f32 %v1242, 0.5
    %v1244 = vmul.f32 %v1167, 0.5
    %v1245 = vtanh.pop %v1244
    %v1246 = vmul.f32 %v1245, 0.5
    %v1247 = vadd.f32 %v1246, 0.5
    %v1248 = vtanh.pop %v1236
    %v1249 = vmul.f32 %v1238, 0.5
    %v1250 = vtanh.pop %v1249
    %v1251 = vmul.f32 %v1250, 0.5
    %v1252 = vadd.f32 %v1251, 0.5
    %v1253 = vmul.f32 %v1247, %v969
    %v1254 = vmul.f32 %v1243, %v1248
    %v1255 = vadd.f32 %v1253, %v1254
    %v1256 = vtanh.pop %v1255
    %v1257 = vmul.f32 %v1252, %v1256
    %1258 = vst [vmem:[#allocation3] sm:$0xff] %v1257
    %1259 = vst [vmem:[#allocation4] sm:$0xff] %v1255
    %s1260 = scalar_lea.vmem [#allocation2], 24
    %1261 = vst [vmem:[%s1260] sm:$0xff] %v1257
    %s1262 = scalar_lea.vmem %s0, 32
    %v1263 = vld [vmem:[%s1262] sm:$0xff]
    %v1264 = vld [vmem:[#allocation3] sm:$0xff]
    %v1265 = vld [vmem:[#allocation4] sm:$0xff]
    %v1266 = vld [vmem:[#allocation6] sm:$0xff]
    %v1267 = vld [vmem:[#allocation6 + $0x8] sm:$0xff]
    %v1268 = vld [vmem:[#allocation6 + $0x10] sm:$0xff]
    %v1269 = vld [vmem:[#allocation6 + $0x18] sm:$0xff]
    %v1270 = vld [vmem:[#allocation6 + $0x20] sm:$0xff]
    %v1271 = vld [vmem:[#allocation6 + $0x28] sm:$0xff]
    %v1272 = vld [vmem:[#allocation6 + $0x30] sm:$0xff]
    %v1273 = vld [vmem:[#allocation6 + $0x38] sm:$0xff]
    %v1274 = vld [vmem:[#allocation6 + $0x40] sm:$0xff]
    %v1275 = vld [vmem:[#allocation6 + $0x48] sm:$0xff]
    %v1276 = vld [vmem:[#allocation6 + $0x50] sm:$0xff]
    %v1277 = vld [vmem:[#allocation6 + $0x58] sm:$0xff]
    %v1278 = vld [vmem:[#allocation6 + $0x60] sm:$0xff]
    %v1279 = vld [vmem:[#allocation6 + $0x68] sm:$0xff]
    %v1280 = vld [vmem:[#allocation6 + $0x70] sm:$0xff]
    %v1281 = vld [vmem:[#allocation6 + $0x78] sm:$0xff]
    %v1282 = vld [vmem:[#allocation6 + $0x80] sm:$0xff]
    %v1283 = vld [vmem:[#allocation6 + $0x88] sm:$0xff]
    %v1284 = vld [vmem:[#allocation6 + $0x90] sm:$0xff]
    %v1285 = vld [vmem:[#allocation6 + $0x98] sm:$0xff]
    %v1286 = vld [vmem:[#allocation6 + $0xa0] sm:$0xff]
    %v1287 = vld [vmem:[#allocation6 + $0xa8] sm:$0xff]
    %v1288 = vld [vmem:[#allocation6 + $0xb0] sm:$0xff]
    %v1289 = vld [vmem:[#allocation6 + $0xb8] sm:$0xff]
    %v1290 = vld [vmem:[#allocation6 + $0xc0] sm:$0xff]
    %v1291 = vld [vmem:[#allocation6 + $0xc8] sm:$0xff]
    %v1292 = vld [vmem:[#allocation6 + $0xd0] sm:$0xff]
    %v1293 = vld [vmem:[#allocation6 + $0xd8] sm:$0xff]
    %v1294 = vld [vmem:[#allocation6 + $0xe0] sm:$0xff]
    %v1295 = vld [vmem:[#allocation6 + $0xe8] sm:$0xff]
    %v1296 = vld [vmem:[#allocation6 + $0xf0] sm:$0xff]
    %v1297 = vld [vmem:[#allocation6 + $0xf8] sm:$0xff]
    %v1298 = vld [vmem:[#allocation6 + $0x100] sm:$0xff]
    %v1299 = vld [vmem:[#allocation6 + $0x108] sm:$0xff]
    %v1300 = vld [vmem:[#allocation6 + $0x110] sm:$0xff]
    %v1301 = vld [vmem:[#allocation6 + $0x118] sm:$0xff]
    %v1302 = vld [vmem:[#allocation6 + $0x120] sm:$0xff]
    %v1303 = vld [vmem:[#allocation6 + $0x128] sm:$0xff]
    %v1304 = vld [vmem:[#allocation6 + $0x130] sm:$0xff]
    %v1305 = vld [vmem:[#allocation6 + $0x138] sm:$0xff]
    %v1306 = vld [vmem:[#allocation6 + $0x140] sm:$0xff]
    %v1307 = vld [vmem:[#allocation6 + $0x148] sm:$0xff]
    %v1308 = vld [vmem:[#allocation6 + $0x150] sm:$0xff]
    %v1309 = vld [vmem:[#allocation6 + $0x158] sm:$0xff]
    %v1310 = vld [vmem:[#allocation6 + $0x160] sm:$0xff]
    %v1311 = vld [vmem:[#allocation6 + $0x168] sm:$0xff]
    %v1312 = vld [vmem:[#allocation6 + $0x170] sm:$0xff]
    %v1313 = vld [vmem:[#allocation6 + $0x178] sm:$0xff]
    %v1314 = vld [vmem:[#allocation6 + $0x180] sm:$0xff]
    %v1315 = vld [vmem:[#allocation6 + $0x188] sm:$0xff]
    %v1316 = vld [vmem:[#allocation6 + $0x190] sm:$0xff]
    %v1317 = vld [vmem:[#allocation6 + $0x198] sm:$0xff]
    %v1318 = vld [vmem:[#allocation6 + $0x1a0] sm:$0xff]
    %v1319 = vld [vmem:[#allocation6 + $0x1a8] sm:$0xff]
    %v1320 = vld [vmem:[#allocation6 + $0x1b0] sm:$0xff]
    %v1321 = vld [vmem:[#allocation6 + $0x1b8] sm:$0xff]
    %v1322 = vld [vmem:[#allocation6 + $0x1c0] sm:$0xff]
    %v1323 = vld [vmem:[#allocation6 + $0x1c8] sm:$0xff]
    %v1324 = vld [vmem:[#allocation6 + $0x1d0] sm:$0xff]
    %v1325 = vld [vmem:[#allocation6 + $0x1d8] sm:$0xff]
    %v1326 = vld [vmem:[#allocation6 + $0x1e0] sm:$0xff]
    %v1327 = vld [vmem:[#allocation6 + $0x1e8] sm:$0xff]
    %v1328 = vld [vmem:[#allocation6 + $0x1f0] sm:$0xff]
    %v1329 = vld [vmem:[#allocation6 + $0x1f8] sm:$0xff]
    %v1330 = vld [vmem:[#allocation6 + $0x200] sm:$0xff]
    %v1331 = vld [vmem:[#allocation6 + $0x208] sm:$0xff]
    %v1332 = vld [vmem:[#allocation6 + $0x210] sm:$0xff]
    %v1333 = vld [vmem:[#allocation6 + $0x218] sm:$0xff]
    %v1334 = vld [vmem:[#allocation6 + $0x220] sm:$0xff]
    %v1335 = vld [vmem:[#allocation6 + $0x228] sm:$0xff]
    %v1336 = vld [vmem:[#allocation6 + $0x230] sm:$0xff]
    %v1337 = vld [vmem:[#allocation6 + $0x238] sm:$0xff]
    %v1338 = vld [vmem:[#allocation6 + $0x240] sm:$0xff]
    %v1339 = vld [vmem:[#allocation6 + $0x248] sm:$0xff]
    %v1340 = vld [vmem:[#allocation6 + $0x250] sm:$0xff]
    %v1341 = vld [vmem:[#allocation6 + $0x258] sm:$0xff]
    %v1342 = vld [vmem:[#allocation6 + $0x260] sm:$0xff]
    %v1343 = vld [vmem:[#allocation6 + $0x268] sm:$0xff]
    %v1344 = vld [vmem:[#allocation6 + $0x270] sm:$0xff]
    %v1345 = vld [vmem:[#allocation6 + $0x278] sm:$0xff]
    %v1346 = vld [vmem:[#allocation6 + $0x280] sm:$0xff]
    %v1347 = vld [vmem:[#allocation6 + $0x288] sm:$0xff]
    %v1348 = vld [vmem:[#allocation6 + $0x290] sm:$0xff]
    %v1349 = vld [vmem:[#allocation6 + $0x298] sm:$0xff]
    %v1350 = vld [vmem:[#allocation6 + $0x2a0] sm:$0xff]
    %v1351 = vld [vmem:[#allocation6 + $0x2a8] sm:$0xff]
    %v1352 = vld [vmem:[#allocation6 + $0x2b0] sm:$0xff]
    %v1353 = vld [vmem:[#allocation6 + $0x2b8] sm:$0xff]
    %v1354 = vld [vmem:[#allocation6 + $0x2c0] sm:$0xff]
    %v1355 = vld [vmem:[#allocation6 + $0x2c8] sm:$0xff]
    %v1356 = vld [vmem:[#allocation6 + $0x2d0] sm:$0xff]
    %v1357 = vld [vmem:[#allocation6 + $0x2d8] sm:$0xff]
    %v1358 = vld [vmem:[#allocation6 + $0x2e0] sm:$0xff]
    %v1359 = vld [vmem:[#allocation6 + $0x2e8] sm:$0xff]
    %v1360 = vld [vmem:[#allocation6 + $0x2f0] sm:$0xff]
    %v1361 = vld [vmem:[#allocation6 + $0x2f8] sm:$0xff]
    %v1362 = vld [vmem:[#allocation6 + $0x300] sm:$0xff]
    %v1363 = vld [vmem:[#allocation6 + $0x308] sm:$0xff]
    %v1364 = vld [vmem:[#allocation6 + $0x310] sm:$0xff]
    %v1365 = vld [vmem:[#allocation6 + $0x318] sm:$0xff]
    %v1366 = vld [vmem:[#allocation6 + $0x320] sm:$0xff]
    %v1367 = vld [vmem:[#allocation6 + $0x328] sm:$0xff]
    %v1368 = vld [vmem:[#allocation6 + $0x330] sm:$0xff]
    %v1369 = vld [vmem:[#allocation6 + $0x338] sm:$0xff]
    %v1370 = vld [vmem:[#allocation6 + $0x340] sm:$0xff]
    %v1371 = vld [vmem:[#allocation6 + $0x348] sm:$0xff]
    %v1372 = vld [vmem:[#allocation6 + $0x350] sm:$0xff]
    %v1373 = vld [vmem:[#allocation6 + $0x358] sm:$0xff]
    %v1374 = vld [vmem:[#allocation6 + $0x360] sm:$0xff]
    %v1375 = vld [vmem:[#allocation6 + $0x368] sm:$0xff]
    %v1376 = vld [vmem:[#allocation6 + $0x370] sm:$0xff]
    %v1377 = vld [vmem:[#allocation6 + $0x378] sm:$0xff]
    %v1378 = vld [vmem:[#allocation6 + $0x380] sm:$0xff]
    %v1379 = vld [vmem:[#allocation6 + $0x388] sm:$0xff]
    %v1380 = vld [vmem:[#allocation6 + $0x390] sm:$0xff]
    %v1381 = vld [vmem:[#allocation6 + $0x398] sm:$0xff]
    %v1382 = vld [vmem:[#allocation6 + $0x3a0] sm:$0xff]
    %v1383 = vld [vmem:[#allocation6 + $0x3a8] sm:$0xff]
    %v1384 = vld [vmem:[#allocation6 + $0x3b0] sm:$0xff]
    %v1385 = vld [vmem:[#allocation6 + $0x3b8] sm:$0xff]
    %v1386 = vld [vmem:[#allocation6 + $0x3c0] sm:$0xff]
    %v1387 = vld [vmem:[#allocation6 + $0x3c8] sm:$0xff]
    %v1388 = vld [vmem:[#allocation6 + $0x3d0] sm:$0xff]
    %v1389 = vld [vmem:[#allocation6 + $0x3d8] sm:$0xff]
    %v1390 = vld [vmem:[#allocation6 + $0x3e0] sm:$0xff]
    %v1391 = vld [vmem:[#allocation6 + $0x3e8] sm:$0xff]
    %v1392 = vld [vmem:[#allocation6 + $0x3f0] sm:$0xff]
    %v1393 = vld [vmem:[#allocation6 + $0x3f8] sm:$0xff]
    %1394 = vmatprep.subr.mxu0 %v1267
    %1395 = vmatpush1.msra.mxu0 %v1266
    %1396 = vmatprep.subr.mxu0 %v1271
    %1397 = vmatpush1.msra.mxu0 %v1270
    %1398 = vmatprep.subr.mxu0 %v1275
    %1399 = vmatpush1.msra.mxu0 %v1274
    %1400 = vmatprep.subr.mxu0 %v1279
    %1401 = vmatpush1.msra.mxu0 %v1278
    %1402 = vmatprep.subr.mxu0 %v1283
    %1403 = vmatpush1.msra.mxu0 %v1282
    %1404 = vmatprep.subr.mxu0 %v1287
    %1405 = vmatpush1.msra.mxu0 %v1286
    %1406 = vmatprep.subr.mxu0 %v1291
    %1407 = vmatpush1.msra.mxu0 %v1290
    %1408 = vmatprep.subr.mxu0 %v1295
    %1409 = vmatpush1.msra.mxu0 %v1294
    %1410 = vmatprep.subr.mxu0 %v1299
    %1411 = vmatpush1.msra.mxu0 %v1298
    %1412 = vmatprep.subr.mxu0 %v1303
    %1413 = vmatpush1.msra.mxu0 %v1302
    %1414 = vmatprep.subr.mxu0 %v1307
    %1415 = vmatpush1.msra.mxu0 %v1306
    %1416 = vmatprep.subr.mxu0 %v1311
    %1417 = vmatpush1.msra.mxu0 %v1310
    %1418 = vmatprep.subr.mxu0 %v1315
    %1419 = vmatpush1.msra.mxu0 %v1314
    %1420 = vmatprep.subr.mxu0 %v1319
    %1421 = vmatpush1.msra.mxu0 %v1318
    %1422 = vmatprep.subr.mxu0 %v1323
    %1423 = vmatpush1.msra.mxu0 %v1322
    %1424 = vmatprep.subr.mxu0 %v1327
    %1425 = vmatpush1.msra.mxu0 %v1326
    %1426 = vmatprep.subr.mxu0 %v1331
    %1427 = vmatpush1.msra.mxu0 %v1330
    %1428 = vmatprep.subr.mxu0 %v1335
    %1429 = vmatpush1.msra.mxu0 %v1334
    %1430 = vmatprep.subr.mxu0 %v1339
    %1431 = vmatpush1.msra.mxu0 %v1338
    %1432 = vmatprep.subr.mxu0 %v1343
    %1433 = vmatpush1.msra.mxu0 %v1342
    %1434 = vmatprep.subr.mxu0 %v1347
    %1435 = vmatpush1.msra.mxu0 %v1346
    %1436 = vmatprep.subr.mxu0 %v1351
    %1437 = vmatpush1.msra.mxu0 %v1350
    %1438 = vmatprep.subr.mxu0 %v1355
    %1439 = vmatpush1.msra.mxu0 %v1354
    %1440 = vmatprep.subr.mxu0 %v1359
    %1441 = vmatpush1.msra.mxu0 %v1358
    %1442 = vmatprep.subr.mxu0 %v1363
    %1443 = vmatpush1.msra.mxu0 %v1362
    %1444 = vmatprep.subr.mxu0 %v1367
    %1445 = vmatpush1.msra.mxu0 %v1366
    %1446 = vmatprep.subr.mxu0 %v1371
    %1447 = vmatpush1.msra.mxu0 %v1370
    %1448 = vmatprep.subr.mxu0 %v1375
    %1449 = vmatpush1.msra.mxu0 %v1374
    %1450 = vmatprep.subr.mxu0 %v1379
    %1451 = vmatpush1.msra.mxu0 %v1378
    %1452 = vmatprep.subr.mxu0 %v1383
    %1453 = vmatpush1.msra.mxu0 %v1382
    %1454 = vmatprep.subr.mxu0 %v1387
    %1455 = vmatpush1.msra.mxu0 %v1386
    %1456 = vmatprep.subr.mxu0 %v1391
    %1457 = vmatpush1.msra.mxu0 %v1390
    %1458 = vmatprep.mubr.f32.mxu0 %v1264
    %1459 = vmatmul.mubr.f32.gmra.mrb[0].mxu0 %v1263
    %v1460 = vpop.f32.mrb[0].mxu0
    %v1461 = vadd.f32 %v194, %v1460
    %v1462 = vpop.f32.mrb[0].mxu0
    %v1463 = vadd.f32 %v198, %v1462
    %1464 = vdwg.mxu0
    %1465 = vmatprep.subr.mxu0 %v1269
    %1466 = vmatpush1.msra.mxu0 %v1268
    %1467 = vmatprep.subr.mxu0 %v1273
    %1468 = vmatpush1.msra.mxu0 %v1272
    %1469 = vmatprep.subr.mxu0 %v1277
    %1470 = vmatpush1.msra.mxu0 %v1276
    %1471 = vmatprep.subr.mxu0 %v1281
    %1472 = vmatpush1.msra.mxu0 %v1280
    %1473 = vmatprep.subr.mxu0 %v1285
    %1474 = vmatpush1.msra.mxu0 %v1284
    %1475 = vmatprep.subr.mxu0 %v1289
    %1476 = vmatpush1.msra.mxu0 %v1288
    %1477 = vmatprep.subr.mxu0 %v1293
    %1478 = vmatpush1.msra.mxu0 %v1292
    %1479 = vmatprep.subr.mxu0 %v1297
    %1480 = vmatpush1.msra.mxu0 %v1296
    %1481 = vmatprep.subr.mxu0 %v1301
    %1482 = vmatpush1.msra.mxu0 %v1300
    %1483 = vmatprep.subr.mxu0 %v1305
    %1484 = vmatpush1.msra.mxu0 %v1304
    %1485 = vmatprep.subr.mxu0 %v1309
    %1486 = vmatpush1.msra.mxu0 %v1308
    %1487 = vmatprep.subr.mxu0 %v1313
    %1488 = vmatpush1.msra.mxu0 %v1312
    %1489 = vmatprep.subr.mxu0 %v1317
    %1490 = vmatpush1.msra.mxu0 %v1316
    %1491 = vmatprep.subr.mxu0 %v1321
    %1492 = vmatpush1.msra.mxu0 %v1320
    %1493 = vmatprep.subr.mxu0 %v1325
    %1494 = vmatpush1.msra.mxu0 %v1324
    %1495 = vmatprep.subr.mxu0 %v1329
    %1496 = vmatpush1.msra.mxu0 %v1328
    %1497 = vmatprep.subr.mxu0 %v1333
    %1498 = vmatpush1.msra.mxu0 %v1332
    %1499 = vmatprep.subr.mxu0 %v1337
    %1500 = vmatpush1.msra.mxu0 %v1336
    %1501 = vmatprep.subr.mxu0 %v1341
    %1502 = vmatpush1.msra.mxu0 %v1340
    %1503 = vmatprep.subr.mxu0 %v1345
    %1504 = vmatpush1.msra.mxu0 %v1344
    %1505 = vmatprep.subr.mxu0 %v1349
    %1506 = vmatpush1.msra.mxu0 %v1348
    %1507 = vmatprep.subr.mxu0 %v1353
    %1508 = vmatpush1.msra.mxu0 %v1352
    %1509 = vmatprep.subr.mxu0 %v1357
    %1510 = vmatpush1.msra.mxu0 %v1356
    %1511 = vmatprep.subr.mxu0 %v1361
    %1512 = vmatpush1.msra.mxu0 %v1360
    %1513 = vmatprep.subr.mxu0 %v1365
    %1514 = vmatpush1.msra.mxu0 %v1364
    %1515 = vmatprep.subr.mxu0 %v1369
    %1516 = vmatpush1.msra.mxu0 %v1368
    %1517 = vmatprep.subr.mxu0 %v1373
    %1518 = vmatpush1.msra.mxu0 %v1372
    %1519 = vmatprep.subr.mxu0 %v1377
    %1520 = vmatpush1.msra.mxu0 %v1376
    %1521 = vmatprep.subr.mxu0 %v1381
    %1522 = vmatpush1.msra.mxu0 %v1380
    %1523 = vmatprep.subr.mxu0 %v1385
    %1524 = vmatpush1.msra.mxu0 %v1384
    %1525 = vmatprep.subr.mxu0 %v1389
    %1526 = vmatpush1.msra.mxu0 %v1388
    %1527 = vmatprep.subr.mxu0 %v1393
    %1528 = vmatpush1.msra.mxu0 %v1392
    %1529 = vmatprep.mubr.f32.mxu0 %v1264
    %1530 = vmatmul.mubr.f32.gmra.mrb[0].mxu0 %v1263
    %v1531 = vpop.f32.mrb[0].mxu0
    %v1532 = vadd.f32 %v202, %v1531
    %v1533 = vpop.f32.mrb[0].mxu0
    %v1534 = vadd.f32 %v206, %v1533
    %1535 = vdwg.mxu0
    %v1536 = vmul.f32 %v1461, 0.5
    %v1537 = vtanh.pop %v1536
    %v1538 = vmul.f32 %v1537, 0.5
    %v1539 = vadd.f32 %v1538, 0.5
    %v1540 = vmul.f32 %v1463, 0.5
    %v1541 = vtanh.pop %v1540
    %v1542 = vmul.f32 %v1541, 0.5
    %v1543 = vadd.f32 %v1542, 0.5
    %v1544 = vtanh.pop %v1532
    %v1545 = vmul.f32 %v1534, 0.5
    %v1546 = vtanh.pop %v1545
    %v1547 = vmul.f32 %v1546, 0.5
    %v1548 = vadd.f32 %v1547, 0.5
    %v1549 = vmul.f32 %v1543, %v1265
    %v1550 = vmul.f32 %v1539, %v1544
    %v1551 = vadd.f32 %v1549, %v1550
    %v1552 = vtanh.pop %v1551
    %v1553 = vmul.f32 %v1548, %v1552
    %1554 = vst [vmem:[#allocation3] sm:$0xff] %v1553
    %1555 = vst [vmem:[#allocation4] sm:$0xff] %v1551
    %s1556 = scalar_lea.vmem [#allocation2], 32
    %1557 = vst [vmem:[%s1556] sm:$0xff] %v1553
    %s1558 = scalar_lea.vmem %s0, 40
    %v1559 = vld [vmem:[%s1558] sm:$0xff]
    %v1560 = vld [vmem:[#allocation3] sm:$0xff]
    %v1561 = vld [vmem:[#allocation4] sm:$0xff]
    %v1562 = vld [vmem:[#allocation6] sm:$0xff]
    %v1563 = vld [vmem:[#allocation6 + $0x8] sm:$0xff]
    %v1564 = vld [vmem:[#allocation6 + $0x10] sm:$0xff]
    %v1565 = vld [vmem:[#allocation6 + $0x18] sm:$0xff]
    %v1566 = vld [vmem:[#allocation6 + $0x20] sm:$0xff]
    %v1567 = vld [vmem:[#allocation6 + $0x28] sm:$0xff]
    %v1568 = vld [vmem:[#allocation6 + $0x30] sm:$0xff]
    %v1569 = vld [vmem:[#allocation6 + $0x38] sm:$0xff]
    %v1570 = vld [vmem:[#allocation6 + $0x40] sm:$0xff]
    %v1571 = vld [vmem:[#allocation6 + $0x48] sm:$0xff]
    %v1572 = vld [vmem:[#allocation6 + $0x50] sm:$0xff]
    %v1573 = vld [vmem:[#allocation6 + $0x58] sm:$0xff]
    %v1574 = vld [vmem:[#allocation6 + $0x60] sm:$0xff]
    %v1575 = vld [vmem:[#allocation6 + $0x68] sm:$0xff]
    %v1576 = vld [vmem:[#allocation6 + $0x70] sm:$0xff]
    %v1577 = vld [vmem:[#allocation6 + $0x78] sm:$0xff]
    %v1578 = vld [vmem:[#allocation6 + $0x80] sm:$0xff]
    %v1579 = vld [vmem:[#allocation6 + $0x88] sm:$0xff]
    %v1580 = vld [vmem:[#allocation6 + $0x90] sm:$0xff]
    %v1581 = vld [vmem:[#allocation6 + $0x98] sm:$0xff]
    %v1582 = vld [vmem:[#allocation6 + $0xa0] sm:$0xff]
    %v1583 = vld [vmem:[#allocation6 + $0xa8] sm:$0xff]
    %v1584 = vld [vmem:[#allocation6 + $0xb0] sm:$0xff]
    %v1585 = vld [vmem:[#allocation6 + $0xb8] sm:$0xff]
    %v1586 = vld [vmem:[#allocation6 + $0xc0] sm:$0xff]
    %v1587 = vld [vmem:[#allocation6 + $0xc8] sm:$0xff]
    %v1588 = vld [vmem:[#allocation6 + $0xd0] sm:$0xff]
    %v1589 = vld [vmem:[#allocation6 + $0xd8] sm:$0xff]
    %v1590 = vld [vmem:[#allocation6 + $0xe0] sm:$0xff]
    %v1591 = vld [vmem:[#allocation6 + $0xe8] sm:$0xff]
    %v1592 = vld [vmem:[#allocation6 + $0xf0] sm:$0xff]
    %v1593 = vld [vmem:[#allocation6 + $0xf8] sm:$0xff]
    %v1594 = vld [vmem:[#allocation6 + $0x100] sm:$0xff]
    %v1595 = vld [vmem:[#allocation6 + $0x108] sm:$0xff]
    %v1596 = vld [vmem:[#allocation6 + $0x110] sm:$0xff]
    %v1597 = vld [vmem:[#allocation6 + $0x118] sm:$0xff]
    %v1598 = vld [vmem:[#allocation6 + $0x120] sm:$0xff]
    %v1599 = vld [vmem:[#allocation6 + $0x128] sm:$0xff]
    %v1600 = vld [vmem:[#allocation6 + $0x130] sm:$0xff]
    %v1601 = vld [vmem:[#allocation6 + $0x138] sm:$0xff]
    %v1602 = vld [vmem:[#allocation6 + $0x140] sm:$0xff]
    %v1603 = vld [vmem:[#allocation6 + $0x148] sm:$0xff]
    %v1604 = vld [vmem:[#allocation6 + $0x150] sm:$0xff]
    %v1605 = vld [vmem:[#allocation6 + $0x158] sm:$0xff]
    %v1606 = vld [vmem:[#allocation6 + $0x160] sm:$0xff]
    %v1607 = vld [vmem:[#allocation6 + $0x168] sm:$0xff]
    %v1608 = vld [vmem:[#allocation6 + $0x170] sm:$0xff]
    %v1609 = vld [vmem:[#allocation6 + $0x178] sm:$0xff]
    %v1610 = vld [vmem:[#allocation6 + $0x180] sm:$0xff]
    %v1611 = vld [vmem:[#allocation6 + $0x188] sm:$0xff]
    %v1612 = vld [vmem:[#allocation6 + $0x190] sm:$0xff]
    %v1613 = vld [vmem:[#allocation6 + $0x198] sm:$0xff]
    %v1614 = vld [vmem:[#allocation6 + $0x1a0] sm:$0xff]
    %v1615 = vld [vmem:[#allocation6 + $0x1a8] sm:$0xff]
    %v1616 = vld [vmem:[#allocation6 + $0x1b0] sm:$0xff]
    %v1617 = vld [vmem:[#allocation6 + $0x1b8] sm:$0xff]
    %v1618 = vld [vmem:[#allocation6 + $0x1c0] sm:$0xff]
    %v1619 = vld [vmem:[#allocation6 + $0x1c8] sm:$0xff]
    %v1620 = vld [vmem:[#allocation6 + $0x1d0] sm:$0xff]
    %v1621 = vld [vmem:[#allocation6 + $0x1d8] sm:$0xff]
    %v1622 = vld [vmem:[#allocation6 + $0x1e0] sm:$0xff]
    %v1623 = vld [vmem:[#allocation6 + $0x1e8] sm:$0xff]
    %v1624 = vld [vmem:[#allocation6 + $0x1f0] sm:$0xff]
    %v1625 = vld [vmem:[#allocation6 + $0x1f8] sm:$0xff]
    %v1626 = vld [vmem:[#allocation6 + $0x200] sm:$0xff]
    %v1627 = vld [vmem:[#allocation6 + $0x208] sm:$0xff]
    %v1628 = vld [vmem:[#allocation6 + $0x210] sm:$0xff]
    %v1629 = vld [vmem:[#allocation6 + $0x218] sm:$0xff]
    %v1630 = vld [vmem:[#allocation6 + $0x220] sm:$0xff]
    %v1631 = vld [vmem:[#allocation6 + $0x228] sm:$0xff]
    %v1632 = vld [vmem:[#allocation6 + $0x230] sm:$0xff]
    %v1633 = vld [vmem:[#allocation6 + $0x238] sm:$0xff]
    %v1634 = vld [vmem:[#allocation6 + $0x240] sm:$0xff]
    %v1635 = vld [vmem:[#allocation6 + $0x248] sm:$0xff]
    %v1636 = vld [vmem:[#allocation6 + $0x250] sm:$0xff]
    %v1637 = vld [vmem:[#allocation6 + $0x258] sm:$0xff]
    %v1638 = vld [vmem:[#allocation6 + $0x260] sm:$0xff]
    %v1639 = vld [vmem:[#allocation6 + $0x268] sm:$0xff]
    %v1640 = vld [vmem:[#allocation6 + $0x270] sm:$0xff]
    %v1641 = vld [vmem:[#allocation6 + $0x278] sm:$0xff]
    %v1642 = vld [vmem:[#allocation6 + $0x280] sm:$0xff]
    %v1643 = vld [vmem:[#allocation6 + $0x288] sm:$0xff]
    %v1644 = vld [vmem:[#allocation6 + $0x290] sm:$0xff]
    %v1645 = vld [vmem:[#allocation6 + $0x298] sm:$0xff]
    %v1646 = vld [vmem:[#allocation6 + $0x2a0] sm:$0xff]
    %v1647 = vld [vmem:[#allocation6 + $0x2a8] sm:$0xff]
    %v1648 = vld [vmem:[#allocation6 + $0x2b0] sm:$0xff]
    %v1649 = vld [vmem:[#allocation6 + $0x2b8] sm:$0xff]
    %v1650 = vld [vmem:[#allocation6 + $0x2c0] sm:$0xff]
    %v1651 = vld [vmem:[#allocation6 + $0x2c8] sm:$0xff]
    %v1652 = vld [vmem:[#allocation6 + $0x2d0] sm:$0xff]
    %v1653 = vld [vmem:[#allocation6 + $0x2d8] sm:$0xff]
    %v1654 = vld [vmem:[#allocation6 + $0x2e0] sm:$0xff]
    %v1655 = vld [vmem:[#allocation6 + $0x2e8] sm:$0xff]
    %v1656 = vld [vmem:[#allocation6 + $0x2f0] sm:$0xff]
    %v1657 = vld [vmem:[#allocation6 + $0x2f8] sm:$0xff]
    %v1658 = vld [vmem:[#allocation6 + $0x300] sm:$0xff]
    %v1659 = vld [vmem:[#allocation6 + $0x308] sm:$0xff]
    %v1660 = vld [vmem:[#allocation6 + $0x310] sm:$0xff]
    %v1661 = vld [vmem:[#allocation6 + $0x318] sm:$0xff]
    %v1662 = vld [vmem:[#allocation6 + $0x320] sm:$0xff]
    %v1663 = vld [vmem:[#allocation6 + $0x328] sm:$0xff]
    %v1664 = vld [vmem:[#allocation6 + $0x330] sm:$0xff]
    %v1665 = vld [vmem:[#allocation6 + $0x338] sm:$0xff]
    %v1666 = vld [vmem:[#allocation6 + $0x340] sm:$0xff]
    %v1667 = vld [vmem:[#allocation6 + $0x348] sm:$0xff]
    %v1668 = vld [vmem:[#allocation6 + $0x350] sm:$0xff]
    %v1669 = vld [vmem:[#allocation6 + $0x358] sm:$0xff]
    %v1670 = vld [vmem:[#allocation6 + $0x360] sm:$0xff]
    %v1671 = vld [vmem:[#allocation6 + $0x368] sm:$0xff]
    %v1672 = vld [vmem:[#allocation6 + $0x370] sm:$0xff]
    %v1673 = vld [vmem:[#allocation6 + $0x378] sm:$0xff]
    %v1674 = vld [vmem:[#allocation6 + $0x380] sm:$0xff]
    %v1675 = vld [vmem:[#allocation6 + $0x388] sm:$0xff]
    %v1676 = vld [vmem:[#allocation6 + $0x390] sm:$0xff]
    %v1677 = vld [vmem:[#allocation6 + $0x398] sm:$0xff]
    %v1678 = vld [vmem:[#allocation6 + $0x3a0] sm:$0xff]
    %v1679 = vld [vmem:[#allocation6 + $0x3a8] sm:$0xff]
    %v1680 = vld [vmem:[#allocation6 + $0x3b0] sm:$0xff]
    %v1681 = vld [vmem:[#allocation6 + $0x3b8] sm:$0xff]
    %v1682 = vld [vmem:[#allocation6 + $0x3c0] sm:$0xff]
    %v1683 = vld [vmem:[#allocation6 + $0x3c8] sm:$0xff]
    %v1684 = vld [vmem:[#allocation6 + $0x3d0] sm:$0xff]
    %v1685 = vld [vmem:[#allocation6 + $0x3d8] sm:$0xff]
    %v1686 = vld [vmem:[#allocation6 + $0x3e0] sm:$0xff]
    %v1687 = vld [vmem:[#allocation6 + $0x3e8] sm:$0xff]
    %v1688 = vld [vmem:[#allocation6 + $0x3f0] sm:$0xff]
    %v1689 = vld [vmem:[#allocation6 + $0x3f8] sm:$0xff]
    %1690 = vmatprep.subr.mxu0 %v1563
    %1691 = vmatpush1.msra.mxu0 %v1562
    %1692 = vmatprep.subr.mxu0 %v1567
    %1693 = vmatpush1.msra.mxu0 %v1566
    %1694 = vmatprep.subr.mxu0 %v1571
    %1695 = vmatpush1.msra.mxu0 %v1570
    %1696 = vmatprep.subr.mxu0 %v1575
    %1697 = vmatpush1.msra.mxu0 %v1574
    %1698 = vmatprep.subr.mxu0 %v1579
    %1699 = vmatpush1.msra.mxu0 %v1578
    %1700 = vmatprep.subr.mxu0 %v1583
    %1701 = vmatpush1.msra.mxu0 %v1582
    %1702 = vmatprep.subr.mxu0 %v1587
    %1703 = vmatpush1.msra.mxu0 %v1586
    %1704 = vmatprep.subr.mxu0 %v1591
    %1705 = vmatpush1.msra.mxu0 %v1590
    %1706 = vmatprep.subr.mxu0 %v1595
    %1707 = vmatpush1.msra.mxu0 %v1594
    %1708 = vmatprep.subr.mxu0 %v1599
    %1709 = vmatpush1.msra.mxu0 %v1598
    %1710 = vmatprep.subr.mxu0 %v1603
    %1711 = vmatpush1.msra.mxu0 %v1602
    %1712 = vmatprep.subr.mxu0 %v1607
    %1713 = vmatpush1.msra.mxu0 %v1606
    %1714 = vmatprep.subr.mxu0 %v1611
    %1715 = vmatpush1.msra.mxu0 %v1610
    %1716 = vmatprep.subr.mxu0 %v1615
    %1717 = vmatpush1.msra.mxu0 %v1614
    %1718 = vmatprep.subr.mxu0 %v1619
    %1719 = vmatpush1.msra.mxu0 %v1618
    %1720 = vmatprep.subr.mxu0 %v1623
    %1721 = vmatpush1.msra.mxu0 %v1622
    %1722 = vmatprep.subr.mxu0 %v1627
    %1723 = vmatpush1.msra.mxu0 %v1626
    %1724 = vmatprep.subr.mxu0 %v1631
    %1725 = vmatpush1.msra.mxu0 %v1630
    %1726 = vmatprep.subr.mxu0 %v1635
    %1727 = vmatpush1.msra.mxu0 %v1634
    %1728 = vmatprep.subr.mxu0 %v1639
    %1729 = vmatpush1.msra.mxu0 %v1638
    %1730 = vmatprep.subr.mxu0 %v1643
    %1731 = vmatpush1.msra.mxu0 %v1642
    %1732 = vmatprep.subr.mxu0 %v1647
    %1733 = vmatpush1.msra.mxu0 %v1646
    %1734 = vmatprep.subr.mxu0 %v1651
    %1735 = vmatpush1.msra.mxu0 %v1650
    %1736 = vmatprep.subr.mxu0 %v1655
    %1737 = vmatpush1.msra.mxu0 %v1654
    %1738 = vmatprep.subr.mxu0 %v1659
    %1739 = vmatpush1.msra.mxu0 %v1658
    %1740 = vmatprep.subr.mxu0 %v1663
    %1741 = vmatpush1.msra.mxu0 %v1662
    %1742 = vmatprep.subr.mxu0 %v1667
    %1743 = vmatpush1.msra.mxu0 %v1666
    %1744 = vmatprep.subr.mxu0 %v1671
    %1745 = vmatpush1.msra.mxu0 %v1670
    %1746 = vmatprep.subr.mxu0 %v1675
    %1747 = vmatpush1.msra.mxu0 %v1674
    %1748 = vmatprep.subr.mxu0 %v1679
    %1749 = vmatpush1.msra.mxu0 %v1678
    %1750 = vmatprep.subr.mxu0 %v1683
    %1751 = vmatpush1.msra.mxu0 %v1682
    %1752 = vmatprep.subr.mxu0 %v1687
    %1753 = vmatpush1.msra.mxu0 %v1686
    %1754 = vmatprep.mubr.f32.mxu0 %v1560
    %1755 = vmatmul.mubr.f32.gmra.mrb[0].mxu0 %v1559
    %v1756 = vpop.f32.mrb[0].mxu0
    %v1757 = vadd.f32 %v194, %v1756
    %v1758 = vpop.f32.mrb[0].mxu0
    %v1759 = vadd.f32 %v198, %v1758
    %1760 = vdwg.mxu0
    %1761 = vmatprep.subr.mxu0 %v1565
    %1762 = vmatpush1.msra.mxu0 %v1564
    %1763 = vmatprep.subr.mxu0 %v1569
    %1764 = vmatpush1.msra.mxu0 %v1568
    %1765 = vmatprep.subr.mxu0 %v1573
    %1766 = vmatpush1.msra.mxu0 %v1572
    %1767 = vmatprep.subr.mxu0 %v1577
    %1768 = vmatpush1.msra.mxu0 %v1576
    %1769 = vmatprep.subr.mxu0 %v1581
    %1770 = vmatpush1.msra.mxu0 %v1580
    %1771 = vmatprep.subr.mxu0 %v1585
    %1772 = vmatpush1.msra.mxu0 %v1584
    %1773 = vmatprep.subr.mxu0 %v1589
    %1774 = vmatpush1.msra.mxu0 %v1588
    %1775 = vmatprep.subr.mxu0 %v1593
    %1776 = vmatpush1.msra.mxu0 %v1592
    %1777 = vmatprep.subr.mxu0 %v1597
    %1778 = vmatpush1.msra.mxu0 %v1596
    %1779 = vmatprep.subr.mxu0 %v1601
    %1780 = vmatpush1.msra.mxu0 %v1600
    %1781 = vmatprep.subr.mxu0 %v1605
    %1782 = vmatpush1.msra.mxu0 %v1604
    %1783 = vmatprep.subr.mxu0 %v1609
    %1784 = vmatpush1.msra.mxu0 %v1608
    %1785 = vmatprep.subr.mxu0 %v1613
    %1786 = vmatpush1.msra.mxu0 %v1612
    %1787 = vmatprep.subr.mxu0 %v1617
    %1788 = vmatpush1.msra.mxu0 %v1616
    %1789 = vmatprep.subr.mxu0 %v1621
    %1790 = vmatpush1.msra.mxu0 %v1620
    %1791 = vmatprep.subr.mxu0 %v1625
    %1792 = vmatpush1.msra.mxu0 %v1624
    %1793 = vmatprep.subr.mxu0 %v1629
    %1794 = vmatpush1.msra.mxu0 %v1628
    %1795 = vmatprep.subr.mxu0 %v1633
    %1796 = vmatpush1.msra.mxu0 %v1632
    %1797 = vmatprep.subr.mxu0 %v1637
    %1798 = vmatpush1.msra.mxu0 %v1636
    %1799 = vmatprep.subr.mxu0 %v1641
    %1800 = vmatpush1.msra.mxu0 %v1640
    %1801 = vmatprep.subr.mxu0 %v1645
    %1802 = vmatpush1.msra.mxu0 %v1644
    %1803 = vmatprep.subr.mxu0 %v1649
    %1804 = vmatpush1.msra.mxu0 %v1648
    %1805 = vmatprep.subr.mxu0 %v1653
    %1806 = vmatpush1.msra.mxu0 %v1652
    %1807 = vmatprep.subr.mxu0 %v1657
    %1808 = vmatpush1.msra.mxu0 %v1656
    %1809 = vmatprep.subr.mxu0 %v1661
    %1810 = vmatpush1.msra.mxu0 %v1660
    %1811 = vmatprep.subr.mxu0 %v1665
    %1812 = vmatpush1.msra.mxu0 %v1664
    %1813 = vmatprep.subr.mxu0 %v1669
    %1814 = vmatpush1.msra.mxu0 %v1668
    %1815 = vmatprep.subr.mxu0 %v1673
    %1816 = vmatpush1.msra.mxu0 %v1672
    %1817 = vmatprep.subr.mxu0 %v1677
    %1818 = vmatpush1.msra.mxu0 %v1676
    %1819 = vmatprep.subr.mxu0 %v1681
    %1820 = vmatpush1.msra.mxu0 %v1680
    %1821 = vmatprep.subr.mxu0 %v1685
    %1822 = vmatpush1.msra.mxu0 %v1684
    %1823 = vmatprep.subr.mxu0 %v1689
    %1824 = vmatpush1.msra.mxu0 %v1688
    %1825 = vmatprep.mubr.f32.mxu0 %v1560
    %1826 = vmatmul.mubr.f32.gmra.mrb[0].mxu0 %v1559
    %v1827 = vpop.f32.mrb[0].mxu0
    %v1828 = vadd.f32 %v202, %v1827
    %v1829 = vpop.f32.mrb[0].mxu0
    %v1830 = vadd.f32 %v206, %v1829
    %1831 = vdwg.mxu0
    %v1832 = vmul.f32 %v1757, 0.5
    %v1833 = vtanh.pop %v1832
    %v1834 = vmul.f32 %v1833, 0.5
    %v1835 = vadd.f32 %v1834, 0.5
    %v1836 = vmul.f32 %v1759, 0.5
    %v1837 = vtanh.pop %v1836
    %v1838 = vmul.f32 %v1837, 0.5
    %v1839 = vadd.f32 %v1838, 0.5
    %v1840 = vtanh.pop %v1828
    %v1841 = vmul.f32 %v1830, 0.5
    %v1842 = vtanh.pop %v1841
    %v1843 = vmul.f32 %v1842, 0.5
    %v1844 = vadd.f32 %v1843, 0.5
    %v1845 = vmul.f32 %v1839, %v1561
    %v1846 = vmul.f32 %v1835, %v1840
    %v1847 = vadd.f32 %v1845, %v1846
    %v1848 = vtanh.pop %v1847
    %v1849 = vmul.f32 %v1844, %v1848
    %1850 = vst [vmem:[#allocation3] sm:$0xff] %v1849
    %1851 = vst [vmem:[#allocation4] sm:$0xff] %v1847
    %s1852 = scalar_lea.vmem [#allocation2], 40
    %1853 = vst [vmem:[%s1852] sm:$0xff] %v1849
    %s1854 = scalar_lea.vmem %s0, 48
    %v1855 = vld [vmem:[%s1854] sm:$0xff]
    %v1856 = vld [vmem:[#allocation3] sm:$0xff]
    %v1857 = vld [vmem:[#allocation4] sm:$0xff]
    %v1858 = vld [vmem:[#allocation6] sm:$0xff]
    %v1859 = vld [vmem:[#allocation6 + $0x8] sm:$0xff]
    %v1860 = vld [vmem:[#allocation6 + $0x10] sm:$0xff]
    %v1861 = vld [vmem:[#allocation6 + $0x18] sm:$0xff]
    %v1862 = vld [vmem:[#allocation6 + $0x20] sm:$0xff]
    %v1863 = vld [vmem:[#allocation6 + $0x28] sm:$0xff]
    %v1864 = vld [vmem:[#allocation6 + $0x30] sm:$0xff]
    %v1865 = vld [vmem:[#allocation6 + $0x38] sm:$0xff]
    %v1866 = vld [vmem:[#allocation6 + $0x40] sm:$0xff]
    %v1867 = vld [vmem:[#allocation6 + $0x48] sm:$0xff]
    %v1868 = vld [vmem:[#allocation6 + $0x50] sm:$0xff]
    %v1869 = vld [vmem:[#allocation6 + $0x58] sm:$0xff]
    %v1870 = vld [vmem:[#allocation6 + $0x60] sm:$0xff]
    %v1871 = vld [vmem:[#allocation6 + $0x68] sm:$0xff]
    %v1872 = vld [vmem:[#allocation6 + $0x70] sm:$0xff]
    %v1873 = vld [vmem:[#allocation6 + $0x78] sm:$0xff]
    %v1874 = vld [vmem:[#allocation6 + $0x80] sm:$0xff]
    %v1875 = vld [vmem:[#allocation6 + $0x88] sm:$0xff]
    %v1876 = vld [vmem:[#allocation6 + $0x90] sm:$0xff]
    %v1877 = vld [vmem:[#allocation6 + $0x98] sm:$0xff]
    %v1878 = vld [vmem:[#allocation6 + $0xa0] sm:$0xff]
    %v1879 = vld [vmem:[#allocation6 + $0xa8] sm:$0xff]
    %v1880 = vld [vmem:[#allocation6 + $0xb0] sm:$0xff]
    %v1881 = vld [vmem:[#allocation6 + $0xb8] sm:$0xff]
    %v1882 = vld [vmem:[#allocation6 + $0xc0] sm:$0xff]
    %v1883 = vld [vmem:[#allocation6 + $0xc8] sm:$0xff]
    %v1884 = vld [vmem:[#allocation6 + $0xd0] sm:$0xff]
    %v1885 = vld [vmem:[#allocation6 + $0xd8] sm:$0xff]
    %v1886 = vld [vmem:[#allocation6 + $0xe0] sm:$0xff]
    %v1887 = vld [vmem:[#allocation6 + $0xe8] sm:$0xff]
    %v1888 = vld [vmem:[#allocation6 + $0xf0] sm:$0xff]
    %v1889 = vld [vmem:[#allocation6 + $0xf8] sm:$0xff]
    %v1890 = vld [vmem:[#allocation6 + $0x100] sm:$0xff]
    %v1891 = vld [vmem:[#allocation6 + $0x108] sm:$0xff]
    %v1892 = vld [vmem:[#allocation6 + $0x110] sm:$0xff]
    %v1893 = vld [vmem:[#allocation6 + $0x118] sm:$0xff]
    %v1894 = vld [vmem:[#allocation6 + $0x120] sm:$0xff]
    %v1895 = vld [vmem:[#allocation6 + $0x128] sm:$0xff]
    %v1896 = vld [vmem:[#allocation6 + $0x130] sm:$0xff]
    %v1897 = vld [vmem:[#allocation6 + $0x138] sm:$0xff]
    %v1898 = vld [vmem:[#allocation6 + $0x140] sm:$0xff]
    %v1899 = vld [vmem:[#allocation6 + $0x148] sm:$0xff]
    %v1900 = vld [vmem:[#allocation6 + $0x150] sm:$0xff]
    %v1901 = vld [vmem:[#allocation6 + $0x158] sm:$0xff]
    %v1902 = vld [vmem:[#allocation6 + $0x160] sm:$0xff]
    %v1903 = vld [vmem:[#allocation6 + $0x168] sm:$0xff]
    %v1904 = vld [vmem:[#allocation6 + $0x170] sm:$0xff]
    %v1905 = vld [vmem:[#allocation6 + $0x178] sm:$0xff]
    %v1906 = vld [vmem:[#allocation6 + $0x180] sm:$0xff]
    %v1907 = vld [vmem:[#allocation6 + $0x188] sm:$0xff]
    %v1908 = vld [vmem:[#allocation6 + $0x190] sm:$0xff]
    %v1909 = vld [vmem:[#allocation6 + $0x198] sm:$0xff]
    %v1910 = vld [vmem:[#allocation6 + $0x1a0] sm:$0xff]
    %v1911 = vld [vmem:[#allocation6 + $0x1a8] sm:$0xff]
    %v1912 = vld [vmem:[#allocation6 + $0x1b0] sm:$0xff]
    %v1913 = vld [vmem:[#allocation6 + $0x1b8] sm:$0xff]
    %v1914 = vld [vmem:[#allocation6 + $0x1c0] sm:$0xff]
    %v1915 = vld [vmem:[#allocation6 + $0x1c8] sm:$0xff]
    %v1916 = vld [vmem:[#allocation6 + $0x1d0] sm:$0xff]
    %v1917 = vld [vmem:[#allocation6 + $0x1d8] sm:$0xff]
    %v1918 = vld [vmem:[#allocation6 + $0x1e0] sm:$0xff]
    %v1919 = vld [vmem:[#allocation6 + $0x1e8] sm:$0xff]
    %v1920 = vld [vmem:[#allocation6 + $0x1f0] sm:$0xff]
    %v1921 = vld [vmem:[#allocation6 + $0x1f8] sm:$0xff]
    %v1922 = vld [vmem:[#allocation6 + $0x200] sm:$0xff]
    %v1923 = vld [vmem:[#allocation6 + $0x208] sm:$0xff]
    %v1924 = vld [vmem:[#allocation6 + $0x210] sm:$0xff]
    %v1925 = vld [vmem:[#allocation6 + $0x218] sm:$0xff]
    %v1926 = vld [vmem:[#allocation6 + $0x220] sm:$0xff]
    %v1927 = vld [vmem:[#allocation6 + $0x228] sm:$0xff]
    %v1928 = vld [vmem:[#allocation6 + $0x230] sm:$0xff]
    %v1929 = vld [vmem:[#allocation6 + $0x238] sm:$0xff]
    %v1930 = vld [vmem:[#allocation6 + $0x240] sm:$0xff]
    %v1931 = vld [vmem:[#allocation6 + $0x248] sm:$0xff]
    %v1932 = vld [vmem:[#allocation6 + $0x250] sm:$0xff]
    %v1933 = vld [vmem:[#allocation6 + $0x258] sm:$0xff]
    %v1934 = vld [vmem:[#allocation6 + $0x260] sm:$0xff]
    %v1935 = vld [vmem:[#allocation6 + $0x268] sm:$0xff]
    %v1936 = vld [vmem:[#allocation6 + $0x270] sm:$0xff]
    %v1937 = vld [vmem:[#allocation6 + $0x278] sm:$0xff]
    %v1938 = vld [vmem:[#allocation6 + $0x280] sm:$0xff]
    %v1939 = vld [vmem:[#allocation6 + $0x288] sm:$0xff]
    %v1940 = vld [vmem:[#allocation6 + $0x290] sm:$0xff]
    %v1941 = vld [vmem:[#allocation6 + $0x298] sm:$0xff]
    %v1942 = vld [vmem:[#allocation6 + $0x2a0] sm:$0xff]
    %v1943 = vld [vmem:[#allocation6 + $0x2a8] sm:$0xff]
    %v1944 = vld [vmem:[#allocation6 + $0x2b0] sm:$0xff]
    %v1945 = vld [vmem:[#allocation6 + $0x2b8] sm:$0xff]
    %v1946 = vld [vmem:[#allocation6 + $0x2c0] sm:$0xff]
    %v1947 = vld [vmem:[#allocation6 + $0x2c8] sm:$0xff]
    %v1948 = vld [vmem:[#allocation6 + $0x2d0] sm:$0xff]
    %v1949 = vld [vmem:[#allocation6 + $0x2d8] sm:$0xff]
    %v1950 = vld [vmem:[#allocation6 + $0x2e0] sm:$0xff]
    %v1951 = vld [vmem:[#allocation6 + $0x2e8] sm:$0xff]
    %v1952 = vld [vmem:[#allocation6 + $0x2f0] sm:$0xff]
    %v1953 = vld [vmem:[#allocation6 + $0x2f8] sm:$0xff]
    %v1954 = vld [vmem:[#allocation6 + $0x300] sm:$0xff]
    %v1955 = vld [vmem:[#allocation6 + $0x308] sm:$0xff]
    %v1956 = vld [vmem:[#allocation6 + $0x310] sm:$0xff]
    %v1957 = vld [vmem:[#allocation6 + $0x318] sm:$0xff]
    %v1958 = vld [vmem:[#allocation6 + $0x320] sm:$0xff]
    %v1959 = vld [vmem:[#allocation6 + $0x328] sm:$0xff]
    %v1960 = vld [vmem:[#allocation6 + $0x330] sm:$0xff]
    %v1961 = vld [vmem:[#allocation6 + $0x338] sm:$0xff]
    %v1962 = vld [vmem:[#allocation6 + $0x340] sm:$0xff]
    %v1963 = vld [vmem:[#allocation6 + $0x348] sm:$0xff]
    %v1964 = vld [vmem:[#allocation6 + $0x350] sm:$0xff]
    %v1965 = vld [vmem:[#allocation6 + $0x358] sm:$0xff]
    %v1966 = vld [vmem:[#allocation6 + $0x360] sm:$0xff]
    %v1967 = vld [vmem:[#allocation6 + $0x368] sm:$0xff]
    %v1968 = vld [vmem:[#allocation6 + $0x370] sm:$0xff]
    %v1969 = vld [vmem:[#allocation6 + $0x378] sm:$0xff]
    %v1970 = vld [vmem:[#allocation6 + $0x380] sm:$0xff]
    %v1971 = vld [vmem:[#allocation6 + $0x388] sm:$0xff]
    %v1972 = vld [vmem:[#allocation6 + $0x390] sm:$0xff]
    %v1973 = vld [vmem:[#allocation6 + $0x398] sm:$0xff]
    %v1974 = vld [vmem:[#allocation6 + $0x3a0] sm:$0xff]
    %v1975 = vld [vmem:[#allocation6 + $0x3a8] sm:$0xff]
    %v1976 = vld [vmem:[#allocation6 + $0x3b0] sm:$0xff]
    %v1977 = vld [vmem:[#allocation6 + $0x3b8] sm:$0xff]
    %v1978 = vld [vmem:[#allocation6 + $0x3c0] sm:$0xff]
    %v1979 = vld [vmem:[#allocation6 + $0x3c8] sm:$0xff]
    %v1980 = vld [vmem:[#allocation6 + $0x3d0] sm:$0xff]
    %v1981 = vld [vmem:[#allocation6 + $0x3d8] sm:$0xff]
    %v1982 = vld [vmem:[#allocation6 + $0x3e0] sm:$0xff]
    %v1983 = vld [vmem:[#allocation6 + $0x3e8] sm:$0xff]
    %v1984 = vld [vmem:[#allocation6 + $0x3f0] sm:$0xff]
    %v1985 = vld [vmem:[#allocation6 + $0x3f8] sm:$0xff]
    %1986 = vmatprep.subr.mxu0 %v1859
    %1987 = vmatpush1.msra.mxu0 %v1858
    %1988 = vmatprep.subr.mxu0 %v1863
    %1989 = vmatpush1.msra.mxu0 %v1862
    %1990 = vmatprep.subr.mxu0 %v1867
    %1991 = vmatpush1.msra.mxu0 %v1866
    %1992 = vmatprep.subr.mxu0 %v1871
    %1993 = vmatpush1.msra.mxu0 %v1870
    %1994 = vmatprep.subr.mxu0 %v1875
    %1995 = vmatpush1.msra.mxu0 %v1874
    %1996 = vmatprep.subr.mxu0 %v1879
    %1997 = vmatpush1.msra.mxu0 %v1878
    %1998 = vmatprep.subr.mxu0 %v1883
    %1999 = vmatpush1.msra.mxu0 %v1882
    %2000 = vmatprep.subr.mxu0 %v1887
    %2001 = vmatpush1.msra.mxu0 %v1886
    %2002 = vmatprep.subr.mxu0 %v1891
    %2003 = vmatpush1.msra.mxu0 %v1890
    %2004 = vmatprep.subr.mxu0 %v1895
    %2005 = vmatpush1.msra.mxu0 %v1894
    %2006 = vmatprep.subr.mxu0 %v1899
    %2007 = vmatpush1.msra.mxu0 %v1898
    %2008 = vmatprep.subr.mxu0 %v1903
    %2009 = vmatpush1.msra.mxu0 %v1902
    %2010 = vmatprep.subr.mxu0 %v1907
    %2011 = vmatpush1.msra.mxu0 %v1906
    %2012 = vmatprep.subr.mxu0 %v1911
    %2013 = vmatpush1.msra.mxu0 %v1910
    %2014 = vmatprep.subr.mxu0 %v1915
    %2015 = vmatpush1.msra.mxu0 %v1914
    %2016 = vmatprep.subr.mxu0 %v1919
    %2017 = vmatpush1.msra.mxu0 %v1918
    %2018 = vmatprep.subr.mxu0 %v1923
    %2019 = vmatpush1.msra.mxu0 %v1922
    %2020 = vmatprep.subr.mxu0 %v1927
    %2021 = vmatpush1.msra.mxu0 %v1926
    %2022 = vmatprep.subr.mxu0 %v1931
    %2023 = vmatpush1.msra.mxu0 %v1930
    %2024 = vmatprep.subr.mxu0 %v1935
    %2025 = vmatpush1.msra.mxu0 %v1934
    %2026 = vmatprep.subr.mxu0 %v1939
    %2027 = vmatpush1.msra.mxu0 %v1938
    %2028 = vmatprep.subr.mxu0 %v1943
    %2029 = vmatpush1.msra.mxu0 %v1942
    %2030 = vmatprep.subr.mxu0 %v1947
    %2031 = vmatpush1.msra.mxu0 %v1946
    %2032 = vmatprep.subr.mxu0 %v1951
    %2033 = vmatpush1.msra.mxu0 %v1950
    %2034 = vmatprep.subr.mxu0 %v1955
    %2035 = vmatpush1.msra.mxu0 %v1954
    %2036 = vmatprep.subr.mxu0 %v1959
    %2037 = vmatpush1.msra.mxu0 %v1958
    %2038 = vmatprep.subr.mxu0 %v1963
    %2039 = vmatpush1.msra.mxu0 %v1962
    %2040 = vmatprep.subr.mxu0 %v1967
    %2041 = vmatpush1.msra.mxu0 %v1966
    %2042 = vmatprep.subr.mxu0 %v1971
    %2043 = vmatpush1.msra.mxu0 %v1970
    %2044 = vmatprep.subr.mxu0 %v1975
    %2045 = vmatpush1.msra.mxu0 %v1974
    %2046 = vmatprep.subr.mxu0 %v1979
    %2047 = vmatpush1.msra.mxu0 %v1978
    %2048 = vmatprep.subr.mxu0 %v1983
    %2049 = vmatpush1.msra.mxu0 %v1982
    %2050 = vmatprep.mubr.f32.mxu0 %v1856
    %2051 = vmatmul.mubr.f32.gmra.mrb[0].mxu0 %v1855
    %v2052 = vpop.f32.mrb[0].mxu0
    %v2053 = vadd.f32 %v194, %v2052
    %v2054 = vpop.f32.mrb[0].mxu0
    %v2055 = vadd.f32 %v198, %v2054
    %2056 = vdwg.mxu0
    %2057 = vmatprep.subr.mxu0 %v1861
    %2058 = vmatpush1.msra.mxu0 %v1860
    %2059 = vmatprep.subr.mxu0 %v1865
    %2060 = vmatpush1.msra.mxu0 %v1864
    %2061 = vmatprep.subr.mxu0 %v1869
    %2062 = vmatpush1.msra.mxu0 %v1868
    %2063 = vmatprep.subr.mxu0 %v1873
    %2064 = vmatpush1.msra.mxu0 %v1872
    %2065 = vmatprep.subr.mxu0 %v1877
    %2066 = vmatpush1.msra.mxu0 %v1876
    %2067 = vmatprep.subr.mxu0 %v1881
    %2068 = vmatpush1.msra.mxu0 %v1880
    %2069 = vmatprep.subr.mxu0 %v1885
    %2070 = vmatpush1.msra.mxu0 %v1884
    %2071 = vmatprep.subr.mxu0 %v1889
    %2072 = vmatpush1.msra.mxu0 %v1888
    %2073 = vmatprep.subr.mxu0 %v1893
    %2074 = vmatpush1.msra.mxu0 %v1892
    %2075 = vmatprep.subr.mxu0 %v1897
    %2076 = vmatpush1.msra.mxu0 %v1896
    %2077 = vmatprep.subr.mxu0 %v1901
    %2078 = vmatpush1.msra.mxu0 %v1900
    %2079 = vmatprep.subr.mxu0 %v1905
    %2080 = vmatpush1.msra.mxu0 %v1904
    %2081 = vmatprep.subr.mxu0 %v1909
    %2082 = vmatpush1.msra.mxu0 %v1908
    %2083 = vmatprep.subr.mxu0 %v1913
    %2084 = vmatpush1.msra.mxu0 %v1912
    %2085 = vmatprep.subr.mxu0 %v1917
    %2086 = vmatpush1.msra.mxu0 %v1916
    %2087 = vmatprep.subr.mxu0 %v1921
    %2088 = vmatpush1.msra.mxu0 %v1920
    %2089 = vmatprep.subr.mxu0 %v1925
    %2090 = vmatpush1.msra.mxu0 %v1924
    %2091 = vmatprep.subr.mxu0 %v1929
    %2092 = vmatpush1.msra.mxu0 %v1928
    %2093 = vmatprep.subr.mxu0 %v1933
    %2094 = vmatpush1.msra.mxu0 %v1932
    %2095 = vmatprep.subr.mxu0 %v1937
    %2096 = vmatpush1.msra.mxu0 %v1936
    %2097 = vmatprep.subr.mxu0 %v1941
    %2098 = vmatpush1.msra.mxu0 %v1940
    %2099 = vmatprep.subr.mxu0 %v1945
    %2100 = vmatpush1.msra.mxu0 %v1944
    %2101 = vmatprep.subr.mxu0 %v1949
    %2102 = vmatpush1.msra.mxu0 %v1948
    %2103 = vmatprep.subr.mxu0 %v1953
    %2104 = vmatpush1.msra.mxu0 %v1952
    %2105 = vmatprep.subr.mxu0 %v1957
    %2106 = vmatpush1.msra.mxu0 %v1956
    %2107 = vmatprep.subr.mxu0 %v1961
    %2108 = vmatpush1.msra.mxu0 %v1960
    %2109 = vmatprep.subr.mxu0 %v1965
    %2110 = vmatpush1.msra.mxu0 %v1964
    %2111 = vmatprep.subr.mxu0 %v1969
    %2112 = vmatpush1.msra.mxu0 %v1968
    %2113 = vmatprep.subr.mxu0 %v1973
    %2114 = vmatpush1.msra.mxu0 %v1972
    %2115 = vmatprep.subr.mxu0 %v1977
    %2116 = vmatpush1.msra.mxu0 %v1976
    %2117 = vmatprep.subr.mxu0 %v1981
    %2118 = vmatpush1.msra.mxu0 %v1980
    %2119 = vmatprep.subr.mxu0 %v1985
    %2120 = vmatpush1.msra.mxu0 %v1984
    %2121 = vmatprep.mubr.f32.mxu0 %v1856
    %2122 = vmatmul.mubr.f32.gmra.mrb[0].mxu0 %v1855
    %v2123 = vpop.f32.mrb[0].mxu0
    %v2124 = vadd.f32 %v202, %v2123
    %v2125 = vpop.f32.mrb[0].mxu0
    %v2126 = vadd.f32 %v206, %v2125
    %2127 = vdwg.mxu0
    %v2128 = vmul.f32 %v2053, 0.5
    %v2129 = vtanh.pop %v2128
    %v2130 = vmul.f32 %v2129, 0.5
    %v2131 = vadd.f32 %v2130, 0.5
    %v2132 = vmul.f32 %v2055, 0.5
    %v2133 = vtanh.pop %v2132
    %v2134 = vmul.f32 %v2133, 0.5
    %v2135 = vadd.f32 %v2134, 0.5
    %v2136 = vtanh.pop %v2124
    %v2137 = vmul.f32 %v2126, 0.5
    %v2138 = vtanh.pop %v2137
    %v2139 = vmul.f32 %v2138, 0.5
    %v2140 = vadd.f32 %v2139, 0.5
    %v2141 = vmul.f32 %v2135, %v1857
    %v2142 = vmul.f32 %v2131, %v2136
    %v2143 = vadd.f32 %v2141, %v2142
    %v2144 = vtanh.pop %v2143
    %v2145 = vmul.f32 %v2140, %v2144
    %2146 = vst [vmem:[#allocation3] sm:$0xff] %v2145
    %2147 = vst [vmem:[#allocation4] sm:$0xff] %v2143
    %s2148 = scalar_lea.vmem [#allocation2], 48
    %2149 = vst [vmem:[%s2148] sm:$0xff] %v2145
    %s2150 = scalar_lea.vmem %s0, 56
    %v2151 = vld [vmem:[%s2150] sm:$0xff]
    %v2152 = vld [vmem:[#allocation3] sm:$0xff]
    %v2153 = vld [vmem:[#allocation4] sm:$0xff]
    %v2154 = vld [vmem:[#allocation6] sm:$0xff]
    %v2155 = vld [vmem:[#allocation6 + $0x8] sm:$0xff]
    %v2156 = vld [vmem:[#allocation6 + $0x10] sm:$0xff]
    %v2157 = vld [vmem:[#allocation6 + $0x18] sm:$0xff]
    %v2158 = vld [vmem:[#allocation6 + $0x20] sm:$0xff]
    %v2159 = vld [vmem:[#allocation6 + $0x28] sm:$0xff]
    %v2160 = vld [vmem:[#allocation6 + $0x30] sm:$0xff]
    %v2161 = vld [vmem:[#allocation6 + $0x38] sm:$0xff]
    %v2162 = vld [vmem:[#allocation6 + $0x40] sm:$0xff]
    %v2163 = vld [vmem:[#allocation6 + $0x48] sm:$0xff]
    %v2164 = vld [vmem:[#allocation6 + $0x50] sm:$0xff]
    %v2165 = vld [vmem:[#allocation6 + $0x58] sm:$0xff]
    %v2166 = vld [vmem:[#allocation6 + $0x60] sm:$0xff]
    %v2167 = vld [vmem:[#allocation6 + $0x68] sm:$0xff]
    %v2168 = vld [vmem:[#allocation6 + $0x70] sm:$0xff]
    %v2169 = vld [vmem:[#allocation6 + $0x78] sm:$0xff]
    %v2170 = vld [vmem:[#allocation6 + $0x80] sm:$0xff]
    %v2171 = vld [vmem:[#allocation6 + $0x88] sm:$0xff]
    %v2172 = vld [vmem:[#allocation6 + $0x90] sm:$0xff]
    %v2173 = vld [vmem:[#allocation6 + $0x98] sm:$0xff]
    %v2174 = vld [vmem:[#allocation6 + $0xa0] sm:$0xff]
    %v2175 = vld [vmem:[#allocation6 + $0xa8] sm:$0xff]
    %v2176 = vld [vmem:[#allocation6 + $0xb0] sm:$0xff]
    %v2177 = vld [vmem:[#allocation6 + $0xb8] sm:$0xff]
    %v2178 = vld [vmem:[#allocation6 + $0xc0] sm:$0xff]
    %v2179 = vld [vmem:[#allocation6 + $0xc8] sm:$0xff]
    %v2180 = vld [vmem:[#allocation6 + $0xd0] sm:$0xff]
    %v2181 = vld [vmem:[#allocation6 + $0xd8] sm:$0xff]
    %v2182 = vld [vmem:[#allocation6 + $0xe0] sm:$0xff]
    %v2183 = vld [vmem:[#allocation6 + $0xe8] sm:$0xff]
    %v2184 = vld [vmem:[#allocation6 + $0xf0] sm:$0xff]
    %v2185 = vld [vmem:[#allocation6 + $0xf8] sm:$0xff]
    %v2186 = vld [vmem:[#allocation6 + $0x100] sm:$0xff]
    %v2187 = vld [vmem:[#allocation6 + $0x108] sm:$0xff]
    %v2188 = vld [vmem:[#allocation6 + $0x110] sm:$0xff]
    %v2189 = vld [vmem:[#allocation6 + $0x118] sm:$0xff]
    %v2190 = vld [vmem:[#allocation6 + $0x120] sm:$0xff]
    %v2191 = vld [vmem:[#allocation6 + $0x128] sm:$0xff]
    %v2192 = vld [vmem:[#allocation6 + $0x130] sm:$0xff]
    %v2193 = vld [vmem:[#allocation6 + $0x138] sm:$0xff]
    %v2194 = vld [vmem:[#allocation6 + $0x140] sm:$0xff]
    %v2195 = vld [vmem:[#allocation6 + $0x148] sm:$0xff]
    %v2196 = vld [vmem:[#allocation6 + $0x150] sm:$0xff]
    %v2197 = vld [vmem:[#allocation6 + $0x158] sm:$0xff]
    %v2198 = vld [vmem:[#allocation6 + $0x160] sm:$0xff]
    %v2199 = vld [vmem:[#allocation6 + $0x168] sm:$0xff]
    %v2200 = vld [vmem:[#allocation6 + $0x170] sm:$0xff]
    %v2201 = vld [vmem:[#allocation6 + $0x178] sm:$0xff]
    %v2202 = vld [vmem:[#allocation6 + $0x180] sm:$0xff]
    %v2203 = vld [vmem:[#allocation6 + $0x188] sm:$0xff]
    %v2204 = vld [vmem:[#allocation6 + $0x190] sm:$0xff]
    %v2205 = vld [vmem:[#allocation6 + $0x198] sm:$0xff]
    %v2206 = vld [vmem:[#allocation6 + $0x1a0] sm:$0xff]
    %v2207 = vld [vmem:[#allocation6 + $0x1a8] sm:$0xff]
    %v2208 = vld [vmem:[#allocation6 + $0x1b0] sm:$0xff]
    %v2209 = vld [vmem:[#allocation6 + $0x1b8] sm:$0xff]
    %v2210 = vld [vmem:[#allocation6 + $0x1c0] sm:$0xff]
    %v2211 = vld [vmem:[#allocation6 + $0x1c8] sm:$0xff]
    %v2212 = vld [vmem:[#allocation6 + $0x1d0] sm:$0xff]
    %v2213 = vld [vmem:[#allocation6 + $0x1d8] sm:$0xff]
    %v2214 = vld [vmem:[#allocation6 + $0x1e0] sm:$0xff]
    %v2215 = vld [vmem:[#allocation6 + $0x1e8] sm:$0xff]
    %v2216 = vld [vmem:[#allocation6 + $0x1f0] sm:$0xff]
    %v2217 = vld [vmem:[#allocation6 + $0x1f8] sm:$0xff]
    %v2218 = vld [vmem:[#allocation6 + $0x200] sm:$0xff]
    %v2219 = vld [vmem:[#allocation6 + $0x208] sm:$0xff]
    %v2220 = vld [vmem:[#allocation6 + $0x210] sm:$0xff]
    %v2221 = vld [vmem:[#allocation6 + $0x218] sm:$0xff]
    %v2222 = vld [vmem:[#allocation6 + $0x220] sm:$0xff]
    %v2223 = vld [vmem:[#allocation6 + $0x228] sm:$0xff]
    %v2224 = vld [vmem:[#allocation6 + $0x230] sm:$0xff]
    %v2225 = vld [vmem:[#allocation6 + $0x238] sm:$0xff]
    %v2226 = vld [vmem:[#allocation6 + $0x240] sm:$0xff]
    %v2227 = vld [vmem:[#allocation6 + $0x248] sm:$0xff]
    %v2228 = vld [vmem:[#allocation6 + $0x250] sm:$0xff]
    %v2229 = vld [vmem:[#allocation6 + $0x258] sm:$0xff]
    %v2230 = vld [vmem:[#allocation6 + $0x260] sm:$0xff]
    %v2231 = vld [vmem:[#allocation6 + $0x268] sm:$0xff]
    %v2232 = vld [vmem:[#allocation6 + $0x270] sm:$0xff]
    %v2233 = vld [vmem:[#allocation6 + $0x278] sm:$0xff]
    %v2234 = vld [vmem:[#allocation6 + $0x280] sm:$0xff]
    %v2235 = vld [vmem:[#allocation6 + $0x288] sm:$0xff]
    %v2236 = vld [vmem:[#allocation6 + $0x290] sm:$0xff]
    %v2237 = vld [vmem:[#allocation6 + $0x298] sm:$0xff]
    %v2238 = vld [vmem:[#allocation6 + $0x2a0] sm:$0xff]
    %v2239 = vld [vmem:[#allocation6 + $0x2a8] sm:$0xff]
    %v2240 = vld [vmem:[#allocation6 + $0x2b0] sm:$0xff]
    %v2241 = vld [vmem:[#allocation6 + $0x2b8] sm:$0xff]
    %v2242 = vld [vmem:[#allocation6 + $0x2c0] sm:$0xff]
    %v2243 = vld [vmem:[#allocation6 + $0x2c8] sm:$0xff]
    %v2244 = vld [vmem:[#allocation6 + $0x2d0] sm:$0xff]
    %v2245 = vld [vmem:[#allocation6 + $0x2d8] sm:$0xff]
    %v2246 = vld [vmem:[#allocation6 + $0x2e0] sm:$0xff]
    %v2247 = vld [vmem:[#allocation6 + $0x2e8] sm:$0xff]
    %v2248 = vld [vmem:[#allocation6 + $0x2f0] sm:$0xff]
    %v2249 = vld [vmem:[#allocation6 + $0x2f8] sm:$0xff]
    %v2250 = vld [vmem:[#allocation6 + $0x300] sm:$0xff]
    %v2251 = vld [vmem:[#allocation6 + $0x308] sm:$0xff]
    %v2252 = vld [vmem:[#allocation6 + $0x310] sm:$0xff]
    %v2253 = vld [vmem:[#allocation6 + $0x318] sm:$0xff]
    %v2254 = vld [vmem:[#allocation6 + $0x320] sm:$0xff]
    %v2255 = vld [vmem:[#allocation6 + $0x328] sm:$0xff]
    %v2256 = vld [vmem:[#allocation6 + $0x330] sm:$0xff]
    %v2257 = vld [vmem:[#allocation6 + $0x338] sm:$0xff]
    %v2258 = vld [vmem:[#allocation6 + $0x340] sm:$0xff]
    %v2259 = vld [vmem:[#allocation6 + $0x348] sm:$0xff]
    %v2260 = vld [vmem:[#allocation6 + $0x350] sm:$0xff]
    %v2261 = vld [vmem:[#allocation6 + $0x358] sm:$0xff]
    %v2262 = vld [vmem:[#allocation6 + $0x360] sm:$0xff]
    %v2263 = vld [vmem:[#allocation6 + $0x368] sm:$0xff]
    %v2264 = vld [vmem:[#allocation6 + $0x370] sm:$0xff]
    %v2265 = vld [vmem:[#allocation6 + $0x378] sm:$0xff]
    %v2266 = vld [vmem:[#allocation6 + $0x380] sm:$0xff]
    %v2267 = vld [vmem:[#allocation6 + $0x388] sm:$0xff]
    %v2268 = vld [vmem:[#allocation6 + $0x390] sm:$0xff]
    %v2269 = vld [vmem:[#allocation6 + $0x398] sm:$0xff]
    %v2270 = vld [vmem:[#allocation6 + $0x3a0] sm:$0xff]
    %v2271 = vld [vmem:[#allocation6 + $0x3a8] sm:$0xff]
    %v2272 = vld [vmem:[#allocation6 + $0x3b0] sm:$0xff]
    %v2273 = vld [vmem:[#allocation6 + $0x3b8] sm:$0xff]
    %v2274 = vld [vmem:[#allocation6 + $0x3c0] sm:$0xff]
    %v2275 = vld [vmem:[#allocation6 + $0x3c8] sm:$0xff]
    %v2276 = vld [vmem:[#allocation6 + $0x3d0] sm:$0xff]
    %v2277 = vld [vmem:[#allocation6 + $0x3d8] sm:$0xff]
    %v2278 = vld [vmem:[#allocation6 + $0x3e0] sm:$0xff]
    %v2279 = vld [vmem:[#allocation6 + $0x3e8] sm:$0xff]
    %v2280 = vld [vmem:[#allocation6 + $0x3f0] sm:$0xff]
    %v2281 = vld [vmem:[#allocation6 + $0x3f8] sm:$0xff]
    %2282 = vmatprep.subr.mxu0 %v2155
    %2283 = vmatpush1.msra.mxu0 %v2154
    %2284 = vmatprep.subr.mxu0 %v2159
    %2285 = vmatpush1.msra.mxu0 %v2158
    %2286 = vmatprep.subr.mxu0 %v2163
    %2287 = vmatpush1.msra.mxu0 %v2162
    %2288 = vmatprep.subr.mxu0 %v2167
    %2289 = vmatpush1.msra.mxu0 %v2166
    %2290 = vmatprep.subr.mxu0 %v2171
    %2291 = vmatpush1.msra.mxu0 %v2170
    %2292 = vmatprep.subr.mxu0 %v2175
    %2293 = vmatpush1.msra.mxu0 %v2174
    %2294 = vmatprep.subr.mxu0 %v2179
    %2295 = vmatpush1.msra.mxu0 %v2178
    %2296 = vmatprep.subr.mxu0 %v2183
    %2297 = vmatpush1.msra.mxu0 %v2182
    %2298 = vmatprep.subr.mxu0 %v2187
    %2299 = vmatpush1.msra.mxu0 %v2186
    %2300 = vmatprep.subr.mxu0 %v2191
    %2301 = vmatpush1.msra.mxu0 %v2190
    %2302 = vmatprep.subr.mxu0 %v2195
    %2303 = vmatpush1.msra.mxu0 %v2194
    %2304 = vmatprep.subr.mxu0 %v2199
    %2305 = vmatpush1.msra.mxu0 %v2198
    %2306 = vmatprep.subr.mxu0 %v2203
    %2307 = vmatpush1.msra.mxu0 %v2202
    %2308 = vmatprep.subr.mxu0 %v2207
    %2309 = vmatpush1.msra.mxu0 %v2206
    %2310 = vmatprep.subr.mxu0 %v2211
    %2311 = vmatpush1.msra.mxu0 %v2210
    %2312 = vmatprep.subr.mxu0 %v2215
    %2313 = vmatpush1.msra.mxu0 %v2214
    %2314 = vmatprep.subr.mxu0 %v2219
    %2315 = vmatpush1.msra.mxu0 %v2218
    %2316 = vmatprep.subr.mxu0 %v2223
    %2317 = vmatpush1.msra.mxu0 %v2222
    %2318 = vmatprep.subr.mxu0 %v2227
    %2319 = vmatpush1.msra.mxu0 %v2226
    %2320 = vmatprep.subr.mxu0 %v2231
    %2321 = vmatpush1.msra.mxu0 %v2230
    %2322 = vmatprep.subr.mxu0 %v2235
    %2323 = vmatpush1.msra.mxu0 %v2234
    %2324 = vmatprep.subr.mxu0 %v2239
    %2325 = vmatpush1.msra.mxu0 %v2238
    %2326 = vmatprep.subr.mxu0 %v2243
    %2327 = vmatpush1.msra.mxu0 %v2242
    %2328 = vmatprep.subr.mxu0 %v2247
    %2329 = vmatpush1.msra.mxu0 %v2246
    %2330 = vmatprep.subr.mxu0 %v2251
    %2331 = vmatpush1.msra.mxu0 %v2250
    %2332 = vmatprep.subr.mxu0 %v2255
    %2333 = vmatpush1.msra.mxu0 %v2254
    %2334 = vmatprep.subr.mxu0 %v2259
    %2335 = vmatpush1.msra.mxu0 %v2258
    %2336 = vmatprep.subr.mxu0 %v2263
    %2337 = vmatpush1.msra.mxu0 %v2262
    %2338 = vmatprep.subr.mxu0 %v2267
    %2339 = vmatpush1.msra.mxu0 %v2266
    %2340 = vmatprep.subr.mxu0 %v2271
    %2341 = vmatpush1.msra.mxu0 %v2270
    %2342 = vmatprep.subr.mxu0 %v2275
    %2343 = vmatpush1.msra.mxu0 %v2274
    %2344 = vmatprep.subr.mxu0 %v2279
    %2345 = vmatpush1.msra.mxu0 %v2278
    %2346 = vmatprep.mubr.f32.mxu0 %v2152
    %2347 = vmatmul.mubr.f32.gmra.mrb[0].mxu0 %v2151
    %v2348 = vpop.f32.mrb[0].mxu0
    %v2349 = vadd.f32 %v194, %v2348
    %v2350 = vpop.f32.mrb[0].mxu0
    %v2351 = vadd.f32 %v198, %v2350
    %2352 = vdwg.mxu0
    %2353 = vmatprep.subr.mxu0 %v2157
    %2354 = vmatpush1.msra.mxu0 %v2156
    %2355 = vmatprep.subr.mxu0 %v2161
    %2356 = vmatpush1.msra.mxu0 %v2160
    %2357 = vmatprep.subr.mxu0 %v2165
    %2358 = vmatpush1.msra.mxu0 %v2164
    %2359 = vmatprep.subr.mxu0 %v2169
    %2360 = vmatpush1.msra.mxu0 %v2168
    %2361 = vmatprep.subr.mxu0 %v2173
    %2362 = vmatpush1.msra.mxu0 %v2172
    %2363 = vmatprep.subr.mxu0 %v2177
    %2364 = vmatpush1.msra.mxu0 %v2176
    %2365 = vmatprep.subr.mxu0 %v2181
    %2366 = vmatpush1.msra.mxu0 %v2180
    %2367 = vmatprep.subr.mxu0 %v2185
    %2368 = vmatpush1.msra.mxu0 %v2184
    %2369 = vmatprep.subr.mxu0 %v2189
    %2370 = vmatpush1.msra.mxu0 %v2188
    %2371 = vmatprep.subr.mxu0 %v2193
    %2372 = vmatpush1.msra.mxu0 %v2192
    %2373 = vmatprep.subr.mxu0 %v2197
    %2374 = vmatpush1.msra.mxu0 %v2196
    %2375 = vmatprep.subr.mxu0 %v2201
    %2376 = vmatpush1.msra.mxu0 %v2200
    %2377 = vmatprep.subr.mxu0 %v2205
    %2378 = vmatpush1.msra.mxu0 %v2204
    %2379 = vmatprep.subr.mxu0 %v2209
    %2380 = vmatpush1.msra.mxu0 %v2208
    %2381 = vmatprep.subr.mxu0 %v2213
    %2382 = vmatpush1.msra.mxu0 %v2212
    %2383 = vmatprep.subr.mxu0 %v2217
    %2384 = vmatpush1.msra.mxu0 %v2216
    %2385 = vmatprep.subr.mxu0 %v2221
    %2386 = vmatpush1.msra.mxu0 %v2220
    %2387 = vmatprep.subr.mxu0 %v2225
    %2388 = vmatpush1.msra.mxu0 %v2224
    %2389 = vmatprep.subr.mxu0 %v2229
    %2390 = vmatpush1.msra.mxu0 %v2228
    %2391 = vmatprep.subr.mxu0 %v2233
    %2392 = vmatpush1.msra.mxu0 %v2232
    %2393 = vmatprep.subr.mxu0 %v2237
    %2394 = vmatpush1.msra.mxu0 %v2236
    %2395 = vmatprep.subr.mxu0 %v2241
    %2396 = vmatpush1.msra.mxu0 %v2240
    %2397 = vmatprep.subr.mxu0 %v2245
    %2398 = vmatpush1.msra.mxu0 %v2244
    %2399 = vmatprep.subr.mxu0 %v2249
    %2400 = vmatpush1.msra.mxu0 %v2248
    %2401 = vmatprep.subr.mxu0 %v2253
    %2402 = vmatpush1.msra.mxu0 %v2252
    %2403 = vmatprep.subr.mxu0 %v2257
    %2404 = vmatpush1.msra.mxu0 %v2256
    %2405 = vmatprep.subr.mxu0 %v2261
    %2406 = vmatpush1.msra.mxu0 %v2260
    %2407 = vmatprep.subr.mxu0 %v2265
    %2408 = vmatpush1.msra.mxu0 %v2264
    %2409 = vmatprep.subr.mxu0 %v2269
    %2410 = vmatpush1.msra.mxu0 %v2268
    %2411 = vmatprep.subr.mxu0 %v2273
    %2412 = vmatpush1.msra.mxu0 %v2272
    %2413 = vmatprep.subr.mxu0 %v2277
    %2414 = vmatpush1.msra.mxu0 %v2276
    %2415 = vmatprep.subr.mxu0 %v2281
    %2416 = vmatpush1.msra.mxu0 %v2280
    %2417 = vmatprep.mubr.f32.mxu0 %v2152
    %2418 = vmatmul.mubr.f32.gmra.mrb[0].mxu0 %v2151
    %v2419 = vpop.f32.mrb[0].mxu0
    %v2420 = vadd.f32 %v202, %v2419
    %v2421 = vpop.f32.mrb[0].mxu0
    %v2422 = vadd.f32 %v206, %v2421
    %2423 = vdwg.mxu0
    %v2424 = vmul.f32 %v2349, 0.5
    %v2425 = vtanh.pop %v2424
    %v2426 = vmul.f32 %v2425, 0.5
    %v2427 = vadd.f32 %v2426, 0.5
    %v2428 = vmul.f32 %v2351, 0.5
    %v2429 = vtanh.pop %v2428
    %v2430 = vmul.f32 %v2429, 0.5
    %v2431 = vadd.f32 %v2430, 0.5
    %v2432 = vtanh.pop %v2420
    %v2433 = vmul.f32 %v2422, 0.5
    %v2434 = vtanh.pop %v2433
    %v2435 = vmul.f32 %v2434, 0.5
    %v2436 = vadd.f32 %v2435, 0.5
    %v2437 = vmul.f32 %v2431, %v2153
    %v2438 = vmul.f32 %v2427, %v2432
    %v2439 = vadd.f32 %v2437, %v2438
    %v2440 = vtanh.pop %v2439
    %v2441 = vmul.f32 %v2436, %v2440
    %2442 = vst [vmem:[#allocation3] sm:$0xff] %v2441
    %2443 = vst [vmem:[#allocation4] sm:$0xff] %v2439
    %s2444 = scalar_lea.vmem [#allocation2], 56
    %2445 = vst [vmem:[%s2444] sm:$0xff] %v2441
    %2446 = vst [vmem:[#allocation3] sm:$0xff] 0.0
    %2447 = vst [vmem:[#allocation4] sm:$0xff] 0.0
    %v2448 = vld [vmem:[%s4] sm:$0xf]
    %v2449 = vld [vmem:[#allocation2] sm:$0xff]
    %v2450 = vld [vmem:[#allocation3] sm:$0xff]
    %v2451 = vld [vmem:[#allocation4] sm:$0xff]
    %v2452 = vld [vmem:[#allocation8] sm:$0xff]
    %v2453 = vld [vmem:[#allocation8 + $0x8] sm:$0xff]
    %v2454 = vld [vmem:[#allocation8 + $0x10] sm:$0xff]
    %v2455 = vld [vmem:[#allocation8 + $0x18] sm:$0xff]
    %v2456 = vld [vmem:[#allocation8 + $0x20] sm:$0xff]
    %v2457 = vld [vmem:[#allocation8 + $0x28] sm:$0xff]
    %v2458 = vld [vmem:[#allocation8 + $0x30] sm:$0xff]
    %v2459 = vld [vmem:[#allocation8 + $0x38] sm:$0xff]
    %v2460 = vld [vmem:[#allocation8 + $0x40] sm:$0xff]
    %v2461 = vld [vmem:[#allocation8 + $0x48] sm:$0xff]
    %v2462 = vld [vmem:[#allocation8 + $0x50] sm:$0xff]
    %v2463 = vld [vmem:[#allocation8 + $0x58] sm:$0xff]
    %v2464 = vld [vmem:[#allocation8 + $0x60] sm:$0xff]
    %v2465 = vld [vmem:[#allocation8 + $0x68] sm:$0xff]
    %v2466 = vld [vmem:[#allocation8 + $0x70] sm:$0xff]
    %v2467 = vld [vmem:[#allocation8 + $0x78] sm:$0xff]
    %v2468 = vld [vmem:[#allocation8 + $0x80] sm:$0xff]
    %v2469 = vld [vmem:[#allocation8 + $0x88] sm:$0xff]
    %v2470 = vld [vmem:[#allocation8 + $0x90] sm:$0xff]
    %v2471 = vld [vmem:[#allocation8 + $0x98] sm:$0xff]
    %v2472 = vld [vmem:[#allocation8 + $0xa0] sm:$0xff]
    %v2473 = vld [vmem:[#allocation8 + $0xa8] sm:$0xff]
    %v2474 = vld [vmem:[#allocation8 + $0xb0] sm:$0xff]
    %v2475 = vld [vmem:[#allocation8 + $0xb8] sm:$0xff]
    %v2476 = vld [vmem:[#allocation8 + $0xc0] sm:$0xff]
    %v2477 = vld [vmem:[#allocation8 + $0xc8] sm:$0xff]
    %v2478 = vld [vmem:[#allocation8 + $0xd0] sm:$0xff]
    %v2479 = vld [vmem:[#allocation8 + $0xd8] sm:$0xff]
    %v2480 = vld [vmem:[#allocation8 + $0xe0] sm:$0xff]
    %v2481 = vld [vmem:[#allocation8 + $0xe8] sm:$0xff]
    %v2482 = vld [vmem:[#allocation8 + $0xf0] sm:$0xff]
    %v2483 = vld [vmem:[#allocation8 + $0xf8] sm:$0xff]
    %v2484 = vld [vmem:[#allocation8 + $0x100] sm:$0xff]
    %v2485 = vld [vmem:[#allocation8 + $0x108] sm:$0xff]
    %v2486 = vld [vmem:[#allocation8 + $0x110] sm:$0xff]
    %v2487 = vld [vmem:[#allocation8 + $0x118] sm:$0xff]
    %v2488 = vld [vmem:[#allocation8 + $0x120] sm:$0xff]
    %v2489 = vld [vmem:[#allocation8 + $0x128] sm:$0xff]
    %v2490 = vld [vmem:[#allocation8 + $0x130] sm:$0xff]
    %v2491 = vld [vmem:[#allocation8 + $0x138] sm:$0xff]
    %v2492 = vld [vmem:[#allocation8 + $0x140] sm:$0xff]
    %v2493 = vld [vmem:[#allocation8 + $0x148] sm:$0xff]
    %v2494 = vld [vmem:[#allocation8 + $0x150] sm:$0xff]
    %v2495 = vld [vmem:[#allocation8 + $0x158] sm:$0xff]
    %v2496 = vld [vmem:[#allocation8 + $0x160] sm:$0xff]
    %v2497 = vld [vmem:[#allocation8 + $0x168] sm:$0xff]
    %v2498 = vld [vmem:[#allocation8 + $0x170] sm:$0xff]
    %v2499 = vld [vmem:[#allocation8 + $0x178] sm:$0xff]
    %v2500 = vld [vmem:[#allocation8 + $0x180] sm:$0xff]
    %v2501 = vld [vmem:[#allocation8 + $0x188] sm:$0xff]
    %v2502 = vld [vmem:[#allocation8 + $0x190] sm:$0xff]
    %v2503 = vld [vmem:[#allocation8 + $0x198] sm:$0xff]
    %v2504 = vld [vmem:[#allocation8 + $0x1a0] sm:$0xff]
    %v2505 = vld [vmem:[#allocation8 + $0x1a8] sm:$0xff]
    %v2506 = vld [vmem:[#allocation8 + $0x1b0] sm:$0xff]
    %v2507 = vld [vmem:[#allocation8 + $0x1b8] sm:$0xff]
    %v2508 = vld [vmem:[#allocation8 + $0x1c0] sm:$0xff]
    %v2509 = vld [vmem:[#allocation8 + $0x1c8] sm:$0xff]
    %v2510 = vld [vmem:[#allocation8 + $0x1d0] sm:$0xff]
    %v2511 = vld [vmem:[#allocation8 + $0x1d8] sm:$0xff]
    %v2512 = vld [vmem:[#allocation8 + $0x1e0] sm:$0xff]
    %v2513 = vld [vmem:[#allocation8 + $0x1e8] sm:$0xff]
    %v2514 = vld [vmem:[#allocation8 + $0x1f0] sm:$0xff]
    %v2515 = vld [vmem:[#allocation8 + $0x1f8] sm:$0xff]
    %v2516 = vld [vmem:[#allocation8 + $0x200] sm:$0xff]
    %v2517 = vld [vmem:[#allocation8 + $0x208] sm:$0xff]
    %v2518 = vld [vmem:[#allocation8 + $0x210] sm:$0xff]
    %v2519 = vld [vmem:[#allocation8 + $0x218] sm:$0xff]
    %v2520 = vld [vmem:[#allocation8 + $0x220] sm:$0xff]
    %v2521 = vld [vmem:[#allocation8 + $0x228] sm:$0xff]
    %v2522 = vld [vmem:[#allocation8 + $0x230] sm:$0xff]
    %v2523 = vld [vmem:[#allocation8 + $0x238] sm:$0xff]
    %v2524 = vld [vmem:[#allocation8 + $0x240] sm:$0xff]
    %v2525 = vld [vmem:[#allocation8 + $0x248] sm:$0xff]
    %v2526 = vld [vmem:[#allocation8 + $0x250] sm:$0xff]
    %v2527 = vld [vmem:[#allocation8 + $0x258] sm:$0xff]
    %v2528 = vld [vmem:[#allocation8 + $0x260] sm:$0xff]
    %v2529 = vld [vmem:[#allocation8 + $0x268] sm:$0xff]
    %v2530 = vld [vmem:[#allocation8 + $0x270] sm:$0xff]
    %v2531 = vld [vmem:[#allocation8 + $0x278] sm:$0xff]
    %v2532 = vld [vmem:[#allocation8 + $0x280] sm:$0xff]
    %v2533 = vld [vmem:[#allocation8 + $0x288] sm:$0xff]
    %v2534 = vld [vmem:[#allocation8 + $0x290] sm:$0xff]
    %v2535 = vld [vmem:[#allocation8 + $0x298] sm:$0xff]
    %v2536 = vld [vmem:[#allocation8 + $0x2a0] sm:$0xff]
    %v2537 = vld [vmem:[#allocation8 + $0x2a8] sm:$0xff]
    %v2538 = vld [vmem:[#allocation8 + $0x2b0] sm:$0xff]
    %v2539 = vld [vmem:[#allocation8 + $0x2b8] sm:$0xff]
    %v2540 = vld [vmem:[#allocation8 + $0x2c0] sm:$0xff]
    %v2541 = vld [vmem:[#allocation8 + $0x2c8] sm:$0xff]
    %v2542 = vld [vmem:[#allocation8 + $0x2d0] sm:$0xff]
    %v2543 = vld [vmem:[#allocation8 + $0x2d8] sm:$0xff]
    %v2544 = vld [vmem:[#allocation8 + $0x2e0] sm:$0xff]
    %v2545 = vld [vmem:[#allocation8 + $0x2e8] sm:$0xff]
    %v2546 = vld [vmem:[#allocation8 + $0x2f0] sm:$0xff]
    %v2547 = vld [vmem:[#allocation8 + $0x2f8] sm:$0xff]
    %v2548 = vld [vmem:[#allocation8 + $0x300] sm:$0xff]
    %v2549 = vld [vmem:[#allocation8 + $0x308] sm:$0xff]
    %v2550 = vld [vmem:[#allocation8 + $0x310] sm:$0xff]
    %v2551 = vld [vmem:[#allocation8 + $0x318] sm:$0xff]
    %v2552 = vld [vmem:[#allocation8 + $0x320] sm:$0xff]
    %v2553 = vld [vmem:[#allocation8 + $0x328] sm:$0xff]
    %v2554 = vld [vmem:[#allocation8 + $0x330] sm:$0xff]
    %v2555 = vld [vmem:[#allocation8 + $0x338] sm:$0xff]
    %v2556 = vld [vmem:[#allocation8 + $0x340] sm:$0xff]
    %v2557 = vld [vmem:[#allocation8 + $0x348] sm:$0xff]
    %v2558 = vld [vmem:[#allocation8 + $0x350] sm:$0xff]
    %v2559 = vld [vmem:[#allocation8 + $0x358] sm:$0xff]
    %v2560 = vld [vmem:[#allocation8 + $0x360] sm:$0xff]
    %v2561 = vld [vmem:[#allocation8 + $0x368] sm:$0xff]
    %v2562 = vld [vmem:[#allocation8 + $0x370] sm:$0xff]
    %v2563 = vld [vmem:[#allocation8 + $0x378] sm:$0xff]
    %v2564 = vld [vmem:[#allocation8 + $0x380] sm:$0xff]
    %v2565 = vld [vmem:[#allocation8 + $0x388] sm:$0xff]
    %v2566 = vld [vmem:[#allocation8 + $0x390] sm:$0xff]
    %v2567 = vld [vmem:[#allocation8 + $0x398] sm:$0xff]
    %v2568 = vld [vmem:[#allocation8 + $0x3a0] sm:$0xff]
    %v2569 = vld [vmem:[#allocation8 + $0x3a8] sm:$0xff]
    %v2570 = vld [vmem:[#allocation8 + $0x3b0] sm:$0xff]
    %v2571 = vld [vmem:[#allocation8 + $0x3b8] sm:$0xff]
    %v2572 = vld [vmem:[#allocation8 + $0x3c0] sm:$0xff]
    %v2573 = vld [vmem:[#allocation8 + $0x3c8] sm:$0xff]
    %v2574 = vld [vmem:[#allocation8 + $0x3d0] sm:$0xff]
    %v2575 = vld [vmem:[#allocation8 + $0x3d8] sm:$0xff]
    %v2576 = vld [vmem:[#allocation8 + $0x3e0] sm:$0xff]
    %v2577 = vld [vmem:[#allocation8 + $0x3e8] sm:$0xff]
    %v2578 = vld [vmem:[#allocation8 + $0x3f0] sm:$0xff]
    %v2579 = vld [vmem:[#allocation8 + $0x3f8] sm:$0xff]
    %v2581 = vlaneseq
    %v2582 = vshrl.u32 %v2581, 7
    %v2583 = vsub.s32 0, %v2582
    %v2584 = vrot.slane %v2448, %v2583
    %v2585 = vlaneseq
    %v2586 = vshrl.u32 %v2585, 7
    %v2587 = vsub.s32 1, %v2586
    %v2588 = vrot.slane %v2448, %v2587
    %v2589 = vlaneseq
    %v2590 = vshrl.u32 %v2589, 7
    %v2591 = vsub.s32 2, %v2590
    %v2592 = vrot.slane %v2448, %v2591
    %v2593 = vlaneseq
    %v2594 = vshrl.u32 %v2593, 7
    %v2595 = vsub.s32 3, %v2594
    %v2596 = vrot.slane %v2448, %v2595
    %2601 = vmatprep.subr.mxu0 %v2453
    %2602 = vmatpush1.msra.mxu0 %v2452
    %2603 = vmatprep.subr.mxu0 %v2457
    %2604 = vmatpush1.msra.mxu0 %v2456
    %2605 = vmatprep.subr.mxu0 %v2461
    %2606 = vmatpush1.msra.mxu0 %v2460
    %2607 = vmatprep.subr.mxu0 %v2465
    %2608 = vmatpush1.msra.mxu0 %v2464
    %2609 = vmatprep.subr.mxu0 %v2469
    %2610 = vmatpush1.msra.mxu0 %v2468
    %2611 = vmatprep.subr.mxu0 %v2473
    %2612 = vmatpush1.msra.mxu0 %v2472
    %2613 = vmatprep.subr.mxu0 %v2477
    %2614 = vmatpush1.msra.mxu0 %v2476
    %2615 = vmatprep.subr.mxu0 %v2481
    %2616 = vmatpush1.msra.mxu0 %v2480
    %2617 = vmatprep.subr.mxu0 %v2485
    %2618 = vmatpush1.msra.mxu0 %v2484
    %2619 = vmatprep.subr.mxu0 %v2489
    %2620 = vmatpush1.msra.mxu0 %v2488
    %2621 = vmatprep.subr.mxu0 %v2493
    %2622 = vmatpush1.msra.mxu0 %v2492
    %2623 = vmatprep.subr.mxu0 %v2497
    %2624 = vmatpush1.msra.mxu0 %v2496
    %2625 = vmatprep.subr.mxu0 %v2501
    %2626 = vmatpush1.msra.mxu0 %v2500
    %2627 = vmatprep.subr.mxu0 %v2505
    %2628 = vmatpush1.msra.mxu0 %v2504
    %2629 = vmatprep.subr.mxu0 %v2509
    %2630 = vmatpush1.msra.mxu0 %v2508
    %2631 = vmatprep.subr.mxu0 %v2513
    %2632 = vmatpush1.msra.mxu0 %v2512
    %2633 = vmatprep.subr.mxu0 %v2517
    %2634 = vmatpush1.msra.mxu0 %v2516
    %2635 = vmatprep.subr.mxu0 %v2521
    %2636 = vmatpush1.msra.mxu0 %v2520
    %2637 = vmatprep.subr.mxu0 %v2525
    %2638 = vmatpush1.msra.mxu0 %v2524
    %2639 = vmatprep.subr.mxu0 %v2529
    %2640 = vmatpush1.msra.mxu0 %v2528
    %2641 = vmatprep.subr.mxu0 %v2533
    %2642 = vmatpush1.msra.mxu0 %v2532
    %2643 = vmatprep.subr.mxu0 %v2537
    %2644 = vmatpush1.msra.mxu0 %v2536
    %2645 = vmatprep.subr.mxu0 %v2541
    %2646 = vmatpush1.msra.mxu0 %v2540
    %2647 = vmatprep.subr.mxu0 %v2545
    %2648 = vmatpush1.msra.mxu0 %v2544
    %2649 = vmatprep.subr.mxu0 %v2549
    %2650 = vmatpush1.msra.mxu0 %v2548
    %2651 = vmatprep.subr.mxu0 %v2553
    %2652 = vmatpush1.msra.mxu0 %v2552
    %2653 = vmatprep.subr.mxu0 %v2557
    %2654 = vmatpush1.msra.mxu0 %v2556
    %2655 = vmatprep.subr.mxu0 %v2561
    %2656 = vmatpush1.msra.mxu0 %v2560
    %2657 = vmatprep.subr.mxu0 %v2565
    %2658 = vmatpush1.msra.mxu0 %v2564
    %2659 = vmatprep.subr.mxu0 %v2569
    %2660 = vmatpush1.msra.mxu0 %v2568
    %2661 = vmatprep.subr.mxu0 %v2573
    %2662 = vmatpush1.msra.mxu0 %v2572
    %2663 = vmatprep.subr.mxu0 %v2577
    %2664 = vmatpush1.msra.mxu0 %v2576
    %2665 = vmatprep.mubr.f32.mxu0 %v2450
    %2666 = vmatmul.mubr.f32.gmra.mrb[0].mxu0 %v2449
    %v2667 = vpop.f32.mrb[0].mxu0
    %v2668 = vadd.f32 %v2584, %v2667
    %v2669 = vpop.f32.mrb[0].mxu0
    %v2670 = vadd.f32 %v2588, %v2669
    %2671 = vdwg.mxu0
    %2672 = vmatprep.subr.mxu0 %v2455
    %2673 = vmatpush1.msra.mxu0 %v2454
    %2674 = vmatprep.subr.mxu0 %v2459
    %2675 = vmatpush1.msra.mxu0 %v2458
    %2676 = vmatprep.subr.mxu0 %v2463
    %2677 = vmatpush1.msra.mxu0 %v2462
    %2678 = vmatprep.subr.mxu0 %v2467
    %2679 = vmatpush1.msra.mxu0 %v2466
    %2680 = vmatprep.subr.mxu0 %v2471
    %2681 = vmatpush1.msra.mxu0 %v2470
    %2682 = vmatprep.subr.mxu0 %v2475
    %2683 = vmatpush1.msra.mxu0 %v2474
    %2684 = vmatprep.subr.mxu0 %v2479
    %2685 = vmatpush1.msra.mxu0 %v2478
    %2686 = vmatprep.subr.mxu0 %v2483
    %2687 = vmatpush1.msra.mxu0 %v2482
    %2688 = vmatprep.subr.mxu0 %v2487
    %2689 = vmatpush1.msra.mxu0 %v2486
    %2690 = vmatprep.subr.mxu0 %v2491
    %2691 = vmatpush1.msra.mxu0 %v2490
    %2692 = vmatprep.subr.mxu0 %v2495
    %2693 = vmatpush1.msra.mxu0 %v2494
    %2694 = vmatprep.subr.mxu0 %v2499
    %2695 = vmatpush1.msra.mxu0 %v2498
    %2696 = vmatprep.subr.mxu0 %v2503
    %2697 = vmatpush1.msra.mxu0 %v2502
    %2698 = vmatprep.subr.mxu0 %v2507
    %2699 = vmatpush1.msra.mxu0 %v2506
    %2700 = vmatprep.subr.mxu0 %v2511
    %2701 = vmatpush1.msra.mxu0 %v2510
    %2702 = vmatprep.subr.mxu0 %v2515
    %2703 = vmatpush1.msra.mxu0 %v2514
    %2704 = vmatprep.subr.mxu0 %v2519
    %2705 = vmatpush1.msra.mxu0 %v2518
    %2706 = vmatprep.subr.mxu0 %v2523
    %2707 = vmatpush1.msra.mxu0 %v2522
    %2708 = vmatprep.subr.mxu0 %v2527
    %2709 = vmatpush1.msra.mxu0 %v2526
    %2710 = vmatprep.subr.mxu0 %v2531
    %2711 = vmatpush1.msra.mxu0 %v2530
    %2712 = vmatprep.subr.mxu0 %v2535
    %2713 = vmatpush1.msra.mxu0 %v2534
    %2714 = vmatprep.subr.mxu0 %v2539
    %2715 = vmatpush1.msra.mxu0 %v2538
    %2716 = vmatprep.subr.mxu0 %v2543
    %2717 = vmatpush1.msra.mxu0 %v2542
    %2718 = vmatprep.subr.mxu0 %v2547
    %2719 = vmatpush1.msra.mxu0 %v2546
    %2720 = vmatprep.subr.mxu0 %v2551
    %2721 = vmatpush1.msra.mxu0 %v2550
    %2722 = vmatprep.subr.mxu0 %v2555
    %2723 = vmatpush1.msra.mxu0 %v2554
    %2724 = vmatprep.subr.mxu0 %v2559
    %2725 = vmatpush1.msra.mxu0 %v2558
    %2726 = vmatprep.subr.mxu0 %v2563
    %2727 = vmatpush1.msra.mxu0 %v2562
    %2728 = vmatprep.subr.mxu0 %v2567
    %2729 = vmatpush1.msra.mxu0 %v2566
    %2730 = vmatprep.subr.mxu0 %v2571
    %2731 = vmatpush1.msra.mxu0 %v2570
    %2732 = vmatprep.subr.mxu0 %v2575
    %2733 = vmatpush1.msra.mxu0 %v2574
    %2734 = vmatprep.subr.mxu0 %v2579
    %2735 = vmatpush1.msra.mxu0 %v2578
    %2736 = vmatprep.mubr.f32.mxu0 %v2450
    %2737 = vmatmul.mubr.f32.gmra.mrb[0].mxu0 %v2449
    %v2738 = vpop.f32.mrb[0].mxu0
    %v2739 = vadd.f32 %v2592, %v2738
    %v2740 = vpop.f32.mrb[0].mxu0
    %v2741 = vadd.f32 %v2596, %v2740
    %2742 = vdwg.mxu0
    %v2743 = vmul.f32 %v2668, 0.5
    %v2744 = vtanh.pop %v2743
    %v2745 = vmul.f32 %v2744, 0.5
    %v2746 = vadd.f32 %v2745, 0.5
    %v2747 = vmul.f32 %v2670, 0.5
    %v2748 = vtanh.pop %v2747
    %v2749 = vmul.f32 %v2748, 0.5
    %v2750 = vadd.f32 %v2749, 0.5
    %v2751 = vtanh.pop %v2739
    %v2752 = vmul.f32 %v2741, 0.5
    %v2753 = vtanh.pop %v2752
    %v2754 = vmul.f32 %v2753, 0.5
    %v2755 = vadd.f32 %v2754, 0.5
    %v2756 = vmul.f32 %v2750, %v2451
    %v2757 = vmul.f32 %v2746, %v2751
    %v2758 = vadd.f32 %v2756, %v2757
    %v2759 = vtanh.pop %v2758
    %v2760 = vmul.f32 %v2755, %v2759
    %2761 = vst [vmem:[#allocation3] sm:$0xff] %v2760
    %2762 = vst [vmem:[#allocation4] sm:$0xff] %v2758
    %v2763 = vld [vmem:[%s668] sm:$0xff]
    %v2764 = vld [vmem:[#allocation3] sm:$0xff]
    %v2765 = vld [vmem:[#allocation4] sm:$0xff]
    %v2766 = vld [vmem:[#allocation8] sm:$0xff]
    %v2767 = vld [vmem:[#allocation8 + $0x8] sm:$0xff]
    %v2768 = vld [vmem:[#allocation8 + $0x10] sm:$0xff]
    %v2769 = vld [vmem:[#allocation8 + $0x18] sm:$0xff]
    %v2770 = vld [vmem:[#allocation8 + $0x20] sm:$0xff]
    %v2771 = vld [vmem:[#allocation8 + $0x28] sm:$0xff]
    %v2772 = vld [vmem:[#allocation8 + $0x30] sm:$0xff]
    %v2773 = vld [vmem:[#allocation8 + $0x38] sm:$0xff]
    %v2774 = vld [vmem:[#allocation8 + $0x40] sm:$0xff]
    %v2775 = vld [vmem:[#allocation8 + $0x48] sm:$0xff]
    %v2776 = vld [vmem:[#allocation8 + $0x50] sm:$0xff]
    %v2777 = vld [vmem:[#allocation8 + $0x58] sm:$0xff]
    %v2778 = vld [vmem:[#allocation8 + $0x60] sm:$0xff]
    %v2779 = vld [vmem:[#allocation8 + $0x68] sm:$0xff]
    %v2780 = vld [vmem:[#allocation8 + $0x70] sm:$0xff]
    %v2781 = vld [vmem:[#allocation8 + $0x78] sm:$0xff]
    %v2782 = vld [vmem:[#allocation8 + $0x80] sm:$0xff]
    %v2783 = vld [vmem:[#allocation8 + $0x88] sm:$0xff]
    %v2784 = vld [vmem:[#allocation8 + $0x90] sm:$0xff]
    %v2785 = vld [vmem:[#allocation8 + $0x98] sm:$0xff]
    %v2786 = vld [vmem:[#allocation8 + $0xa0] sm:$0xff]
    %v2787 = vld [vmem:[#allocation8 + $0xa8] sm:$0xff]
    %v2788 = vld [vmem:[#allocation8 + $0xb0] sm:$0xff]
    %v2789 = vld [vmem:[#allocation8 + $0xb8] sm:$0xff]
    %v2790 = vld [vmem:[#allocation8 + $0xc0] sm:$0xff]
    %v2791 = vld [vmem:[#allocation8 + $0xc8] sm:$0xff]
    %v2792 = vld [vmem:[#allocation8 + $0xd0] sm:$0xff]
    %v2793 = vld [vmem:[#allocation8 + $0xd8] sm:$0xff]
    %v2794 = vld [vmem:[#allocation8 + $0xe0] sm:$0xff]
    %v2795 = vld [vmem:[#allocation8 + $0xe8] sm:$0xff]
    %v2796 = vld [vmem:[#allocation8 + $0xf0] sm:$0xff]
    %v2797 = vld [vmem:[#allocation8 + $0xf8] sm:$0xff]
    %v2798 = vld [vmem:[#allocation8 + $0x100] sm:$0xff]
    %v2799 = vld [vmem:[#allocation8 + $0x108] sm:$0xff]
    %v2800 = vld [vmem:[#allocation8 + $0x110] sm:$0xff]
    %v2801 = vld [vmem:[#allocation8 + $0x118] sm:$0xff]
    %v2802 = vld [vmem:[#allocation8 + $0x120] sm:$0xff]
    %v2803 = vld [vmem:[#allocation8 + $0x128] sm:$0xff]
    %v2804 = vld [vmem:[#allocation8 + $0x130] sm:$0xff]
    %v2805 = vld [vmem:[#allocation8 + $0x138] sm:$0xff]
    %v2806 = vld [vmem:[#allocation8 + $0x140] sm:$0xff]
    %v2807 = vld [vmem:[#allocation8 + $0x148] sm:$0xff]
    %v2808 = vld [vmem:[#allocation8 + $0x150] sm:$0xff]
    %v2809 = vld [vmem:[#allocation8 + $0x158] sm:$0xff]
    %v2810 = vld [vmem:[#allocation8 + $0x160] sm:$0xff]
    %v2811 = vld [vmem:[#allocation8 + $0x168] sm:$0xff]
    %v2812 = vld [vmem:[#allocation8 + $0x170] sm:$0xff]
    %v2813 = vld [vmem:[#allocation8 + $0x178] sm:$0xff]
    %v2814 = vld [vmem:[#allocation8 + $0x180] sm:$0xff]
    %v2815 = vld [vmem:[#allocation8 + $0x188] sm:$0xff]
    %v2816 = vld [vmem:[#allocation8 + $0x190] sm:$0xff]
    %v2817 = vld [vmem:[#allocation8 + $0x198] sm:$0xff]
    %v2818 = vld [vmem:[#allocation8 + $0x1a0] sm:$0xff]
    %v2819 = vld [vmem:[#allocation8 + $0x1a8] sm:$0xff]
    %v2820 = vld [vmem:[#allocation8 + $0x1b0] sm:$0xff]
    %v2821 = vld [vmem:[#allocation8 + $0x1b8] sm:$0xff]
    %v2822 = vld [vmem:[#allocation8 + $0x1c0] sm:$0xff]
    %v2823 = vld [vmem:[#allocation8 + $0x1c8] sm:$0xff]
    %v2824 = vld [vmem:[#allocation8 + $0x1d0] sm:$0xff]
    %v2825 = vld [vmem:[#allocation8 + $0x1d8] sm:$0xff]
    %v2826 = vld [vmem:[#allocation8 + $0x1e0] sm:$0xff]
    %v2827 = vld [vmem:[#allocation8 + $0x1e8] sm:$0xff]
    %v2828 = vld [vmem:[#allocation8 + $0x1f0] sm:$0xff]
    %v2829 = vld [vmem:[#allocation8 + $0x1f8] sm:$0xff]
    %v2830 = vld [vmem:[#allocation8 + $0x200] sm:$0xff]
    %v2831 = vld [vmem:[#allocation8 + $0x208] sm:$0xff]
    %v2832 = vld [vmem:[#allocation8 + $0x210] sm:$0xff]
    %v2833 = vld [vmem:[#allocation8 + $0x218] sm:$0xff]
    %v2834 = vld [vmem:[#allocation8 + $0x220] sm:$0xff]
    %v2835 = vld [vmem:[#allocation8 + $0x228] sm:$0xff]
    %v2836 = vld [vmem:[#allocation8 + $0x230] sm:$0xff]
    %v2837 = vld [vmem:[#allocation8 + $0x238] sm:$0xff]
    %v2838 = vld [vmem:[#allocation8 + $0x240] sm:$0xff]
    %v2839 = vld [vmem:[#allocation8 + $0x248] sm:$0xff]
    %v2840 = vld [vmem:[#allocation8 + $0x250] sm:$0xff]
    %v2841 = vld [vmem:[#allocation8 + $0x258] sm:$0xff]
    %v2842 = vld [vmem:[#allocation8 + $0x260] sm:$0xff]
    %v2843 = vld [vmem:[#allocation8 + $0x268] sm:$0xff]
    %v2844 = vld [vmem:[#allocation8 + $0x270] sm:$0xff]
    %v2845 = vld [vmem:[#allocation8 + $0x278] sm:$0xff]
    %v2846 = vld [vmem:[#allocation8 + $0x280] sm:$0xff]
    %v2847 = vld [vmem:[#allocation8 + $0x288] sm:$0xff]
    %v2848 = vld [vmem:[#allocation8 + $0x290] sm:$0xff]
    %v2849 = vld [vmem:[#allocation8 + $0x298] sm:$0xff]
    %v2850 = vld [vmem:[#allocation8 + $0x2a0] sm:$0xff]
    %v2851 = vld [vmem:[#allocation8 + $0x2a8] sm:$0xff]
    %v2852 = vld [vmem:[#allocation8 + $0x2b0] sm:$0xff]
    %v2853 = vld [vmem:[#allocation8 + $0x2b8] sm:$0xff]
    %v2854 = vld [vmem:[#allocation8 + $0x2c0] sm:$0xff]
    %v2855 = vld [vmem:[#allocation8 + $0x2c8] sm:$0xff]
    %v2856 = vld [vmem:[#allocation8 + $0x2d0] sm:$0xff]
    %v2857 = vld [vmem:[#allocation8 + $0x2d8] sm:$0xff]
    %v2858 = vld [vmem:[#allocation8 + $0x2e0] sm:$0xff]
    %v2859 = vld [vmem:[#allocation8 + $0x2e8] sm:$0xff]
    %v2860 = vld [vmem:[#allocation8 + $0x2f0] sm:$0xff]
    %v2861 = vld [vmem:[#allocation8 + $0x2f8] sm:$0xff]
    %v2862 = vld [vmem:[#allocation8 + $0x300] sm:$0xff]
    %v2863 = vld [vmem:[#allocation8 + $0x308] sm:$0xff]
    %v2864 = vld [vmem:[#allocation8 + $0x310] sm:$0xff]
    %v2865 = vld [vmem:[#allocation8 + $0x318] sm:$0xff]
    %v2866 = vld [vmem:[#allocation8 + $0x320] sm:$0xff]
    %v2867 = vld [vmem:[#allocation8 + $0x328] sm:$0xff]
    %v2868 = vld [vmem:[#allocation8 + $0x330] sm:$0xff]
    %v2869 = vld [vmem:[#allocation8 + $0x338] sm:$0xff]
    %v2870 = vld [vmem:[#allocation8 + $0x340] sm:$0xff]
    %v2871 = vld [vmem:[#allocation8 + $0x348] sm:$0xff]
    %v2872 = vld [vmem:[#allocation8 + $0x350] sm:$0xff]
    %v2873 = vld [vmem:[#allocation8 + $0x358] sm:$0xff]
    %v2874 = vld [vmem:[#allocation8 + $0x360] sm:$0xff]
    %v2875 = vld [vmem:[#allocation8 + $0x368] sm:$0xff]
    %v2876 = vld [vmem:[#allocation8 + $0x370] sm:$0xff]
    %v2877 = vld [vmem:[#allocation8 + $0x378] sm:$0xff]
    %v2878 = vld [vmem:[#allocation8 + $0x380] sm:$0xff]
    %v2879 = vld [vmem:[#allocation8 + $0x388] sm:$0xff]
    %v2880 = vld [vmem:[#allocation8 + $0x390] sm:$0xff]
    %v2881 = vld [vmem:[#allocation8 + $0x398] sm:$0xff]
    %v2882 = vld [vmem:[#allocation8 + $0x3a0] sm:$0xff]
    %v2883 = vld [vmem:[#allocation8 + $0x3a8] sm:$0xff]
    %v2884 = vld [vmem:[#allocation8 + $0x3b0] sm:$0xff]
    %v2885 = vld [vmem:[#allocation8 + $0x3b8] sm:$0xff]
    %v2886 = vld [vmem:[#allocation8 + $0x3c0] sm:$0xff]
    %v2887 = vld [vmem:[#allocation8 + $0x3c8] sm:$0xff]
    %v2888 = vld [vmem:[#allocation8 + $0x3d0] sm:$0xff]
    %v2889 = vld [vmem:[#allocation8 + $0x3d8] sm:$0xff]
    %v2890 = vld [vmem:[#allocation8 + $0x3e0] sm:$0xff]
    %v2891 = vld [vmem:[#allocation8 + $0x3e8] sm:$0xff]
    %v2892 = vld [vmem:[#allocation8 + $0x3f0] sm:$0xff]
    %v2893 = vld [vmem:[#allocation8 + $0x3f8] sm:$0xff]
    %2894 = vmatprep.subr.mxu0 %v2767
    %2895 = vmatpush1.msra.mxu0 %v2766
    %2896 = vmatprep.subr.mxu0 %v2771
    %2897 = vmatpush1.msra.mxu0 %v2770
    %2898 = vmatprep.subr.mxu0 %v2775
    %2899 = vmatpush1.msra.mxu0 %v2774
    %2900 = vmatprep.subr.mxu0 %v2779
    %2901 = vmatpush1.msra.mxu0 %v2778
    %2902 = vmatprep.subr.mxu0 %v2783
    %2903 = vmatpush1.msra.mxu0 %v2782
    %2904 = vmatprep.subr.mxu0 %v2787
    %2905 = vmatpush1.msra.mxu0 %v2786
    %2906 = vmatprep.subr.mxu0 %v2791
    %2907 = vmatpush1.msra.mxu0 %v2790
    %2908 = vmatprep.subr.mxu0 %v2795
    %2909 = vmatpush1.msra.mxu0 %v2794
    %2910 = vmatprep.subr.mxu0 %v2799
    %2911 = vmatpush1.msra.mxu0 %v2798
    %2912 = vmatprep.subr.mxu0 %v2803
    %2913 = vmatpush1.msra.mxu0 %v2802
    %2914 = vmatprep.subr.mxu0 %v2807
    %2915 = vmatpush1.msra.mxu0 %v2806
    %2916 = vmatprep.subr.mxu0 %v2811
    %2917 = vmatpush1.msra.mxu0 %v2810
    %2918 = vmatprep.subr.mxu0 %v2815
    %2919 = vmatpush1.msra.mxu0 %v2814
    %2920 = vmatprep.subr.mxu0 %v2819
    %2921 = vmatpush1.msra.mxu0 %v2818
    %2922 = vmatprep.subr.mxu0 %v2823
    %2923 = vmatpush1.msra.mxu0 %v2822
    %2924 = vmatprep.subr.mxu0 %v2827
    %2925 = vmatpush1.msra.mxu0 %v2826
    %2926 = vmatprep.subr.mxu0 %v2831
    %2927 = vmatpush1.msra.mxu0 %v2830
    %2928 = vmatprep.subr.mxu0 %v2835
    %2929 = vmatpush1.msra.mxu0 %v2834
    %2930 = vmatprep.subr.mxu0 %v2839
    %2931 = vmatpush1.msra.mxu0 %v2838
    %2932 = vmatprep.subr.mxu0 %v2843
    %2933 = vmatpush1.msra.mxu0 %v2842
    %2934 = vmatprep.subr.mxu0 %v2847
    %2935 = vmatpush1.msra.mxu0 %v2846
    %2936 = vmatprep.subr.mxu0 %v2851
    %2937 = vmatpush1.msra.mxu0 %v2850
    %2938 = vmatprep.subr.mxu0 %v2855
    %2939 = vmatpush1.msra.mxu0 %v2854
    %2940 = vmatprep.subr.mxu0 %v2859
    %2941 = vmatpush1.msra.mxu0 %v2858
    %2942 = vmatprep.subr.mxu0 %v2863
    %2943 = vmatpush1.msra.mxu0 %v2862
    %2944 = vmatprep.subr.mxu0 %v2867
    %2945 = vmatpush1.msra.mxu0 %v2866
    %2946 = vmatprep.subr.mxu0 %v2871
    %2947 = vmatpush1.msra.mxu0 %v2870
    %2948 = vmatprep.subr.mxu0 %v2875
    %2949 = vmatpush1.msra.mxu0 %v2874
    %2950 = vmatprep.subr.mxu0 %v2879
    %2951 = vmatpush1.msra.mxu0 %v2878
    %2952 = vmatprep.subr.mxu0 %v2883
    %2953 = vmatpush1.msra.mxu0 %v2882
    %2954 = vmatprep.subr.mxu0 %v2887
    %2955 = vmatpush1.msra.mxu0 %v2886
    %2956 = vmatprep.subr.mxu0 %v2891
    %2957 = vmatpush1.msra.mxu0 %v2890
    %2958 = vmatprep.mubr.f32.mxu0 %v2764
    %2959 = vmatmul.mubr.f32.gmra.mrb[0].mxu0 %v2763
    %v2960 = vpop.f32.mrb[0].mxu0
    %v2961 = vadd.f32 %v2584, %v2960
    %v2962 = vpop.f32.mrb[0].mxu0
    %v2963 = vadd.f32 %v2588, %v2962
    %2964 = vdwg.mxu0
    %2965 = vmatprep.subr.mxu0 %v2769
    %2966 = vmatpush1.msra.mxu0 %v2768
    %2967 = vmatprep.subr.mxu0 %v2773
    %2968 = vmatpush1.msra.mxu0 %v2772
    %2969 = vmatprep.subr.mxu0 %v2777
    %2970 = vmatpush1.msra.mxu0 %v2776
    %2971 = vmatprep.subr.mxu0 %v2781
    %2972 = vmatpush1.msra.mxu0 %v2780
    %2973 = vmatprep.subr.mxu0 %v2785
    %2974 = vmatpush1.msra.mxu0 %v2784
    %2975 = vmatprep.subr.mxu0 %v2789
    %2976 = vmatpush1.msra.mxu0 %v2788
    %2977 = vmatprep.subr.mxu0 %v2793
    %2978 = vmatpush1.msra.mxu0 %v2792
    %2979 = vmatprep.subr.mxu0 %v2797
    %2980 = vmatpush1.msra.mxu0 %v2796
    %2981 = vmatprep.subr.mxu0 %v2801
    %2982 = vmatpush1.msra.mxu0 %v2800
    %2983 = vmatprep.subr.mxu0 %v2805
    %2984 = vmatpush1.msra.mxu0 %v2804
    %2985 = vmatprep.subr.mxu0 %v2809
    %2986 = vmatpush1.msra.mxu0 %v2808
    %2987 = vmatprep.subr.mxu0 %v2813
    %2988 = vmatpush1.msra.mxu0 %v2812
    %2989 = vmatprep.subr.mxu0 %v2817
    %2990 = vmatpush1.msra.mxu0 %v2816
    %2991 = vmatprep.subr.mxu0 %v2821
    %2992 = vmatpush1.msra.mxu0 %v2820
    %2993 = vmatprep.subr.mxu0 %v2825
    %2994 = vmatpush1.msra.mxu0 %v2824
    %2995 = vmatprep.subr.mxu0 %v2829
    %2996 = vmatpush1.msra.mxu0 %v2828
    %2997 = vmatprep.subr.mxu0 %v2833
    %2998 = vmatpush1.msra.mxu0 %v2832
    %2999 = vmatprep.subr.mxu0 %v2837
    %3000 = vmatpush1.msra.mxu0 %v2836
    %3001 = vmatprep.subr.mxu0 %v2841
    %3002 = vmatpush1.msra.mxu0 %v2840
    %3003 = vmatprep.subr.mxu0 %v2845
    %3004 = vmatpush1.msra.mxu0 %v2844
    %3005 = vmatprep.subr.mxu0 %v2849
    %3006 = vmatpush1.msra.mxu0 %v2848
    %3007 = vmatprep.subr.mxu0 %v2853
    %3008 = vmatpush1.msra.mxu0 %v2852
    %3009 = vmatprep.subr.mxu0 %v2857
    %3010 = vmatpush1.msra.mxu0 %v2856
    %3011 = vmatprep.subr.mxu0 %v2861
    %3012 = vmatpush1.msra.mxu0 %v2860
    %3013 = vmatprep.subr.mxu0 %v2865
    %3014 = vmatpush1.msra.mxu0 %v2864
    %3015 = vmatprep.subr.mxu0 %v2869
    %3016 = vmatpush1.msra.mxu0 %v2868
    %3017 = vmatprep.subr.mxu0 %v2873
    %3018 = vmatpush1.msra.mxu0 %v2872
    %3019 = vmatprep.subr.mxu0 %v2877
    %3020 = vmatpush1.msra.mxu0 %v2876
    %3021 = vmatprep.subr.mxu0 %v2881
    %3022 = vmatpush1.msra.mxu0 %v2880
    %3023 = vmatprep.subr.mxu0 %v2885
    %3024 = vmatpush1.msra.mxu0 %v2884
    %3025 = vmatprep.subr.mxu0 %v2889
    %3026 = vmatpush1.msra.mxu0 %v2888
    %3027 = vmatprep.subr.mxu0 %v2893
    %3028 = vmatpush1.msra.mxu0 %v2892
    %3029 = vmatprep.mubr.f32.mxu0 %v2764
    %3030 = vmatmul.mubr.f32.gmra.mrb[0].mxu0 %v2763
    %v3031 = vpop.f32.mrb[0].mxu0
    %v3032 = vadd.f32 %v2592, %v3031
    %v3033 = vpop.f32.mrb[0].mxu0
    %v3034 = vadd.f32 %v2596, %v3033
    %3035 = vdwg.mxu0
    %v3036 = vmul.f32 %v2961, 0.5
    %v3037 = vtanh.pop %v3036
    %v3038 = vmul.f32 %v3037, 0.5
    %v3039 = vadd.f32 %v3038, 0.5
    %v3040 = vmul.f32 %v2963, 0.5
    %v3041 = vtanh.pop %v3040
    %v3042 = vmul.f32 %v3041, 0.5
    %v3043 = vadd.f32 %v3042, 0.5
    %v3044 = vtanh.pop %v3032
    %v3045 = vmul.f32 %v3034, 0.5
    %v3046 = vtanh.pop %v3045
    %v3047 = vmul.f32 %v3046, 0.5
    %v3048 = vadd.f32 %v3047, 0.5
    %v3049 = vmul.f32 %v3043, %v2765
    %v3050 = vmul.f32 %v3039, %v3044
    %v3051 = vadd.f32 %v3049, %v3050
    %v3052 = vtanh.pop %v3051
    %v3053 = vmul.f32 %v3048, %v3052
    %3054 = vst [vmem:[#allocation3] sm:$0xff] %v3053
    %3055 = vst [vmem:[#allocation4] sm:$0xff] %v3051
    %v3056 = vld [vmem:[%s964] sm:$0xff]
    %v3057 = vld [vmem:[#allocation3] sm:$0xff]
    %v3058 = vld [vmem:[#allocation4] sm:$0xff]
    %v3059 = vld [vmem:[#allocation8] sm:$0xff]
    %v3060 = vld [vmem:[#allocation8 + $0x8] sm:$0xff]
    %v3061 = vld [vmem:[#allocation8 + $0x10] sm:$0xff]
    %v3062 = vld [vmem:[#allocation8 + $0x18] sm:$0xff]
    %v3063 = vld [vmem:[#allocation8 + $0x20] sm:$0xff]
    %v3064 = vld [vmem:[#allocation8 + $0x28] sm:$0xff]
    %v3065 = vld [vmem:[#allocation8 + $0x30] sm:$0xff]
    %v3066 = vld [vmem:[#allocation8 + $0x38] sm:$0xff]
    %v3067 = vld [vmem:[#allocation8 + $0x40] sm:$0xff]
    %v3068 = vld [vmem:[#allocation8 + $0x48] sm:$0xff]
    %v3069 = vld [vmem:[#allocation8 + $0x50] sm:$0xff]
    %v3070 = vld [vmem:[#allocation8 + $0x58] sm:$0xff]
    %v3071 = vld [vmem:[#allocation8 + $0x60] sm:$0xff]
    %v3072 = vld [vmem:[#allocation8 + $0x68] sm:$0xff]
    %v3073 = vld [vmem:[#allocation8 + $0x70] sm:$0xff]
    %v3074 = vld [vmem:[#allocation8 + $0x78] sm:$0xff]
    %v3075 = vld [vmem:[#allocation8 + $0x80] sm:$0xff]
    %v3076 = vld [vmem:[#allocation8 + $0x88] sm:$0xff]
    %v3077 = vld [vmem:[#allocation8 + $0x90] sm:$0xff]
    %v3078 = vld [vmem:[#allocation8 + $0x98] sm:$0xff]
    %v3079 = vld [vmem:[#allocation8 + $0xa0] sm:$0xff]
    %v3080 = vld [vmem:[#allocation8 + $0xa8] sm:$0xff]
    %v3081 = vld [vmem:[#allocation8 + $0xb0] sm:$0xff]
    %v3082 = vld [vmem:[#allocation8 + $0xb8] sm:$0xff]
    %v3083 = vld [vmem:[#allocation8 + $0xc0] sm:$0xff]
    %v3084 = vld [vmem:[#allocation8 + $0xc8] sm:$0xff]
    %v3085 = vld [vmem:[#allocation8 + $0xd0] sm:$0xff]
    %v3086 = vld [vmem:[#allocation8 + $0xd8] sm:$0xff]
    %v3087 = vld [vmem:[#allocation8 + $0xe0] sm:$0xff]
    %v3088 = vld [vmem:[#allocation8 + $0xe8] sm:$0xff]
    %v3089 = vld [vmem:[#allocation8 + $0xf0] sm:$0xff]
    %v3090 = vld [vmem:[#allocation8 + $0xf8] sm:$0xff]
    %v3091 = vld [vmem:[#allocation8 + $0x100] sm:$0xff]
    %v3092 = vld [vmem:[#allocation8 + $0x108] sm:$0xff]
    %v3093 = vld [vmem:[#allocation8 + $0x110] sm:$0xff]
    %v3094 = vld [vmem:[#allocation8 + $0x118] sm:$0xff]
    %v3095 = vld [vmem:[#allocation8 + $0x120] sm:$0xff]
    %v3096 = vld [vmem:[#allocation8 + $0x128] sm:$0xff]
    %v3097 = vld [vmem:[#allocation8 + $0x130] sm:$0xff]
    %v3098 = vld [vmem:[#allocation8 + $0x138] sm:$0xff]
    %v3099 = vld [vmem:[#allocation8 + $0x140] sm:$0xff]
    %v3100 = vld [vmem:[#allocation8 + $0x148] sm:$0xff]
    %v3101 = vld [vmem:[#allocation8 + $0x150] sm:$0xff]
    %v3102 = vld [vmem:[#allocation8 + $0x158] sm:$0xff]
    %v3103 = vld [vmem:[#allocation8 + $0x160] sm:$0xff]
    %v3104 = vld [vmem:[#allocation8 + $0x168] sm:$0xff]
    %v3105 = vld [vmem:[#allocation8 + $0x170] sm:$0xff]
    %v3106 = vld [vmem:[#allocation8 + $0x178] sm:$0xff]
    %v3107 = vld [vmem:[#allocation8 + $0x180] sm:$0xff]
    %v3108 = vld [vmem:[#allocation8 + $0x188] sm:$0xff]
    %v3109 = vld [vmem:[#allocation8 + $0x190] sm:$0xff]
    %v3110 = vld [vmem:[#allocation8 + $0x198] sm:$0xff]
    %v3111 = vld [vmem:[#allocation8 + $0x1a0] sm:$0xff]
    %v3112 = vld [vmem:[#allocation8 + $0x1a8] sm:$0xff]
    %v3113 = vld [vmem:[#allocation8 + $0x1b0] sm:$0xff]
    %v3114 = vld [vmem:[#allocation8 + $0x1b8] sm:$0xff]
    %v3115 = vld [vmem:[#allocation8 + $0x1c0] sm:$0xff]
    %v3116 = vld [vmem:[#allocation8 + $0x1c8] sm:$0xff]
    %v3117 = vld [vmem:[#allocation8 + $0x1d0] sm:$0xff]
    %v3118 = vld [vmem:[#allocation8 + $0x1d8] sm:$0xff]
    %v3119 = vld [vmem:[#allocation8 + $0x1e0] sm:$0xff]
    %v3120 = vld [vmem:[#allocation8 + $0x1e8] sm:$0xff]
    %v3121 = vld [vmem:[#allocation8 + $0x1f0] sm:$0xff]
    %v3122 = vld [vmem:[#allocation8 + $0x1f8] sm:$0xff]
    %v3123 = vld [vmem:[#allocation8 + $0x200] sm:$0xff]
    %v3124 = vld [vmem:[#allocation8 + $0x208] sm:$0xff]
    %v3125 = vld [vmem:[#allocation8 + $0x210] sm:$0xff]
    %v3126 = vld [vmem:[#allocation8 + $0x218] sm:$0xff]
    %v3127 = vld [vmem:[#allocation8 + $0x220] sm:$0xff]
    %v3128 = vld [vmem:[#allocation8 + $0x228] sm:$0xff]
    %v3129 = vld [vmem:[#allocation8 + $0x230] sm:$0xff]
    %v3130 = vld [vmem:[#allocation8 + $0x238] sm:$0xff]
    %v3131 = vld [vmem:[#allocation8 + $0x240] sm:$0xff]
    %v3132 = vld [vmem:[#allocation8 + $0x248] sm:$0xff]
    %v3133 = vld [vmem:[#allocation8 + $0x250] sm:$0xff]
    %v3134 = vld [vmem:[#allocation8 + $0x258] sm:$0xff]
    %v3135 = vld [vmem:[#allocation8 + $0x260] sm:$0xff]
    %v3136 = vld [vmem:[#allocation8 + $0x268] sm:$0xff]
    %v3137 = vld [vmem:[#allocation8 + $0x270] sm:$0xff]
    %v3138 = vld [vmem:[#allocation8 + $0x278] sm:$0xff]
    %v3139 = vld [vmem:[#allocation8 + $0x280] sm:$0xff]
    %v3140 = vld [vmem:[#allocation8 + $0x288] sm:$0xff]
    %v3141 = vld [vmem:[#allocation8 + $0x290] sm:$0xff]
    %v3142 = vld [vmem:[#allocation8 + $0x298] sm:$0xff]
    %v3143 = vld [vmem:[#allocation8 + $0x2a0] sm:$0xff]
    %v3144 = vld [vmem:[#allocation8 + $0x2a8] sm:$0xff]
    %v3145 = vld [vmem:[#allocation8 + $0x2b0] sm:$0xff]
    %v3146 = vld [vmem:[#allocation8 + $0x2b8] sm:$0xff]
    %v3147 = vld [vmem:[#allocation8 + $0x2c0] sm:$0xff]
    %v3148 = vld [vmem:[#allocation8 + $0x2c8] sm:$0xff]
    %v3149 = vld [vmem:[#allocation8 + $0x2d0] sm:$0xff]
    %v3150 = vld [vmem:[#allocation8 + $0x2d8] sm:$0xff]
    %v3151 = vld [vmem:[#allocation8 + $0x2e0] sm:$0xff]
    %v3152 = vld [vmem:[#allocation8 + $0x2e8] sm:$0xff]
    %v3153 = vld [vmem:[#allocation8 + $0x2f0] sm:$0xff]
    %v3154 = vld [vmem:[#allocation8 + $0x2f8] sm:$0xff]
    %v3155 = vld [vmem:[#allocation8 + $0x300] sm:$0xff]
    %v3156 = vld [vmem:[#allocation8 + $0x308] sm:$0xff]
    %v3157 = vld [vmem:[#allocation8 + $0x310] sm:$0xff]
    %v3158 = vld [vmem:[#allocation8 + $0x318] sm:$0xff]
    %v3159 = vld [vmem:[#allocation8 + $0x320] sm:$0xff]
    %v3160 = vld [vmem:[#allocation8 + $0x328] sm:$0xff]
    %v3161 = vld [vmem:[#allocation8 + $0x330] sm:$0xff]
    %v3162 = vld [vmem:[#allocation8 + $0x338] sm:$0xff]
    %v3163 = vld [vmem:[#allocation8 + $0x340] sm:$0xff]
    %v3164 = vld [vmem:[#allocation8 + $0x348] sm:$0xff]
    %v3165 = vld [vmem:[#allocation8 + $0x350] sm:$0xff]
    %v3166 = vld [vmem:[#allocation8 + $0x358] sm:$0xff]
    %v3167 = vld [vmem:[#allocation8 + $0x360] sm:$0xff]
    %v3168 = vld [vmem:[#allocation8 + $0x368] sm:$0xff]
    %v3169 = vld [vmem:[#allocation8 + $0x370] sm:$0xff]
    %v3170 = vld [vmem:[#allocation8 + $0x378] sm:$0xff]
    %v3171 = vld [vmem:[#allocation8 + $0x380] sm:$0xff]
    %v3172 = vld [vmem:[#allocation8 + $0x388] sm:$0xff]
    %v3173 = vld [vmem:[#allocation8 + $0x390] sm:$0xff]
    %v3174 = vld [vmem:[#allocation8 + $0x398] sm:$0xff]
    %v3175 = vld [vmem:[#allocation8 + $0x3a0] sm:$0xff]
    %v3176 = vld [vmem:[#allocation8 + $0x3a8] sm:$0xff]
    %v3177 = vld [vmem:[#allocation8 + $0x3b0] sm:$0xff]
    %v3178 = vld [vmem:[#allocation8 + $0x3b8] sm:$0xff]
    %v3179 = vld [vmem:[#allocation8 + $0x3c0] sm:$0xff]
    %v3180 = vld [vmem:[#allocation8 + $0x3c8] sm:$0xff]
    %v3181 = vld [vmem:[#allocation8 + $0x3d0] sm:$0xff]
    %v3182 = vld [vmem:[#allocation8 + $0x3d8] sm:$0xff]
    %v3183 = vld [vmem:[#allocation8 + $0x3e0] sm:$0xff]
    %v3184 = vld [vmem:[#allocation8 + $0x3e8] sm:$0xff]
    %v3185 = vld [vmem:[#allocation8 + $0x3f0] sm:$0xff]
    %v3186 = vld [vmem:[#allocation8 + $0x3f8] sm:$0xff]
    %3187 = vmatprep.subr.mxu0 %v3060
    %3188 = vmatpush1.msra.mxu0 %v3059
    %3189 = vmatprep.subr.mxu0 %v3064
    %3190 = vmatpush1.msra.mxu0 %v3063
    %3191 = vmatprep.subr.mxu0 %v3068
    %3192 = vmatpush1.msra.mxu0 %v3067
    %3193 = vmatprep.subr.mxu0 %v3072
    %3194 = vmatpush1.msra.mxu0 %v3071
    %3195 = vmatprep.subr.mxu0 %v3076
    %3196 = vmatpush1.msra.mxu0 %v3075
    %3197 = vmatprep.subr.mxu0 %v3080
    %3198 = vmatpush1.msra.mxu0 %v3079
    %3199 = vmatprep.subr.mxu0 %v3084
    %3200 = vmatpush1.msra.mxu0 %v3083
    %3201 = vmatprep.subr.mxu0 %v3088
    %3202 = vmatpush1.msra.mxu0 %v3087
    %3203 = vmatprep.subr.mxu0 %v3092
    %3204 = vmatpush1.msra.mxu0 %v3091
    %3205 = vmatprep.subr.mxu0 %v3096
    %3206 = vmatpush1.msra.mxu0 %v3095
    %3207 = vmatprep.subr.mxu0 %v3100
    %3208 = vmatpush1.msra.mxu0 %v3099
    %3209 = vmatprep.subr.mxu0 %v3104
    %3210 = vmatpush1.msra.mxu0 %v3103
    %3211 = vmatprep.subr.mxu0 %v3108
    %3212 = vmatpush1.msra.mxu0 %v3107
    %3213 = vmatprep.subr.mxu0 %v3112
    %3214 = vmatpush1.msra.mxu0 %v3111
    %3215 = vmatprep.subr.mxu0 %v3116
    %3216 = vmatpush1.msra.mxu0 %v3115
    %3217 = vmatprep.subr.mxu0 %v3120
    %3218 = vmatpush1.msra.mxu0 %v3119
    %3219 = vmatprep.subr.mxu0 %v3124
    %3220 = vmatpush1.msra.mxu0 %v3123
    %3221 = vmatprep.subr.mxu0 %v3128
    %3222 = vmatpush1.msra.mxu0 %v3127
    %3223 = vmatprep.subr.mxu0 %v3132
    %3224 = vmatpush1.msra.mxu0 %v3131
    %3225 = vmatprep.subr.mxu0 %v3136
    %3226 = vmatpush1.msra.mxu0 %v3135
    %3227 = vmatprep.subr.mxu0 %v3140
    %3228 = vmatpush1.msra.mxu0 %v3139
    %3229 = vmatprep.subr.mxu0 %v3144
    %3230 = vmatpush1.msra.mxu0 %v3143
    %3231 = vmatprep.subr.mxu0 %v3148
    %3232 = vmatpush1.msra.mxu0 %v3147
    %3233 = vmatprep.subr.mxu0 %v3152
    %3234 = vmatpush1.msra.mxu0 %v3151
    %3235 = vmatprep.subr.mxu0 %v3156
    %3236 = vmatpush1.msra.mxu0 %v3155
    %3237 = vmatprep.subr.mxu0 %v3160
    %3238 = vmatpush1.msra.mxu0 %v3159
    %3239 = vmatprep.subr.mxu0 %v3164
    %3240 = vmatpush1.msra.mxu0 %v3163
    %3241 = vmatprep.subr.mxu0 %v3168
    %3242 = vmatpush1.msra.mxu0 %v3167
    %3243 = vmatprep.subr.mxu0 %v3172
    %3244 = vmatpush1.msra.mxu0 %v3171
    %3245 = vmatprep.subr.mxu0 %v3176
    %3246 = vmatpush1.msra.mxu0 %v3175
    %3247 = vmatprep.subr.mxu0 %v3180
    %3248 = vmatpush1.msra.mxu0 %v3179
    %3249 = vmatprep.subr.mxu0 %v3184
    %3250 = vmatpush1.msra.mxu0 %v3183
    %3251 = vmatprep.mubr.f32.mxu0 %v3057
    %3252 = vmatmul.mubr.f32.gmra.mrb[0].mxu0 %v3056
    %v3253 = vpop.f32.mrb[0].mxu0
    %v3254 = vadd.f32 %v2584, %v3253
    %v3255 = vpop.f32.mrb[0].mxu0
    %v3256 = vadd.f32 %v2588, %v3255
    %3257 = vdwg.mxu0
    %3258 = vmatprep.subr.mxu0 %v3062
    %3259 = vmatpush1.msra.mxu0 %v3061
    %3260 = vmatprep.subr.mxu0 %v3066
    %3261 = vmatpush1.msra.mxu0 %v3065
    %3262 = vmatprep.subr.mxu0 %v3070
    %3263 = vmatpush1.msra.mxu0 %v3069
    %3264 = vmatprep.subr.mxu0 %v3074
    %3265 = vmatpush1.msra.mxu0 %v3073
    %3266 = vmatprep.subr.mxu0 %v3078
    %3267 = vmatpush1.msra.mxu0 %v3077
    %3268 = vmatprep.subr.mxu0 %v3082
    %3269 = vmatpush1.msra.mxu0 %v3081
    %3270 = vmatprep.subr.mxu0 %v3086
    %3271 = vmatpush1.msra.mxu0 %v3085
    %3272 = vmatprep.subr.mxu0 %v3090
    %3273 = vmatpush1.msra.mxu0 %v3089
    %3274 = vmatprep.subr.mxu0 %v3094
    %3275 = vmatpush1.msra.mxu0 %v3093
    %3276 = vmatprep.subr.mxu0 %v3098
    %3277 = vmatpush1.msra.mxu0 %v3097
    %3278 = vmatprep.subr.mxu0 %v3102
    %3279 = vmatpush1.msra.mxu0 %v3101
    %3280 = vmatprep.subr.mxu0 %v3106
    %3281 = vmatpush1.msra.mxu0 %v3105
    %3282 = vmatprep.subr.mxu0 %v3110
    %3283 = vmatpush1.msra.mxu0 %v3109
    %3284 = vmatprep.subr.mxu0 %v3114
    %3285 = vmatpush1.msra.mxu0 %v3113
    %3286 = vmatprep.subr.mxu0 %v3118
    %3287 = vmatpush1.msra.mxu0 %v3117
    %3288 = vmatprep.subr.mxu0 %v3122
    %3289 = vmatpush1.msra.mxu0 %v3121
    %3290 = vmatprep.subr.mxu0 %v3126
    %3291 = vmatpush1.msra.mxu0 %v3125
    %3292 = vmatprep.subr.mxu0 %v3130
    %3293 = vmatpush1.msra.mxu0 %v3129
    %3294 = vmatprep.subr.mxu0 %v3134
    %3295 = vmatpush1.msra.mxu0 %v3133
    %3296 = vmatprep.subr.mxu0 %v3138
    %3297 = vmatpush1.msra.mxu0 %v3137
    %3298 = vmatprep.subr.mxu0 %v3142
    %3299 = vmatpush1.msra.mxu0 %v3141
    %3300 = vmatprep.subr.mxu0 %v3146
    %3301 = vmatpush1.msra.mxu0 %v3145
    %3302 = vmatprep.subr.mxu0 %v3150
    %3303 = vmatpush1.msra.mxu0 %v3149
    %3304 = vmatprep.subr.mxu0 %v3154
    %3305 = vmatpush1.msra.mxu0 %v3153
    %3306 = vmatprep.subr.mxu0 %v3158
    %3307 = vmatpush1.msra.mxu0 %v3157
    %3308 = vmatprep.subr.mxu0 %v3162
    %3309 = vmatpush1.msra.mxu0 %v3161
    %3310 = vmatprep.subr.mxu0 %v3166
    %3311 = vmatpush1.msra.mxu0 %v3165
    %3312 = vmatprep.subr.mxu0 %v3170
    %3313 = vmatpush1.msra.mxu0 %v3169
    %3314 = vmatprep.subr.mxu0 %v3174
    %3315 = vmatpush1.msra.mxu0 %v3173
    %3316 = vmatprep.subr.mxu0 %v3178
    %3317 = vmatpush1.msra.mxu0 %v3177
    %3318 = vmatprep.subr.mxu0 %v3182
    %3319 = vmatpush1.msra.mxu0 %v3181
    %3320 = vmatprep.subr.mxu0 %v3186
    %3321 = vmatpush1.msra.mxu0 %v3185
    %3322 = vmatprep.mubr.f32.mxu0 %v3057
    %3323 = vmatmul.mubr.f32.gmra.mrb[0].mxu0 %v3056
    %v3324 = vpop.f32.mrb[0].mxu0
    %v3325 = vadd.f32 %v2592, %v3324
    %v3326 = vpop.f32.mrb[0].mxu0
    %v3327 = vadd.f32 %v2596, %v3326
    %3328 = vdwg.mxu0
    %v3329 = vmul.f32 %v3254, 0.5
    %v3330 = vtanh.pop %v3329
    %v3331 = vmul.f32 %v3330, 0.5
    %v3332 = vadd.f32 %v3331, 0.5
    %v3333 = vmul.f32 %v3256, 0.5
    %v3334 = vtanh.pop %v3333
    %v3335 = vmul.f32 %v3334, 0.5
    %v3336 = vadd.f32 %v3335, 0.5
    %v3337 = vtanh.pop %v3325
    %v3338 = vmul.f32 %v3327, 0.5
    %v3339 = vtanh.pop %v3338
    %v3340 = vmul.f32 %v3339, 0.5
    %v3341 = vadd.f32 %v3340, 0.5
    %v3342 = vmul.f32 %v3336, %v3058
    %v3343 = vmul.f32 %v3332, %v3337
    %v3344 = vadd.f32 %v3342, %v3343
    %v3345 = vtanh.pop %v3344
    %v3346 = vmul.f32 %v3341, %v3345
    %3347 = vst [vmem:[#allocation3] sm:$0xff] %v3346
    %3348 = vst [vmem:[#allocation4] sm:$0xff] %v3344
    %v3349 = vld [vmem:[%s1260] sm:$0xff]
    %v3350 = vld [vmem:[#allocation3] sm:$0xff]
    %v3351 = vld [vmem:[#allocation4] sm:$0xff]
    %v3352 = vld [vmem:[#allocation8] sm:$0xff]
    %v3353 = vld [vmem:[#allocation8 + $0x8] sm:$0xff]
    %v3354 = vld [vmem:[#allocation8 + $0x10] sm:$0xff]
    %v3355 = vld [vmem:[#allocation8 + $0x18] sm:$0xff]
    %v3356 = vld [vmem:[#allocation8 + $0x20] sm:$0xff]
    %v3357 = vld [vmem:[#allocation8 + $0x28] sm:$0xff]
    %v3358 = vld [vmem:[#allocation8 + $0x30] sm:$0xff]
    %v3359 = vld [vmem:[#allocation8 + $0x38] sm:$0xff]
    %v3360 = vld [vmem:[#allocation8 + $0x40] sm:$0xff]
    %v3361 = vld [vmem:[#allocation8 + $0x48] sm:$0xff]
    %v3362 = vld [vmem:[#allocation8 + $0x50] sm:$0xff]
    %v3363 = vld [vmem:[#allocation8 + $0x58] sm:$0xff]
    %v3364 = vld [vmem:[#allocation8 + $0x60] sm:$0xff]
    %v3365 = vld [vmem:[#allocation8 + $0x68] sm:$0xff]
    %v3366 = vld [vmem:[#allocation8 + $0x70] sm:$0xff]
    %v3367 = vld [vmem:[#allocation8 + $0x78] sm:$0xff]
    %v3368 = vld [vmem:[#allocation8 + $0x80] sm:$0xff]
    %v3369 = vld [vmem:[#allocation8 + $0x88] sm:$0xff]
    %v3370 = vld [vmem:[#allocation8 + $0x90] sm:$0xff]
    %v3371 = vld [vmem:[#allocation8 + $0x98] sm:$0xff]
    %v3372 = vld [vmem:[#allocation8 + $0xa0] sm:$0xff]
    %v3373 = vld [vmem:[#allocation8 + $0xa8] sm:$0xff]
    %v3374 = vld [vmem:[#allocation8 + $0xb0] sm:$0xff]
    %v3375 = vld [vmem:[#allocation8 + $0xb8] sm:$0xff]
    %v3376 = vld [vmem:[#allocation8 + $0xc0] sm:$0xff]
    %v3377 = vld [vmem:[#allocation8 + $0xc8] sm:$0xff]
    %v3378 = vld [vmem:[#allocation8 + $0xd0] sm:$0xff]
    %v3379 = vld [vmem:[#allocation8 + $0xd8] sm:$0xff]
    %v3380 = vld [vmem:[#allocation8 + $0xe0] sm:$0xff]
    %v3381 = vld [vmem:[#allocation8 + $0xe8] sm:$0xff]
    %v3382 = vld [vmem:[#allocation8 + $0xf0] sm:$0xff]
    %v3383 = vld [vmem:[#allocation8 + $0xf8] sm:$0xff]
    %v3384 = vld [vmem:[#allocation8 + $0x100] sm:$0xff]
    %v3385 = vld [vmem:[#allocation8 + $0x108] sm:$0xff]
    %v3386 = vld [vmem:[#allocation8 + $0x110] sm:$0xff]
    %v3387 = vld [vmem:[#allocation8 + $0x118] sm:$0xff]
    %v3388 = vld [vmem:[#allocation8 + $0x120] sm:$0xff]
    %v3389 = vld [vmem:[#allocation8 + $0x128] sm:$0xff]
    %v3390 = vld [vmem:[#allocation8 + $0x130] sm:$0xff]
    %v3391 = vld [vmem:[#allocation8 + $0x138] sm:$0xff]
    %v3392 = vld [vmem:[#allocation8 + $0x140] sm:$0xff]
    %v3393 = vld [vmem:[#allocation8 + $0x148] sm:$0xff]
    %v3394 = vld [vmem:[#allocation8 + $0x150] sm:$0xff]
    %v3395 = vld [vmem:[#allocation8 + $0x158] sm:$0xff]
    %v3396 = vld [vmem:[#allocation8 + $0x160] sm:$0xff]
    %v3397 = vld [vmem:[#allocation8 + $0x168] sm:$0xff]
    %v3398 = vld [vmem:[#allocation8 + $0x170] sm:$0xff]
    %v3399 = vld [vmem:[#allocation8 + $0x178] sm:$0xff]
    %v3400 = vld [vmem:[#allocation8 + $0x180] sm:$0xff]
    %v3401 = vld [vmem:[#allocation8 + $0x188] sm:$0xff]
    %v3402 = vld [vmem:[#allocation8 + $0x190] sm:$0xff]
    %v3403 = vld [vmem:[#allocation8 + $0x198] sm:$0xff]
    %v3404 = vld [vmem:[#allocation8 + $0x1a0] sm:$0xff]
    %v3405 = vld [vmem:[#allocation8 + $0x1a8] sm:$0xff]
    %v3406 = vld [vmem:[#allocation8 + $0x1b0] sm:$0xff]
    %v3407 = vld [vmem:[#allocation8 + $0x1b8] sm:$0xff]
    %v3408 = vld [vmem:[#allocation8 + $0x1c0] sm:$0xff]
    %v3409 = vld [vmem:[#allocation8 + $0x1c8] sm:$0xff]
    %v3410 = vld [vmem:[#allocation8 + $0x1d0] sm:$0xff]
    %v3411 = vld [vmem:[#allocation8 + $0x1d8] sm:$0xff]
    %v3412 = vld [vmem:[#allocation8 + $0x1e0] sm:$0xff]
    %v3413 = vld [vmem:[#allocation8 + $0x1e8] sm:$0xff]
    %v3414 = vld [vmem:[#allocation8 + $0x1f0] sm:$0xff]
    %v3415 = vld [vmem:[#allocation8 + $0x1f8] sm:$0xff]
    %v3416 = vld [vmem:[#allocation8 + $0x200] sm:$0xff]
    %v3417 = vld [vmem:[#allocation8 + $0x208] sm:$0xff]
    %v3418 = vld [vmem:[#allocation8 + $0x210] sm:$0xff]
    %v3419 = vld [vmem:[#allocation8 + $0x218] sm:$0xff]
    %v3420 = vld [vmem:[#allocation8 + $0x220] sm:$0xff]
    %v3421 = vld [vmem:[#allocation8 + $0x228] sm:$0xff]
    %v3422 = vld [vmem:[#allocation8 + $0x230] sm:$0xff]
    %v3423 = vld [vmem:[#allocation8 + $0x238] sm:$0xff]
    %v3424 = vld [vmem:[#allocation8 + $0x240] sm:$0xff]
    %v3425 = vld [vmem:[#allocation8 + $0x248] sm:$0xff]
    %v3426 = vld [vmem:[#allocation8 + $0x250] sm:$0xff]
    %v3427 = vld [vmem:[#allocation8 + $0x258] sm:$0xff]
    %v3428 = vld [vmem:[#allocation8 + $0x260] sm:$0xff]
    %v3429 = vld [vmem:[#allocation8 + $0x268] sm:$0xff]
    %v3430 = vld [vmem:[#allocation8 + $0x270] sm:$0xff]
    %v3431 = vld [vmem:[#allocation8 + $0x278] sm:$0xff]
    %v3432 = vld [vmem:[#allocation8 + $0x280] sm:$0xff]
    %v3433 = vld [vmem:[#allocation8 + $0x288] sm:$0xff]
    %v3434 = vld [vmem:[#allocation8 + $0x290] sm:$0xff]
    %v3435 = vld [vmem:[#allocation8 + $0x298] sm:$0xff]
    %v3436 = vld [vmem:[#allocation8 + $0x2a0] sm:$0xff]
    %v3437 = vld [vmem:[#allocation8 + $0x2a8] sm:$0xff]
    %v3438 = vld [vmem:[#allocation8 + $0x2b0] sm:$0xff]
    %v3439 = vld [vmem:[#allocation8 + $0x2b8] sm:$0xff]
    %v3440 = vld [vmem:[#allocation8 + $0x2c0] sm:$0xff]
    %v3441 = vld [vmem:[#allocation8 + $0x2c8] sm:$0xff]
    %v3442 = vld [vmem:[#allocation8 + $0x2d0] sm:$0xff]
    %v3443 = vld [vmem:[#allocation8 + $0x2d8] sm:$0xff]
    %v3444 = vld [vmem:[#allocation8 + $0x2e0] sm:$0xff]
    %v3445 = vld [vmem:[#allocation8 + $0x2e8] sm:$0xff]
    %v3446 = vld [vmem:[#allocation8 + $0x2f0] sm:$0xff]
    %v3447 = vld [vmem:[#allocation8 + $0x2f8] sm:$0xff]
    %v3448 = vld [vmem:[#allocation8 + $0x300] sm:$0xff]
    %v3449 = vld [vmem:[#allocation8 + $0x308] sm:$0xff]
    %v3450 = vld [vmem:[#allocation8 + $0x310] sm:$0xff]
    %v3451 = vld [vmem:[#allocation8 + $0x318] sm:$0xff]
    %v3452 = vld [vmem:[#allocation8 + $0x320] sm:$0xff]
    %v3453 = vld [vmem:[#allocation8 + $0x328] sm:$0xff]
    %v3454 = vld [vmem:[#allocation8 + $0x330] sm:$0xff]
    %v3455 = vld [vmem:[#allocation8 + $0x338] sm:$0xff]
    %v3456 = vld [vmem:[#allocation8 + $0x340] sm:$0xff]
    %v3457 = vld [vmem:[#allocation8 + $0x348] sm:$0xff]
    %v3458 = vld [vmem:[#allocation8 + $0x350] sm:$0xff]
    %v3459 = vld [vmem:[#allocation8 + $0x358] sm:$0xff]
    %v3460 = vld [vmem:[#allocation8 + $0x360] sm:$0xff]
    %v3461 = vld [vmem:[#allocation8 + $0x368] sm:$0xff]
    %v3462 = vld [vmem:[#allocation8 + $0x370] sm:$0xff]
    %v3463 = vld [vmem:[#allocation8 + $0x378] sm:$0xff]
    %v3464 = vld [vmem:[#allocation8 + $0x380] sm:$0xff]
    %v3465 = vld [vmem:[#allocation8 + $0x388] sm:$0xff]
    %v3466 = vld [vmem:[#allocation8 + $0x390] sm:$0xff]
    %v3467 = vld [vmem:[#allocation8 + $0x398] sm:$0xff]
    %v3468 = vld [vmem:[#allocation8 + $0x3a0] sm:$0xff]
    %v3469 = vld [vmem:[#allocation8 + $0x3a8] sm:$0xff]
    %v3470 = vld [vmem:[#allocation8 + $0x3b0] sm:$0xff]
    %v3471 = vld [vmem:[#allocation8 + $0x3b8] sm:$0xff]
    %v3472 = vld [vmem:[#allocation8 + $0x3c0] sm:$0xff]
    %v3473 = vld [vmem:[#allocation8 + $0x3c8] sm:$0xff]
    %v3474 = vld [vmem:[#allocation8 + $0x3d0] sm:$0xff]
    %v3475 = vld [vmem:[#allocation8 + $0x3d8] sm:$0xff]
    %v3476 = vld [vmem:[#allocation8 + $0x3e0] sm:$0xff]
    %v3477 = vld [vmem:[#allocation8 + $0x3e8] sm:$0xff]
    %v3478 = vld [vmem:[#allocation8 + $0x3f0] sm:$0xff]
    %v3479 = vld [vmem:[#allocation8 + $0x3f8] sm:$0xff]
    %3480 = vmatprep.subr.mxu0 %v3353
    %3481 = vmatpush1.msra.mxu0 %v3352
    %3482 = vmatprep.subr.mxu0 %v3357
    %3483 = vmatpush1.msra.mxu0 %v3356
    %3484 = vmatprep.subr.mxu0 %v3361
    %3485 = vmatpush1.msra.mxu0 %v3360
    %3486 = vmatprep.subr.mxu0 %v3365
    %3487 = vmatpush1.msra.mxu0 %v3364
    %3488 = vmatprep.subr.mxu0 %v3369
    %3489 = vmatpush1.msra.mxu0 %v3368
    %3490 = vmatprep.subr.mxu0 %v3373
    %3491 = vmatpush1.msra.mxu0 %v3372
    %3492 = vmatprep.subr.mxu0 %v3377
    %3493 = vmatpush1.msra.mxu0 %v3376
    %3494 = vmatprep.subr.mxu0 %v3381
    %3495 = vmatpush1.msra.mxu0 %v3380
    %3496 = vmatprep.subr.mxu0 %v3385
    %3497 = vmatpush1.msra.mxu0 %v3384
    %3498 = vmatprep.subr.mxu0 %v3389
    %3499 = vmatpush1.msra.mxu0 %v3388
    %3500 = vmatprep.subr.mxu0 %v3393
    %3501 = vmatpush1.msra.mxu0 %v3392
    %3502 = vmatprep.subr.mxu0 %v3397
    %3503 = vmatpush1.msra.mxu0 %v3396
    %3504 = vmatprep.subr.mxu0 %v3401
    %3505 = vmatpush1.msra.mxu0 %v3400
    %3506 = vmatprep.subr.mxu0 %v3405
    %3507 = vmatpush1.msra.mxu0 %v3404
    %3508 = vmatprep.subr.mxu0 %v3409
    %3509 = vmatpush1.msra.mxu0 %v3408
    %3510 = vmatprep.subr.mxu0 %v3413
    %3511 = vmatpush1.msra.mxu0 %v3412
    %3512 = vmatprep.subr.mxu0 %v3417
    %3513 = vmatpush1.msra.mxu0 %v3416
    %3514 = vmatprep.subr.mxu0 %v3421
    %3515 = vmatpush1.msra.mxu0 %v3420
    %3516 = vmatprep.subr.mxu0 %v3425
    %3517 = vmatpush1.msra.mxu0 %v3424
    %3518 = vmatprep.subr.mxu0 %v3429
    %3519 = vmatpush1.msra.mxu0 %v3428
    %3520 = vmatprep.subr.mxu0 %v3433
    %3521 = vmatpush1.msra.mxu0 %v3432
    %3522 = vmatprep.subr.mxu0 %v3437
    %3523 = vmatpush1.msra.mxu0 %v3436
    %3524 = vmatprep.subr.mxu0 %v3441
    %3525 = vmatpush1.msra.mxu0 %v3440
    %3526 = vmatprep.subr.mxu0 %v3445
    %3527 = vmatpush1.msra.mxu0 %v3444
    %3528 = vmatprep.subr.mxu0 %v3449
    %3529 = vmatpush1.msra.mxu0 %v3448
    %3530 = vmatprep.subr.mxu0 %v3453
    %3531 = vmatpush1.msra.mxu0 %v3452
    %3532 = vmatprep.subr.mxu0 %v3457
    %3533 = vmatpush1.msra.mxu0 %v3456
    %3534 = vmatprep.subr.mxu0 %v3461
    %3535 = vmatpush1.msra.mxu0 %v3460
    %3536 = vmatprep.subr.mxu0 %v3465
    %3537 = vmatpush1.msra.mxu0 %v3464
    %3538 = vmatprep.subr.mxu0 %v3469
    %3539 = vmatpush1.msra.mxu0 %v3468
    %3540 = vmatprep.subr.mxu0 %v3473
    %3541 = vmatpush1.msra.mxu0 %v3472
    %3542 = vmatprep.subr.mxu0 %v3477
    %3543 = vmatpush1.msra.mxu0 %v3476
    %3544 = vmatprep.mubr.f32.mxu0 %v3350
    %3545 = vmatmul.mubr.f32.gmra.mrb[0].mxu0 %v3349
    %v3546 = vpop.f32.mrb[0].mxu0
    %v3547 = vadd.f32 %v2584, %v3546
    %v3548 = vpop.f32.mrb[0].mxu0
    %v3549 = vadd.f32 %v2588, %v3548
    %3550 = vdwg.mxu0
    %3551 = vmatprep.subr.mxu0 %v3355
    %3552 = vmatpush1.msra.mxu0 %v3354
    %3553 = vmatprep.subr.mxu0 %v3359
    %3554 = vmatpush1.msra.mxu0 %v3358
    %3555 = vmatprep.subr.mxu0 %v3363
    %3556 = vmatpush1.msra.mxu0 %v3362
    %3557 = vmatprep.subr.mxu0 %v3367
    %3558 = vmatpush1.msra.mxu0 %v3366
    %3559 = vmatprep.subr.mxu0 %v3371
    %3560 = vmatpush1.msra.mxu0 %v3370
    %3561 = vmatprep.subr.mxu0 %v3375
    %3562 = vmatpush1.msra.mxu0 %v3374
    %3563 = vmatprep.subr.mxu0 %v3379
    %3564 = vmatpush1.msra.mxu0 %v3378
    %3565 = vmatprep.subr.mxu0 %v3383
    %3566 = vmatpush1.msra.mxu0 %v3382
    %3567 = vmatprep.subr.mxu0 %v3387
    %3568 = vmatpush1.msra.mxu0 %v3386
    %3569 = vmatprep.subr.mxu0 %v3391
    %3570 = vmatpush1.msra.mxu0 %v3390
    %3571 = vmatprep.subr.mxu0 %v3395
    %3572 = vmatpush1.msra.mxu0 %v3394
    %3573 = vmatprep.subr.mxu0 %v3399
    %3574 = vmatpush1.msra.mxu0 %v3398
    %3575 = vmatprep.subr.mxu0 %v3403
    %3576 = vmatpush1.msra.mxu0 %v3402
    %3577 = vmatprep.subr.mxu0 %v3407
    %3578 = vmatpush1.msra.mxu0 %v3406
    %3579 = vmatprep.subr.mxu0 %v3411
    %3580 = vmatpush1.msra.mxu0 %v3410
    %3581 = vmatprep.subr.mxu0 %v3415
    %3582 = vmatpush1.msra.mxu0 %v3414
    %3583 = vmatprep.subr.mxu0 %v3419
    %3584 = vmatpush1.msra.mxu0 %v3418
    %3585 = vmatprep.subr.mxu0 %v3423
    %3586 = vmatpush1.msra.mxu0 %v3422
    %3587 = vmatprep.subr.mxu0 %v3427
    %3588 = vmatpush1.msra.mxu0 %v3426
    %3589 = vmatprep.subr.mxu0 %v3431
    %3590 = vmatpush1.msra.mxu0 %v3430
    %3591 = vmatprep.subr.mxu0 %v3435
    %3592 = vmatpush1.msra.mxu0 %v3434
    %3593 = vmatprep.subr.mxu0 %v3439
    %3594 = vmatpush1.msra.mxu0 %v3438
    %3595 = vmatprep.subr.mxu0 %v3443
    %3596 = vmatpush1.msra.mxu0 %v3442
    %3597 = vmatprep.subr.mxu0 %v3447
    %3598 = vmatpush1.msra.mxu0 %v3446
    %3599 = vmatprep.subr.mxu0 %v3451
    %3600 = vmatpush1.msra.mxu0 %v3450
    %3601 = vmatprep.subr.mxu0 %v3455
    %3602 = vmatpush1.msra.mxu0 %v3454
    %3603 = vmatprep.subr.mxu0 %v3459
    %3604 = vmatpush1.msra.mxu0 %v3458
    %3605 = vmatprep.subr.mxu0 %v3463
    %3606 = vmatpush1.msra.mxu0 %v3462
    %3607 = vmatprep.subr.mxu0 %v3467
    %3608 = vmatpush1.msra.mxu0 %v3466
    %3609 = vmatprep.subr.mxu0 %v3471
    %3610 = vmatpush1.msra.mxu0 %v3470
    %3611 = vmatprep.subr.mxu0 %v3475
    %3612 = vmatpush1.msra.mxu0 %v3474
    %3613 = vmatprep.subr.mxu0 %v3479
    %3614 = vmatpush1.msra.mxu0 %v3478
    %3615 = vmatprep.mubr.f32.mxu0 %v3350
    %3616 = vmatmul.mubr.f32.gmra.mrb[0].mxu0 %v3349
    %v3617 = vpop.f32.mrb[0].mxu0
    %v3618 = vadd.f32 %v2592, %v3617
    %v3619 = vpop.f32.mrb[0].mxu0
    %v3620 = vadd.f32 %v2596, %v3619
    %3621 = vdwg.mxu0
    %v3622 = vmul.f32 %v3547, 0.5
    %v3623 = vtanh.pop %v3622
    %v3624 = vmul.f32 %v3623, 0.5
    %v3625 = vadd.f32 %v3624, 0.5
    %v3626 = vmul.f32 %v3549, 0.5
    %v3627 = vtanh.pop %v3626
    %v3628 = vmul.f32 %v3627, 0.5
    %v3629 = vadd.f32 %v3628, 0.5
    %v3630 = vtanh.pop %v3618
    %v3631 = vmul.f32 %v3620, 0.5
    %v3632 = vtanh.pop %v3631
    %v3633 = vmul.f32 %v3632, 0.5
    %v3634 = vadd.f32 %v3633, 0.5
    %v3635 = vmul.f32 %v3629, %v3351
    %v3636 = vmul.f32 %v3625, %v3630
    %v3637 = vadd.f32 %v3635, %v3636
    %v3638 = vtanh.pop %v3637
    %v3639 = vmul.f32 %v3634, %v3638
    %3640 = vst [vmem:[#allocation3] sm:$0xff] %v3639
    %3641 = vst [vmem:[#allocation4] sm:$0xff] %v3637
    %v3642 = vld [vmem:[%s1556] sm:$0xff]
    %v3643 = vld [vmem:[#allocation3] sm:$0xff]
    %v3644 = vld [vmem:[#allocation4] sm:$0xff]
    %v3645 = vld [vmem:[#allocation8] sm:$0xff]
    %v3646 = vld [vmem:[#allocation8 + $0x8] sm:$0xff]
    %v3647 = vld [vmem:[#allocation8 + $0x10] sm:$0xff]
    %v3648 = vld [vmem:[#allocation8 + $0x18] sm:$0xff]
    %v3649 = vld [vmem:[#allocation8 + $0x20] sm:$0xff]
    %v3650 = vld [vmem:[#allocation8 + $0x28] sm:$0xff]
    %v3651 = vld [vmem:[#allocation8 + $0x30] sm:$0xff]
    %v3652 = vld [vmem:[#allocation8 + $0x38] sm:$0xff]
    %v3653 = vld [vmem:[#allocation8 + $0x40] sm:$0xff]
    %v3654 = vld [vmem:[#allocation8 + $0x48] sm:$0xff]
    %v3655 = vld [vmem:[#allocation8 + $0x50] sm:$0xff]
    %v3656 = vld [vmem:[#allocation8 + $0x58] sm:$0xff]
    %v3657 = vld [vmem:[#allocation8 + $0x60] sm:$0xff]
    %v3658 = vld [vmem:[#allocation8 + $0x68] sm:$0xff]
    %v3659 = vld [vmem:[#allocation8 + $0x70] sm:$0xff]
    %v3660 = vld [vmem:[#allocation8 + $0x78] sm:$0xff]
    %v3661 = vld [vmem:[#allocation8 + $0x80] sm:$0xff]
    %v3662 = vld [vmem:[#allocation8 + $0x88] sm:$0xff]
    %v3663 = vld [vmem:[#allocation8 + $0x90] sm:$0xff]
    %v3664 = vld [vmem:[#allocation8 + $0x98] sm:$0xff]
    %v3665 = vld [vmem:[#allocation8 + $0xa0] sm:$0xff]
    %v3666 = vld [vmem:[#allocation8 + $0xa8] sm:$0xff]
    %v3667 = vld [vmem:[#allocation8 + $0xb0] sm:$0xff]
    %v3668 = vld [vmem:[#allocation8 + $0xb8] sm:$0xff]
    %v3669 = vld [vmem:[#allocation8 + $0xc0] sm:$0xff]
    %v3670 = vld [vmem:[#allocation8 + $0xc8] sm:$0xff]
    %v3671 = vld [vmem:[#allocation8 + $0xd0] sm:$0xff]
    %v3672 = vld [vmem:[#allocation8 + $0xd8] sm:$0xff]
    %v3673 = vld [vmem:[#allocation8 + $0xe0] sm:$0xff]
    %v3674 = vld [vmem:[#allocation8 + $0xe8] sm:$0xff]
    %v3675 = vld [vmem:[#allocation8 + $0xf0] sm:$0xff]
    %v3676 = vld [vmem:[#allocation8 + $0xf8] sm:$0xff]
    %v3677 = vld [vmem:[#allocation8 + $0x100] sm:$0xff]
    %v3678 = vld [vmem:[#allocation8 + $0x108] sm:$0xff]
    %v3679 = vld [vmem:[#allocation8 + $0x110] sm:$0xff]
    %v3680 = vld [vmem:[#allocation8 + $0x118] sm:$0xff]
    %v3681 = vld [vmem:[#allocation8 + $0x120] sm:$0xff]
    %v3682 = vld [vmem:[#allocation8 + $0x128] sm:$0xff]
    %v3683 = vld [vmem:[#allocation8 + $0x130] sm:$0xff]
    %v3684 = vld [vmem:[#allocation8 + $0x138] sm:$0xff]
    %v3685 = vld [vmem:[#allocation8 + $0x140] sm:$0xff]
    %v3686 = vld [vmem:[#allocation8 + $0x148] sm:$0xff]
    %v3687 = vld [vmem:[#allocation8 + $0x150] sm:$0xff]
    %v3688 = vld [vmem:[#allocation8 + $0x158] sm:$0xff]
    %v3689 = vld [vmem:[#allocation8 + $0x160] sm:$0xff]
    %v3690 = vld [vmem:[#allocation8 + $0x168] sm:$0xff]
    %v3691 = vld [vmem:[#allocation8 + $0x170] sm:$0xff]
    %v3692 = vld [vmem:[#allocation8 + $0x178] sm:$0xff]
    %v3693 = vld [vmem:[#allocation8 + $0x180] sm:$0xff]
    %v3694 = vld [vmem:[#allocation8 + $0x188] sm:$0xff]
    %v3695 = vld [vmem:[#allocation8 + $0x190] sm:$0xff]
    %v3696 = vld [vmem:[#allocation8 + $0x198] sm:$0xff]
    %v3697 = vld [vmem:[#allocation8 + $0x1a0] sm:$0xff]
    %v3698 = vld [vmem:[#allocation8 + $0x1a8] sm:$0xff]
    %v3699 = vld [vmem:[#allocation8 + $0x1b0] sm:$0xff]
    %v3700 = vld [vmem:[#allocation8 + $0x1b8] sm:$0xff]
    %v3701 = vld [vmem:[#allocation8 + $0x1c0] sm:$0xff]
    %v3702 = vld [vmem:[#allocation8 + $0x1c8] sm:$0xff]
    %v3703 = vld [vmem:[#allocation8 + $0x1d0] sm:$0xff]
    %v3704 = vld [vmem:[#allocation8 + $0x1d8] sm:$0xff]
    %v3705 = vld [vmem:[#allocation8 + $0x1e0] sm:$0xff]
    %v3706 = vld [vmem:[#allocation8 + $0x1e8] sm:$0xff]
    %v3707 = vld [vmem:[#allocation8 + $0x1f0] sm:$0xff]
    %v3708 = vld [vmem:[#allocation8 + $0x1f8] sm:$0xff]
    %v3709 = vld [vmem:[#allocation8 + $0x200] sm:$0xff]
    %v3710 = vld [vmem:[#allocation8 + $0x208] sm:$0xff]
    %v3711 = vld [vmem:[#allocation8 + $0x210] sm:$0xff]
    %v3712 = vld [vmem:[#allocation8 + $0x218] sm:$0xff]
    %v3713 = vld [vmem:[#allocation8 + $0x220] sm:$0xff]
    %v3714 = vld [vmem:[#allocation8 + $0x228] sm:$0xff]
    %v3715 = vld [vmem:[#allocation8 + $0x230] sm:$0xff]
    %v3716 = vld [vmem:[#allocation8 + $0x238] sm:$0xff]
    %v3717 = vld [vmem:[#allocation8 + $0x240] sm:$0xff]
    %v3718 = vld [vmem:[#allocation8 + $0x248] sm:$0xff]
    %v3719 = vld [vmem:[#allocation8 + $0x250] sm:$0xff]
    %v3720 = vld [vmem:[#allocation8 + $0x258] sm:$0xff]
    %v3721 = vld [vmem:[#allocation8 + $0x260] sm:$0xff]
    %v3722 = vld [vmem:[#allocation8 + $0x268] sm:$0xff]
    %v3723 = vld [vmem:[#allocation8 + $0x270] sm:$0xff]
    %v3724 = vld [vmem:[#allocation8 + $0x278] sm:$0xff]
    %v3725 = vld [vmem:[#allocation8 + $0x280] sm:$0xff]
    %v3726 = vld [vmem:[#allocation8 + $0x288] sm:$0xff]
    %v3727 = vld [vmem:[#allocation8 + $0x290] sm:$0xff]
    %v3728 = vld [vmem:[#allocation8 + $0x298] sm:$0xff]
    %v3729 = vld [vmem:[#allocation8 + $0x2a0] sm:$0xff]
    %v3730 = vld [vmem:[#allocation8 + $0x2a8] sm:$0xff]
    %v3731 = vld [vmem:[#allocation8 + $0x2b0] sm:$0xff]
    %v3732 = vld [vmem:[#allocation8 + $0x2b8] sm:$0xff]
    %v3733 = vld [vmem:[#allocation8 + $0x2c0] sm:$0xff]
    %v3734 = vld [vmem:[#allocation8 + $0x2c8] sm:$0xff]
    %v3735 = vld [vmem:[#allocation8 + $0x2d0] sm:$0xff]
    %v3736 = vld [vmem:[#allocation8 + $0x2d8] sm:$0xff]
    %v3737 = vld [vmem:[#allocation8 + $0x2e0] sm:$0xff]
    %v3738 = vld [vmem:[#allocation8 + $0x2e8] sm:$0xff]
    %v3739 = vld [vmem:[#allocation8 + $0x2f0] sm:$0xff]
    %v3740 = vld [vmem:[#allocation8 + $0x2f8] sm:$0xff]
    %v3741 = vld [vmem:[#allocation8 + $0x300] sm:$0xff]
    %v3742 = vld [vmem:[#allocation8 + $0x308] sm:$0xff]
    %v3743 = vld [vmem:[#allocation8 + $0x310] sm:$0xff]
    %v3744 = vld [vmem:[#allocation8 + $0x318] sm:$0xff]
    %v3745 = vld [vmem:[#allocation8 + $0x320] sm:$0xff]
    %v3746 = vld [vmem:[#allocation8 + $0x328] sm:$0xff]
    %v3747 = vld [vmem:[#allocation8 + $0x330] sm:$0xff]
    %v3748 = vld [vmem:[#allocation8 + $0x338] sm:$0xff]
    %v3749 = vld [vmem:[#allocation8 + $0x340] sm:$0xff]
    %v3750 = vld [vmem:[#allocation8 + $0x348] sm:$0xff]
    %v3751 = vld [vmem:[#allocation8 + $0x350] sm:$0xff]
    %v3752 = vld [vmem:[#allocation8 + $0x358] sm:$0xff]
    %v3753 = vld [vmem:[#allocation8 + $0x360] sm:$0xff]
    %v3754 = vld [vmem:[#allocation8 + $0x368] sm:$0xff]
    %v3755 = vld [vmem:[#allocation8 + $0x370] sm:$0xff]
    %v3756 = vld [vmem:[#allocation8 + $0x378] sm:$0xff]
    %v3757 = vld [vmem:[#allocation8 + $0x380] sm:$0xff]
    %v3758 = vld [vmem:[#allocation8 + $0x388] sm:$0xff]
    %v3759 = vld [vmem:[#allocation8 + $0x390] sm:$0xff]
    %v3760 = vld [vmem:[#allocation8 + $0x398] sm:$0xff]
    %v3761 = vld [vmem:[#allocation8 + $0x3a0] sm:$0xff]
    %v3762 = vld [vmem:[#allocation8 + $0x3a8] sm:$0xff]
    %v3763 = vld [vmem:[#allocation8 + $0x3b0] sm:$0xff]
    %v3764 = vld [vmem:[#allocation8 + $0x3b8] sm:$0xff]
    %v3765 = vld [vmem:[#allocation8 + $0x3c0] sm:$0xff]
    %v3766 = vld [vmem:[#allocation8 + $0x3c8] sm:$0xff]
    %v3767 = vld [vmem:[#allocation8 + $0x3d0] sm:$0xff]
    %v3768 = vld [vmem:[#allocation8 + $0x3d8] sm:$0xff]
    %v3769 = vld [vmem:[#allocation8 + $0x3e0] sm:$0xff]
    %v3770 = vld [vmem:[#allocation8 + $0x3e8] sm:$0xff]
    %v3771 = vld [vmem:[#allocation8 + $0x3f0] sm:$0xff]
    %v3772 = vld [vmem:[#allocation8 + $0x3f8] sm:$0xff]
    %3773 = vmatprep.subr.mxu0 %v3646
    %3774 = vmatpush1.msra.mxu0 %v3645
    %3775 = vmatprep.subr.mxu0 %v3650
    %3776 = vmatpush1.msra.mxu0 %v3649
    %3777 = vmatprep.subr.mxu0 %v3654
    %3778 = vmatpush1.msra.mxu0 %v3653
    %3779 = vmatprep.subr.mxu0 %v3658
    %3780 = vmatpush1.msra.mxu0 %v3657
    %3781 = vmatprep.subr.mxu0 %v3662
    %3782 = vmatpush1.msra.mxu0 %v3661
    %3783 = vmatprep.subr.mxu0 %v3666
    %3784 = vmatpush1.msra.mxu0 %v3665
    %3785 = vmatprep.subr.mxu0 %v3670
    %3786 = vmatpush1.msra.mxu0 %v3669
    %3787 = vmatprep.subr.mxu0 %v3674
    %3788 = vmatpush1.msra.mxu0 %v3673
    %3789 = vmatprep.subr.mxu0 %v3678
    %3790 = vmatpush1.msra.mxu0 %v3677
    %3791 = vmatprep.subr.mxu0 %v3682
    %3792 = vmatpush1.msra.mxu0 %v3681
    %3793 = vmatprep.subr.mxu0 %v3686
    %3794 = vmatpush1.msra.mxu0 %v3685
    %3795 = vmatprep.subr.mxu0 %v3690
    %3796 = vmatpush1.msra.mxu0 %v3689
    %3797 = vmatprep.subr.mxu0 %v3694
    %3798 = vmatpush1.msra.mxu0 %v3693
    %3799 = vmatprep.subr.mxu0 %v3698
    %3800 = vmatpush1.msra.mxu0 %v3697
    %3801 = vmatprep.subr.mxu0 %v3702
    %3802 = vmatpush1.msra.mxu0 %v3701
    %3803 = vmatprep.subr.mxu0 %v3706
    %3804 = vmatpush1.msra.mxu0 %v3705
    %3805 = vmatprep.subr.mxu0 %v3710
    %3806 = vmatpush1.msra.mxu0 %v3709
    %3807 = vmatprep.subr.mxu0 %v3714
    %3808 = vmatpush1.msra.mxu0 %v3713
    %3809 = vmatprep.subr.mxu0 %v3718
    %3810 = vmatpush1.msra.mxu0 %v3717
    %3811 = vmatprep.subr.mxu0 %v3722
    %3812 = vmatpush1.msra.mxu0 %v3721
    %3813 = vmatprep.subr.mxu0 %v3726
    %3814 = vmatpush1.msra.mxu0 %v3725
    %3815 = vmatprep.subr.mxu0 %v3730
    %3816 = vmatpush1.msra.mxu0 %v3729
    %3817 = vmatprep.subr.mxu0 %v3734
    %3818 = vmatpush1.msra.mxu0 %v3733
    %3819 = vmatprep.subr.mxu0 %v3738
    %3820 = vmatpush1.msra.mxu0 %v3737
    %3821 = vmatprep.subr.mxu0 %v3742
    %3822 = vmatpush1.msra.mxu0 %v3741
    %3823 = vmatprep.subr.mxu0 %v3746
    %3824 = vmatpush1.msra.mxu0 %v3745
    %3825 = vmatprep.subr.mxu0 %v3750
    %3826 = vmatpush1.msra.mxu0 %v3749
    %3827 = vmatprep.subr.mxu0 %v3754
    %3828 = vmatpush1.msra.mxu0 %v3753
    %3829 = vmatprep.subr.mxu0 %v3758
    %3830 = vmatpush1.msra.mxu0 %v3757
    %3831 = vmatprep.subr.mxu0 %v3762
    %3832 = vmatpush1.msra.mxu0 %v3761
    %3833 = vmatprep.subr.mxu0 %v3766
    %3834 = vmatpush1.msra.mxu0 %v3765
    %3835 = vmatprep.subr.mxu0 %v3770
    %3836 = vmatpush1.msra.mxu0 %v3769
    %3837 = vmatprep.mubr.f32.mxu0 %v3643
    %3838 = vmatmul.mubr.f32.gmra.mrb[0].mxu0 %v3642
    %v3839 = vpop.f32.mrb[0].mxu0
    %v3840 = vadd.f32 %v2584, %v3839
    %v3841 = vpop.f32.mrb[0].mxu0
    %v3842 = vadd.f32 %v2588, %v3841
    %3843 = vdwg.mxu0
    %3844 = vmatprep.subr.mxu0 %v3648
    %3845 = vmatpush1.msra.mxu0 %v3647
    %3846 = vmatprep.subr.mxu0 %v3652
    %3847 = vmatpush1.msra.mxu0 %v3651
    %3848 = vmatprep.subr.mxu0 %v3656
    %3849 = vmatpush1.msra.mxu0 %v3655
    %3850 = vmatprep.subr.mxu0 %v3660
    %3851 = vmatpush1.msra.mxu0 %v3659
    %3852 = vmatprep.subr.mxu0 %v3664
    %3853 = vmatpush1.msra.mxu0 %v3663
    %3854 = vmatprep.subr.mxu0 %v3668
    %3855 = vmatpush1.msra.mxu0 %v3667
    %3856 = vmatprep.subr.mxu0 %v3672
    %3857 = vmatpush1.msra.mxu0 %v3671
    %3858 = vmatprep.subr.mxu0 %v3676
    %3859 = vmatpush1.msra.mxu0 %v3675
    %3860 = vmatprep.subr.mxu0 %v3680
    %3861 = vmatpush1.msra.mxu0 %v3679
    %3862 = vmatprep.subr.mxu0 %v3684
    %3863 = vmatpush1.msra.mxu0 %v3683
    %3864 = vmatprep.subr.mxu0 %v3688
    %3865 = vmatpush1.msra.mxu0 %v3687
    %3866 = vmatprep.subr.mxu0 %v3692
    %3867 = vmatpush1.msra.mxu0 %v3691
    %3868 = vmatprep.subr.mxu0 %v3696
    %3869 = vmatpush1.msra.mxu0 %v3695
    %3870 = vmatprep.subr.mxu0 %v3700
    %3871 = vmatpush1.msra.mxu0 %v3699
    %3872 = vmatprep.subr.mxu0 %v3704
    %3873 = vmatpush1.msra.mxu0 %v3703
    %3874 = vmatprep.subr.mxu0 %v3708
    %3875 = vmatpush1.msra.mxu0 %v3707
    %3876 = vmatprep.subr.mxu0 %v3712
    %3877 = vmatpush1.msra.mxu0 %v3711
    %3878 = vmatprep.subr.mxu0 %v3716
    %3879 = vmatpush1.msra.mxu0 %v3715
    %3880 = vmatprep.subr.mxu0 %v3720
    %3881 = vmatpush1.msra.mxu0 %v3719
    %3882 = vmatprep.subr.mxu0 %v3724
    %3883 = vmatpush1.msra.mxu0 %v3723
    %3884 = vmatprep.subr.mxu0 %v3728
    %3885 = vmatpush1.msra.mxu0 %v3727
    %3886 = vmatprep.subr.mxu0 %v3732
    %3887 = vmatpush1.msra.mxu0 %v3731
    %3888 = vmatprep.subr.mxu0 %v3736
    %3889 = vmatpush1.msra.mxu0 %v3735
    %3890 = vmatprep.subr.mxu0 %v3740
    %3891 = vmatpush1.msra.mxu0 %v3739
    %3892 = vmatprep.subr.mxu0 %v3744
    %3893 = vmatpush1.msra.mxu0 %v3743
    %3894 = vmatprep.subr.mxu0 %v3748
    %3895 = vmatpush1.msra.mxu0 %v3747
    %3896 = vmatprep.subr.mxu0 %v3752
    %3897 = vmatpush1.msra.mxu0 %v3751
    %3898 = vmatprep.subr.mxu0 %v3756
    %3899 = vmatpush1.msra.mxu0 %v3755
    %3900 = vmatprep.subr.mxu0 %v3760
    %3901 = vmatpush1.msra.mxu0 %v3759
    %3902 = vmatprep.subr.mxu0 %v3764
    %3903 = vmatpush1.msra.mxu0 %v3763
    %3904 = vmatprep.subr.mxu0 %v3768
    %3905 = vmatpush1.msra.mxu0 %v3767
    %3906 = vmatprep.subr.mxu0 %v3772
    %3907 = vmatpush1.msra.mxu0 %v3771
    %3908 = vmatprep.mubr.f32.mxu0 %v3643
    %3909 = vmatmul.mubr.f32.gmra.mrb[0].mxu0 %v3642
    %v3910 = vpop.f32.mrb[0].mxu0
    %v3911 = vadd.f32 %v2592, %v3910
    %v3912 = vpop.f32.mrb[0].mxu0
    %v3913 = vadd.f32 %v2596, %v3912
    %3914 = vdwg.mxu0
    %v3915 = vmul.f32 %v3840, 0.5
    %v3916 = vtanh.pop %v3915
    %v3917 = vmul.f32 %v3916, 0.5
    %v3918 = vadd.f32 %v3917, 0.5
    %v3919 = vmul.f32 %v3842, 0.5
    %v3920 = vtanh.pop %v3919
    %v3921 = vmul.f32 %v3920, 0.5
    %v3922 = vadd.f32 %v3921, 0.5
    %v3923 = vtanh.pop %v3911
    %v3924 = vmul.f32 %v3913, 0.5
    %v3925 = vtanh.pop %v3924
    %v3926 = vmul.f32 %v3925, 0.5
    %v3927 = vadd.f32 %v3926, 0.5
    %v3928 = vmul.f32 %v3922, %v3644
    %v3929 = vmul.f32 %v3918, %v3923
    %v3930 = vadd.f32 %v3928, %v3929
    %v3931 = vtanh.pop %v3930
    %v3932 = vmul.f32 %v3927, %v3931
    %3933 = vst [vmem:[#allocation3] sm:$0xff] %v3932
    %3934 = vst [vmem:[#allocation4] sm:$0xff] %v3930
    %v3935 = vld [vmem:[%s1852] sm:$0xff]
    %v3936 = vld [vmem:[#allocation3] sm:$0xff]
    %v3937 = vld [vmem:[#allocation4] sm:$0xff]
    %v3938 = vld [vmem:[#allocation8] sm:$0xff]
    %v3939 = vld [vmem:[#allocation8 + $0x8] sm:$0xff]
    %v3940 = vld [vmem:[#allocation8 + $0x10] sm:$0xff]
    %v3941 = vld [vmem:[#allocation8 + $0x18] sm:$0xff]
    %v3942 = vld [vmem:[#allocation8 + $0x20] sm:$0xff]
    %v3943 = vld [vmem:[#allocation8 + $0x28] sm:$0xff]
    %v3944 = vld [vmem:[#allocation8 + $0x30] sm:$0xff]
    %v3945 = vld [vmem:[#allocation8 + $0x38] sm:$0xff]
    %v3946 = vld [vmem:[#allocation8 + $0x40] sm:$0xff]
    %v3947 = vld [vmem:[#allocation8 + $0x48] sm:$0xff]
    %v3948 = vld [vmem:[#allocation8 + $0x50] sm:$0xff]
    %v3949 = vld [vmem:[#allocation8 + $0x58] sm:$0xff]
    %v3950 = vld [vmem:[#allocation8 + $0x60] sm:$0xff]
    %v3951 = vld [vmem:[#allocation8 + $0x68] sm:$0xff]
    %v3952 = vld [vmem:[#allocation8 + $0x70] sm:$0xff]
    %v3953 = vld [vmem:[#allocation8 + $0x78] sm:$0xff]
    %v3954 = vld [vmem:[#allocation8 + $0x80] sm:$0xff]
    %v3955 = vld [vmem:[#allocation8 + $0x88] sm:$0xff]
    %v3956 = vld [vmem:[#allocation8 + $0x90] sm:$0xff]
    %v3957 = vld [vmem:[#allocation8 + $0x98] sm:$0xff]
    %v3958 = vld [vmem:[#allocation8 + $0xa0] sm:$0xff]
    %v3959 = vld [vmem:[#allocation8 + $0xa8] sm:$0xff]
    %v3960 = vld [vmem:[#allocation8 + $0xb0] sm:$0xff]
    %v3961 = vld [vmem:[#allocation8 + $0xb8] sm:$0xff]
    %v3962 = vld [vmem:[#allocation8 + $0xc0] sm:$0xff]
    %v3963 = vld [vmem:[#allocation8 + $0xc8] sm:$0xff]
    %v3964 = vld [vmem:[#allocation8 + $0xd0] sm:$0xff]
    %v3965 = vld [vmem:[#allocation8 + $0xd8] sm:$0xff]
    %v3966 = vld [vmem:[#allocation8 + $0xe0] sm:$0xff]
    %v3967 = vld [vmem:[#allocation8 + $0xe8] sm:$0xff]
    %v3968 = vld [vmem:[#allocation8 + $0xf0] sm:$0xff]
    %v3969 = vld [vmem:[#allocation8 + $0xf8] sm:$0xff]
    %v3970 = vld [vmem:[#allocation8 + $0x100] sm:$0xff]
    %v3971 = vld [vmem:[#allocation8 + $0x108] sm:$0xff]
    %v3972 = vld [vmem:[#allocation8 + $0x110] sm:$0xff]
    %v3973 = vld [vmem:[#allocation8 + $0x118] sm:$0xff]
    %v3974 = vld [vmem:[#allocation8 + $0x120] sm:$0xff]
    %v3975 = vld [vmem:[#allocation8 + $0x128] sm:$0xff]
    %v3976 = vld [vmem:[#allocation8 + $0x130] sm:$0xff]
    %v3977 = vld [vmem:[#allocation8 + $0x138] sm:$0xff]
    %v3978 = vld [vmem:[#allocation8 + $0x140] sm:$0xff]
    %v3979 = vld [vmem:[#allocation8 + $0x148] sm:$0xff]
    %v3980 = vld [vmem:[#allocation8 + $0x150] sm:$0xff]
    %v3981 = vld [vmem:[#allocation8 + $0x158] sm:$0xff]
    %v3982 = vld [vmem:[#allocation8 + $0x160] sm:$0xff]
    %v3983 = vld [vmem:[#allocation8 + $0x168] sm:$0xff]
    %v3984 = vld [vmem:[#allocation8 + $0x170] sm:$0xff]
    %v3985 = vld [vmem:[#allocation8 + $0x178] sm:$0xff]
    %v3986 = vld [vmem:[#allocation8 + $0x180] sm:$0xff]
    %v3987 = vld [vmem:[#allocation8 + $0x188] sm:$0xff]
    %v3988 = vld [vmem:[#allocation8 + $0x190] sm:$0xff]
    %v3989 = vld [vmem:[#allocation8 + $0x198] sm:$0xff]
    %v3990 = vld [vmem:[#allocation8 + $0x1a0] sm:$0xff]
    %v3991 = vld [vmem:[#allocation8 + $0x1a8] sm:$0xff]
    %v3992 = vld [vmem:[#allocation8 + $0x1b0] sm:$0xff]
    %v3993 = vld [vmem:[#allocation8 + $0x1b8] sm:$0xff]
    %v3994 = vld [vmem:[#allocation8 + $0x1c0] sm:$0xff]
    %v3995 = vld [vmem:[#allocation8 + $0x1c8] sm:$0xff]
    %v3996 = vld [vmem:[#allocation8 + $0x1d0] sm:$0xff]
    %v3997 = vld [vmem:[#allocation8 + $0x1d8] sm:$0xff]
    %v3998 = vld [vmem:[#allocation8 + $0x1e0] sm:$0xff]
    %v3999 = vld [vmem:[#allocation8 + $0x1e8] sm:$0xff]
    %v4000 = vld [vmem:[#allocation8 + $0x1f0] sm:$0xff]
    %v4001 = vld [vmem:[#allocation8 + $0x1f8] sm:$0xff]
    %v4002 = vld [vmem:[#allocation8 + $0x200] sm:$0xff]
    %v4003 = vld [vmem:[#allocation8 + $0x208] sm:$0xff]
    %v4004 = vld [vmem:[#allocation8 + $0x210] sm:$0xff]
    %v4005 = vld [vmem:[#allocation8 + $0x218] sm:$0xff]
    %v4006 = vld [vmem:[#allocation8 + $0x220] sm:$0xff]
    %v4007 = vld [vmem:[#allocation8 + $0x228] sm:$0xff]
    %v4008 = vld [vmem:[#allocation8 + $0x230] sm:$0xff]
    %v4009 = vld [vmem:[#allocation8 + $0x238] sm:$0xff]
    %v4010 = vld [vmem:[#allocation8 + $0x240] sm:$0xff]
    %v4011 = vld [vmem:[#allocation8 + $0x248] sm:$0xff]
    %v4012 = vld [vmem:[#allocation8 + $0x250] sm:$0xff]
    %v4013 = vld [vmem:[#allocation8 + $0x258] sm:$0xff]
    %v4014 = vld [vmem:[#allocation8 + $0x260] sm:$0xff]
    %v4015 = vld [vmem:[#allocation8 + $0x268] sm:$0xff]
    %v4016 = vld [vmem:[#allocation8 + $0x270] sm:$0xff]
    %v4017 = vld [vmem:[#allocation8 + $0x278] sm:$0xff]
    %v4018 = vld [vmem:[#allocation8 + $0x280] sm:$0xff]
    %v4019 = vld [vmem:[#allocation8 + $0x288] sm:$0xff]
    %v4020 = vld [vmem:[#allocation8 + $0x290] sm:$0xff]
    %v4021 = vld [vmem:[#allocation8 + $0x298] sm:$0xff]
    %v4022 = vld [vmem:[#allocation8 + $0x2a0] sm:$0xff]
    %v4023 = vld [vmem:[#allocation8 + $0x2a8] sm:$0xff]
    %v4024 = vld [vmem:[#allocation8 + $0x2b0] sm:$0xff]
    %v4025 = vld [vmem:[#allocation8 + $0x2b8] sm:$0xff]
    %v4026 = vld [vmem:[#allocation8 + $0x2c0] sm:$0xff]
    %v4027 = vld [vmem:[#allocation8 + $0x2c8] sm:$0xff]
    %v4028 = vld [vmem:[#allocation8 + $0x2d0] sm:$0xff]
    %v4029 = vld [vmem:[#allocation8 + $0x2d8] sm:$0xff]
    %v4030 = vld [vmem:[#allocation8 + $0x2e0] sm:$0xff]
    %v4031 = vld [vmem:[#allocation8 + $0x2e8] sm:$0xff]
    %v4032 = vld [vmem:[#allocation8 + $0x2f0] sm:$0xff]
    %v4033 = vld [vmem:[#allocation8 + $0x2f8] sm:$0xff]
    %v4034 = vld [vmem:[#allocation8 + $0x300] sm:$0xff]
    %v4035 = vld [vmem:[#allocation8 + $0x308] sm:$0xff]
    %v4036 = vld [vmem:[#allocation8 + $0x310] sm:$0xff]
    %v4037 = vld [vmem:[#allocation8 + $0x318] sm:$0xff]
    %v4038 = vld [vmem:[#allocation8 + $0x320] sm:$0xff]
    %v4039 = vld [vmem:[#allocation8 + $0x328] sm:$0xff]
    %v4040 = vld [vmem:[#allocation8 + $0x330] sm:$0xff]
    %v4041 = vld [vmem:[#allocation8 + $0x338] sm:$0xff]
    %v4042 = vld [vmem:[#allocation8 + $0x340] sm:$0xff]
    %v4043 = vld [vmem:[#allocation8 + $0x348] sm:$0xff]
    %v4044 = vld [vmem:[#allocation8 + $0x350] sm:$0xff]
    %v4045 = vld [vmem:[#allocation8 + $0x358] sm:$0xff]
    %v4046 = vld [vmem:[#allocation8 + $0x360] sm:$0xff]
    %v4047 = vld [vmem:[#allocation8 + $0x368] sm:$0xff]
    %v4048 = vld [vmem:[#allocation8 + $0x370] sm:$0xff]
    %v4049 = vld [vmem:[#allocation8 + $0x378] sm:$0xff]
    %v4050 = vld [vmem:[#allocation8 + $0x380] sm:$0xff]
    %v4051 = vld [vmem:[#allocation8 + $0x388] sm:$0xff]
    %v4052 = vld [vmem:[#allocation8 + $0x390] sm:$0xff]
    %v4053 = vld [vmem:[#allocation8 + $0x398] sm:$0xff]
    %v4054 = vld [vmem:[#allocation8 + $0x3a0] sm:$0xff]
    %v4055 = vld [vmem:[#allocation8 + $0x3a8] sm:$0xff]
    %v4056 = vld [vmem:[#allocation8 + $0x3b0] sm:$0xff]
    %v4057 = vld [vmem:[#allocation8 + $0x3b8] sm:$0xff]
    %v4058 = vld [vmem:[#allocation8 + $0x3c0] sm:$0xff]
    %v4059 = vld [vmem:[#allocation8 + $0x3c8] sm:$0xff]
    %v4060 = vld [vmem:[#allocation8 + $0x3d0] sm:$0xff]
    %v4061 = vld [vmem:[#allocation8 + $0x3d8] sm:$0xff]
    %v4062 = vld [vmem:[#allocation8 + $0x3e0] sm:$0xff]
    %v4063 = vld [vmem:[#allocation8 + $0x3e8] sm:$0xff]
    %v4064 = vld [vmem:[#allocation8 + $0x3f0] sm:$0xff]
    %v4065 = vld [vmem:[#allocation8 + $0x3f8] sm:$0xff]
    %4066 = vmatprep.subr.mxu0 %v3939
    %4067 = vmatpush1.msra.mxu0 %v3938
    %4068 = vmatprep.subr.mxu0 %v3943
    %4069 = vmatpush1.msra.mxu0 %v3942
    %4070 = vmatprep.subr.mxu0 %v3947
    %4071 = vmatpush1.msra.mxu0 %v3946
    %4072 = vmatprep.subr.mxu0 %v3951
    %4073 = vmatpush1.msra.mxu0 %v3950
    %4074 = vmatprep.subr.mxu0 %v3955
    %4075 = vmatpush1.msra.mxu0 %v3954
    %4076 = vmatprep.subr.mxu0 %v3959
    %4077 = vmatpush1.msra.mxu0 %v3958
    %4078 = vmatprep.subr.mxu0 %v3963
    %4079 = vmatpush1.msra.mxu0 %v3962
    %4080 = vmatprep.subr.mxu0 %v3967
    %4081 = vmatpush1.msra.mxu0 %v3966
    %4082 = vmatprep.subr.mxu0 %v3971
    %4083 = vmatpush1.msra.mxu0 %v3970
    %4084 = vmatprep.subr.mxu0 %v3975
    %4085 = vmatpush1.msra.mxu0 %v3974
    %4086 = vmatprep.subr.mxu0 %v3979
    %4087 = vmatpush1.msra.mxu0 %v3978
    %4088 = vmatprep.subr.mxu0 %v3983
    %4089 = vmatpush1.msra.mxu0 %v3982
    %4090 = vmatprep.subr.mxu0 %v3987
    %4091 = vmatpush1.msra.mxu0 %v3986
    %4092 = vmatprep.subr.mxu0 %v3991
    %4093 = vmatpush1.msra.mxu0 %v3990
    %4094 = vmatprep.subr.mxu0 %v3995
    %4095 = vmatpush1.msra.mxu0 %v3994
    %4096 = vmatprep.subr.mxu0 %v3999
    %4097 = vmatpush1.msra.mxu0 %v3998
    %4098 = vmatprep.subr.mxu0 %v4003
    %4099 = vmatpush1.msra.mxu0 %v4002
    %4100 = vmatprep.subr.mxu0 %v4007
    %4101 = vmatpush1.msra.mxu0 %v4006
    %4102 = vmatprep.subr.mxu0 %v4011
    %4103 = vmatpush1.msra.mxu0 %v4010
    %4104 = vmatprep.subr.mxu0 %v4015
    %4105 = vmatpush1.msra.mxu0 %v4014
    %4106 = vmatprep.subr.mxu0 %v4019
    %4107 = vmatpush1.msra.mxu0 %v4018
    %4108 = vmatprep.subr.mxu0 %v4023
    %4109 = vmatpush1.msra.mxu0 %v4022
    %4110 = vmatprep.subr.mxu0 %v4027
    %4111 = vmatpush1.msra.mxu0 %v4026
    %4112 = vmatprep.subr.mxu0 %v4031
    %4113 = vmatpush1.msra.mxu0 %v4030
    %4114 = vmatprep.subr.mxu0 %v4035
    %4115 = vmatpush1.msra.mxu0 %v4034
    %4116 = vmatprep.subr.mxu0 %v4039
    %4117 = vmatpush1.msra.mxu0 %v4038
    %4118 = vmatprep.subr.mxu0 %v4043
    %4119 = vmatpush1.msra.mxu0 %v4042
    %4120 = vmatprep.subr.mxu0 %v4047
    %4121 = vmatpush1.msra.mxu0 %v4046
    %4122 = vmatprep.subr.mxu0 %v4051
    %4123 = vmatpush1.msra.mxu0 %v4050
    %4124 = vmatprep.subr.mxu0 %v4055
    %4125 = vmatpush1.msra.mxu0 %v4054
    %4126 = vmatprep.subr.mxu0 %v4059
    %4127 = vmatpush1.msra.mxu0 %v4058
    %4128 = vmatprep.subr.mxu0 %v4063
    %4129 = vmatpush1.msra.mxu0 %v4062
    %4130 = vmatprep.mubr.f32.mxu0 %v3936
    %4131 = vmatmul.mubr.f32.gmra.mrb[0].mxu0 %v3935
    %v4132 = vpop.f32.mrb[0].mxu0
    %v4133 = vadd.f32 %v2584, %v4132
    %v4134 = vpop.f32.mrb[0].mxu0
    %v4135 = vadd.f32 %v2588, %v4134
    %4136 = vdwg.mxu0
    %4137 = vmatprep.subr.mxu0 %v3941
    %4138 = vmatpush1.msra.mxu0 %v3940
    %4139 = vmatprep.subr.mxu0 %v3945
    %4140 = vmatpush1.msra.mxu0 %v3944
    %4141 = vmatprep.subr.mxu0 %v3949
    %4142 = vmatpush1.msra.mxu0 %v3948
    %4143 = vmatprep.subr.mxu0 %v3953
    %4144 = vmatpush1.msra.mxu0 %v3952
    %4145 = vmatprep.subr.mxu0 %v3957
    %4146 = vmatpush1.msra.mxu0 %v3956
    %4147 = vmatprep.subr.mxu0 %v3961
    %4148 = vmatpush1.msra.mxu0 %v3960
    %4149 = vmatprep.subr.mxu0 %v3965
    %4150 = vmatpush1.msra.mxu0 %v3964
    %4151 = vmatprep.subr.mxu0 %v3969
    %4152 = vmatpush1.msra.mxu0 %v3968
    %4153 = vmatprep.subr.mxu0 %v3973
    %4154 = vmatpush1.msra.mxu0 %v3972
    %4155 = vmatprep.subr.mxu0 %v3977
    %4156 = vmatpush1.msra.mxu0 %v3976
    %4157 = vmatprep.subr.mxu0 %v3981
    %4158 = vmatpush1.msra.mxu0 %v3980
    %4159 = vmatprep.subr.mxu0 %v3985
    %4160 = vmatpush1.msra.mxu0 %v3984
    %4161 = vmatprep.subr.mxu0 %v3989
    %4162 = vmatpush1.msra.mxu0 %v3988
    %4163 = vmatprep.subr.mxu0 %v3993
    %4164 = vmatpush1.msra.mxu0 %v3992
    %4165 = vmatprep.subr.mxu0 %v3997
    %4166 = vmatpush1.msra.mxu0 %v3996
    %4167 = vmatprep.subr.mxu0 %v4001
    %4168 = vmatpush1.msra.mxu0 %v4000
    %4169 = vmatprep.subr.mxu0 %v4005
    %4170 = vmatpush1.msra.mxu0 %v4004
    %4171 = vmatprep.subr.mxu0 %v4009
    %4172 = vmatpush1.msra.mxu0 %v4008
    %4173 = vmatprep.subr.mxu0 %v4013
    %4174 = vmatpush1.msra.mxu0 %v4012
    %4175 = vmatprep.subr.mxu0 %v4017
    %4176 = vmatpush1.msra.mxu0 %v4016
    %4177 = vmatprep.subr.mxu0 %v4021
    %4178 = vmatpush1.msra.mxu0 %v4020
    %4179 = vmatprep.subr.mxu0 %v4025
    %4180 = vmatpush1.msra.mxu0 %v4024
    %4181 = vmatprep.subr.mxu0 %v4029
    %4182 = vmatpush1.msra.mxu0 %v4028
    %4183 = vmatprep.subr.mxu0 %v4033
    %4184 = vmatpush1.msra.mxu0 %v4032
    %4185 = vmatprep.subr.mxu0 %v4037
    %4186 = vmatpush1.msra.mxu0 %v4036
    %4187 = vmatprep.subr.mxu0 %v4041
    %4188 = vmatpush1.msra.mxu0 %v4040
    %4189 = vmatprep.subr.mxu0 %v4045
    %4190 = vmatpush1.msra.mxu0 %v4044
    %4191 = vmatprep.subr.mxu0 %v4049
    %4192 = vmatpush1.msra.mxu0 %v4048
    %4193 = vmatprep.subr.mxu0 %v4053
    %4194 = vmatpush1.msra.mxu0 %v4052
    %4195 = vmatprep.subr.mxu0 %v4057
    %4196 = vmatpush1.msra.mxu0 %v4056
    %4197 = vmatprep.subr.mxu0 %v4061
    %4198 = vmatpush1.msra.mxu0 %v4060
    %4199 = vmatprep.subr.mxu0 %v4065
    %4200 = vmatpush1.msra.mxu0 %v4064
    %4201 = vmatprep.mubr.f32.mxu0 %v3936
    %4202 = vmatmul.mubr.f32.gmra.mrb[0].mxu0 %v3935
    %v4203 = vpop.f32.mrb[0].mxu0
    %v4204 = vadd.f32 %v2592, %v4203
    %v4205 = vpop.f32.mrb[0].mxu0
    %v4206 = vadd.f32 %v2596, %v4205
    %4207 = vdwg.mxu0
    %v4208 = vmul.f32 %v4133, 0.5
    %v4209 = vtanh.pop %v4208
    %v4210 = vmul.f32 %v4209, 0.5
    %v4211 = vadd.f32 %v4210, 0.5
    %v4212 = vmul.f32 %v4135, 0.5
    %v4213 = vtanh.pop %v4212
    %v4214 = vmul.f32 %v4213, 0.5
    %v4215 = vadd.f32 %v4214, 0.5
    %v4216 = vtanh.pop %v4204
    %v4217 = vmul.f32 %v4206, 0.5
    %v4218 = vtanh.pop %v4217
    %v4219 = vmul.f32 %v4218, 0.5
    %v4220 = vadd.f32 %v4219, 0.5
    %v4221 = vmul.f32 %v4215, %v3937
    %v4222 = vmul.f32 %v4211, %v4216
    %v4223 = vadd.f32 %v4221, %v4222
    %v4224 = vtanh.pop %v4223
    %v4225 = vmul.f32 %v4220, %v4224
    %4226 = vst [vmem:[#allocation3] sm:$0xff] %v4225
    %4227 = vst [vmem:[#allocation4] sm:$0xff] %v4223
    %v4228 = vld [vmem:[%s2148] sm:$0xff]
    %v4229 = vld [vmem:[#allocation3] sm:$0xff]
    %v4230 = vld [vmem:[#allocation4] sm:$0xff]
    %v4231 = vld [vmem:[#allocation8] sm:$0xff]
    %v4232 = vld [vmem:[#allocation8 + $0x8] sm:$0xff]
    %v4233 = vld [vmem:[#allocation8 + $0x10] sm:$0xff]
    %v4234 = vld [vmem:[#allocation8 + $0x18] sm:$0xff]
    %v4235 = vld [vmem:[#allocation8 + $0x20] sm:$0xff]
    %v4236 = vld [vmem:[#allocation8 + $0x28] sm:$0xff]
    %v4237 = vld [vmem:[#allocation8 + $0x30] sm:$0xff]
    %v4238 = vld [vmem:[#allocation8 + $0x38] sm:$0xff]
    %v4239 = vld [vmem:[#allocation8 + $0x40] sm:$0xff]
    %v4240 = vld [vmem:[#allocation8 + $0x48] sm:$0xff]
    %v4241 = vld [vmem:[#allocation8 + $0x50] sm:$0xff]
    %v4242 = vld [vmem:[#allocation8 + $0x58] sm:$0xff]
    %v4243 = vld [vmem:[#allocation8 + $0x60] sm:$0xff]
    %v4244 = vld [vmem:[#allocation8 + $0x68] sm:$0xff]
    %v4245 = vld [vmem:[#allocation8 + $0x70] sm:$0xff]
    %v4246 = vld [vmem:[#allocation8 + $0x78] sm:$0xff]
    %v4247 = vld [vmem:[#allocation8 + $0x80] sm:$0xff]
    %v4248 = vld [vmem:[#allocation8 + $0x88] sm:$0xff]
    %v4249 = vld [vmem:[#allocation8 + $0x90] sm:$0xff]
    %v4250 = vld [vmem:[#allocation8 + $0x98] sm:$0xff]
    %v4251 = vld [vmem:[#allocation8 + $0xa0] sm:$0xff]
    %v4252 = vld [vmem:[#allocation8 + $0xa8] sm:$0xff]
    %v4253 = vld [vmem:[#allocation8 + $0xb0] sm:$0xff]
    %v4254 = vld [vmem:[#allocation8 + $0xb8] sm:$0xff]
    %v4255 = vld [vmem:[#allocation8 + $0xc0] sm:$0xff]
    %v4256 = vld [vmem:[#allocation8 + $0xc8] sm:$0xff]
    %v4257 = vld [vmem:[#allocation8 + $0xd0] sm:$0xff]
    %v4258 = vld [vmem:[#allocation8 + $0xd8] sm:$0xff]
    %v4259 = vld [vmem:[#allocation8 + $0xe0] sm:$0xff]
    %v4260 = vld [vmem:[#allocation8 + $0xe8] sm:$0xff]
    %v4261 = vld [vmem:[#allocation8 + $0xf0] sm:$0xff]
    %v4262 = vld [vmem:[#allocation8 + $0xf8] sm:$0xff]
    %v4263 = vld [vmem:[#allocation8 + $0x100] sm:$0xff]
    %v4264 = vld [vmem:[#allocation8 + $0x108] sm:$0xff]
    %v4265 = vld [vmem:[#allocation8 + $0x110] sm:$0xff]
    %v4266 = vld [vmem:[#allocation8 + $0x118] sm:$0xff]
    %v4267 = vld [vmem:[#allocation8 + $0x120] sm:$0xff]
    %v4268 = vld [vmem:[#allocation8 + $0x128] sm:$0xff]
    %v4269 = vld [vmem:[#allocation8 + $0x130] sm:$0xff]
    %v4270 = vld [vmem:[#allocation8 + $0x138] sm:$0xff]
    %v4271 = vld [vmem:[#allocation8 + $0x140] sm:$0xff]
    %v4272 = vld [vmem:[#allocation8 + $0x148] sm:$0xff]
    %v4273 = vld [vmem:[#allocation8 + $0x150] sm:$0xff]
    %v4274 = vld [vmem:[#allocation8 + $0x158] sm:$0xff]
    %v4275 = vld [vmem:[#allocation8 + $0x160] sm:$0xff]
    %v4276 = vld [vmem:[#allocation8 + $0x168] sm:$0xff]
    %v4277 = vld [vmem:[#allocation8 + $0x170] sm:$0xff]
    %v4278 = vld [vmem:[#allocation8 + $0x178] sm:$0xff]
    %v4279 = vld [vmem:[#allocation8 + $0x180] sm:$0xff]
    %v4280 = vld [vmem:[#allocation8 + $0x188] sm:$0xff]
    %v4281 = vld [vmem:[#allocation8 + $0x190] sm:$0xff]
    %v4282 = vld [vmem:[#allocation8 + $0x198] sm:$0xff]
    %v4283 = vld [vmem:[#allocation8 + $0x1a0] sm:$0xff]
    %v4284 = vld [vmem:[#allocation8 + $0x1a8] sm:$0xff]
    %v4285 = vld [vmem:[#allocation8 + $0x1b0] sm:$0xff]
    %v4286 = vld [vmem:[#allocation8 + $0x1b8] sm:$0xff]
    %v4287 = vld [vmem:[#allocation8 + $0x1c0] sm:$0xff]
    %v4288 = vld [vmem:[#allocation8 + $0x1c8] sm:$0xff]
    %v4289 = vld [vmem:[#allocation8 + $0x1d0] sm:$0xff]
    %v4290 = vld [vmem:[#allocation8 + $0x1d8] sm:$0xff]
    %v4291 = vld [vmem:[#allocation8 + $0x1e0] sm:$0xff]
    %v4292 = vld [vmem:[#allocation8 + $0x1e8] sm:$0xff]
    %v4293 = vld [vmem:[#allocation8 + $0x1f0] sm:$0xff]
    %v4294 = vld [vmem:[#allocation8 + $0x1f8] sm:$0xff]
    %v4295 = vld [vmem:[#allocation8 + $0x200] sm:$0xff]
    %v4296 = vld [vmem:[#allocation8 + $0x208] sm:$0xff]
    %v4297 = vld [vmem:[#allocation8 + $0x210] sm:$0xff]
    %v4298 = vld [vmem:[#allocation8 + $0x218] sm:$0xff]
    %v4299 = vld [vmem:[#allocation8 + $0x220] sm:$0xff]
    %v4300 = vld [vmem:[#allocation8 + $0x228] sm:$0xff]
    %v4301 = vld [vmem:[#allocation8 + $0x230] sm:$0xff]
    %v4302 = vld [vmem:[#allocation8 + $0x238] sm:$0xff]
    %v4303 = vld [vmem:[#allocation8 + $0x240] sm:$0xff]
    %v4304 = vld [vmem:[#allocation8 + $0x248] sm:$0xff]
    %v4305 = vld [vmem:[#allocation8 + $0x250] sm:$0xff]
    %v4306 = vld [vmem:[#allocation8 + $0x258] sm:$0xff]
    %v4307 = vld [vmem:[#allocation8 + $0x260] sm:$0xff]
    %v4308 = vld [vmem:[#allocation8 + $0x268] sm:$0xff]
    %v4309 = vld [vmem:[#allocation8 + $0x270] sm:$0xff]
    %v4310 = vld [vmem:[#allocation8 + $0x278] sm:$0xff]
    %v4311 = vld [vmem:[#allocation8 + $0x280] sm:$0xff]
    %v4312 = vld [vmem:[#allocation8 + $0x288] sm:$0xff]
    %v4313 = vld [vmem:[#allocation8 + $0x290] sm:$0xff]
    %v4314 = vld [vmem:[#allocation8 + $0x298] sm:$0xff]
    %v4315 = vld [vmem:[#allocation8 + $0x2a0] sm:$0xff]
    %v4316 = vld [vmem:[#allocation8 + $0x2a8] sm:$0xff]
    %v4317 = vld [vmem:[#allocation8 + $0x2b0] sm:$0xff]
    %v4318 = vld [vmem:[#allocation8 + $0x2b8] sm:$0xff]
    %v4319 = vld [vmem:[#allocation8 + $0x2c0] sm:$0xff]
    %v4320 = vld [vmem:[#allocation8 + $0x2c8] sm:$0xff]
    %v4321 = vld [vmem:[#allocation8 + $0x2d0] sm:$0xff]
    %v4322 = vld [vmem:[#allocation8 + $0x2d8] sm:$0xff]
    %v4323 = vld [vmem:[#allocation8 + $0x2e0] sm:$0xff]
    %v4324 = vld [vmem:[#allocation8 + $0x2e8] sm:$0xff]
    %v4325 = vld [vmem:[#allocation8 + $0x2f0] sm:$0xff]
    %v4326 = vld [vmem:[#allocation8 + $0x2f8] sm:$0xff]
    %v4327 = vld [vmem:[#allocation8 + $0x300] sm:$0xff]
    %v4328 = vld [vmem:[#allocation8 + $0x308] sm:$0xff]
    %v4329 = vld [vmem:[#allocation8 + $0x310] sm:$0xff]
    %v4330 = vld [vmem:[#allocation8 + $0x318] sm:$0xff]
    %v4331 = vld [vmem:[#allocation8 + $0x320] sm:$0xff]
    %v4332 = vld [vmem:[#allocation8 + $0x328] sm:$0xff]
    %v4333 = vld [vmem:[#allocation8 + $0x330] sm:$0xff]
    %v4334 = vld [vmem:[#allocation8 + $0x338] sm:$0xff]
    %v4335 = vld [vmem:[#allocation8 + $0x340] sm:$0xff]
    %v4336 = vld [vmem:[#allocation8 + $0x348] sm:$0xff]
    %v4337 = vld [vmem:[#allocation8 + $0x350] sm:$0xff]
    %v4338 = vld [vmem:[#allocation8 + $0x358] sm:$0xff]
    %v4339 = vld [vmem:[#allocation8 + $0x360] sm:$0xff]
    %v4340 = vld [vmem:[#allocation8 + $0x368] sm:$0xff]
    %v4341 = vld [vmem:[#allocation8 + $0x370] sm:$0xff]
    %v4342 = vld [vmem:[#allocation8 + $0x378] sm:$0xff]
    %v4343 = vld [vmem:[#allocation8 + $0x380] sm:$0xff]
    %v4344 = vld [vmem:[#allocation8 + $0x388] sm:$0xff]
    %v4345 = vld [vmem:[#allocation8 + $0x390] sm:$0xff]
    %v4346 = vld [vmem:[#allocation8 + $0x398] sm:$0xff]
    %v4347 = vld [vmem:[#allocation8 + $0x3a0] sm:$0xff]
    %v4348 = vld [vmem:[#allocation8 + $0x3a8] sm:$0xff]
    %v4349 = vld [vmem:[#allocation8 + $0x3b0] sm:$0xff]
    %v4350 = vld [vmem:[#allocation8 + $0x3b8] sm:$0xff]
    %v4351 = vld [vmem:[#allocation8 + $0x3c0] sm:$0xff]
    %v4352 = vld [vmem:[#allocation8 + $0x3c8] sm:$0xff]
    %v4353 = vld [vmem:[#allocation8 + $0x3d0] sm:$0xff]
    %v4354 = vld [vmem:[#allocation8 + $0x3d8] sm:$0xff]
    %v4355 = vld [vmem:[#allocation8 + $0x3e0] sm:$0xff]
    %v4356 = vld [vmem:[#allocation8 + $0x3e8] sm:$0xff]
    %v4357 = vld [vmem:[#allocation8 + $0x3f0] sm:$0xff]
    %v4358 = vld [vmem:[#allocation8 + $0x3f8] sm:$0xff]
    %4359 = vmatprep.subr.mxu0 %v4232
    %4360 = vmatpush1.msra.mxu0 %v4231
    %4361 = vmatprep.subr.mxu0 %v4236
    %4362 = vmatpush1.msra.mxu0 %v4235
    %4363 = vmatprep.subr.mxu0 %v4240
    %4364 = vmatpush1.msra.mxu0 %v4239
    %4365 = vmatprep.subr.mxu0 %v4244
    %4366 = vmatpush1.msra.mxu0 %v4243
    %4367 = vmatprep.subr.mxu0 %v4248
    %4368 = vmatpush1.msra.mxu0 %v4247
    %4369 = vmatprep.subr.mxu0 %v4252
    %4370 = vmatpush1.msra.mxu0 %v4251
    %4371 = vmatprep.subr.mxu0 %v4256
    %4372 = vmatpush1.msra.mxu0 %v4255
    %4373 = vmatprep.subr.mxu0 %v4260
    %4374 = vmatpush1.msra.mxu0 %v4259
    %4375 = vmatprep.subr.mxu0 %v4264
    %4376 = vmatpush1.msra.mxu0 %v4263
    %4377 = vmatprep.subr.mxu0 %v4268
    %4378 = vmatpush1.msra.mxu0 %v4267
    %4379 = vmatprep.subr.mxu0 %v4272
    %4380 = vmatpush1.msra.mxu0 %v4271
    %4381 = vmatprep.subr.mxu0 %v4276
    %4382 = vmatpush1.msra.mxu0 %v4275
    %4383 = vmatprep.subr.mxu0 %v4280
    %4384 = vmatpush1.msra.mxu0 %v4279
    %4385 = vmatprep.subr.mxu0 %v4284
    %4386 = vmatpush1.msra.mxu0 %v4283
    %4387 = vmatprep.subr.mxu0 %v4288
    %4388 = vmatpush1.msra.mxu0 %v4287
    %4389 = vmatprep.subr.mxu0 %v4292
    %4390 = vmatpush1.msra.mxu0 %v4291
    %4391 = vmatprep.subr.mxu0 %v4296
    %4392 = vmatpush1.msra.mxu0 %v4295
    %4393 = vmatprep.subr.mxu0 %v4300
    %4394 = vmatpush1.msra.mxu0 %v4299
    %4395 = vmatprep.subr.mxu0 %v4304
    %4396 = vmatpush1.msra.mxu0 %v4303
    %4397 = vmatprep.subr.mxu0 %v4308
    %4398 = vmatpush1.msra.mxu0 %v4307
    %4399 = vmatprep.subr.mxu0 %v4312
    %4400 = vmatpush1.msra.mxu0 %v4311
    %4401 = vmatprep.subr.mxu0 %v4316
    %4402 = vmatpush1.msra.mxu0 %v4315
    %4403 = vmatprep.subr.mxu0 %v4320
    %4404 = vmatpush1.msra.mxu0 %v4319
    %4405 = vmatprep.subr.mxu0 %v4324
    %4406 = vmatpush1.msra.mxu0 %v4323
    %4407 = vmatprep.subr.mxu0 %v4328
    %4408 = vmatpush1.msra.mxu0 %v4327
    %4409 = vmatprep.subr.mxu0 %v4332
    %4410 = vmatpush1.msra.mxu0 %v4331
    %4411 = vmatprep.subr.mxu0 %v4336
    %4412 = vmatpush1.msra.mxu0 %v4335
    %4413 = vmatprep.subr.mxu0 %v4340
    %4414 = vmatpush1.msra.mxu0 %v4339
    %4415 = vmatprep.subr.mxu0 %v4344
    %4416 = vmatpush1.msra.mxu0 %v4343
    %4417 = vmatprep.subr.mxu0 %v4348
    %4418 = vmatpush1.msra.mxu0 %v4347
    %4419 = vmatprep.subr.mxu0 %v4352
    %4420 = vmatpush1.msra.mxu0 %v4351
    %4421 = vmatprep.subr.mxu0 %v4356
    %4422 = vmatpush1.msra.mxu0 %v4355
    %4423 = vmatprep.mubr.f32.mxu0 %v4229
    %4424 = vmatmul.mubr.f32.gmra.mrb[0].mxu0 %v4228
    %v4425 = vpop.f32.mrb[0].mxu0
    %v4426 = vadd.f32 %v2584, %v4425
    %v4427 = vpop.f32.mrb[0].mxu0
    %v4428 = vadd.f32 %v2588, %v4427
    %4429 = vdwg.mxu0
    %4430 = vmatprep.subr.mxu0 %v4234
    %4431 = vmatpush1.msra.mxu0 %v4233
    %4432 = vmatprep.subr.mxu0 %v4238
    %4433 = vmatpush1.msra.mxu0 %v4237
    %4434 = vmatprep.subr.mxu0 %v4242
    %4435 = vmatpush1.msra.mxu0 %v4241
    %4436 = vmatprep.subr.mxu0 %v4246
    %4437 = vmatpush1.msra.mxu0 %v4245
    %4438 = vmatprep.subr.mxu0 %v4250
    %4439 = vmatpush1.msra.mxu0 %v4249
    %4440 = vmatprep.subr.mxu0 %v4254
    %4441 = vmatpush1.msra.mxu0 %v4253
    %4442 = vmatprep.subr.mxu0 %v4258
    %4443 = vmatpush1.msra.mxu0 %v4257
    %4444 = vmatprep.subr.mxu0 %v4262
    %4445 = vmatpush1.msra.mxu0 %v4261
    %4446 = vmatprep.subr.mxu0 %v4266
    %4447 = vmatpush1.msra.mxu0 %v4265
    %4448 = vmatprep.subr.mxu0 %v4270
    %4449 = vmatpush1.msra.mxu0 %v4269
    %4450 = vmatprep.subr.mxu0 %v4274
    %4451 = vmatpush1.msra.mxu0 %v4273
    %4452 = vmatprep.subr.mxu0 %v4278
    %4453 = vmatpush1.msra.mxu0 %v4277
    %4454 = vmatprep.subr.mxu0 %v4282
    %4455 = vmatpush1.msra.mxu0 %v4281
    %4456 = vmatprep.subr.mxu0 %v4286
    %4457 = vmatpush1.msra.mxu0 %v4285
    %4458 = vmatprep.subr.mxu0 %v4290
    %4459 = vmatpush1.msra.mxu0 %v4289
    %4460 = vmatprep.subr.mxu0 %v4294
    %4461 = vmatpush1.msra.mxu0 %v4293
    %4462 = vmatprep.subr.mxu0 %v4298
    %4463 = vmatpush1.msra.mxu0 %v4297
    %4464 = vmatprep.subr.mxu0 %v4302
    %4465 = vmatpush1.msra.mxu0 %v4301
    %4466 = vmatprep.subr.mxu0 %v4306
    %4467 = vmatpush1.msra.mxu0 %v4305
    %4468 = vmatprep.subr.mxu0 %v4310
    %4469 = vmatpush1.msra.mxu0 %v4309
    %4470 = vmatprep.subr.mxu0 %v4314
    %4471 = vmatpush1.msra.mxu0 %v4313
    %4472 = vmatprep.subr.mxu0 %v4318
    %4473 = vmatpush1.msra.mxu0 %v4317
    %4474 = vmatprep.subr.mxu0 %v4322
    %4475 = vmatpush1.msra.mxu0 %v4321
    %4476 = vmatprep.subr.mxu0 %v4326
    %4477 = vmatpush1.msra.mxu0 %v4325
    %4478 = vmatprep.subr.mxu0 %v4330
    %4479 = vmatpush1.msra.mxu0 %v4329
    %4480 = vmatprep.subr.mxu0 %v4334
    %4481 = vmatpush1.msra.mxu0 %v4333
    %4482 = vmatprep.subr.mxu0 %v4338
    %4483 = vmatpush1.msra.mxu0 %v4337
    %4484 = vmatprep.subr.mxu0 %v4342
    %4485 = vmatpush1.msra.mxu0 %v4341
    %4486 = vmatprep.subr.mxu0 %v4346
    %4487 = vmatpush1.msra.mxu0 %v4345
    %4488 = vmatprep.subr.mxu0 %v4350
    %4489 = vmatpush1.msra.mxu0 %v4349
    %4490 = vmatprep.subr.mxu0 %v4354
    %4491 = vmatpush1.msra.mxu0 %v4353
    %4492 = vmatprep.subr.mxu0 %v4358
    %4493 = vmatpush1.msra.mxu0 %v4357
    %4494 = vmatprep.mubr.f32.mxu0 %v4229
    %4495 = vmatmul.mubr.f32.gmra.mrb[0].mxu0 %v4228
    %v4496 = vpop.f32.mrb[0].mxu0
    %v4497 = vadd.f32 %v2592, %v4496
    %v4498 = vpop.f32.mrb[0].mxu0
    %v4499 = vadd.f32 %v2596, %v4498
    %4500 = vdwg.mxu0
    %v4501 = vmul.f32 %v4426, 0.5
    %v4502 = vtanh.pop %v4501
    %v4503 = vmul.f32 %v4502, 0.5
    %v4504 = vadd.f32 %v4503, 0.5
    %v4505 = vmul.f32 %v4428, 0.5
    %v4506 = vtanh.pop %v4505
    %v4507 = vmul.f32 %v4506, 0.5
    %v4508 = vadd.f32 %v4507, 0.5
    %v4509 = vtanh.pop %v4497
    %v4510 = vmul.f32 %v4499, 0.5
    %v4511 = vtanh.pop %v4510
    %v4512 = vmul.f32 %v4511, 0.5
    %v4513 = vadd.f32 %v4512, 0.5
    %v4514 = vmul.f32 %v4508, %v4230
    %v4515 = vmul.f32 %v4504, %v4509
    %v4516 = vadd.f32 %v4514, %v4515
    %v4517 = vtanh.pop %v4516
    %v4518 = vmul.f32 %v4513, %v4517
    %4519 = vst [vmem:[#allocation3] sm:$0xff] %v4518
    %4520 = vst [vmem:[#allocation4] sm:$0xff] %v4516
    %v4521 = vld [vmem:[%s2444] sm:$0xff]
    %v4522 = vld [vmem:[#allocation3] sm:$0xff]
    %v4523 = vld [vmem:[#allocation4] sm:$0xff]
    %v4524 = vld [vmem:[#allocation8] sm:$0xff]
    %v4525 = vld [vmem:[#allocation8 + $0x8] sm:$0xff]
    %v4526 = vld [vmem:[#allocation8 + $0x10] sm:$0xff]
    %v4527 = vld [vmem:[#allocation8 + $0x18] sm:$0xff]
    %v4528 = vld [vmem:[#allocation8 + $0x20] sm:$0xff]
    %v4529 = vld [vmem:[#allocation8 + $0x28] sm:$0xff]
    %v4530 = vld [vmem:[#allocation8 + $0x30] sm:$0xff]
    %v4531 = vld [vmem:[#allocation8 + $0x38] sm:$0xff]
    %v4532 = vld [vmem:[#allocation8 + $0x40] sm:$0xff]
    %v4533 = vld [vmem:[#allocation8 + $0x48] sm:$0xff]
    %v4534 = vld [vmem:[#allocation8 + $0x50] sm:$0xff]
    %v4535 = vld [vmem:[#allocation8 + $0x58] sm:$0xff]
    %v4536 = vld [vmem:[#allocation8 + $0x60] sm:$0xff]
    %v4537 = vld [vmem:[#allocation8 + $0x68] sm:$0xff]
    %v4538 = vld [vmem:[#allocation8 + $0x70] sm:$0xff]
    %v4539 = vld [vmem:[#allocation8 + $0x78] sm:$0xff]
    %v4540 = vld [vmem:[#allocation8 + $0x80] sm:$0xff]
    %v4541 = vld [vmem:[#allocation8 + $0x88] sm:$0xff]
    %v4542 = vld [vmem:[#allocation8 + $0x90] sm:$0xff]
    %v4543 = vld [vmem:[#allocation8 + $0x98] sm:$0xff]
    %v4544 = vld [vmem:[#allocation8 + $0xa0] sm:$0xff]
    %v4545 = vld [vmem:[#allocation8 + $0xa8] sm:$0xff]
    %v4546 = vld [vmem:[#allocation8 + $0xb0] sm:$0xff]
    %v4547 = vld [vmem:[#allocation8 + $0xb8] sm:$0xff]
    %v4548 = vld [vmem:[#allocation8 + $0xc0] sm:$0xff]
    %v4549 = vld [vmem:[#allocation8 + $0xc8] sm:$0xff]
    %v4550 = vld [vmem:[#allocation8 + $0xd0] sm:$0xff]
    %v4551 = vld [vmem:[#allocation8 + $0xd8] sm:$0xff]
    %v4552 = vld [vmem:[#allocation8 + $0xe0] sm:$0xff]
    %v4553 = vld [vmem:[#allocation8 + $0xe8] sm:$0xff]
    %v4554 = vld [vmem:[#allocation8 + $0xf0] sm:$0xff]
    %v4555 = vld [vmem:[#allocation8 + $0xf8] sm:$0xff]
    %v4556 = vld [vmem:[#allocation8 + $0x100] sm:$0xff]
    %v4557 = vld [vmem:[#allocation8 + $0x108] sm:$0xff]
    %v4558 = vld [vmem:[#allocation8 + $0x110] sm:$0xff]
    %v4559 = vld [vmem:[#allocation8 + $0x118] sm:$0xff]
    %v4560 = vld [vmem:[#allocation8 + $0x120] sm:$0xff]
    %v4561 = vld [vmem:[#allocation8 + $0x128] sm:$0xff]
    %v4562 = vld [vmem:[#allocation8 + $0x130] sm:$0xff]
    %v4563 = vld [vmem:[#allocation8 + $0x138] sm:$0xff]
    %v4564 = vld [vmem:[#allocation8 + $0x140] sm:$0xff]
    %v4565 = vld [vmem:[#allocation8 + $0x148] sm:$0xff]
    %v4566 = vld [vmem:[#allocation8 + $0x150] sm:$0xff]
    %v4567 = vld [vmem:[#allocation8 + $0x158] sm:$0xff]
    %v4568 = vld [vmem:[#allocation8 + $0x160] sm:$0xff]
    %v4569 = vld [vmem:[#allocation8 + $0x168] sm:$0xff]
    %v4570 = vld [vmem:[#allocation8 + $0x170] sm:$0xff]
    %v4571 = vld [vmem:[#allocation8 + $0x178] sm:$0xff]
    %v4572 = vld [vmem:[#allocation8 + $0x180] sm:$0xff]
    %v4573 = vld [vmem:[#allocation8 + $0x188] sm:$0xff]
    %v4574 = vld [vmem:[#allocation8 + $0x190] sm:$0xff]
    %v4575 = vld [vmem:[#allocation8 + $0x198] sm:$0xff]
    %v4576 = vld [vmem:[#allocation8 + $0x1a0] sm:$0xff]
    %v4577 = vld [vmem:[#allocation8 + $0x1a8] sm:$0xff]
    %v4578 = vld [vmem:[#allocation8 + $0x1b0] sm:$0xff]
    %v4579 = vld [vmem:[#allocation8 + $0x1b8] sm:$0xff]
    %v4580 = vld [vmem:[#allocation8 + $0x1c0] sm:$0xff]
    %v4581 = vld [vmem:[#allocation8 + $0x1c8] sm:$0xff]
    %v4582 = vld [vmem:[#allocation8 + $0x1d0] sm:$0xff]
    %v4583 = vld [vmem:[#allocation8 + $0x1d8] sm:$0xff]
    %v4584 = vld [vmem:[#allocation8 + $0x1e0] sm:$0xff]
    %v4585 = vld [vmem:[#allocation8 + $0x1e8] sm:$0xff]
    %v4586 = vld [vmem:[#allocation8 + $0x1f0] sm:$0xff]
    %v4587 = vld [vmem:[#allocation8 + $0x1f8] sm:$0xff]
    %v4588 = vld [vmem:[#allocation8 + $0x200] sm:$0xff]
    %v4589 = vld [vmem:[#allocation8 + $0x208] sm:$0xff]
    %v4590 = vld [vmem:[#allocation8 + $0x210] sm:$0xff]
    %v4591 = vld [vmem:[#allocation8 + $0x218] sm:$0xff]
    %v4592 = vld [vmem:[#allocation8 + $0x220] sm:$0xff]
    %v4593 = vld [vmem:[#allocation8 + $0x228] sm:$0xff]
    %v4594 = vld [vmem:[#allocation8 + $0x230] sm:$0xff]
    %v4595 = vld [vmem:[#allocation8 + $0x238] sm:$0xff]
    %v4596 = vld [vmem:[#allocation8 + $0x240] sm:$0xff]
    %v4597 = vld [vmem:[#allocation8 + $0x248] sm:$0xff]
    %v4598 = vld [vmem:[#allocation8 + $0x250] sm:$0xff]
    %v4599 = vld [vmem:[#allocation8 + $0x258] sm:$0xff]
    %v4600 = vld [vmem:[#allocation8 + $0x260] sm:$0xff]
    %v4601 = vld [vmem:[#allocation8 + $0x268] sm:$0xff]
    %v4602 = vld [vmem:[#allocation8 + $0x270] sm:$0xff]
    %v4603 = vld [vmem:[#allocation8 + $0x278] sm:$0xff]
    %v4604 = vld [vmem:[#allocation8 + $0x280] sm:$0xff]
    %v4605 = vld [vmem:[#allocation8 + $0x288] sm:$0xff]
    %v4606 = vld [vmem:[#allocation8 + $0x290] sm:$0xff]
    %v4607 = vld [vmem:[#allocation8 + $0x298] sm:$0xff]
    %v4608 = vld [vmem:[#allocation8 + $0x2a0] sm:$0xff]
    %v4609 = vld [vmem:[#allocation8 + $0x2a8] sm:$0xff]
    %v4610 = vld [vmem:[#allocation8 + $0x2b0] sm:$0xff]
    %v4611 = vld [vmem:[#allocation8 + $0x2b8] sm:$0xff]
    %v4612 = vld [vmem:[#allocation8 + $0x2c0] sm:$0xff]
    %v4613 = vld [vmem:[#allocation8 + $0x2c8] sm:$0xff]
    %v4614 = vld [vmem:[#allocation8 + $0x2d0] sm:$0xff]
    %v4615 = vld [vmem:[#allocation8 + $0x2d8] sm:$0xff]
    %v4616 = vld [vmem:[#allocation8 + $0x2e0] sm:$0xff]
    %v4617 = vld [vmem:[#allocation8 + $0x2e8] sm:$0xff]
    %v4618 = vld [vmem:[#allocation8 + $0x2f0] sm:$0xff]
    %v4619 = vld [vmem:[#allocation8 + $0x2f8] sm:$0xff]
    %v4620 = vld [vmem:[#allocation8 + $0x300] sm:$0xff]
    %v4621 = vld [vmem:[#allocation8 + $0x308] sm:$0xff]
    %v4622 = vld [vmem:[#allocation8 + $0x310] sm:$0xff]
    %v4623 = vld [vmem:[#allocation8 + $0x318] sm:$0xff]
    %v4624 = vld [vmem:[#allocation8 + $0x320] sm:$0xff]
    %v4625 = vld [vmem:[#allocation8 + $0x328] sm:$0xff]
    %v4626 = vld [vmem:[#allocation8 + $0x330] sm:$0xff]
    %v4627 = vld [vmem:[#allocation8 + $0x338] sm:$0xff]
    %v4628 = vld [vmem:[#allocation8 + $0x340] sm:$0xff]
    %v4629 = vld [vmem:[#allocation8 + $0x348] sm:$0xff]
    %v4630 = vld [vmem:[#allocation8 + $0x350] sm:$0xff]
    %v4631 = vld [vmem:[#allocation8 + $0x358] sm:$0xff]
    %v4632 = vld [vmem:[#allocation8 + $0x360] sm:$0xff]
    %v4633 = vld [vmem:[#allocation8 + $0x368] sm:$0xff]
    %v4634 = vld [vmem:[#allocation8 + $0x370] sm:$0xff]
    %v4635 = vld [vmem:[#allocation8 + $0x378] sm:$0xff]
    %v4636 = vld [vmem:[#allocation8 + $0x380] sm:$0xff]
    %v4637 = vld [vmem:[#allocation8 + $0x388] sm:$0xff]
    %v4638 = vld [vmem:[#allocation8 + $0x390] sm:$0xff]
    %v4639 = vld [vmem:[#allocation8 + $0x398] sm:$0xff]
    %v4640 = vld [vmem:[#allocation8 + $0x3a0] sm:$0xff]
    %v4641 = vld [vmem:[#allocation8 + $0x3a8] sm:$0xff]
    %v4642 = vld [vmem:[#allocation8 + $0x3b0] sm:$0xff]
    %v4643 = vld [vmem:[#allocation8 + $0x3b8] sm:$0xff]
    %v4644 = vld [vmem:[#allocation8 + $0x3c0] sm:$0xff]
    %v4645 = vld [vmem:[#allocation8 + $0x3c8] sm:$0xff]
    %v4646 = vld [vmem:[#allocation8 + $0x3d0] sm:$0xff]
    %v4647 = vld [vmem:[#allocation8 + $0x3d8] sm:$0xff]
    %v4648 = vld [vmem:[#allocation8 + $0x3e0] sm:$0xff]
    %v4649 = vld [vmem:[#allocation8 + $0x3e8] sm:$0xff]
    %v4650 = vld [vmem:[#allocation8 + $0x3f0] sm:$0xff]
    %v4651 = vld [vmem:[#allocation8 + $0x3f8] sm:$0xff]
    %4652 = vmatprep.subr.mxu0 %v4525
    %4653 = vmatpush1.msra.mxu0 %v4524
    %4654 = vmatprep.subr.mxu0 %v4529
    %4655 = vmatpush1.msra.mxu0 %v4528
    %4656 = vmatprep.subr.mxu0 %v4533
    %4657 = vmatpush1.msra.mxu0 %v4532
    %4658 = vmatprep.subr.mxu0 %v4537
    %4659 = vmatpush1.msra.mxu0 %v4536
    %4660 = vmatprep.subr.mxu0 %v4541
    %4661 = vmatpush1.msra.mxu0 %v4540
    %4662 = vmatprep.subr.mxu0 %v4545
    %4663 = vmatpush1.msra.mxu0 %v4544
    %4664 = vmatprep.subr.mxu0 %v4549
    %4665 = vmatpush1.msra.mxu0 %v4548
    %4666 = vmatprep.subr.mxu0 %v4553
    %4667 = vmatpush1.msra.mxu0 %v4552
    %4668 = vmatprep.subr.mxu0 %v4557
    %4669 = vmatpush1.msra.mxu0 %v4556
    %4670 = vmatprep.subr.mxu0 %v4561
    %4671 = vmatpush1.msra.mxu0 %v4560
    %4672 = vmatprep.subr.mxu0 %v4565
    %4673 = vmatpush1.msra.mxu0 %v4564
    %4674 = vmatprep.subr.mxu0 %v4569
    %4675 = vmatpush1.msra.mxu0 %v4568
    %4676 = vmatprep.subr.mxu0 %v4573
    %4677 = vmatpush1.msra.mxu0 %v4572
    %4678 = vmatprep.subr.mxu0 %v4577
    %4679 = vmatpush1.msra.mxu0 %v4576
    %4680 = vmatprep.subr.mxu0 %v4581
    %4681 = vmatpush1.msra.mxu0 %v4580
    %4682 = vmatprep.subr.mxu0 %v4585
    %4683 = vmatpush1.msra.mxu0 %v4584
    %4684 = vmatprep.subr.mxu0 %v4589
    %4685 = vmatpush1.msra.mxu0 %v4588
    %4686 = vmatprep.subr.mxu0 %v4593
    %4687 = vmatpush1.msra.mxu0 %v4592
    %4688 = vmatprep.subr.mxu0 %v4597
    %4689 = vmatpush1.msra.mxu0 %v4596
    %4690 = vmatprep.subr.mxu0 %v4601
    %4691 = vmatpush1.msra.mxu0 %v4600
    %4692 = vmatprep.subr.mxu0 %v4605
    %4693 = vmatpush1.msra.mxu0 %v4604
    %4694 = vmatprep.subr.mxu0 %v4609
    %4695 = vmatpush1.msra.mxu0 %v4608
    %4696 = vmatprep.subr.mxu0 %v4613
    %4697 = vmatpush1.msra.mxu0 %v4612
    %4698 = vmatprep.subr.mxu0 %v4617
    %4699 = vmatpush1.msra.mxu0 %v4616
    %4700 = vmatprep.subr.mxu0 %v4621
    %4701 = vmatpush1.msra.mxu0 %v4620
    %4702 = vmatprep.subr.mxu0 %v4625
    %4703 = vmatpush1.msra.mxu0 %v4624
    %4704 = vmatprep.subr.mxu0 %v4629
    %4705 = vmatpush1.msra.mxu0 %v4628
    %4706 = vmatprep.subr.mxu0 %v4633
    %4707 = vmatpush1.msra.mxu0 %v4632
    %4708 = vmatprep.subr.mxu0 %v4637
    %4709 = vmatpush1.msra.mxu0 %v4636
    %4710 = vmatprep.subr.mxu0 %v4641
    %4711 = vmatpush1.msra.mxu0 %v4640
    %4712 = vmatprep.subr.mxu0 %v4645
    %4713 = vmatpush1.msra.mxu0 %v4644
    %4714 = vmatprep.subr.mxu0 %v4649
    %4715 = vmatpush1.msra.mxu0 %v4648
    %4716 = vmatprep.mubr.f32.mxu0 %v4522
    %4717 = vmatmul.mubr.f32.gmra.mrb[0].mxu0 %v4521
    %v4718 = vpop.f32.mrb[0].mxu0
    %v4719 = vadd.f32 %v2584, %v4718
    %v4720 = vpop.f32.mrb[0].mxu0
    %v4721 = vadd.f32 %v2588, %v4720
    %4722 = vdwg.mxu0
    %4723 = vmatprep.subr.mxu0 %v4527
    %4724 = vmatpush1.msra.mxu0 %v4526
    %4725 = vmatprep.subr.mxu0 %v4531
    %4726 = vmatpush1.msra.mxu0 %v4530
    %4727 = vmatprep.subr.mxu0 %v4535
    %4728 = vmatpush1.msra.mxu0 %v4534
    %4729 = vmatprep.subr.mxu0 %v4539
    %4730 = vmatpush1.msra.mxu0 %v4538
    %4731 = vmatprep.subr.mxu0 %v4543
    %4732 = vmatpush1.msra.mxu0 %v4542
    %4733 = vmatprep.subr.mxu0 %v4547
    %4734 = vmatpush1.msra.mxu0 %v4546
    %4735 = vmatprep.subr.mxu0 %v4551
    %4736 = vmatpush1.msra.mxu0 %v4550
    %4737 = vmatprep.subr.mxu0 %v4555
    %4738 = vmatpush1.msra.mxu0 %v4554
    %4739 = vmatprep.subr.mxu0 %v4559
    %4740 = vmatpush1.msra.mxu0 %v4558
    %4741 = vmatprep.subr.mxu0 %v4563
    %4742 = vmatpush1.msra.mxu0 %v4562
    %4743 = vmatprep.subr.mxu0 %v4567
    %4744 = vmatpush1.msra.mxu0 %v4566
    %4745 = vmatprep.subr.mxu0 %v4571
    %4746 = vmatpush1.msra.mxu0 %v4570
    %4747 = vmatprep.subr.mxu0 %v4575
    %4748 = vmatpush1.msra.mxu0 %v4574
    %4749 = vmatprep.subr.mxu0 %v4579
    %4750 = vmatpush1.msra.mxu0 %v4578
    %4751 = vmatprep.subr.mxu0 %v4583
    %4752 = vmatpush1.msra.mxu0 %v4582
    %4753 = vmatprep.subr.mxu0 %v4587
    %4754 = vmatpush1.msra.mxu0 %v4586
    %4755 = vmatprep.subr.mxu0 %v4591
    %4756 = vmatpush1.msra.mxu0 %v4590
    %4757 = vmatprep.subr.mxu0 %v4595
    %4758 = vmatpush1.msra.mxu0 %v4594
    %4759 = vmatprep.subr.mxu0 %v4599
    %4760 = vmatpush1.msra.mxu0 %v4598
    %4761 = vmatprep.subr.mxu0 %v4603
    %4762 = vmatpush1.msra.mxu0 %v4602
    %4763 = vmatprep.subr.mxu0 %v4607
    %4764 = vmatpush1.msra.mxu0 %v4606
    %4765 = vmatprep.subr.mxu0 %v4611
    %4766 = vmatpush1.msra.mxu0 %v4610
    %4767 = vmatprep.subr.mxu0 %v4615
    %4768 = vmatpush1.msra.mxu0 %v4614
    %4769 = vmatprep.subr.mxu0 %v4619
    %4770 = vmatpush1.msra.mxu0 %v4618
    %4771 = vmatprep.subr.mxu0 %v4623
    %4772 = vmatpush1.msra.mxu0 %v4622
    %4773 = vmatprep.subr.mxu0 %v4627
    %4774 = vmatpush1.msra.mxu0 %v4626
    %4775 = vmatprep.subr.mxu0 %v4631
    %4776 = vmatpush1.msra.mxu0 %v4630
    %4777 = vmatprep.subr.mxu0 %v4635
    %4778 = vmatpush1.msra.mxu0 %v4634
    %4779 = vmatprep.subr.mxu0 %v4639
    %4780 = vmatpush1.msra.mxu0 %v4638
    %4781 = vmatprep.subr.mxu0 %v4643
    %4782 = vmatpush1.msra.mxu0 %v4642
    %4783 = vmatprep.subr.mxu0 %v4647
    %4784 = vmatpush1.msra.mxu0 %v4646
    %4785 = vmatprep.subr.mxu0 %v4651
    %4786 = vmatpush1.msra.mxu0 %v4650
    %4787 = vmatprep.mubr.f32.mxu0 %v4522
    %4788 = vmatmul.mubr.f32.gmra.mrb[0].mxu0 %v4521
    %v4789 = vpop.f32.mrb[0].mxu0
    %v4790 = vadd.f32 %v2592, %v4789
    %v4791 = vpop.f32.mrb[0].mxu0
    %v4792 = vadd.f32 %v2596, %v4791
    %4793 = vdwg.mxu0
    %v4794 = vmul.f32 %v4719, 0.5
    %v4795 = vtanh.pop %v4794
    %v4796 = vmul.f32 %v4795, 0.5
    %v4797 = vadd.f32 %v4796, 0.5
    %v4798 = vmul.f32 %v4721, 0.5
    %v4799 = vtanh.pop %v4798
    %v4800 = vmul.f32 %v4799, 0.5
    %v4801 = vadd.f32 %v4800, 0.5
    %v4802 = vtanh.pop %v4790
    %v4803 = vmul.f32 %v4792, 0.5
    %v4804 = vtanh.pop %v4803
    %v4805 = vmul.f32 %v4804, 0.5
    %v4806 = vadd.f32 %v4805, 0.5
    %v4807 = vmul.f32 %v4801, %v4523
    %v4808 = vmul.f32 %v4797, %v4802
    %v4809 = vadd.f32 %v4807, %v4808
    %v4810 = vtanh.pop %v4809
    %v4811 = vmul.f32 %v4806, %v4810
    %4812 = vst [vmem:[#allocation3] sm:$0xff] %v4811
    %4813 = vst [vmem:[#allocation4] sm:$0xff] %v4809
    %v4814 = vld [vmem:[#allocation3] sm:$0xff]
    %v4815 = vld [vmem:[%s5] sm:$0x1]
    %v4817 = vlaneseq
    %v4818 = vshrl.u32 %v4817, 7
    %v4819 = vsub.s32 0, %v4818
    %v4820 = vrot.slane %v4815, %v4819
    %v4822 = vmul.f32 %v4814, %v4820
    %4823 = vadd.xlane.f32.xlu0 %v4822
    %v4824 = vpop.xlane.xlu0 %4823
    %v4825 = vld [vmem:[#allocation5] sm:$0x1]
    %v4827 = vlaneseq
    %v4828 = vshrl.u32 %v4827, 7
    %v4829 = vsub.s32 0, %v4828
    %v4830 = vrot.slane %v4825, %v4829
    %v4832 = vadd.f32 %v4824, %v4830
    %v4833 = vmul.f32 %v4832, 0.5
    %v4834 = vtanh.pop %v4833
    %v4835 = vmul.f32 %v4834, 0.5
    %v4836 = vadd.f32 %v4835, 0.5
    %vm4837 = vcmask 7168
    %4838 = vst.msk [vmem:[%s7] sm:$0xff] %vm4837, %v4836
    // Predicated region
    $region38: #{lstm_model_forward.1} parent=1 // pred_check
      _
    $region39: #{lstm_model_forward.1} parent=1 // pred_check_branch
      %4840 = sbr.rel (0) target = $region41
    $region40: #{lstm_model_forward.1} parent=1 // pred_region
      _
    $region41: #{lstm_model_forward.1} parent=1 // pred_fallthru
      _
    // Predicated region
    $region42: #{lstm_model_forward.1} parent=1 // pred_check
      _
    $region43: #{lstm_model_forward.1} parent=1 // pred_check_branch
      %4842 = sbr.rel (0) target = $region45
    $region44: #{lstm_model_forward.1} parent=1 // pred_region
      _
    $region45: #{lstm_model_forward.1} parent=1 // pred_fallthru
      _
    %4843 = vsyncpa [#allocation7], 1
    %4844 = vsyncpa [#allocation9], 1

</llo_original>
